<compile_context>
chip_gen: v7x
topology: tpu7x:2x2x1
jax: 0.10.0
libtpu: 0.0.40
codegen_flags: <defaults>
</compile_context>

<pallas_src>
import numpy as np
import jax
import jax.numpy as jnp
from jax.experimental import pallas as pl
from jax.experimental.pallas import tpu as pltpu

BATCH = 2
LENGTH = 16
N_CHANNELS_IN = 4
N_CHANNELS_OUT = 1
N_FILTERS_KS3 = [16, 16]
N_FILTERS_KS1 = [[8], [], [16]]      # len == len(N_FILTERS_KS3) + 1

EPS = 1e-5                           # BatchNorm eps
_HI = jax.lax.Precision.HIGHEST

# Padded channel width inside the kernel: smallest multiple of 8 covering all
# real channel counts of this config.
_ALL_C = [N_CHANNELS_IN, N_CHANNELS_OUT] + list(N_FILTERS_KS3) + \
         [c for grp in N_FILTERS_KS1 for c in grp]
CPAD = max(8, int(np.ceil(max(_ALL_C) / 8.0)) * 8)


# ------------------------------ fused kernel --------------------------------

def make_fused_kernel(plan, *, N, L, Cin, Cout):
    """plan: static tuple of ops ('block_add'|'block_cat'|'conv3'|'final', idx...)."""
    NL = N * L

    def mm(a, b):
        return jnp.dot(a, b, preferred_element_type=jnp.float32, precision=_HI)

    def kernel(x_ref, w11_ref, w33_ref, vec_ref, perm_ref, o_ref):
        # Host-built (NL, NL) block-diagonal circular-shift permutations:
        #   (h @ p_m1)[:, b*L + l] = h[:, b*L + (l-1) mod L]
        #   (h @ p_p1)[:, b*L + l] = h[:, b*L + (l+1) mod L]
        p_m1 = perm_ref[0]
        p_p1 = perm_ref[1]

        def vcol(i):                          # per-channel column, (CPAD, 1)
            return vec_ref[i]

        def conv1x1(h, wi, bi):
            return mm(w11_ref[wi], h) + vcol(bi)

        def bn(h, gi, bi, relu=True):         # training-mode batch stats over (N, L)
            cnt = float(NL)
            mean = jnp.sum(h, axis=1, keepdims=True) / cnt
            var = jnp.sum((h - mean) ** 2, axis=1, keepdims=True) / cnt
            y = (h - mean) * (jax.lax.rsqrt(var + EPS) * vcol(gi)) + vcol(bi)
            return jnp.maximum(y, 0.0) if relu else y

        def conv3_relu(h, wi, bi):            # circular K=3, pad_left = 1
            slab = jnp.concatenate([mm(h, p_m1), h, mm(h, p_p1)], axis=0)  # (3*CPAD, NL)
            return jnp.maximum(mm(w33_ref[wi], slab) + vcol(bi), 0.0)

        # ---- load input (N, Cin, L) -> single (CPAD, N*L) tile -------------
        x_cat = jnp.concatenate([x_ref[n].astype(jnp.float32) for n in range(N)],
                                axis=1)                                  # (Cin, NL)
        h = jnp.concatenate(
            [x_cat, jnp.zeros((CPAD - Cin, NL), jnp.float32)], axis=0)  # (CPAD, NL)

        for op in plan:
            kind = op[0]
            if kind == "block_add":           # additive ResNetBlock + outer ReLU
                _, w1, b1, g1, be1, w2, b2, g2, be2 = op
                z = bn(conv1x1(h, w1, b1), g1, be1)
                y = bn(conv1x1(z, w2, b2), g2, be2)
                h = jnp.maximum(h + y, 0.0)
            elif kind == "block_cat":         # non-additive block (concat via split W)
                (_, w1, b1, g1, be1, w2, b2, g2, be2,
                 wa, wb, b3, g3, be3) = op
                z = bn(conv1x1(h, w1, b1), g1, be1)
                z = bn(conv1x1(z, w2, b2), g2, be2)
                y = mm(w11_ref[wa], h) + mm(w11_ref[wb], z) + vcol(b3)
                h = bn(y, g3, be3)            # block ReLU; idempotent wrt outer ReLU
            elif kind == "conv3":             # relu(layer3x3(x))
                _, wi, bi = op
                h = conv3_relu(h, wi, bi)
            else:                             # 'final' 1x1 conv, no ReLU
                _, wf, bf = op
                y = mm(w11_ref[wf], h) + vcol(bf)
                for n in range(N):
                    o_ref[n] = y[:Cout, n * L:(n + 1) * L].astype(o_ref.dtype)
        # TODO(synk): direct_shortcut=True branch (final(x) + input) not exercised here.

    return kernel


def build_perm(N, L):
    """(2, N*L, N*L): block-diagonal circular -1 / +1 shift permutations."""
    NL = N * L
    p_m1 = np.zeros((NL, NL), np.float32)
    p_p1 = np.zeros((NL, NL), np.float32)
    for b in range(N):
        for l in range(L):
            c = b * L + l
            p_m1[b * L + (l - 1) % L, c] = 1.0
            p_p1[b * L + (l + 1) % L, c] = 1.0
    return jnp.asarray(np.stack([p_m1, p_p1]))


def resnet_forward_fused(packed, x_ncl):
    """x_ncl: (N, Cin, L) in PyTorch NCL layout -> (N, Cout, L)."""
    N, Cin, L = x_ncl.shape
    Cout = packed["cout"]
    w11, w33, vec = packed["w11"], packed["w33"], packed["vec"]
    perm = build_perm(N, L)
    kernel = make_fused_kernel(packed["plan"], N=N, L=L, Cin=Cin, Cout=Cout)
    return pl.pallas_call(
        kernel,
        out_shape=jax.ShapeDtypeStruct((N, Cout, L), jnp.float32),
        grid=(1,),
        in_specs=[pl.BlockSpec(x_ncl.shape, lambda i: (0, 0, 0)),
                  pl.BlockSpec(w11.shape, lambda i: (0, 0, 0)),
                  pl.BlockSpec(w33.shape, lambda i: (0, 0, 0)),
                  pl.BlockSpec(vec.shape, lambda i: (0, 0, 0)),
                  pl.BlockSpec(perm.shape, lambda i: (0, 0, 0))],
        out_specs=pl.BlockSpec((N, Cout, L), lambda i: (0, 0, 0)),
        compiler_params=pltpu.CompilerParams(
            dimension_semantics=("arbitrary",)),
    )(x_ncl, w11, w33, vec, perm)


# ----------------------- parameter packing for the kernel -------------------

def pack_params(params, cout_final):
    """Pack natural-layout params into 3 dense arrays + a static op plan."""
    w11_list, w33_list, vec_list = [], [], []

    def add_w11(w_io):                        # (cin, cout) -> padded transpose
        cin, cout = w_io.shape
        assert max(cin, cout) <= CPAD
        m = np.zeros((CPAD, CPAD), np.float32)
        m[:cout, :cin] = np.asarray(w_io).T
        w11_list.append(m)
        return len(w11_list) - 1

    def add_w33(w_kio):                       # (3, cin, cout)
        K, cin, cout = w_kio.shape
        assert max(cin, cout) <= CPAD
        m = np.zeros((CPAD, K * CPAD), np.float32)
        wn = np.asarray(w_kio)
        for k in range(K):
            m[:cout, k * CPAD:k * CPAD + cin] = wn[k].T
        w33_list.append(m)
        return len(w33_list) - 1

    def add_vec(v):                           # (1, c) or (c,) -> (CPAD, 1) column
        vv = np.asarray(v).reshape(-1)
        c = np.zeros((CPAD, 1), np.float32)
        c[:vv.shape[0], 0] = vv
        vec_list.append(c)
        return len(vec_list) - 1

    def block_entry(p):
        base = (add_w11(p['w1'][0]), add_vec(p['b1']), add_vec(p['g1']), add_vec(p['be1']),
                add_w11(p['w2'][0]), add_vec(p['b2']), add_vec(p['g2']), add_vec(p['be2']))
        if p['additive']:
            return ('block_add',) + base
        cin = p['w1'].shape[1]
        w1x1 = np.asarray(p['w1x1'][0])       # (cin + cz, cout): rows = [x ; z]
        return ('block_cat',) + base + (
            add_w11(w1x1[:cin]), add_w11(w1x1[cin:]), add_vec(p['b1x1']),
            add_vec(p['g1x1']), add_vec(p['be1x1']))

    plan = []
    for p in params['blocks'][0]:
        plan.append(block_entry(p))
    for i, c3 in enumerate(params['convs3']):
        plan.append(('conv3', add_w33(c3['w']), add_vec(c3['b'])))
        for p in params['blocks'][i + 1]:
            plan.append(block_entry(p))
    plan.append(('final', add_w11(params['final']['w'][0]), add_vec(params['final']['b'])))

    if not w33_list:
        w33_list.append(np.zeros((CPAD, 3 * CPAD), np.float32))
    return {
        'plan': tuple(plan),
        'w11': jnp.asarray(np.stack(w11_list)),          # (n11, CPAD, CPAD)
        'w33': jnp.asarray(np.stack(w33_list)),          # (n33, CPAD, 3*CPAD)
        'vec': jnp.asarray(np.stack(vec_list)),          # (nvec, CPAD, 1)
        'cout': cout_final,
    }


# ---------------------------- pure-JAX reference ----------------------------

def conv1d_ref(x, w_kio, bias):
    """Circular conv, NLC layout. x: (N,L,Cin), w: (K,Cin,Cout), bias: (1,Cout)."""
    N, L, Cin = x.shape
    K = w_kio.shape[0]
    pad_left = K // 2                          # PeriodicConv1D circular padding
    pos = (jnp.arange(L)[:, None] + jnp.arange(K)[None, :] - pad_left) % L
    gathered = x[:, pos, :]                    # (N, L, K, Cin)
    return jnp.einsum('nlkc,kcd->nld', gathered, w_kio, precision=_HI) + bias


def bn_relu_ref(x, gamma, beta):
    mean = jnp.mean(x, axis=(0, 1), keepdims=True)
    var = jnp.mean((x - mean) ** 2, axis=(0, 1), keepdims=True)
    y = (x - mean) * jax.lax.rsqrt(var + EPS) * gamma + beta
    return jnp.maximum(y, 0.0)


def resnet_block_ref(p, x):
    z = bn_relu_ref(conv1d_ref(x, p['w1'], p['b1']), p['g1'], p['be1'])
    h = conv1d_ref(z, p['w2'], p['b2'])
    if p['additive']:
        return jnp.maximum(x + bn_relu_ref(h, p['g2'], p['be2']), 0.0)
    z2 = bn_relu_ref(h, p['g2'], p['be2'])
    cat = jnp.concatenate([x, z2], axis=-1)
    return bn_relu_ref(conv1d_ref(cat, p['w1x1'], p['b1x1']), p['g1x1'], p['be1x1'])


def resnet_ref(params, x_ncl):
    x = jnp.transpose(x_ncl, (0, 2, 1))        # NCL -> NLC
    for p in params['blocks'][0]:
        x = resnet_block_ref(p, x)
    for i, c3 in enumerate(params['convs3']):
        x = jnp.maximum(conv1d_ref(x, c3['w'], c3['b']), 0.0)
        for p in params['blocks'][i + 1]:
            x = resnet_block_ref(p, x)
    y = conv1d_ref(x, params['final']['w'], params['final']['b'])
    return jnp.transpose(y, (0, 2, 1))         # NLC -> NCL


# --------------------------- parameter construction -------------------------

def init_conv(key, cin, cout, k):
    kw, kb = jax.random.split(key)
    scale = 1.0 / np.sqrt(cin * k)
    w = scale * jax.random.normal(kw, (k, cin, cout), jnp.float32)   # (K, Cin, Cout)
    b = scale * jax.random.normal(kb, (1, cout), jnp.float32)
    return w, b


def init_bn(key, c):
    kg, kb = jax.random.split(key)
    gamma = 1.0 + 0.1 * jax.random.normal(kg, (1, c), jnp.float32)
    beta = 0.1 * jax.random.normal(kb, (1, c), jnp.float32)
    return gamma, beta


def init_block(key, cin, cout):
    # hidden_channels=None -> hidden == out; n_out_conv2 == out in both branches.
    additive = (cout == cin)
    k1, k2, k3, k4, k5, k6 = jax.random.split(key, 6)
    p = {'additive': additive}
    p['w1'], p['b1'] = init_conv(k1, cin, cout, 1)
    p['w2'], p['b2'] = init_conv(k2, cout, cout, 1)
    p['g1'], p['be1'] = init_bn(k3, cout)
    p['g2'], p['be2'] = init_bn(k4, cout)
    if not additive:
        p['w1x1'], p['b1x1'] = init_conv(k5, cin + cout, cout, 1)
        p['g1x1'], p['be1x1'] = init_bn(k6, cout)
    return p


def init_resnet(key):
    keys = iter(jax.random.split(key, 64))
    params = {'blocks': [], 'convs3': []}
    n_in = N_CHANNELS_IN
    for i in range(len(N_FILTERS_KS1)):
        blks = []
        for cout in N_FILTERS_KS1[i]:
            blks.append(init_block(next(keys), n_in, cout))
            n_in = cout
        params['blocks'].append(blks)
        if i < len(N_FILTERS_KS3):
            cout = N_FILTERS_KS3[i]
            w, b = init_conv(next(keys), n_in, cout, 3)
            params['convs3'].append({'w': w, 'b': b})
            n_in = cout
    wf, bf = init_conv(next(keys), n_in, N_CHANNELS_OUT, 1)
    params['final'] = {'w': wf, 'b': bf}
    return params


# ----------------------------------- main -----------------------------------

if __name__ == "__main__":
    key = jax.random.PRNGKey(0)
    kp, kx = jax.random.split(key)
    params = init_resnet(kp)
    packed = pack_params(params, N_CHANNELS_OUT)

    # PyTorch NCL input: (batch, channels_in, length)
    x = jax.random.normal(kx, (BATCH, N_CHANNELS_IN, LENGTH), jnp.float32)

    y = jax.block_until_ready(resnet_forward_fused(packed, x))
    y_ref = jax.block_until_ready(resnet_ref(params, x))

    assert y.shape == (BATCH, N_CHANNELS_OUT, LENGTH), y.shape
    err = float(np.max(np.abs(np.asarray(y) - np.asarray(y_ref))))
    if not np.allclose(np.asarray(y), np.asarray(y_ref), rtol=1e-3, atol=1e-3):
        raise SystemExit("mismatch vs reference, max abs diff = %g" % err)
    print("KERNEL_OK")
</pallas_src>

<mosaic_0001>
module attributes {stable_mosaic.version = 11 : i64} {
  func.func @kernel(%arg0: i32, %arg1: memref<2x4x16xf32, #tpu.memory_space<vmem>>, %arg2: memref<7x16x16xf32, #tpu.memory_space<vmem>>, %arg3: memref<2x16x48xf32, #tpu.memory_space<vmem>>, %arg4: memref<18x16x1xf32, #tpu.memory_space<vmem>>, %arg5: memref<2x32x32xf32, #tpu.memory_space<vmem>>, %arg6: memref<2x1x16xf32, #tpu.memory_space<vmem>>) attributes {dimension_semantics = [#tpu.dimension_semantics<arbitrary>], iteration_bounds = array<i64: 1>, scalar_prefetch = 0 : i64, scratch_operands = 0 : i64, tpu.core_type = #tpu.core_type<tc>, window_params = [{pipeline_mode = #tpu.pipeline_mode<synchronous>, transform_indices = @transform_0, window_bounds = array<i64: 2, 4, 16>}, {pipeline_mode = #tpu.pipeline_mode<synchronous>, transform_indices = @transform_1, window_bounds = array<i64: 7, 16, 16>}, {pipeline_mode = #tpu.pipeline_mode<synchronous>, transform_indices = @transform_2, window_bounds = array<i64: 2, 16, 48>}, {pipeline_mode = #tpu.pipeline_mode<synchronous>, transform_indices = @transform_3, window_bounds = array<i64: 18, 16, 1>}, {pipeline_mode = #tpu.pipeline_mode<synchronous>, transform_indices = @transform_4, window_bounds = array<i64: 2, 32, 32>}, {pipeline_mode = #tpu.pipeline_mode<synchronous>, transform_indices = @transform_5, window_bounds = array<i64: 2, 1, 16>}]} {
    %c0 = arith.constant 0 : index
    %c0_0 = arith.constant 0 : index
    %c0_1 = arith.constant 0 : index
    %0 = vector.load %arg5[%c0, %c0_0, %c0_1] : memref<2x32x32xf32, #tpu.memory_space<vmem>>, vector<1x32x32xf32>
    %1 = vector.shape_cast %0 : vector<1x32x32xf32> to vector<32x32xf32>
    %c1 = arith.constant 1 : index
    %c0_2 = arith.constant 0 : index
    %c0_3 = arith.constant 0 : index
    %2 = vector.load %arg5[%c1, %c0_2, %c0_3] : memref<2x32x32xf32, #tpu.memory_space<vmem>>, vector<1x32x32xf32>
    %3 = vector.shape_cast %2 : vector<1x32x32xf32> to vector<32x32xf32>
    %c0_4 = arith.constant 0 : index
    %c0_5 = arith.constant 0 : index
    %c0_6 = arith.constant 0 : index
    %4 = vector.load %arg1[%c0_4, %c0_5, %c0_6] : memref<2x4x16xf32, #tpu.memory_space<vmem>>, vector<1x4x16xf32>
    %5 = vector.shape_cast %4 : vector<1x4x16xf32> to vector<4x16xf32>
    %c1_7 = arith.constant 1 : index
    %c0_8 = arith.constant 0 : index
    %c0_9 = arith.constant 0 : index
    %6 = vector.load %arg1[%c1_7, %c0_8, %c0_9] : memref<2x4x16xf32, #tpu.memory_space<vmem>>, vector<1x4x16xf32>
    %7 = vector.shape_cast %6 : vector<1x4x16xf32> to vector<4x16xf32>
    %8 = tpu.concatenate %5, %7 in 1 : vector<4x16xf32>, vector<4x16xf32> -> vector<4x32xf32>
    %cst = arith.constant 0.000000e+00 : f32
    %9 = vector.broadcast %cst : f32 to vector<12x32xf32>
    %10 = tpu.concatenate %8, %9 in 0 : vector<4x32xf32>, vector<12x32xf32> -> vector<16x32xf32>
    %c0_10 = arith.constant 0 : index
    %c0_11 = arith.constant 0 : index
    %c0_12 = arith.constant 0 : index
    %11 = vector.load %arg2[%c0_10, %c0_11, %c0_12] : memref<7x16x16xf32, #tpu.memory_space<vmem>>, vector<1x16x16xf32>
    %12 = vector.shape_cast %11 : vector<1x16x16xf32> to vector<16x16xf32>
    %cst_13 = arith.constant dense<0.000000e+00> : vector<16x32xf32>
    %13 = tpu.matmul %12, %10, %cst_13 {dimension_numbers = #tpu.dot_dimension_numbers<[1], [0], [0], [1], [0, 0, 1, 1], [], []>, precision = #tpu.contract_precision<fp32>} : vector<16x16xf32>, vector<16x32xf32>, vector<16x32xf32> -> vector<16x32xf32>
    %c0_14 = arith.constant 0 : index
    %c0_15 = arith.constant 0 : index
    %c0_16 = arith.constant 0 : index
    %14 = vector.load %arg4[%c0_14, %c0_15, %c0_16] : memref<18x16x1xf32, #tpu.memory_space<vmem>>, vector<1x16x1xf32>
    %15 = vector.shape_cast %14 : vector<1x16x1xf32> to vector<16x1xf32>
    %16 = vector.broadcast %15 : vector<16x1xf32> to vector<16x32xf32>
    %17 = arith.addf %13, %16 : vector<16x32xf32>
    %cst_17 = arith.constant dense<0.000000e+00> : vector<16xf32>
    %18 = vector.multi_reduction <add>, %17, %cst_17 [1] : vector<16x32xf32> to vector<16xf32>
    %19 = vector.shape_cast %18 : vector<16xf32> to vector<16x1xf32>
    %cst_18 = arith.constant 3.200000e+01 : f32
    %20 = vector.broadcast %cst_18 : f32 to vector<16x1xf32>
    %21 = arith.divf %19, %20 : vector<16x1xf32>
    %22 = vector.broadcast %21 : vector<16x1xf32> to vector<16x32xf32>
    %23 = arith.subf %17, %22 : vector<16x32xf32>
    %24 = arith.mulf %23, %23 : vector<16x32xf32>
    %cst_19 = arith.constant dense<0.000000e+00> : vector<16xf32>
    %25 = vector.multi_reduction <add>, %24, %cst_19 [1] : vector<16x32xf32> to vector<16xf32>
    %26 = vector.shape_cast %25 : vector<16xf32> to vector<16x1xf32>
    %cst_20 = arith.constant 3.200000e+01 : f32
    %27 = vector.broadcast %cst_20 : f32 to vector<16x1xf32>
    %28 = arith.divf %26, %27 : vector<16x1xf32>
    %29 = vector.broadcast %21 : vector<16x1xf32> to vector<16x32xf32>
    %30 = arith.subf %17, %29 : vector<16x32xf32>
    %cst_21 = arith.constant 9.99999974E-6 : f32
    %31 = vector.broadcast %cst_21 : f32 to vector<16x1xf32>
    %32 = arith.addf %28, %31 : vector<16x1xf32>
    %33 = math.rsqrt %32 : vector<16x1xf32>
    %c1_22 = arith.constant 1 : index
    %c0_23 = arith.constant 0 : index
    %c0_24 = arith.constant 0 : index
    %34 = vector.load %arg4[%c1_22, %c0_23, %c0_24] : memref<18x16x1xf32, #tpu.memory_space<vmem>>, vector<1x16x1xf32>
    %35 = vector.shape_cast %34 : vector<1x16x1xf32> to vector<16x1xf32>
    %36 = arith.mulf %33, %35 : vector<16x1xf32>
    %37 = vector.broadcast %36 : vector<16x1xf32> to vector<16x32xf32>
    %38 = arith.mulf %30, %37 : vector<16x32xf32>
    %c2 = arith.constant 2 : index
    %c0_25 = arith.constant 0 : index
    %c0_26 = arith.constant 0 : index
    %39 = vector.load %arg4[%c2, %c0_25, %c0_26] : memref<18x16x1xf32, #tpu.memory_space<vmem>>, vector<1x16x1xf32>
    %40 = vector.shape_cast %39 : vector<1x16x1xf32> to vector<16x1xf32>
    %41 = vector.broadcast %40 : vector<16x1xf32> to vector<16x32xf32>
    %42 = arith.addf %38, %41 : vector<16x32xf32>
    %cst_27 = arith.constant 0.000000e+00 : f32
    %43 = vector.broadcast %cst_27 : f32 to vector<16x32xf32>
    %44 = arith.maximumf %42, %43 : vector<16x32xf32>
    %c1_28 = arith.constant 1 : index
    %c0_29 = arith.constant 0 : index
    %c0_30 = arith.constant 0 : index
    %45 = vector.load %arg2[%c1_28, %c0_29, %c0_30] : memref<7x16x16xf32, #tpu.memory_space<vmem>>, vector<1x16x16xf32>
    %46 = vector.shape_cast %45 : vector<1x16x16xf32> to vector<16x16xf32>
    %cst_31 = arith.constant dense<0.000000e+00> : vector<16x32xf32>
    %47 = tpu.matmul %46, %44, %cst_31 {dimension_numbers = #tpu.dot_dimension_numbers<[1], [0], [0], [1], [0, 0, 1, 1], [], []>, precision = #tpu.contract_precision<fp32>} : vector<16x16xf32>, vector<16x32xf32>, vector<16x32xf32> -> vector<16x32xf32>
    %c3 = arith.constant 3 : index
    %c0_32 = arith.constant 0 : index
    %c0_33 = arith.constant 0 : index
    %48 = vector.load %arg4[%c3, %c0_32, %c0_33] : memref<18x16x1xf32, #tpu.memory_space<vmem>>, vector<1x16x1xf32>
    %49 = vector.shape_cast %48 : vector<1x16x1xf32> to vector<16x1xf32>
    %50 = vector.broadcast %49 : vector<16x1xf32> to vector<16x32xf32>
    %51 = arith.addf %47, %50 : vector<16x32xf32>
    %cst_34 = arith.constant dense<0.000000e+00> : vector<16xf32>
    %52 = vector.multi_reduction <add>, %51, %cst_34 [1] : vector<16x32xf32> to vector<16xf32>
    %53 = vector.shape_cast %52 : vector<16xf32> to vector<16x1xf32>
    %cst_35 = arith.constant 3.200000e+01 : f32
    %54 = vector.broadcast %cst_35 : f32 to vector<16x1xf32>
    %55 = arith.divf %53, %54 : vector<16x1xf32>
    %56 = vector.broadcast %55 : vector<16x1xf32> to vector<16x32xf32>
    %57 = arith.subf %51, %56 : vector<16x32xf32>
    %58 = arith.mulf %57, %57 : vector<16x32xf32>
    %cst_36 = arith.constant dense<0.000000e+00> : vector<16xf32>
    %59 = vector.multi_reduction <add>, %58, %cst_36 [1] : vector<16x32xf32> to vector<16xf32>
    %60 = vector.shape_cast %59 : vector<16xf32> to vector<16x1xf32>
    %cst_37 = arith.constant 3.200000e+01 : f32
    %61 = vector.broadcast %cst_37 : f32 to vector<16x1xf32>
    %62 = arith.divf %60, %61 : vector<16x1xf32>
    %63 = vector.broadcast %55 : vector<16x1xf32> to vector<16x32xf32>
    %64 = arith.subf %51, %63 : vector<16x32xf32>
    %cst_38 = arith.constant 9.99999974E-6 : f32
    %65 = vector.broadcast %cst_38 : f32 to vector<16x1xf32>
    %66 = arith.addf %62, %65 : vector<16x1xf32>
    %67 = math.rsqrt %66 : vector<16x1xf32>
    %c4 = arith.constant 4 : index
    %c0_39 = arith.constant 0 : index
    %c0_40 = arith.constant 0 : index
    %68 = vector.load %arg4[%c4, %c0_39, %c0_40] : memref<18x16x1xf32, #tpu.memory_space<vmem>>, vector<1x16x1xf32>
    %69 = vector.shape_cast %68 : vector<1x16x1xf32> to vector<16x1xf32>
    %70 = arith.mulf %67, %69 : vector<16x1xf32>
    %71 = vector.broadcast %70 : vector<16x1xf32> to vector<16x32xf32>
    %72 = arith.mulf %64, %71 : vector<16x32xf32>
    %c5 = arith.constant 5 : index
    %c0_41 = arith.constant 0 : index
    %c0_42 = arith.constant 0 : index
    %73 = vector.load %arg4[%c5, %c0_41, %c0_42] : memref<18x16x1xf32, #tpu.memory_space<vmem>>, vector<1x16x1xf32>
    %74 = vector.shape_cast %73 : vector<1x16x1xf32> to vector<16x1xf32>
    %75 = vector.broadcast %74 : vector<16x1xf32> to vector<16x32xf32>
    %76 = arith.addf %72, %75 : vector<16x32xf32>
    %cst_43 = arith.constant 0.000000e+00 : f32
    %77 = vector.broadcast %cst_43 : f32 to vector<16x32xf32>
    %78 = arith.maximumf %76, %77 : vector<16x32xf32>
    %c2_44 = arith.constant 2 : index
    %c0_45 = arith.constant 0 : index
    %c0_46 = arith.constant 0 : index
    %79 = vector.load %arg2[%c2_44, %c0_45, %c0_46] : memref<7x16x16xf32, #tpu.memory_space<vmem>>, vector<1x16x16xf32>
    %80 = vector.shape_cast %79 : vector<1x16x16xf32> to vector<16x16xf32>
    %cst_47 = arith.constant dense<0.000000e+00> : vector<16x32xf32>
    %81 = tpu.matmul %80, %10, %cst_47 {dimension_numbers = #tpu.dot_dimension_numbers<[1], [0], [0], [1], [0, 0, 1, 1], [], []>, precision = #tpu.contract_precision<fp32>} : vector<16x16xf32>, vector<16x32xf32>, vector<16x32xf32> -> vector<16x32xf32>
    %c3_48 = arith.constant 3 : index
    %c0_49 = arith.constant 0 : index
    %c0_50 = arith.constant 0 : index
    %82 = vector.load %arg2[%c3_48, %c0_49, %c0_50] : memref<7x16x16xf32, #tpu.memory_space<vmem>>, vector<1x16x16xf32>
    %83 = vector.shape_cast %82 : vector<1x16x16xf32> to vector<16x16xf32>
    %cst_51 = arith.constant dense<0.000000e+00> : vector<16x32xf32>
    %84 = tpu.matmul %83, %78, %cst_51 {dimension_numbers = #tpu.dot_dimension_numbers<[1], [0], [0], [1], [0, 0, 1, 1], [], []>, precision = #tpu.contract_precision<fp32>} : vector<16x16xf32>, vector<16x32xf32>, vector<16x32xf32> -> vector<16x32xf32>
    %85 = arith.addf %81, %84 : vector<16x32xf32>
    %c6 = arith.constant 6 : index
    %c0_52 = arith.constant 0 : index
    %c0_53 = arith.constant 0 : index
    %86 = vector.load %arg4[%c6, %c0_52, %c0_53] : memref<18x16x1xf32, #tpu.memory_space<vmem>>, vector<1x16x1xf32>
    %87 = vector.shape_cast %86 : vector<1x16x1xf32> to vector<16x1xf32>
    %88 = vector.broadcast %87 : vector<16x1xf32> to vector<16x32xf32>
    %89 = arith.addf %85, %88 : vector<16x32xf32>
    %cst_54 = arith.constant dense<0.000000e+00> : vector<16xf32>
    %90 = vector.multi_reduction <add>, %89, %cst_54 [1] : vector<16x32xf32> to vector<16xf32>
    %91 = vector.shape_cast %90 : vector<16xf32> to vector<16x1xf32>
    %cst_55 = arith.constant 3.200000e+01 : f32
    %92 = vector.broadcast %cst_55 : f32 to vector<16x1xf32>
    %93 = arith.divf %91, %92 : vector<16x1xf32>
    %94 = vector.broadcast %93 : vector<16x1xf32> to vector<16x32xf32>
    %95 = arith.subf %89, %94 : vector<16x32xf32>
    %96 = arith.mulf %95, %95 : vector<16x32xf32>
    %cst_56 = arith.constant dense<0.000000e+00> : vector<16xf32>
    %97 = vector.multi_reduction <add>, %96, %cst_56 [1] : vector<16x32xf32> to vector<16xf32>
    %98 = vector.shape_cast %97 : vector<16xf32> to vector<16x1xf32>
    %cst_57 = arith.constant 3.200000e+01 : f32
    %99 = vector.broadcast %cst_57 : f32 to vector<16x1xf32>
    %100 = arith.divf %98, %99 : vector<16x1xf32>
    %101 = vector.broadcast %93 : vector<16x1xf32> to vector<16x32xf32>
    %102 = arith.subf %89, %101 : vector<16x32xf32>
    %cst_58 = arith.constant 9.99999974E-6 : f32
    %103 = vector.broadcast %cst_58 : f32 to vector<16x1xf32>
    %104 = arith.addf %100, %103 : vector<16x1xf32>
    %105 = math.rsqrt %104 : vector<16x1xf32>
    %c7 = arith.constant 7 : index
    %c0_59 = arith.constant 0 : index
    %c0_60 = arith.constant 0 : index
    %106 = vector.load %arg4[%c7, %c0_59, %c0_60] : memref<18x16x1xf32, #tpu.memory_space<vmem>>, vector<1x16x1xf32>
    %107 = vector.shape_cast %106 : vector<1x16x1xf32> to vector<16x1xf32>
    %108 = arith.mulf %105, %107 : vector<16x1xf32>
    %109 = vector.broadcast %108 : vector<16x1xf32> to vector<16x32xf32>
    %110 = arith.mulf %102, %109 : vector<16x32xf32>
    %c8 = arith.constant 8 : index
    %c0_61 = arith.constant 0 : index
    %c0_62 = arith.constant 0 : index
    %111 = vector.load %arg4[%c8, %c0_61, %c0_62] : memref<18x16x1xf32, #tpu.memory_space<vmem>>, vector<1x16x1xf32>
    %112 = vector.shape_cast %111 : vector<1x16x1xf32> to vector<16x1xf32>
    %113 = vector.broadcast %112 : vector<16x1xf32> to vector<16x32xf32>
    %114 = arith.addf %110, %113 : vector<16x32xf32>
    %cst_63 = arith.constant 0.000000e+00 : f32
    %115 = vector.broadcast %cst_63 : f32 to vector<16x32xf32>
    %116 = arith.maximumf %114, %115 : vector<16x32xf32>
    %cst_64 = arith.constant dense<0.000000e+00> : vector<16x32xf32>
    %117 = tpu.matmul %116, %1, %cst_64 {dimension_numbers = #tpu.dot_dimension_numbers<[1], [0], [0], [1], [0, 0, 1, 1], [], []>, precision = #tpu.contract_precision<fp32>} : vector<16x32xf32>, vector<32x32xf32>, vector<16x32xf32> -> vector<16x32xf32>
    %cst_65 = arith.constant dense<0.000000e+00> : vector<16x32xf32>
    %118 = tpu.matmul %116, %3, %cst_65 {dimension_numbers = #tpu.dot_dimension_numbers<[1], [0], [0], [1], [0, 0, 1, 1], [], []>, precision = #tpu.contract_precision<fp32>} : vector<16x32xf32>, vector<32x32xf32>, vector<16x32xf32> -> vector<16x32xf32>
    %119 = tpu.concatenate %117, %116, %118 in 0 : vector<16x32xf32>, vector<16x32xf32>, vector<16x32xf32> -> vector<48x32xf32>
    %c0_66 = arith.constant 0 : index
    %c0_67 = arith.constant 0 : index
    %c0_68 = arith.constant 0 : index
    %120 = vector.load %arg3[%c0_66, %c0_67, %c0_68] : memref<2x16x48xf32, #tpu.memory_space<vmem>>, vector<1x16x48xf32>
    %121 = vector.shape_cast %120 : vector<1x16x48xf32> to vector<16x48xf32>
    %cst_69 = arith.constant dense<0.000000e+00> : vector<16x32xf32>
    %122 = tpu.matmul %121, %119, %cst_69 {dimension_numbers = #tpu.dot_dimension_numbers<[1], [0], [0], [1], [0, 0, 1, 1], [], []>, precision = #tpu.contract_precision<fp32>} : vector<16x48xf32>, vector<48x32xf32>, vector<16x32xf32> -> vector<16x32xf32>
    %c9 = arith.constant 9 : index
    %c0_70 = arith.constant 0 : index
    %c0_71 = arith.constant 0 : index
    %123 = vector.load %arg4[%c9, %c0_70, %c0_71] : memref<18x16x1xf32, #tpu.memory_space<vmem>>, vector<1x16x1xf32>
    %124 = vector.shape_cast %123 : vector<1x16x1xf32> to vector<16x1xf32>
    %125 = vector.broadcast %124 : vector<16x1xf32> to vector<16x32xf32>
    %126 = arith.addf %122, %125 : vector<16x32xf32>
    %cst_72 = arith.constant 0.000000e+00 : f32
    %127 = vector.broadcast %cst_72 : f32 to vector<16x32xf32>
    %128 = arith.maximumf %126, %127 : vector<16x32xf32>
    %cst_73 = arith.constant dense<0.000000e+00> : vector<16x32xf32>
    %129 = tpu.matmul %128, %1, %cst_73 {dimension_numbers = #tpu.dot_dimension_numbers<[1], [0], [0], [1], [0, 0, 1, 1], [], []>, precision = #tpu.contract_precision<fp32>} : vector<16x32xf32>, vector<32x32xf32>, vector<16x32xf32> -> vector<16x32xf32>
    %cst_74 = arith.constant dense<0.000000e+00> : vector<16x32xf32>
    %130 = tpu.matmul %128, %3, %cst_74 {dimension_numbers = #tpu.dot_dimension_numbers<[1], [0], [0], [1], [0, 0, 1, 1], [], []>, precision = #tpu.contract_precision<fp32>} : vector<16x32xf32>, vector<32x32xf32>, vector<16x32xf32> -> vector<16x32xf32>
    %131 = tpu.concatenate %129, %128, %130 in 0 : vector<16x32xf32>, vector<16x32xf32>, vector<16x32xf32> -> vector<48x32xf32>
    %c1_75 = arith.constant 1 : index
    %c0_76 = arith.constant 0 : index
    %c0_77 = arith.constant 0 : index
    %132 = vector.load %arg3[%c1_75, %c0_76, %c0_77] : memref<2x16x48xf32, #tpu.memory_space<vmem>>, vector<1x16x48xf32>
    %133 = vector.shape_cast %132 : vector<1x16x48xf32> to vector<16x48xf32>
    %cst_78 = arith.constant dense<0.000000e+00> : vector<16x32xf32>
    %134 = tpu.matmul %133, %131, %cst_78 {dimension_numbers = #tpu.dot_dimension_numbers<[1], [0], [0], [1], [0, 0, 1, 1], [], []>, precision = #tpu.contract_precision<fp32>} : vector<16x48xf32>, vector<48x32xf32>, vector<16x32xf32> -> vector<16x32xf32>
    %c10 = arith.constant 10 : index
    %c0_79 = arith.constant 0 : index
    %c0_80 = arith.constant 0 : index
    %135 = vector.load %arg4[%c10, %c0_79, %c0_80] : memref<18x16x1xf32, #tpu.memory_space<vmem>>, vector<1x16x1xf32>
    %136 = vector.shape_cast %135 : vector<1x16x1xf32> to vector<16x1xf32>
    %137 = vector.broadcast %136 : vector<16x1xf32> to vector<16x32xf32>
    %138 = arith.addf %134, %137 : vector<16x32xf32>
    %cst_81 = arith.constant 0.000000e+00 : f32
    %139 = vector.broadcast %cst_81 : f32 to vector<16x32xf32>
    %140 = arith.maximumf %138, %139 : vector<16x32xf32>
    %c4_82 = arith.constant 4 : index
    %c0_83 = arith.constant 0 : index
    %c0_84 = arith.constant 0 : index
    %141 = vector.load %arg2[%c4_82, %c0_83, %c0_84] : memref<7x16x16xf32, #tpu.memory_space<vmem>>, vector<1x16x16xf32>
    %142 = vector.shape_cast %141 : vector<1x16x16xf32> to vector<16x16xf32>
    %cst_85 = arith.constant dense<0.000000e+00> : vector<16x32xf32>
    %143 = tpu.matmul %142, %140, %cst_85 {dimension_numbers = #tpu.dot_dimension_numbers<[1], [0], [0], [1], [0, 0, 1, 1], [], []>, precision = #tpu.contract_precision<fp32>} : vector<16x16xf32>, vector<16x32xf32>, vector<16x32xf32> -> vector<16x32xf32>
    %c11 = arith.constant 11 : index
    %c0_86 = arith.constant 0 : index
    %c0_87 = arith.constant 0 : index
    %144 = vector.load %arg4[%c11, %c0_86, %c0_87] : memref<18x16x1xf32, #tpu.memory_space<vmem>>, vector<1x16x1xf32>
    %145 = vector.shape_cast %144 : vector<1x16x1xf32> to vector<16x1xf32>
    %146 = vector.broadcast %145 : vector<16x1xf32> to vector<16x32xf32>
    %147 = arith.addf %143, %146 : vector<16x32xf32>
    %cst_88 = arith.constant dense<0.000000e+00> : vector<16xf32>
    %148 = vector.multi_reduction <add>, %147, %cst_88 [1] : vector<16x32xf32> to vector<16xf32>
    %149 = vector.shape_cast %148 : vector<16xf32> to vector<16x1xf32>
    %cst_89 = arith.constant 3.200000e+01 : f32
    %150 = vector.broadcast %cst_89 : f32 to vector<16x1xf32>
    %151 = arith.divf %149, %150 : vector<16x1xf32>
    %152 = vector.broadcast %151 : vector<16x1xf32> to vector<16x32xf32>
    %153 = arith.subf %147, %152 : vector<16x32xf32>
    %154 = arith.mulf %153, %153 : vector<16x32xf32>
    %cst_90 = arith.constant dense<0.000000e+00> : vector<16xf32>
    %155 = vector.multi_reduction <add>, %154, %cst_90 [1] : vector<16x32xf32> to vector<16xf32>
    %156 = vector.shape_cast %155 : vector<16xf32> to vector<16x1xf32>
    %cst_91 = arith.constant 3.200000e+01 : f32
    %157 = vector.broadcast %cst_91 : f32 to vector<16x1xf32>
    %158 = arith.divf %156, %157 : vector<16x1xf32>
    %159 = vector.broadcast %151 : vector<16x1xf32> to vector<16x32xf32>
    %160 = arith.subf %147, %159 : vector<16x32xf32>
    %cst_92 = arith.constant 9.99999974E-6 : f32
    %161 = vector.broadcast %cst_92 : f32 to vector<16x1xf32>
    %162 = arith.addf %158, %161 : vector<16x1xf32>
    %163 = math.rsqrt %162 : vector<16x1xf32>
    %c12 = arith.constant 12 : index
    %c0_93 = arith.constant 0 : index
    %c0_94 = arith.constant 0 : index
    %164 = vector.load %arg4[%c12, %c0_93, %c0_94] : memref<18x16x1xf32, #tpu.memory_space<vmem>>, vector<1x16x1xf32>
    %165 = vector.shape_cast %164 : vector<1x16x1xf32> to vector<16x1xf32>
    %166 = arith.mulf %163, %165 : vector<16x1xf32>
    %167 = vector.broadcast %166 : vector<16x1xf32> to vector<16x32xf32>
    %168 = arith.mulf %160, %167 : vector<16x32xf32>
    %c13 = arith.constant 13 : index
    %c0_95 = arith.constant 0 : index
    %c0_96 = arith.constant 0 : index
    %169 = vector.load %arg4[%c13, %c0_95, %c0_96] : memref<18x16x1xf32, #tpu.memory_space<vmem>>, vector<1x16x1xf32>
    %170 = vector.shape_cast %169 : vector<1x16x1xf32> to vector<16x1xf32>
    %171 = vector.broadcast %170 : vector<16x1xf32> to vector<16x32xf32>
    %172 = arith.addf %168, %171 : vector<16x32xf32>
    %cst_97 = arith.constant 0.000000e+00 : f32
    %173 = vector.broadcast %cst_97 : f32 to vector<16x32xf32>
    %174 = arith.maximumf %172, %173 : vector<16x32xf32>
    %c5_98 = arith.constant 5 : index
    %c0_99 = arith.constant 0 : index
    %c0_100 = arith.constant 0 : index
    %175 = vector.load %arg2[%c5_98, %c0_99, %c0_100] : memref<7x16x16xf32, #tpu.memory_space<vmem>>, vector<1x16x16xf32>
    %176 = vector.shape_cast %175 : vector<1x16x16xf32> to vector<16x16xf32>
    %cst_101 = arith.constant dense<0.000000e+00> : vector<16x32xf32>
    %177 = tpu.matmul %176, %174, %cst_101 {dimension_numbers = #tpu.dot_dimension_numbers<[1], [0], [0], [1], [0, 0, 1, 1], [], []>, precision = #tpu.contract_precision<fp32>} : vector<16x16xf32>, vector<16x32xf32>, vector<16x32xf32> -> vector<16x32xf32>
    %c14 = arith.constant 14 : index
    %c0_102 = arith.constant 0 : index
    %c0_103 = arith.constant 0 : index
    %178 = vector.load %arg4[%c14, %c0_102, %c0_103] : memref<18x16x1xf32, #tpu.memory_space<vmem>>, vector<1x16x1xf32>
    %179 = vector.shape_cast %178 : vector<1x16x1xf32> to vector<16x1xf32>
    %180 = vector.broadcast %179 : vector<16x1xf32> to vector<16x32xf32>
    %181 = arith.addf %177, %180 : vector<16x32xf32>
    %cst_104 = arith.constant dense<0.000000e+00> : vector<16xf32>
    %182 = vector.multi_reduction <add>, %181, %cst_104 [1] : vector<16x32xf32> to vector<16xf32>
    %183 = vector.shape_cast %182 : vector<16xf32> to vector<16x1xf32>
    %cst_105 = arith.constant 3.200000e+01 : f32
    %184 = vector.broadcast %cst_105 : f32 to vector<16x1xf32>
    %185 = arith.divf %183, %184 : vector<16x1xf32>
    %186 = vector.broadcast %185 : vector<16x1xf32> to vector<16x32xf32>
    %187 = arith.subf %181, %186 : vector<16x32xf32>
    %188 = arith.mulf %187, %187 : vector<16x32xf32>
    %cst_106 = arith.constant dense<0.000000e+00> : vector<16xf32>
    %189 = vector.multi_reduction <add>, %188, %cst_106 [1] : vector<16x32xf32> to vector<16xf32>
    %190 = vector.shape_cast %189 : vector<16xf32> to vector<16x1xf32>
    %cst_107 = arith.constant 3.200000e+01 : f32
    %191 = vector.broadcast %cst_107 : f32 to vector<16x1xf32>
    %192 = arith.divf %190, %191 : vector<16x1xf32>
    %193 = vector.broadcast %185 : vector<16x1xf32> to vector<16x32xf32>
    %194 = arith.subf %181, %193 : vector<16x32xf32>
    %cst_108 = arith.constant 9.99999974E-6 : f32
    %195 = vector.broadcast %cst_108 : f32 to vector<16x1xf32>
    %196 = arith.addf %192, %195 : vector<16x1xf32>
    %197 = math.rsqrt %196 : vector<16x1xf32>
    %c15 = arith.constant 15 : index
    %c0_109 = arith.constant 0 : index
    %c0_110 = arith.constant 0 : index
    %198 = vector.load %arg4[%c15, %c0_109, %c0_110] : memref<18x16x1xf32, #tpu.memory_space<vmem>>, vector<1x16x1xf32>
    %199 = vector.shape_cast %198 : vector<1x16x1xf32> to vector<16x1xf32>
    %200 = arith.mulf %197, %199 : vector<16x1xf32>
    %201 = vector.broadcast %200 : vector<16x1xf32> to vector<16x32xf32>
    %202 = arith.mulf %194, %201 : vector<16x32xf32>
    %c16 = arith.constant 16 : index
    %c0_111 = arith.constant 0 : index
    %c0_112 = arith.constant 0 : index
    %203 = vector.load %arg4[%c16, %c0_111, %c0_112] : memref<18x16x1xf32, #tpu.memory_space<vmem>>, vector<1x16x1xf32>
    %204 = vector.shape_cast %203 : vector<1x16x1xf32> to vector<16x1xf32>
    %205 = vector.broadcast %204 : vector<16x1xf32> to vector<16x32xf32>
    %206 = arith.addf %202, %205 : vector<16x32xf32>
    %cst_113 = arith.constant 0.000000e+00 : f32
    %207 = vector.broadcast %cst_113 : f32 to vector<16x32xf32>
    %208 = arith.maximumf %206, %207 : vector<16x32xf32>
    %209 = arith.addf %140, %208 : vector<16x32xf32>
    %cst_114 = arith.constant 0.000000e+00 : f32
    %210 = vector.broadcast %cst_114 : f32 to vector<16x32xf32>
    %211 = arith.maximumf %209, %210 : vector<16x32xf32>
    %c6_115 = arith.constant 6 : index
    %c0_116 = arith.constant 0 : index
    %c0_117 = arith.constant 0 : index
    %212 = vector.load %arg2[%c6_115, %c0_116, %c0_117] : memref<7x16x16xf32, #tpu.memory_space<vmem>>, vector<1x16x16xf32>
    %213 = vector.shape_cast %212 : vector<1x16x16xf32> to vector<16x16xf32>
    %cst_118 = arith.constant dense<0.000000e+00> : vector<16x32xf32>
    %214 = tpu.matmul %213, %211, %cst_118 {dimension_numbers = #tpu.dot_dimension_numbers<[1], [0], [0], [1], [0, 0, 1, 1], [], []>, precision = #tpu.contract_precision<fp32>} : vector<16x16xf32>, vector<16x32xf32>, vector<16x32xf32> -> vector<16x32xf32>
    %c17 = arith.constant 17 : index
    %c0_119 = arith.constant 0 : index
    %c0_120 = arith.constant 0 : index
    %215 = vector.load %arg4[%c17, %c0_119, %c0_120] : memref<18x16x1xf32, #tpu.memory_space<vmem>>, vector<1x16x1xf32>
    %216 = vector.shape_cast %215 : vector<1x16x1xf32> to vector<16x1xf32>
    %217 = vector.broadcast %216 : vector<16x1xf32> to vector<16x32xf32>
    %218 = arith.addf %214, %217 : vector<16x32xf32>
    %219 = vector.extract_strided_slice %218 {offsets = [0, 0], sizes = [1, 16], strides = [1, 1]} : vector<16x32xf32> to vector<1x16xf32>
    %c0_121 = arith.constant 0 : index
    %c0_122 = arith.constant 0 : index
    %c0_123 = arith.constant 0 : index
    %220 = vector.load %arg6[%c0_121, %c0_122, %c0_123] : memref<2x1x16xf32, #tpu.memory_space<vmem>>, vector<1x1x16xf32>
    %221 = vector.shape_cast %220 : vector<1x1x16xf32> to vector<1x16xf32>
    %222 = vector.shape_cast %219 : vector<1x16xf32> to vector<1x1x16xf32>
    tpu.vector_store %arg6[%c0_121, %c0_122, %c0_123], %222 {strides = array<i32>} : memref<2x1x16xf32, #tpu.memory_space<vmem>>, vector<1x1x16xf32>,
    %223 = vector.extract_strided_slice %218 {offsets = [0, 16], sizes = [1, 16], strides = [1, 1]} : vector<16x32xf32> to vector<1x16xf32>
    %c1_124 = arith.constant 1 : index
    %c0_125 = arith.constant 0 : index
    %c0_126 = arith.constant 0 : index
    %224 = vector.load %arg6[%c1_124, %c0_125, %c0_126] : memref<2x1x16xf32, #tpu.memory_space<vmem>>, vector<1x1x16xf32>
    %225 = vector.shape_cast %224 : vector<1x1x16xf32> to vector<1x16xf32>
    %226 = vector.shape_cast %223 : vector<1x16xf32> to vector<1x1x16xf32>
    tpu.vector_store %arg6[%c1_124, %c0_125, %c0_126], %226 {strides = array<i32>} : memref<2x1x16xf32, #tpu.memory_space<vmem>>, vector<1x1x16xf32>,
    return
  }
  func.func @transform_0(%arg0: i32) -> (i32, i32, i32) {
    %c0_i32 = arith.constant 0 : i32
    %c0_i32_0 = arith.constant 0 : i32
    %c0_i32_1 = arith.constant 0 : i32
    %c0_i32_2 = arith.constant 0 : i32
    return %c0_i32, %c0_i32_0, %c0_i32_1 : i32, i32, i32
  }
  func.func @transform_1(%arg0: i32) -> (i32, i32, i32) {
    %c0_i32 = arith.constant 0 : i32
    %c0_i32_0 = arith.constant 0 : i32
    %c0_i32_1 = arith.constant 0 : i32
    %c0_i32_2 = arith.constant 0 : i32
    return %c0_i32, %c0_i32_0, %c0_i32_1 : i32, i32, i32
  }
  func.func @transform_2(%arg0: i32) -> (i32, i32, i32) {
    %c0_i32 = arith.constant 0 : i32
    %c0_i32_0 = arith.constant 0 : i32
    %c0_i32_1 = arith.constant 0 : i32
    %c0_i32_2 = arith.constant 0 : i32
    return %c0_i32, %c0_i32_0, %c0_i32_1 : i32, i32, i32
  }
  func.func @transform_3(%arg0: i32) -> (i32, i32, i32) {
    %c0_i32 = arith.constant 0 : i32
    %c0_i32_0 = arith.constant 0 : i32
    %c0_i32_1 = arith.constant 0 : i32
    %c0_i32_2 = arith.constant 0 : i32
    return %c0_i32, %c0_i32_0, %c0_i32_1 : i32, i32, i32
  }
  func.func @transform_4(%arg0: i32) -> (i32, i32, i32) {
    %c0_i32 = arith.constant 0 : i32
    %c0_i32_0 = arith.constant 0 : i32
    %c0_i32_1 = arith.constant 0 : i32
    %c0_i32_2 = arith.constant 0 : i32
    return %c0_i32, %c0_i32_0, %c0_i32_1 : i32, i32, i32
  }
  func.func @transform_5(%arg0: i32) -> (i32, i32, i32) {
    %c0_i32 = arith.constant 0 : i32
    %c0_i32_0 = arith.constant 0 : i32
    %c0_i32_1 = arith.constant 0 : i32
    %c0_i32_2 = arith.constant 0 : i32
    return %c0_i32, %c0_i32_0, %c0_i32_1 : i32, i32, i32
  }
}

</mosaic_0001>

<llo_original>
// kernel: tpu_custom_call.1
$region0: #{tpu_custom_call.1}
  #allocation0 [shape = 'u32[]', space=smem, size = 0x4, offset = 0x4, fixed_abs, tag = 'smem constant byte address 0x4 - core index']
  #allocation1 [shape = 'u32[144,128]{1,0:T(1,128)}', space=vmem, size = 0x12000, scoped, tag = 'internal scratch']
  %s0 = inlined_call_operand.vmem [shape: f32[2,4,16], index: 0, kind: input, shape index: {}]
  %s1 = inlined_call_operand.vmem [shape: f32[7,16,16], index: 1, kind: input, shape index: {}]
  %s2 = inlined_call_operand.vmem [shape: f32[2,16,48], index: 2, kind: input, shape index: {}]
  %s3 = inlined_call_operand.vmem [shape: f32[18,16,1], index: 3, kind: input, shape index: {}]
  %s4 = inlined_call_operand.vmem [shape: f32[2,32,32], index: 4, kind: input, shape index: {}]
  %s5 = inlined_call_operand.hbm [shape: f32[2,1,16], index: 5, kind: output, shape index: {}]
  %s6 = sld [smem:[#allocation0]]
  $region30: #{tpu_custom_call.1} parent=0
    _
  %s8 = ssub.s32 1, %s6
  %s9 = scalar_select 0, %s8, %s6
  $region1: #{tpu_custom_call.1} parent=0
    #allocation2 [shape = 'u8[1024]{0}', space=vmem, size = 0x400, scoped, tag = 'output window, operand 0, single buffered']
    #allocation3 [shape = 's32[1]{0}', space=sflag, size = 0x4, scoped, tag = 'scoped memory for tpu_custom_call.1']
    %10 = vsyncpa [#allocation3], 0
    // Predicated region
    $region2: #{tpu_custom_call.1} parent=1 // pred_check
      _
    $region3: #{tpu_custom_call.1} parent=1 // pred_check_branch
      %12 = sbr.rel (0) target = $region5
    $region4: #{tpu_custom_call.1} parent=1 // pred_region
      _
    $region5: #{tpu_custom_call.1} parent=1 // pred_fallthru
      _
    // Predicated region
    $region6: #{tpu_custom_call.1} parent=1 // pred_check
      _
    $region7: #{tpu_custom_call.1} parent=1 // pred_check_branch
      %14 = sbr.rel (0) target = $region9
    $region8: #{tpu_custom_call.1} parent=1 // pred_region
      _
    $region9: #{tpu_custom_call.1} parent=1 // pred_fallthru
      _
    // Predicated region
    $region10: #{tpu_custom_call.1} parent=1 // pred_check
      _
    $region11: #{tpu_custom_call.1} parent=1 // pred_check_branch
      %16 = sbr.rel (0) target = $region13
    $region12: #{tpu_custom_call.1} parent=1 // pred_region
      _
    $region13: #{tpu_custom_call.1} parent=1 // pred_fallthru
      _
    // Predicated region
    $region14: #{tpu_custom_call.1} parent=1 // pred_check
      _
    $region15: #{tpu_custom_call.1} parent=1 // pred_check_branch
      %18 = sbr.rel (0) target = $region17
    $region16: #{tpu_custom_call.1} parent=1 // pred_region
      _
    $region17: #{tpu_custom_call.1} parent=1 // pred_fallthru
      _
    // Predicated region
    $region18: #{tpu_custom_call.1} parent=1 // pred_check
      _
    $region19: #{tpu_custom_call.1} parent=1 // pred_check_branch
      %20 = sbr.rel (0) target = $region21
    $region20: #{tpu_custom_call.1} parent=1 // pred_region
      _
    $region21: #{tpu_custom_call.1} parent=1 // pred_fallthru
      _
    %v21 = vld [vmem:[%s4] sm:$0xff]
    %v22 = vld [vmem:[%s4 + $0x8] sm:$0xff]
    %v23 = vld [vmem:[%s4 + $0x10] sm:$0xff]
    %v24 = vld [vmem:[%s4 + $0x18] sm:$0xff]
    %s25 = scalar_lea.vmem %s4, 32
    %v26 = vld [vmem:[%s25] sm:$0xff]
    %v27 = vld [vmem:[%s25 + $0x8] sm:$0xff]
    %v28 = vld [vmem:[%s25 + $0x10] sm:$0xff]
    %v29 = vld [vmem:[%s25 + $0x18] sm:$0xff]
    %v30 = vld [vmem:[%s0] sm:$0xf]
    %s31 = scalar_lea.vmem %s0, 4
    %v32 = vld [vmem:[%s31] sm:$0xf]
    %34 = vrot.lane.b32.xlu0 %v32, 16
    %v35 = vpop.permute.xlu0 %34
    %vm37 = vcmask 130048
    %v38 = vsel %vm37, %v30, %v35
    %vm39 = vcmask 1043456
    %v40 = vsel %vm39, %v38, 0.0
    %v41 = vld [vmem:[%s1] sm:$0xff]
    %v42 = vld [vmem:[%s1 + $0x8] sm:$0xff]
    %v43 = vld [vmem:[%s3] sm:$0xff]
    %v44 = vld [vmem:[%s3 + $0x8] sm:$0xff]
    %46 = vset.pattern.permute.xlu0 0
    %47 = vperm.xlu0 %46, %v43
    %v48 = vpop.permute.xlu0 %47
    %51 = vset.pattern.permute.xlu0 0
    %52 = vperm.xlu0 %51, %v44
    %v53 = vpop.permute.xlu0 %52
    %v56 = vsel %vm37, %v41, 0
    %v59 = vsel %vm37, %v42, 0
    %61 = vmatprep.subr.mxu0 0.0
    %v62 = vand.u32 %v40, 4294901760
    %63 = vmatpush1.msra.mxu0 %v62
    %64 = vmatprep.subr.mxu0 0.0
    %65 = vmatpush1.msra.mxu0 0.0
    %66 = vmatprep.subr.mxu0 0.0
    %67 = vmatpush1.msra.mxu0 0.0
    %68 = vmatprep.subr.mxu0 0.0
    %69 = vmatpush1.msra.mxu0 0.0
    %70 = vmatprep.subr.mxu0 0.0
    %71 = vmatpush1.msra.mxu0 0.0
    %72 = vmatprep.subr.mxu0 0.0
    %73 = vmatpush1.msra.mxu0 0.0
    %74 = vmatprep.subr.mxu0 0.0
    %75 = vmatpush1.msra.mxu0 0.0
    %76 = vmatprep.subr.mxu0 0.0
    %77 = vmatpush1.msra.mxu0 0.0
    %78 = vmatprep.subr.mxu0 0.0
    %79 = vmatpush1.msra.mxu0 0.0
    %80 = vmatprep.subr.mxu0 0.0
    %81 = vmatpush1.msra.mxu0 0.0
    %82 = vmatprep.subr.mxu0 0.0
    %83 = vmatpush1.msra.mxu0 0.0
    %84 = vmatprep.subr.mxu0 0.0
    %85 = vmatpush1.msra.mxu0 0.0
    %86 = vmatprep.subr.mxu0 0.0
    %87 = vmatpush1.msra.mxu0 0.0
    %88 = vmatprep.subr.mxu0 0.0
    %89 = vmatpush1.msra.mxu0 0.0
    %90 = vmatprep.subr.mxu0 0.0
    %91 = vmatpush1.msra.mxu0 0.0
    %92 = vmatprep.subr.mxu0 0.0
    %93 = vmatpush1.msra.mxu0 0.0
    %94 = vmatprep.subr.mxu0 0.0
    %95 = vmatpush1.msra.mxu0 0.0
    %96 = vmatprep.subr.mxu0 0.0
    %97 = vmatpush1.msra.mxu0 0.0
    %98 = vmatprep.subr.mxu0 0.0
    %99 = vmatpush1.msra.mxu0 0.0
    %100 = vmatprep.subr.mxu0 0.0
    %101 = vmatpush1.msra.mxu0 0.0
    %102 = vmatprep.subr.mxu0 0.0
    %103 = vmatpush1.msra.mxu0 0.0
    %104 = vmatprep.subr.mxu0 0.0
    %105 = vmatpush1.msra.mxu0 0.0
    %106 = vmatprep.subr.mxu0 0.0
    %107 = vmatpush1.msra.mxu0 0.0
    %108 = vmatprep.subr.mxu0 0.0
    %109 = vmatpush1.msra.mxu0 0.0
    %110 = vmatprep.subr.mxu0 0.0
    %111 = vmatpush1.msra.mxu0 0.0
    %112 = vmatprep.subr.mxu0 0.0
    %113 = vmatpush1.msra.mxu0 0.0
    %114 = vmatprep.subr.mxu0 0.0
    %115 = vmatpush1.msra.mxu0 0.0
    %116 = vmatprep.subr.mxu0 0.0
    %117 = vmatpush1.msra.mxu0 0.0
    %118 = vmatprep.subr.mxu0 0.0
    %119 = vmatpush1.msra.mxu0 0.0
    %120 = vmatprep.subr.mxu0 0.0
    %121 = vmatpush1.msra.mxu0 0.0
    %122 = vmatprep.subr.mxu0 0.0
    %123 = vmatpush1.msra.mxu0 0.0
    %124 = vmatprep.subr.mxu0 0.0
    %125 = vmatpush1.msra.mxu0 0.0
    %126 = vmatprep.mubr.f32.mxu0 0.0
    %v127 = vand.u32 %v56, 4294901760
    %v128 = vsub.f32 %v56, %v127
    %v129 = vand.u32 %v128, 4294901760
    %v130 = vsub.f32 %v128, %v129
    %v131 = vand.u32 %v130, 4294901760
    %132 = vmatmul.mubr.f32.gmra.mrb[0].mxu0 %v131
    %v133 = vpop.f32.mrb[0].mxu0
    %v134 = vadd.f32 %v48, %v133
    %v135 = vpop.f32.mrb[0].mxu0
    %136 = vmatprep.mubr.f32.mxu0 0.0
    %v137 = vand.u32 %v59, 4294901760
    %v138 = vsub.f32 %v59, %v137
    %v139 = vand.u32 %v138, 4294901760
    %v140 = vsub.f32 %v138, %v139
    %v141 = vand.u32 %v140, 4294901760
    %142 = vmatmul.mubr.f32.gmra.mrb[0].mxu0 %v141
    %v143 = vpop.f32.mrb[0].mxu0
    %v144 = vadd.f32 %v53, %v143
    %v145 = vpop.f32.mrb[0].mxu0
    %146 = vdwg.mxu0
    %147 = vmatprep.subr.mxu0 0.0
    %v148 = vand.u32 %v40, 4294901760
    %v149 = vsub.f32 %v40, %v148
    %v150 = vand.u32 %v149, 4294901760
    %v151 = vsub.f32 %v149, %v150
    %v152 = vand.u32 %v151, 4294901760
    %153 = vmatpush1.msra.mxu0 %v152
    %154 = vmatprep.subr.mxu0 0.0
    %155 = vmatpush1.msra.mxu0 0.0
    %156 = vmatprep.subr.mxu0 0.0
    %157 = vmatpush1.msra.mxu0 0.0
    %158 = vmatprep.subr.mxu0 0.0
    %159 = vmatpush1.msra.mxu0 0.0
    %160 = vmatprep.subr.mxu0 0.0
    %161 = vmatpush1.msra.mxu0 0.0
    %162 = vmatprep.subr.mxu0 0.0
    %163 = vmatpush1.msra.mxu0 0.0
    %164 = vmatprep.subr.mxu0 0.0
    %165 = vmatpush1.msra.mxu0 0.0
    %166 = vmatprep.subr.mxu0 0.0
    %167 = vmatpush1.msra.mxu0 0.0
    %168 = vmatprep.subr.mxu0 0.0
    %169 = vmatpush1.msra.mxu0 0.0
    %170 = vmatprep.subr.mxu0 0.0
    %171 = vmatpush1.msra.mxu0 0.0
    %172 = vmatprep.subr.mxu0 0.0
    %173 = vmatpush1.msra.mxu0 0.0
    %174 = vmatprep.subr.mxu0 0.0
    %175 = vmatpush1.msra.mxu0 0.0
    %176 = vmatprep.subr.mxu0 0.0
    %177 = vmatpush1.msra.mxu0 0.0
    %178 = vmatprep.subr.mxu0 0.0
    %179 = vmatpush1.msra.mxu0 0.0
    %180 = vmatprep.subr.mxu0 0.0
    %181 = vmatpush1.msra.mxu0 0.0
    %182 = vmatprep.subr.mxu0 0.0
    %183 = vmatpush1.msra.mxu0 0.0
    %184 = vmatprep.subr.mxu0 0.0
    %185 = vmatpush1.msra.mxu0 0.0
    %186 = vmatprep.subr.mxu0 0.0
    %187 = vmatpush1.msra.mxu0 0.0
    %188 = vmatprep.subr.mxu0 0.0
    %189 = vmatpush1.msra.mxu0 0.0
    %190 = vmatprep.subr.mxu0 0.0
    %191 = vmatpush1.msra.mxu0 0.0
    %192 = vmatprep.subr.mxu0 0.0
    %193 = vmatpush1.msra.mxu0 0.0
    %194 = vmatprep.subr.mxu0 0.0
    %195 = vmatpush1.msra.mxu0 0.0
    %196 = vmatprep.subr.mxu0 0.0
    %197 = vmatpush1.msra.mxu0 0.0
    %198 = vmatprep.subr.mxu0 0.0
    %199 = vmatpush1.msra.mxu0 0.0
    %200 = vmatprep.subr.mxu0 0.0
    %201 = vmatpush1.msra.mxu0 0.0
    %202 = vmatprep.subr.mxu0 0.0
    %203 = vmatpush1.msra.mxu0 0.0
    %204 = vmatprep.subr.mxu0 0.0
    %205 = vmatpush1.msra.mxu0 0.0
    %206 = vmatprep.subr.mxu0 0.0
    %207 = vmatpush1.msra.mxu0 0.0
    %208 = vmatprep.subr.mxu0 0.0
    %209 = vmatpush1.msra.mxu0 0.0
    %210 = vmatprep.subr.mxu0 0.0
    %211 = vmatpush1.msra.mxu0 0.0
    %212 = vmatprep.subr.mxu0 0.0
    %213 = vmatpush1.msra.mxu0 0.0
    %214 = vmatprep.subr.mxu0 0.0
    %215 = vmatpush1.msra.mxu0 0.0
    %216 = vmatprep.mubr.f32.mxu0 0.0
    %v217 = vand.u32 %v56, 4294901760
    %218 = vmatmul.mubr.f32.gmra.mrb[0].mxu0 %v217
    %v219 = vpop.f32.mrb[0].mxu0
    %v220 = vadd.f32 %v134, %v219
    %v221 = vpop.f32.mrb[0].mxu0
    %222 = vmatprep.mubr.f32.mxu0 0.0
    %v223 = vand.u32 %v59, 4294901760
    %224 = vmatmul.mubr.f32.gmra.mrb[0].mxu0 %v223
    %v225 = vpop.f32.mrb[0].mxu0
    %v226 = vadd.f32 %v144, %v225
    %v227 = vpop.f32.mrb[0].mxu0
    %228 = vdwg.mxu0
    %229 = vmatprep.subr.mxu0 0.0
    %v230 = vand.u32 %v40, 4294901760
    %v231 = vsub.f32 %v40, %v230
    %232 = vmatpush1.msra.mxu0 %v231
    %233 = vmatprep.subr.mxu0 0.0
    %234 = vmatpush1.msra.mxu0 0.0
    %235 = vmatprep.subr.mxu0 0.0
    %236 = vmatpush1.msra.mxu0 0.0
    %237 = vmatprep.subr.mxu0 0.0
    %238 = vmatpush1.msra.mxu0 0.0
    %239 = vmatprep.subr.mxu0 0.0
    %240 = vmatpush1.msra.mxu0 0.0
    %241 = vmatprep.subr.mxu0 0.0
    %242 = vmatpush1.msra.mxu0 0.0
    %243 = vmatprep.subr.mxu0 0.0
    %244 = vmatpush1.msra.mxu0 0.0
    %245 = vmatprep.subr.mxu0 0.0
    %246 = vmatpush1.msra.mxu0 0.0
    %247 = vmatprep.subr.mxu0 0.0
    %248 = vmatpush1.msra.mxu0 0.0
    %249 = vmatprep.subr.mxu0 0.0
    %250 = vmatpush1.msra.mxu0 0.0
    %251 = vmatprep.subr.mxu0 0.0
    %252 = vmatpush1.msra.mxu0 0.0
    %253 = vmatprep.subr.mxu0 0.0
    %254 = vmatpush1.msra.mxu0 0.0
    %255 = vmatprep.subr.mxu0 0.0
    %256 = vmatpush1.msra.mxu0 0.0
    %257 = vmatprep.subr.mxu0 0.0
    %258 = vmatpush1.msra.mxu0 0.0
    %259 = vmatprep.subr.mxu0 0.0
    %260 = vmatpush1.msra.mxu0 0.0
    %261 = vmatprep.subr.mxu0 0.0
    %262 = vmatpush1.msra.mxu0 0.0
    %263 = vmatprep.subr.mxu0 0.0
    %264 = vmatpush1.msra.mxu0 0.0
    %265 = vmatprep.subr.mxu0 0.0
    %266 = vmatpush1.msra.mxu0 0.0
    %267 = vmatprep.subr.mxu0 0.0
    %268 = vmatpush1.msra.mxu0 0.0
    %269 = vmatprep.subr.mxu0 0.0
    %270 = vmatpush1.msra.mxu0 0.0
    %271 = vmatprep.subr.mxu0 0.0
    %272 = vmatpush1.msra.mxu0 0.0
    %273 = vmatprep.subr.mxu0 0.0
    %274 = vmatpush1.msra.mxu0 0.0
    %275 = vmatprep.subr.mxu0 0.0
    %276 = vmatpush1.msra.mxu0 0.0
    %277 = vmatprep.subr.mxu0 0.0
    %278 = vmatpush1.msra.mxu0 0.0
    %279 = vmatprep.subr.mxu0 0.0
    %280 = vmatpush1.msra.mxu0 0.0
    %281 = vmatprep.subr.mxu0 0.0
    %282 = vmatpush1.msra.mxu0 0.0
    %283 = vmatprep.subr.mxu0 0.0
    %284 = vmatpush1.msra.mxu0 0.0
    %285 = vmatprep.subr.mxu0 0.0
    %286 = vmatpush1.msra.mxu0 0.0
    %287 = vmatprep.subr.mxu0 0.0
    %288 = vmatpush1.msra.mxu0 0.0
    %289 = vmatprep.subr.mxu0 0.0
    %290 = vmatpush1.msra.mxu0 0.0
    %291 = vmatprep.subr.mxu0 0.0
    %292 = vmatpush1.msra.mxu0 0.0
    %293 = vmatprep.subr.mxu0 0.0
    %294 = vmatpush1.msra.mxu0 0.0
    %295 = vmatprep.mubr.f32.mxu0 0.0
    %v296 = vand.u32 %v56, 4294901760
    %v297 = vsub.f32 %v56, %v296
    %298 = vmatmul.mubr.f32.gmra.mrb[0].mxu0 %v297
    %v299 = vpop.f32.mrb[0].mxu0
    %v300 = vadd.f32 %v220, %v299
    %v301 = vpop.f32.mrb[0].mxu0
    %302 = vmatprep.mubr.f32.mxu0 0.0
    %v303 = vand.u32 %v59, 4294901760
    %v304 = vsub.f32 %v59, %v303
    %305 = vmatmul.mubr.f32.gmra.mrb[0].mxu0 %v304
    %v306 = vpop.f32.mrb[0].mxu0
    %v307 = vadd.f32 %v226, %v306
    %v308 = vpop.f32.mrb[0].mxu0
    %309 = vdwg.mxu0
    %310 = vmatprep.subr.mxu0 0.0
    %v311 = vand.u32 %v40, 4294901760
    %312 = vmatpush1.msra.mxu0 %v311
    %313 = vmatprep.subr.mxu0 0.0
    %314 = vmatpush1.msra.mxu0 0.0
    %315 = vmatprep.subr.mxu0 0.0
    %316 = vmatpush1.msra.mxu0 0.0
    %317 = vmatprep.subr.mxu0 0.0
    %318 = vmatpush1.msra.mxu0 0.0
    %319 = vmatprep.subr.mxu0 0.0
    %320 = vmatpush1.msra.mxu0 0.0
    %321 = vmatprep.subr.mxu0 0.0
    %322 = vmatpush1.msra.mxu0 0.0
    %323 = vmatprep.subr.mxu0 0.0
    %324 = vmatpush1.msra.mxu0 0.0
    %325 = vmatprep.subr.mxu0 0.0
    %326 = vmatpush1.msra.mxu0 0.0
    %327 = vmatprep.subr.mxu0 0.0
    %328 = vmatpush1.msra.mxu0 0.0
    %329 = vmatprep.subr.mxu0 0.0
    %330 = vmatpush1.msra.mxu0 0.0
    %331 = vmatprep.subr.mxu0 0.0
    %332 = vmatpush1.msra.mxu0 0.0
    %333 = vmatprep.subr.mxu0 0.0
    %334 = vmatpush1.msra.mxu0 0.0
    %335 = vmatprep.subr.mxu0 0.0
    %336 = vmatpush1.msra.mxu0 0.0
    %337 = vmatprep.subr.mxu0 0.0
    %338 = vmatpush1.msra.mxu0 0.0
    %339 = vmatprep.subr.mxu0 0.0
    %340 = vmatpush1.msra.mxu0 0.0
    %341 = vmatprep.subr.mxu0 0.0
    %342 = vmatpush1.msra.mxu0 0.0
    %343 = vmatprep.subr.mxu0 0.0
    %344 = vmatpush1.msra.mxu0 0.0
    %345 = vmatprep.subr.mxu0 0.0
    %346 = vmatpush1.msra.mxu0 0.0
    %347 = vmatprep.subr.mxu0 0.0
    %348 = vmatpush1.msra.mxu0 0.0
    %349 = vmatprep.subr.mxu0 0.0
    %350 = vmatpush1.msra.mxu0 0.0
    %351 = vmatprep.subr.mxu0 0.0
    %352 = vmatpush1.msra.mxu0 0.0
    %353 = vmatprep.subr.mxu0 0.0
    %354 = vmatpush1.msra.mxu0 0.0
    %355 = vmatprep.subr.mxu0 0.0
    %356 = vmatpush1.msra.mxu0 0.0
    %357 = vmatprep.subr.mxu0 0.0
    %358 = vmatpush1.msra.mxu0 0.0
    %359 = vmatprep.subr.mxu0 0.0
    %360 = vmatpush1.msra.mxu0 0.0
    %361 = vmatprep.subr.mxu0 0.0
    %362 = vmatpush1.msra.mxu0 0.0
    %363 = vmatprep.subr.mxu0 0.0
    %364 = vmatpush1.msra.mxu0 0.0
    %365 = vmatprep.subr.mxu0 0.0
    %366 = vmatpush1.msra.mxu0 0.0
    %367 = vmatprep.subr.mxu0 0.0
    %368 = vmatpush1.msra.mxu0 0.0
    %369 = vmatprep.subr.mxu0 0.0
    %370 = vmatpush1.msra.mxu0 0.0
    %371 = vmatprep.subr.mxu0 0.0
    %372 = vmatpush1.msra.mxu0 0.0
    %373 = vmatprep.subr.mxu0 0.0
    %374 = vmatpush1.msra.mxu0 0.0
    %375 = vmatprep.mubr.f32.mxu0 0.0
    %v376 = vand.u32 %v56, 4294901760
    %v377 = vsub.f32 %v56, %v376
    %v378 = vand.u32 %v377, 4294901760
    %379 = vmatmul.mubr.f32.gmra.mrb[0].mxu0 %v378
    %v380 = vpop.f32.mrb[0].mxu0
    %v381 = vadd.f32 %v300, %v380
    %v382 = vpop.f32.mrb[0].mxu0
    %383 = vmatprep.mubr.f32.mxu0 0.0
    %v384 = vand.u32 %v59, 4294901760
    %v385 = vsub.f32 %v59, %v384
    %v386 = vand.u32 %v385, 4294901760
    %387 = vmatmul.mubr.f32.gmra.mrb[0].mxu0 %v386
    %v388 = vpop.f32.mrb[0].mxu0
    %v389 = vadd.f32 %v307, %v388
    %v390 = vpop.f32.mrb[0].mxu0
    %391 = vdwg.mxu0
    %392 = vmatprep.subr.mxu0 0.0
    %v393 = vand.u32 %v40, 4294901760
    %v394 = vsub.f32 %v40, %v393
    %v395 = vand.u32 %v394, 4294901760
    %396 = vmatpush1.msra.mxu0 %v395
    %397 = vmatprep.subr.mxu0 0.0
    %398 = vmatpush1.msra.mxu0 0.0
    %399 = vmatprep.subr.mxu0 0.0
    %400 = vmatpush1.msra.mxu0 0.0
    %401 = vmatprep.subr.mxu0 0.0
    %402 = vmatpush1.msra.mxu0 0.0
    %403 = vmatprep.subr.mxu0 0.0
    %404 = vmatpush1.msra.mxu0 0.0
    %405 = vmatprep.subr.mxu0 0.0
    %406 = vmatpush1.msra.mxu0 0.0
    %407 = vmatprep.subr.mxu0 0.0
    %408 = vmatpush1.msra.mxu0 0.0
    %409 = vmatprep.subr.mxu0 0.0
    %410 = vmatpush1.msra.mxu0 0.0
    %411 = vmatprep.subr.mxu0 0.0
    %412 = vmatpush1.msra.mxu0 0.0
    %413 = vmatprep.subr.mxu0 0.0
    %414 = vmatpush1.msra.mxu0 0.0
    %415 = vmatprep.subr.mxu0 0.0
    %416 = vmatpush1.msra.mxu0 0.0
    %417 = vmatprep.subr.mxu0 0.0
    %418 = vmatpush1.msra.mxu0 0.0
    %419 = vmatprep.subr.mxu0 0.0
    %420 = vmatpush1.msra.mxu0 0.0
    %421 = vmatprep.subr.mxu0 0.0
    %422 = vmatpush1.msra.mxu0 0.0
    %423 = vmatprep.subr.mxu0 0.0
    %424 = vmatpush1.msra.mxu0 0.0
    %425 = vmatprep.subr.mxu0 0.0
    %426 = vmatpush1.msra.mxu0 0.0
    %427 = vmatprep.subr.mxu0 0.0
    %428 = vmatpush1.msra.mxu0 0.0
    %429 = vmatprep.subr.mxu0 0.0
    %430 = vmatpush1.msra.mxu0 0.0
    %431 = vmatprep.subr.mxu0 0.0
    %432 = vmatpush1.msra.mxu0 0.0
    %433 = vmatprep.subr.mxu0 0.0
    %434 = vmatpush1.msra.mxu0 0.0
    %435 = vmatprep.subr.mxu0 0.0
    %436 = vmatpush1.msra.mxu0 0.0
    %437 = vmatprep.subr.mxu0 0.0
    %438 = vmatpush1.msra.mxu0 0.0
    %439 = vmatprep.subr.mxu0 0.0
    %440 = vmatpush1.msra.mxu0 0.0
    %441 = vmatprep.subr.mxu0 0.0
    %442 = vmatpush1.msra.mxu0 0.0
    %443 = vmatprep.subr.mxu0 0.0
    %444 = vmatpush1.msra.mxu0 0.0
    %445 = vmatprep.subr.mxu0 0.0
    %446 = vmatpush1.msra.mxu0 0.0
    %447 = vmatprep.subr.mxu0 0.0
    %448 = vmatpush1.msra.mxu0 0.0
    %449 = vmatprep.subr.mxu0 0.0
    %450 = vmatpush1.msra.mxu0 0.0
    %451 = vmatprep.subr.mxu0 0.0
    %452 = vmatpush1.msra.mxu0 0.0
    %453 = vmatprep.subr.mxu0 0.0
    %454 = vmatpush1.msra.mxu0 0.0
    %455 = vmatprep.subr.mxu0 0.0
    %456 = vmatpush1.msra.mxu0 0.0
    %457 = vmatprep.subr.mxu0 0.0
    %458 = vmatpush1.msra.mxu0 0.0
    %459 = vmatprep.mubr.f32.mxu0 0.0
    %v460 = vand.u32 %v56, 4294901760
    %461 = vmatmul.mubr.f32.gmra.mrb[0].mxu0 %v460
    %v462 = vpop.f32.mrb[0].mxu0
    %v463 = vadd.f32 %v381, %v462
    %v464 = vpop.f32.mrb[0].mxu0
    %465 = vmatprep.mubr.f32.mxu0 0.0
    %v466 = vand.u32 %v59, 4294901760
    %467 = vmatmul.mubr.f32.gmra.mrb[0].mxu0 %v466
    %v468 = vpop.f32.mrb[0].mxu0
    %v469 = vadd.f32 %v389, %v468
    %v470 = vpop.f32.mrb[0].mxu0
    %471 = vdwg.mxu0
    %472 = vmatprep.subr.mxu0 0.0
    %v473 = vand.u32 %v40, 4294901760
    %474 = vmatpush1.msra.mxu0 %v473
    %475 = vmatprep.subr.mxu0 0.0
    %476 = vmatpush1.msra.mxu0 0.0
    %477 = vmatprep.subr.mxu0 0.0
    %478 = vmatpush1.msra.mxu0 0.0
    %479 = vmatprep.subr.mxu0 0.0
    %480 = vmatpush1.msra.mxu0 0.0
    %481 = vmatprep.subr.mxu0 0.0
    %482 = vmatpush1.msra.mxu0 0.0
    %483 = vmatprep.subr.mxu0 0.0
    %484 = vmatpush1.msra.mxu0 0.0
    %485 = vmatprep.subr.mxu0 0.0
    %486 = vmatpush1.msra.mxu0 0.0
    %487 = vmatprep.subr.mxu0 0.0
    %488 = vmatpush1.msra.mxu0 0.0
    %489 = vmatprep.subr.mxu0 0.0
    %490 = vmatpush1.msra.mxu0 0.0
    %491 = vmatprep.subr.mxu0 0.0
    %492 = vmatpush1.msra.mxu0 0.0
    %493 = vmatprep.subr.mxu0 0.0
    %494 = vmatpush1.msra.mxu0 0.0
    %495 = vmatprep.subr.mxu0 0.0
    %496 = vmatpush1.msra.mxu0 0.0
    %497 = vmatprep.subr.mxu0 0.0
    %498 = vmatpush1.msra.mxu0 0.0
    %499 = vmatprep.subr.mxu0 0.0
    %500 = vmatpush1.msra.mxu0 0.0
    %501 = vmatprep.subr.mxu0 0.0
    %502 = vmatpush1.msra.mxu0 0.0
    %503 = vmatprep.subr.mxu0 0.0
    %504 = vmatpush1.msra.mxu0 0.0
    %505 = vmatprep.subr.mxu0 0.0
    %506 = vmatpush1.msra.mxu0 0.0
    %507 = vmatprep.subr.mxu0 0.0
    %508 = vmatpush1.msra.mxu0 0.0
    %509 = vmatprep.subr.mxu0 0.0
    %510 = vmatpush1.msra.mxu0 0.0
    %511 = vmatprep.subr.mxu0 0.0
    %512 = vmatpush1.msra.mxu0 0.0
    %513 = vmatprep.subr.mxu0 0.0
    %514 = vmatpush1.msra.mxu0 0.0
    %515 = vmatprep.subr.mxu0 0.0
    %516 = vmatpush1.msra.mxu0 0.0
    %517 = vmatprep.subr.mxu0 0.0
    %518 = vmatpush1.msra.mxu0 0.0
    %519 = vmatprep.subr.mxu0 0.0
    %520 = vmatpush1.msra.mxu0 0.0
    %521 = vmatprep.subr.mxu0 0.0
    %522 = vmatpush1.msra.mxu0 0.0
    %523 = vmatprep.subr.mxu0 0.0
    %524 = vmatpush1.msra.mxu0 0.0
    %525 = vmatprep.subr.mxu0 0.0
    %526 = vmatpush1.msra.mxu0 0.0
    %527 = vmatprep.subr.mxu0 0.0
    %528 = vmatpush1.msra.mxu0 0.0
    %529 = vmatprep.subr.mxu0 0.0
    %530 = vmatpush1.msra.mxu0 0.0
    %531 = vmatprep.subr.mxu0 0.0
    %532 = vmatpush1.msra.mxu0 0.0
    %533 = vmatprep.subr.mxu0 0.0
    %534 = vmatpush1.msra.mxu0 0.0
    %535 = vmatprep.subr.mxu0 0.0
    %536 = vmatpush1.msra.mxu0 0.0
    %537 = vmatprep.mubr.f32.mxu0 0.0
    %v538 = vand.u32 %v56, 4294901760
    %539 = vmatmul.mubr.f32.gmra.mrb[0].mxu0 %v538
    %v540 = vpop.f32.mrb[0].mxu0
    %v541 = vadd.f32 %v463, %v540
    %v542 = vpop.f32.mrb[0].mxu0
    %543 = vmatprep.mubr.f32.mxu0 0.0
    %v544 = vand.u32 %v59, 4294901760
    %545 = vmatmul.mubr.f32.gmra.mrb[0].mxu0 %v544
    %v546 = vpop.f32.mrb[0].mxu0
    %v547 = vadd.f32 %v469, %v546
    %v548 = vpop.f32.mrb[0].mxu0
    %549 = vdwg.mxu0
    %vm550 = vcmask 261120
    %v551 = vsel %vm550, %v541, 0.0
    %552 = vadd.xlane.f32.xlu0 %v551
    %v553 = vpop.xlane.xlu0 %552
    %v554 = vsel %vm550, %v547, 0.0
    %555 = vadd.xlane.f32.xlu0 %v554
    %v556 = vpop.xlane.xlu0 %555
    %v557 = vrcp.pop 32.0
    %v558 = vmul.f32 %v553, %v557
    %v559 = vmul.f32 %v556, %v557
    %v560 = vsub.f32 %v541, %v558
    %v561 = vsub.f32 %v547, %v559
    %v562 = vmul.f32 %v560, %v560
    %v563 = vmul.f32 %v561, %v561
    %v564 = vsel %vm550, %v562, 0.0
    %565 = vadd.xlane.f32.xlu0 %v564
    %v566 = vpop.xlane.xlu0 %565
    %v567 = vsel %vm550, %v563, 0.0
    %568 = vadd.xlane.f32.xlu0 %v567
    %v569 = vpop.xlane.xlu0 %568
    %v570 = vmul.f32 %v566, %v557
    %v571 = vmul.f32 %v569, %v557
    %v572 = vadd.f32 %v570, 1e-05
    %v573 = vadd.f32 %v571, 1e-05
    %v574 = vrsqrt.pop %v572
    %v575 = vrsqrt.pop %v573
    %s576 = scalar_lea.vmem %s3, 16
    %v577 = vld [vmem:[%s576] sm:$0xff]
    %v578 = vld [vmem:[%s576 + $0x8] sm:$0xff]
    %v579 = vmul.f32 %v574, %v577
    %v580 = vmul.f32 %v575, %v578
    %582 = vset.pattern.permute.xlu0 0
    %583 = vperm.xlu0 %582, %v579
    %v584 = vpop.permute.xlu0 %583
    %587 = vset.pattern.permute.xlu0 0
    %588 = vperm.xlu0 %587, %v580
    %v589 = vpop.permute.xlu0 %588
    %v591 = vmul.f32 %v560, %v584
    %v592 = vmul.f32 %v561, %v589
    %s593 = scalar_lea.vmem %s3, 32
    %v594 = vld [vmem:[%s593] sm:$0xff]
    %v595 = vld [vmem:[%s593 + $0x8] sm:$0xff]
    %597 = vset.pattern.permute.xlu0 0
    %598 = vperm.xlu0 %597, %v594
    %v599 = vpop.permute.xlu0 %598
    %602 = vset.pattern.permute.xlu0 0
    %603 = vperm.xlu0 %602, %v595
    %v604 = vpop.permute.xlu0 %603
    %v606 = vadd.f32 %v591, %v599
    %v607 = vadd.f32 %v592, %v604
    %v608 = vmax.f32 %v606, 0.0
    %v609 = vmax.f32 %v607, 0.0
    %s610 = scalar_lea.vmem %s1, 16
    %v611 = vld [vmem:[%s610] sm:$0xff]
    %v612 = vld [vmem:[%s610 + $0x8] sm:$0xff]
    %s613 = scalar_lea.vmem %s3, 48
    %v614 = vld [vmem:[%s613] sm:$0xff]
    %v615 = vld [vmem:[%s613 + $0x8] sm:$0xff]
    %617 = vset.pattern.permute.xlu0 0
    %618 = vperm.xlu0 %617, %v614
    %v619 = vpop.permute.xlu0 %618
    %622 = vset.pattern.permute.xlu0 0
    %623 = vperm.xlu0 %622, %v615
    %v624 = vpop.permute.xlu0 %623
    %v627 = vsel %vm37, %v611, 0
    %v630 = vsel %vm37, %v612, 0
    %632 = vmatprep.subr.mxu0 0.0
    %v633 = vand.u32 %v608, 4294901760
    %634 = vmatpush1.msra.mxu0 %v633
    %635 = vmatprep.subr.mxu0 0.0
    %v636 = vand.u32 %v609, 4294901760
    %637 = vmatpush1.msra.mxu0 %v636
    %638 = vmatprep.subr.mxu0 0.0
    %639 = vmatpush1.msra.mxu0 0.0
    %640 = vmatprep.subr.mxu0 0.0
    %641 = vmatpush1.msra.mxu0 0.0
    %642 = vmatprep.subr.mxu0 0.0
    %643 = vmatpush1.msra.mxu0 0.0
    %644 = vmatprep.subr.mxu0 0.0
    %645 = vmatpush1.msra.mxu0 0.0
    %646 = vmatprep.subr.mxu0 0.0
    %647 = vmatpush1.msra.mxu0 0.0
    %648 = vmatprep.subr.mxu0 0.0
    %649 = vmatpush1.msra.mxu0 0.0
    %650 = vmatprep.subr.mxu0 0.0
    %651 = vmatpush1.msra.mxu0 0.0
    %652 = vmatprep.subr.mxu0 0.0
    %653 = vmatpush1.msra.mxu0 0.0
    %654 = vmatprep.subr.mxu0 0.0
    %655 = vmatpush1.msra.mxu0 0.0
    %656 = vmatprep.subr.mxu0 0.0
    %657 = vmatpush1.msra.mxu0 0.0
    %658 = vmatprep.subr.mxu0 0.0
    %659 = vmatpush1.msra.mxu0 0.0
    %660 = vmatprep.subr.mxu0 0.0
    %661 = vmatpush1.msra.mxu0 0.0
    %662 = vmatprep.subr.mxu0 0.0
    %663 = vmatpush1.msra.mxu0 0.0
    %664 = vmatprep.subr.mxu0 0.0
    %665 = vmatpush1.msra.mxu0 0.0
    %666 = vmatprep.subr.mxu0 0.0
    %667 = vmatpush1.msra.mxu0 0.0
    %668 = vmatprep.subr.mxu0 0.0
    %669 = vmatpush1.msra.mxu0 0.0
    %670 = vmatprep.subr.mxu0 0.0
    %671 = vmatpush1.msra.mxu0 0.0
    %672 = vmatprep.subr.mxu0 0.0
    %673 = vmatpush1.msra.mxu0 0.0
    %674 = vmatprep.subr.mxu0 0.0
    %675 = vmatpush1.msra.mxu0 0.0
    %676 = vmatprep.subr.mxu0 0.0
    %677 = vmatpush1.msra.mxu0 0.0
    %678 = vmatprep.subr.mxu0 0.0
    %679 = vmatpush1.msra.mxu0 0.0
    %680 = vmatprep.subr.mxu0 0.0
    %681 = vmatpush1.msra.mxu0 0.0
    %682 = vmatprep.subr.mxu0 0.0
    %683 = vmatpush1.msra.mxu0 0.0
    %684 = vmatprep.subr.mxu0 0.0
    %685 = vmatpush1.msra.mxu0 0.0
    %686 = vmatprep.subr.mxu0 0.0
    %687 = vmatpush1.msra.mxu0 0.0
    %688 = vmatprep.subr.mxu0 0.0
    %689 = vmatpush1.msra.mxu0 0.0
    %690 = vmatprep.subr.mxu0 0.0
    %691 = vmatpush1.msra.mxu0 0.0
    %692 = vmatprep.subr.mxu0 0.0
    %693 = vmatpush1.msra.mxu0 0.0
    %694 = vmatprep.subr.mxu0 0.0
    %695 = vmatpush1.msra.mxu0 0.0
    %696 = vmatprep.subr.mxu0 0.0
    %697 = vmatpush1.msra.mxu0 0.0
    %698 = vmatprep.mubr.f32.mxu0 0.0
    %v699 = vand.u32 %v627, 4294901760
    %v700 = vsub.f32 %v627, %v699
    %v701 = vand.u32 %v700, 4294901760
    %v702 = vsub.f32 %v700, %v701
    %v703 = vand.u32 %v702, 4294901760
    %704 = vmatmul.mubr.f32.gmra.mrb[0].mxu0 %v703
    %v705 = vpop.f32.mrb[0].mxu0
    %v706 = vadd.f32 %v619, %v705
    %v707 = vpop.f32.mrb[0].mxu0
    %708 = vmatprep.mubr.f32.mxu0 0.0
    %v709 = vand.u32 %v630, 4294901760
    %v710 = vsub.f32 %v630, %v709
    %v711 = vand.u32 %v710, 4294901760
    %v712 = vsub.f32 %v710, %v711
    %v713 = vand.u32 %v712, 4294901760
    %714 = vmatmul.mubr.f32.gmra.mrb[0].mxu0 %v713
    %v715 = vpop.f32.mrb[0].mxu0
    %v716 = vadd.f32 %v624, %v715
    %v717 = vpop.f32.mrb[0].mxu0
    %718 = vdwg.mxu0
    %719 = vmatprep.subr.mxu0 0.0
    %v720 = vand.u32 %v608, 4294901760
    %v721 = vsub.f32 %v608, %v720
    %v722 = vand.u32 %v721, 4294901760
    %v723 = vsub.f32 %v721, %v722
    %v724 = vand.u32 %v723, 4294901760
    %725 = vmatpush1.msra.mxu0 %v724
    %726 = vmatprep.subr.mxu0 0.0
    %v727 = vand.u32 %v609, 4294901760
    %v728 = vsub.f32 %v609, %v727
    %v729 = vand.u32 %v728, 4294901760
    %v730 = vsub.f32 %v728, %v729
    %v731 = vand.u32 %v730, 4294901760
    %732 = vmatpush1.msra.mxu0 %v731
    %733 = vmatprep.subr.mxu0 0.0
    %734 = vmatpush1.msra.mxu0 0.0
    %735 = vmatprep.subr.mxu0 0.0
    %736 = vmatpush1.msra.mxu0 0.0
    %737 = vmatprep.subr.mxu0 0.0
    %738 = vmatpush1.msra.mxu0 0.0
    %739 = vmatprep.subr.mxu0 0.0
    %740 = vmatpush1.msra.mxu0 0.0
    %741 = vmatprep.subr.mxu0 0.0
    %742 = vmatpush1.msra.mxu0 0.0
    %743 = vmatprep.subr.mxu0 0.0
    %744 = vmatpush1.msra.mxu0 0.0
    %745 = vmatprep.subr.mxu0 0.0
    %746 = vmatpush1.msra.mxu0 0.0
    %747 = vmatprep.subr.mxu0 0.0
    %748 = vmatpush1.msra.mxu0 0.0
    %749 = vmatprep.subr.mxu0 0.0
    %750 = vmatpush1.msra.mxu0 0.0
    %751 = vmatprep.subr.mxu0 0.0
    %752 = vmatpush1.msra.mxu0 0.0
    %753 = vmatprep.subr.mxu0 0.0
    %754 = vmatpush1.msra.mxu0 0.0
    %755 = vmatprep.subr.mxu0 0.0
    %756 = vmatpush1.msra.mxu0 0.0
    %757 = vmatprep.subr.mxu0 0.0
    %758 = vmatpush1.msra.mxu0 0.0
    %759 = vmatprep.subr.mxu0 0.0
    %760 = vmatpush1.msra.mxu0 0.0
    %761 = vmatprep.subr.mxu0 0.0
    %762 = vmatpush1.msra.mxu0 0.0
    %763 = vmatprep.subr.mxu0 0.0
    %764 = vmatpush1.msra.mxu0 0.0
    %765 = vmatprep.subr.mxu0 0.0
    %766 = vmatpush1.msra.mxu0 0.0
    %767 = vmatprep.subr.mxu0 0.0
    %768 = vmatpush1.msra.mxu0 0.0
    %769 = vmatprep.subr.mxu0 0.0
    %770 = vmatpush1.msra.mxu0 0.0
    %771 = vmatprep.subr.mxu0 0.0
    %772 = vmatpush1.msra.mxu0 0.0
    %773 = vmatprep.subr.mxu0 0.0
    %774 = vmatpush1.msra.mxu0 0.0
    %775 = vmatprep.subr.mxu0 0.0
    %776 = vmatpush1.msra.mxu0 0.0
    %777 = vmatprep.subr.mxu0 0.0
    %778 = vmatpush1.msra.mxu0 0.0
    %779 = vmatprep.subr.mxu0 0.0
    %780 = vmatpush1.msra.mxu0 0.0
    %781 = vmatprep.subr.mxu0 0.0
    %782 = vmatpush1.msra.mxu0 0.0
    %783 = vmatprep.subr.mxu0 0.0
    %784 = vmatpush1.msra.mxu0 0.0
    %785 = vmatprep.subr.mxu0 0.0
    %786 = vmatpush1.msra.mxu0 0.0
    %787 = vmatprep.subr.mxu0 0.0
    %788 = vmatpush1.msra.mxu0 0.0
    %789 = vmatprep.subr.mxu0 0.0
    %790 = vmatpush1.msra.mxu0 0.0
    %791 = vmatprep.subr.mxu0 0.0
    %792 = vmatpush1.msra.mxu0 0.0
    %793 = vmatprep.mubr.f32.mxu0 0.0
    %v794 = vand.u32 %v627, 4294901760
    %795 = vmatmul.mubr.f32.gmra.mrb[0].mxu0 %v794
    %v796 = vpop.f32.mrb[0].mxu0
    %v797 = vadd.f32 %v706, %v796
    %v798 = vpop.f32.mrb[0].mxu0
    %799 = vmatprep.mubr.f32.mxu0 0.0
    %v800 = vand.u32 %v630, 4294901760
    %801 = vmatmul.mubr.f32.gmra.mrb[0].mxu0 %v800
    %v802 = vpop.f32.mrb[0].mxu0
    %v803 = vadd.f32 %v716, %v802
    %v804 = vpop.f32.mrb[0].mxu0
    %805 = vdwg.mxu0
    %806 = vmatprep.subr.mxu0 0.0
    %v807 = vand.u32 %v608, 4294901760
    %v808 = vsub.f32 %v608, %v807
    %809 = vmatpush1.msra.mxu0 %v808
    %810 = vmatprep.subr.mxu0 0.0
    %v811 = vand.u32 %v609, 4294901760
    %v812 = vsub.f32 %v609, %v811
    %813 = vmatpush1.msra.mxu0 %v812
    %814 = vmatprep.subr.mxu0 0.0
    %815 = vmatpush1.msra.mxu0 0.0
    %816 = vmatprep.subr.mxu0 0.0
    %817 = vmatpush1.msra.mxu0 0.0
    %818 = vmatprep.subr.mxu0 0.0
    %819 = vmatpush1.msra.mxu0 0.0
    %820 = vmatprep.subr.mxu0 0.0
    %821 = vmatpush1.msra.mxu0 0.0
    %822 = vmatprep.subr.mxu0 0.0
    %823 = vmatpush1.msra.mxu0 0.0
    %824 = vmatprep.subr.mxu0 0.0
    %825 = vmatpush1.msra.mxu0 0.0
    %826 = vmatprep.subr.mxu0 0.0
    %827 = vmatpush1.msra.mxu0 0.0
    %828 = vmatprep.subr.mxu0 0.0
    %829 = vmatpush1.msra.mxu0 0.0
    %830 = vmatprep.subr.mxu0 0.0
    %831 = vmatpush1.msra.mxu0 0.0
    %832 = vmatprep.subr.mxu0 0.0
    %833 = vmatpush1.msra.mxu0 0.0
    %834 = vmatprep.subr.mxu0 0.0
    %835 = vmatpush1.msra.mxu0 0.0
    %836 = vmatprep.subr.mxu0 0.0
    %837 = vmatpush1.msra.mxu0 0.0
    %838 = vmatprep.subr.mxu0 0.0
    %839 = vmatpush1.msra.mxu0 0.0
    %840 = vmatprep.subr.mxu0 0.0
    %841 = vmatpush1.msra.mxu0 0.0
    %842 = vmatprep.subr.mxu0 0.0
    %843 = vmatpush1.msra.mxu0 0.0
    %844 = vmatprep.subr.mxu0 0.0
    %845 = vmatpush1.msra.mxu0 0.0
    %846 = vmatprep.subr.mxu0 0.0
    %847 = vmatpush1.msra.mxu0 0.0
    %848 = vmatprep.subr.mxu0 0.0
    %849 = vmatpush1.msra.mxu0 0.0
    %850 = vmatprep.subr.mxu0 0.0
    %851 = vmatpush1.msra.mxu0 0.0
    %852 = vmatprep.subr.mxu0 0.0
    %853 = vmatpush1.msra.mxu0 0.0
    %854 = vmatprep.subr.mxu0 0.0
    %855 = vmatpush1.msra.mxu0 0.0
    %856 = vmatprep.subr.mxu0 0.0
    %857 = vmatpush1.msra.mxu0 0.0
    %858 = vmatprep.subr.mxu0 0.0
    %859 = vmatpush1.msra.mxu0 0.0
    %860 = vmatprep.subr.mxu0 0.0
    %861 = vmatpush1.msra.mxu0 0.0
    %862 = vmatprep.subr.mxu0 0.0
    %863 = vmatpush1.msra.mxu0 0.0
    %864 = vmatprep.subr.mxu0 0.0
    %865 = vmatpush1.msra.mxu0 0.0
    %866 = vmatprep.subr.mxu0 0.0
    %867 = vmatpush1.msra.mxu0 0.0
    %868 = vmatprep.subr.mxu0 0.0
    %869 = vmatpush1.msra.mxu0 0.0
    %870 = vmatprep.subr.mxu0 0.0
    %871 = vmatpush1.msra.mxu0 0.0
    %872 = vmatprep.subr.mxu0 0.0
    %873 = vmatpush1.msra.mxu0 0.0
    %874 = vmatprep.mubr.f32.mxu0 0.0
    %v875 = vand.u32 %v627, 4294901760
    %v876 = vsub.f32 %v627, %v875
    %877 = vmatmul.mubr.f32.gmra.mrb[0].mxu0 %v876
    %v878 = vpop.f32.mrb[0].mxu0
    %v879 = vadd.f32 %v797, %v878
    %v880 = vpop.f32.mrb[0].mxu0
    %881 = vmatprep.mubr.f32.mxu0 0.0
    %v882 = vand.u32 %v630, 4294901760
    %v883 = vsub.f32 %v630, %v882
    %884 = vmatmul.mubr.f32.gmra.mrb[0].mxu0 %v883
    %v885 = vpop.f32.mrb[0].mxu0
    %v886 = vadd.f32 %v803, %v885
    %v887 = vpop.f32.mrb[0].mxu0
    %888 = vdwg.mxu0
    %889 = vmatprep.subr.mxu0 0.0
    %v890 = vand.u32 %v608, 4294901760
    %891 = vmatpush1.msra.mxu0 %v890
    %892 = vmatprep.subr.mxu0 0.0
    %v893 = vand.u32 %v609, 4294901760
    %894 = vmatpush1.msra.mxu0 %v893
    %895 = vmatprep.subr.mxu0 0.0
    %896 = vmatpush1.msra.mxu0 0.0
    %897 = vmatprep.subr.mxu0 0.0
    %898 = vmatpush1.msra.mxu0 0.0
    %899 = vmatprep.subr.mxu0 0.0
    %900 = vmatpush1.msra.mxu0 0.0
    %901 = vmatprep.subr.mxu0 0.0
    %902 = vmatpush1.msra.mxu0 0.0
    %903 = vmatprep.subr.mxu0 0.0
    %904 = vmatpush1.msra.mxu0 0.0
    %905 = vmatprep.subr.mxu0 0.0
    %906 = vmatpush1.msra.mxu0 0.0
    %907 = vmatprep.subr.mxu0 0.0
    %908 = vmatpush1.msra.mxu0 0.0
    %909 = vmatprep.subr.mxu0 0.0
    %910 = vmatpush1.msra.mxu0 0.0
    %911 = vmatprep.subr.mxu0 0.0
    %912 = vmatpush1.msra.mxu0 0.0
    %913 = vmatprep.subr.mxu0 0.0
    %914 = vmatpush1.msra.mxu0 0.0
    %915 = vmatprep.subr.mxu0 0.0
    %916 = vmatpush1.msra.mxu0 0.0
    %917 = vmatprep.subr.mxu0 0.0
    %918 = vmatpush1.msra.mxu0 0.0
    %919 = vmatprep.subr.mxu0 0.0
    %920 = vmatpush1.msra.mxu0 0.0
    %921 = vmatprep.subr.mxu0 0.0
    %922 = vmatpush1.msra.mxu0 0.0
    %923 = vmatprep.subr.mxu0 0.0
    %924 = vmatpush1.msra.mxu0 0.0
    %925 = vmatprep.subr.mxu0 0.0
    %926 = vmatpush1.msra.mxu0 0.0
    %927 = vmatprep.subr.mxu0 0.0
    %928 = vmatpush1.msra.mxu0 0.0
    %929 = vmatprep.subr.mxu0 0.0
    %930 = vmatpush1.msra.mxu0 0.0
    %931 = vmatprep.subr.mxu0 0.0
    %932 = vmatpush1.msra.mxu0 0.0
    %933 = vmatprep.subr.mxu0 0.0
    %934 = vmatpush1.msra.mxu0 0.0
    %935 = vmatprep.subr.mxu0 0.0
    %936 = vmatpush1.msra.mxu0 0.0
    %937 = vmatprep.subr.mxu0 0.0
    %938 = vmatpush1.msra.mxu0 0.0
    %939 = vmatprep.subr.mxu0 0.0
    %940 = vmatpush1.msra.mxu0 0.0
    %941 = vmatprep.subr.mxu0 0.0
    %942 = vmatpush1.msra.mxu0 0.0
    %943 = vmatprep.subr.mxu0 0.0
    %944 = vmatpush1.msra.mxu0 0.0
    %945 = vmatprep.subr.mxu0 0.0
    %946 = vmatpush1.msra.mxu0 0.0
    %947 = vmatprep.subr.mxu0 0.0
    %948 = vmatpush1.msra.mxu0 0.0
    %949 = vmatprep.subr.mxu0 0.0
    %950 = vmatpush1.msra.mxu0 0.0
    %951 = vmatprep.subr.mxu0 0.0
    %952 = vmatpush1.msra.mxu0 0.0
    %953 = vmatprep.subr.mxu0 0.0
    %954 = vmatpush1.msra.mxu0 0.0
    %955 = vmatprep.mubr.f32.mxu0 0.0
    %v956 = vand.u32 %v627, 4294901760
    %v957 = vsub.f32 %v627, %v956
    %v958 = vand.u32 %v957, 4294901760
    %959 = vmatmul.mubr.f32.gmra.mrb[0].mxu0 %v958
    %v960 = vpop.f32.mrb[0].mxu0
    %v961 = vadd.f32 %v879, %v960
    %v962 = vpop.f32.mrb[0].mxu0
    %963 = vmatprep.mubr.f32.mxu0 0.0
    %v964 = vand.u32 %v630, 4294901760
    %v965 = vsub.f32 %v630, %v964
    %v966 = vand.u32 %v965, 4294901760
    %967 = vmatmul.mubr.f32.gmra.mrb[0].mxu0 %v966
    %v968 = vpop.f32.mrb[0].mxu0
    %v969 = vadd.f32 %v886, %v968
    %v970 = vpop.f32.mrb[0].mxu0
    %971 = vdwg.mxu0
    %972 = vmatprep.subr.mxu0 0.0
    %v973 = vand.u32 %v608, 4294901760
    %v974 = vsub.f32 %v608, %v973
    %v975 = vand.u32 %v974, 4294901760
    %976 = vmatpush1.msra.mxu0 %v975
    %977 = vmatprep.subr.mxu0 0.0
    %v978 = vand.u32 %v609, 4294901760
    %v979 = vsub.f32 %v609, %v978
    %v980 = vand.u32 %v979, 4294901760
    %981 = vmatpush1.msra.mxu0 %v980
    %982 = vmatprep.subr.mxu0 0.0
    %983 = vmatpush1.msra.mxu0 0.0
    %984 = vmatprep.subr.mxu0 0.0
    %985 = vmatpush1.msra.mxu0 0.0
    %986 = vmatprep.subr.mxu0 0.0
    %987 = vmatpush1.msra.mxu0 0.0
    %988 = vmatprep.subr.mxu0 0.0
    %989 = vmatpush1.msra.mxu0 0.0
    %990 = vmatprep.subr.mxu0 0.0
    %991 = vmatpush1.msra.mxu0 0.0
    %992 = vmatprep.subr.mxu0 0.0
    %993 = vmatpush1.msra.mxu0 0.0
    %994 = vmatprep.subr.mxu0 0.0
    %995 = vmatpush1.msra.mxu0 0.0
    %996 = vmatprep.subr.mxu0 0.0
    %997 = vmatpush1.msra.mxu0 0.0
    %998 = vmatprep.subr.mxu0 0.0
    %999 = vmatpush1.msra.mxu0 0.0
    %1000 = vmatprep.subr.mxu0 0.0
    %1001 = vmatpush1.msra.mxu0 0.0
    %1002 = vmatprep.subr.mxu0 0.0
    %1003 = vmatpush1.msra.mxu0 0.0
    %1004 = vmatprep.subr.mxu0 0.0
    %1005 = vmatpush1.msra.mxu0 0.0
    %1006 = vmatprep.subr.mxu0 0.0
    %1007 = vmatpush1.msra.mxu0 0.0
    %1008 = vmatprep.subr.mxu0 0.0
    %1009 = vmatpush1.msra.mxu0 0.0
    %1010 = vmatprep.subr.mxu0 0.0
    %1011 = vmatpush1.msra.mxu0 0.0
    %1012 = vmatprep.subr.mxu0 0.0
    %1013 = vmatpush1.msra.mxu0 0.0
    %1014 = vmatprep.subr.mxu0 0.0
    %1015 = vmatpush1.msra.mxu0 0.0
    %1016 = vmatprep.subr.mxu0 0.0
    %1017 = vmatpush1.msra.mxu0 0.0
    %1018 = vmatprep.subr.mxu0 0.0
    %1019 = vmatpush1.msra.mxu0 0.0
    %1020 = vmatprep.subr.mxu0 0.0
    %1021 = vmatpush1.msra.mxu0 0.0
    %1022 = vmatprep.subr.mxu0 0.0
    %1023 = vmatpush1.msra.mxu0 0.0
    %1024 = vmatprep.subr.mxu0 0.0
    %1025 = vmatpush1.msra.mxu0 0.0
    %1026 = vmatprep.subr.mxu0 0.0
    %1027 = vmatpush1.msra.mxu0 0.0
    %1028 = vmatprep.subr.mxu0 0.0
    %1029 = vmatpush1.msra.mxu0 0.0
    %1030 = vmatprep.subr.mxu0 0.0
    %1031 = vmatpush1.msra.mxu0 0.0
    %1032 = vmatprep.subr.mxu0 0.0
    %1033 = vmatpush1.msra.mxu0 0.0
    %1034 = vmatprep.subr.mxu0 0.0
    %1035 = vmatpush1.msra.mxu0 0.0
    %1036 = vmatprep.subr.mxu0 0.0
    %1037 = vmatpush1.msra.mxu0 0.0
    %1038 = vmatprep.subr.mxu0 0.0
    %1039 = vmatpush1.msra.mxu0 0.0
    %1040 = vmatprep.subr.mxu0 0.0
    %1041 = vmatpush1.msra.mxu0 0.0
    %1042 = vmatprep.mubr.f32.mxu0 0.0
    %v1043 = vand.u32 %v627, 4294901760
    %1044 = vmatmul.mubr.f32.gmra.mrb[0].mxu0 %v1043
    %v1045 = vpop.f32.mrb[0].mxu0
    %v1046 = vadd.f32 %v961, %v1045
    %v1047 = vpop.f32.mrb[0].mxu0
    %1048 = vmatprep.mubr.f32.mxu0 0.0
    %v1049 = vand.u32 %v630, 4294901760
    %1050 = vmatmul.mubr.f32.gmra.mrb[0].mxu0 %v1049
    %v1051 = vpop.f32.mrb[0].mxu0
    %v1052 = vadd.f32 %v969, %v1051
    %v1053 = vpop.f32.mrb[0].mxu0
    %1054 = vdwg.mxu0
    %1055 = vmatprep.subr.mxu0 0.0
    %v1056 = vand.u32 %v608, 4294901760
    %1057 = vmatpush1.msra.mxu0 %v1056
    %1058 = vmatprep.subr.mxu0 0.0
    %v1059 = vand.u32 %v609, 4294901760
    %1060 = vmatpush1.msra.mxu0 %v1059
    %1061 = vmatprep.subr.mxu0 0.0
    %1062 = vmatpush1.msra.mxu0 0.0
    %1063 = vmatprep.subr.mxu0 0.0
    %1064 = vmatpush1.msra.mxu0 0.0
    %1065 = vmatprep.subr.mxu0 0.0
    %1066 = vmatpush1.msra.mxu0 0.0
    %1067 = vmatprep.subr.mxu0 0.0
    %1068 = vmatpush1.msra.mxu0 0.0
    %1069 = vmatprep.subr.mxu0 0.0
    %1070 = vmatpush1.msra.mxu0 0.0
    %1071 = vmatprep.subr.mxu0 0.0
    %1072 = vmatpush1.msra.mxu0 0.0
    %1073 = vmatprep.subr.mxu0 0.0
    %1074 = vmatpush1.msra.mxu0 0.0
    %1075 = vmatprep.subr.mxu0 0.0
    %1076 = vmatpush1.msra.mxu0 0.0
    %1077 = vmatprep.subr.mxu0 0.0
    %1078 = vmatpush1.msra.mxu0 0.0
    %1079 = vmatprep.subr.mxu0 0.0
    %1080 = vmatpush1.msra.mxu0 0.0
    %1081 = vmatprep.subr.mxu0 0.0
    %1082 = vmatpush1.msra.mxu0 0.0
    %1083 = vmatprep.subr.mxu0 0.0
    %1084 = vmatpush1.msra.mxu0 0.0
    %1085 = vmatprep.subr.mxu0 0.0
    %1086 = vmatpush1.msra.mxu0 0.0
    %1087 = vmatprep.subr.mxu0 0.0
    %1088 = vmatpush1.msra.mxu0 0.0
    %1089 = vmatprep.subr.mxu0 0.0
    %1090 = vmatpush1.msra.mxu0 0.0
    %1091 = vmatprep.subr.mxu0 0.0
    %1092 = vmatpush1.msra.mxu0 0.0
    %1093 = vmatprep.subr.mxu0 0.0
    %1094 = vmatpush1.msra.mxu0 0.0
    %1095 = vmatprep.subr.mxu0 0.0
    %1096 = vmatpush1.msra.mxu0 0.0
    %1097 = vmatprep.subr.mxu0 0.0
    %1098 = vmatpush1.msra.mxu0 0.0
    %1099 = vmatprep.subr.mxu0 0.0
    %1100 = vmatpush1.msra.mxu0 0.0
    %1101 = vmatprep.subr.mxu0 0.0
    %1102 = vmatpush1.msra.mxu0 0.0
    %1103 = vmatprep.subr.mxu0 0.0
    %1104 = vmatpush1.msra.mxu0 0.0
    %1105 = vmatprep.subr.mxu0 0.0
    %1106 = vmatpush1.msra.mxu0 0.0
    %1107 = vmatprep.subr.mxu0 0.0
    %1108 = vmatpush1.msra.mxu0 0.0
    %1109 = vmatprep.subr.mxu0 0.0
    %1110 = vmatpush1.msra.mxu0 0.0
    %1111 = vmatprep.subr.mxu0 0.0
    %1112 = vmatpush1.msra.mxu0 0.0
    %1113 = vmatprep.subr.mxu0 0.0
    %1114 = vmatpush1.msra.mxu0 0.0
    %1115 = vmatprep.subr.mxu0 0.0
    %1116 = vmatpush1.msra.mxu0 0.0
    %1117 = vmatprep.subr.mxu0 0.0
    %1118 = vmatpush1.msra.mxu0 0.0
    %1119 = vmatprep.subr.mxu0 0.0
    %1120 = vmatpush1.msra.mxu0 0.0
    %1121 = vmatprep.mubr.f32.mxu0 0.0
    %v1122 = vand.u32 %v627, 4294901760
    %1123 = vmatmul.mubr.f32.gmra.mrb[0].mxu0 %v1122
    %v1124 = vpop.f32.mrb[0].mxu0
    %v1125 = vadd.f32 %v1046, %v1124
    %v1126 = vpop.f32.mrb[0].mxu0
    %1127 = vmatprep.mubr.f32.mxu0 0.0
    %v1128 = vand.u32 %v630, 4294901760
    %1129 = vmatmul.mubr.f32.gmra.mrb[0].mxu0 %v1128
    %v1130 = vpop.f32.mrb[0].mxu0
    %v1131 = vadd.f32 %v1052, %v1130
    %v1132 = vpop.f32.mrb[0].mxu0
    %1133 = vdwg.mxu0
    %v1134 = vsel %vm550, %v1125, 0.0
    %1135 = vadd.xlane.f32.xlu0 %v1134
    %v1136 = vpop.xlane.xlu0 %1135
    %v1137 = vsel %vm550, %v1131, 0.0
    %1138 = vadd.xlane.f32.xlu0 %v1137
    %v1139 = vpop.xlane.xlu0 %1138
    %v1140 = vmul.f32 %v1136, %v557
    %v1141 = vmul.f32 %v1139, %v557
    %v1142 = vsub.f32 %v1125, %v1140
    %v1143 = vsub.f32 %v1131, %v1141
    %v1144 = vmul.f32 %v1142, %v1142
    %v1145 = vmul.f32 %v1143, %v1143
    %v1146 = vsel %vm550, %v1144, 0.0
    %1147 = vadd.xlane.f32.xlu0 %v1146
    %v1148 = vpop.xlane.xlu0 %1147
    %v1149 = vsel %vm550, %v1145, 0.0
    %1150 = vadd.xlane.f32.xlu0 %v1149
    %v1151 = vpop.xlane.xlu0 %1150
    %v1152 = vmul.f32 %v1148, %v557
    %v1153 = vmul.f32 %v1151, %v557
    %v1154 = vadd.f32 %v1152, 1e-05
    %v1155 = vadd.f32 %v1153, 1e-05
    %v1156 = vrsqrt.pop %v1154
    %v1157 = vrsqrt.pop %v1155
    %s1158 = scalar_lea.vmem %s3, 64
    %v1159 = vld [vmem:[%s1158] sm:$0xff]
    %v1160 = vld [vmem:[%s1158 + $0x8] sm:$0xff]
    %v1161 = vmul.f32 %v1156, %v1159
    %v1162 = vmul.f32 %v1157, %v1160
    %1164 = vset.pattern.permute.xlu0 0
    %1165 = vperm.xlu0 %1164, %v1161
    %v1166 = vpop.permute.xlu0 %1165
    %1169 = vset.pattern.permute.xlu0 0
    %1170 = vperm.xlu0 %1169, %v1162
    %v1171 = vpop.permute.xlu0 %1170
    %v1173 = vmul.f32 %v1142, %v1166
    %v1174 = vmul.f32 %v1143, %v1171
    %s1175 = scalar_lea.vmem %s3, 80
    %v1176 = vld [vmem:[%s1175] sm:$0xff]
    %v1177 = vld [vmem:[%s1175 + $0x8] sm:$0xff]
    %1179 = vset.pattern.permute.xlu0 0
    %1180 = vperm.xlu0 %1179, %v1176
    %v1181 = vpop.permute.xlu0 %1180
    %1184 = vset.pattern.permute.xlu0 0
    %1185 = vperm.xlu0 %1184, %v1177
    %v1186 = vpop.permute.xlu0 %1185
    %v1188 = vadd.f32 %v1173, %v1181
    %v1189 = vadd.f32 %v1174, %v1186
    %v1190 = vmax.f32 %v1188, 0.0
    %v1191 = vmax.f32 %v1189, 0.0
    %s1192 = scalar_lea.vmem %s1, 32
    %v1193 = vld [vmem:[%s1192] sm:$0xff]
    %v1194 = vld [vmem:[%s1192 + $0x8] sm:$0xff]
    %s1195 = scalar_lea.vmem %s1, 48
    %v1196 = vld [vmem:[%s1195] sm:$0xff]
    %v1197 = vld [vmem:[%s1195 + $0x8] sm:$0xff]
    %v1199 = vsel %vm37, %v1196, 0
    %v1202 = vsel %vm37, %v1197, 0
    %1204 = vmatprep.subr.mxu0 0.0
    %v1205 = vand.u32 %v1190, 4294901760
    %1206 = vmatpush1.msra.mxu0 %v1205
    %1207 = vmatprep.subr.mxu0 0.0
    %v1208 = vand.u32 %v1191, 4294901760
    %1209 = vmatpush1.msra.mxu0 %v1208
    %1210 = vmatprep.subr.mxu0 0.0
    %1211 = vmatpush1.msra.mxu0 0.0
    %1212 = vmatprep.subr.mxu0 0.0
    %1213 = vmatpush1.msra.mxu0 0.0
    %1214 = vmatprep.subr.mxu0 0.0
    %1215 = vmatpush1.msra.mxu0 0.0
    %1216 = vmatprep.subr.mxu0 0.0
    %1217 = vmatpush1.msra.mxu0 0.0
    %1218 = vmatprep.subr.mxu0 0.0
    %1219 = vmatpush1.msra.mxu0 0.0
    %1220 = vmatprep.subr.mxu0 0.0
    %1221 = vmatpush1.msra.mxu0 0.0
    %1222 = vmatprep.subr.mxu0 0.0
    %1223 = vmatpush1.msra.mxu0 0.0
    %1224 = vmatprep.subr.mxu0 0.0
    %1225 = vmatpush1.msra.mxu0 0.0
    %1226 = vmatprep.subr.mxu0 0.0
    %1227 = vmatpush1.msra.mxu0 0.0
    %1228 = vmatprep.subr.mxu0 0.0
    %1229 = vmatpush1.msra.mxu0 0.0
    %1230 = vmatprep.subr.mxu0 0.0
    %1231 = vmatpush1.msra.mxu0 0.0
    %1232 = vmatprep.subr.mxu0 0.0
    %1233 = vmatpush1.msra.mxu0 0.0
    %1234 = vmatprep.subr.mxu0 0.0
    %1235 = vmatpush1.msra.mxu0 0.0
    %1236 = vmatprep.subr.mxu0 0.0
    %1237 = vmatpush1.msra.mxu0 0.0
    %1238 = vmatprep.subr.mxu0 0.0
    %1239 = vmatpush1.msra.mxu0 0.0
    %1240 = vmatprep.subr.mxu0 0.0
    %1241 = vmatpush1.msra.mxu0 0.0
    %1242 = vmatprep.subr.mxu0 0.0
    %1243 = vmatpush1.msra.mxu0 0.0
    %1244 = vmatprep.subr.mxu0 0.0
    %1245 = vmatpush1.msra.mxu0 0.0
    %1246 = vmatprep.subr.mxu0 0.0
    %1247 = vmatpush1.msra.mxu0 0.0
    %1248 = vmatprep.subr.mxu0 0.0
    %1249 = vmatpush1.msra.mxu0 0.0
    %1250 = vmatprep.subr.mxu0 0.0
    %1251 = vmatpush1.msra.mxu0 0.0
    %1252 = vmatprep.subr.mxu0 0.0
    %1253 = vmatpush1.msra.mxu0 0.0
    %1254 = vmatprep.subr.mxu0 0.0
    %1255 = vmatpush1.msra.mxu0 0.0
    %1256 = vmatprep.subr.mxu0 0.0
    %1257 = vmatpush1.msra.mxu0 0.0
    %1258 = vmatprep.subr.mxu0 0.0
    %1259 = vmatpush1.msra.mxu0 0.0
    %1260 = vmatprep.subr.mxu0 0.0
    %1261 = vmatpush1.msra.mxu0 0.0
    %1262 = vmatprep.subr.mxu0 0.0
    %1263 = vmatpush1.msra.mxu0 0.0
    %1264 = vmatprep.subr.mxu0 0.0
    %1265 = vmatpush1.msra.mxu0 0.0
    %1266 = vmatprep.subr.mxu0 0.0
    %1267 = vmatpush1.msra.mxu0 0.0
    %1268 = vmatprep.subr.mxu0 0.0
    %1269 = vmatpush1.msra.mxu0 0.0
    %1270 = vmatprep.mubr.f32.mxu0 0.0
    %v1271 = vand.u32 %v1199, 4294901760
    %v1272 = vsub.f32 %v1199, %v1271
    %v1273 = vand.u32 %v1272, 4294901760
    %v1274 = vsub.f32 %v1272, %v1273
    %v1275 = vand.u32 %v1274, 4294901760
    %1276 = vmatmul.mubr.f32.gmra.mrb[0].mxu0 %v1275
    %v1277 = vpop.f32.mrb[0].mxu0
    %v1278 = vadd.f32 0.0, %v1277
    %v1279 = vpop.f32.mrb[0].mxu0
    %1280 = vmatprep.mubr.f32.mxu0 0.0
    %v1281 = vand.u32 %v1202, 4294901760
    %v1282 = vsub.f32 %v1202, %v1281
    %v1283 = vand.u32 %v1282, 4294901760
    %v1284 = vsub.f32 %v1282, %v1283
    %v1285 = vand.u32 %v1284, 4294901760
    %1286 = vmatmul.mubr.f32.gmra.mrb[0].mxu0 %v1285
    %v1287 = vpop.f32.mrb[0].mxu0
    %v1288 = vadd.f32 0.0, %v1287
    %v1289 = vpop.f32.mrb[0].mxu0
    %1290 = vdwg.mxu0
    %1291 = vmatprep.subr.mxu0 0.0
    %v1292 = vand.u32 %v1190, 4294901760
    %v1293 = vsub.f32 %v1190, %v1292
    %v1294 = vand.u32 %v1293, 4294901760
    %v1295 = vsub.f32 %v1293, %v1294
    %v1296 = vand.u32 %v1295, 4294901760
    %1297 = vmatpush1.msra.mxu0 %v1296
    %1298 = vmatprep.subr.mxu0 0.0
    %v1299 = vand.u32 %v1191, 4294901760
    %v1300 = vsub.f32 %v1191, %v1299
    %v1301 = vand.u32 %v1300, 4294901760
    %v1302 = vsub.f32 %v1300, %v1301
    %v1303 = vand.u32 %v1302, 4294901760
    %1304 = vmatpush1.msra.mxu0 %v1303
    %1305 = vmatprep.subr.mxu0 0.0
    %1306 = vmatpush1.msra.mxu0 0.0
    %1307 = vmatprep.subr.mxu0 0.0
    %1308 = vmatpush1.msra.mxu0 0.0
    %1309 = vmatprep.subr.mxu0 0.0
    %1310 = vmatpush1.msra.mxu0 0.0
    %1311 = vmatprep.subr.mxu0 0.0
    %1312 = vmatpush1.msra.mxu0 0.0
    %1313 = vmatprep.subr.mxu0 0.0
    %1314 = vmatpush1.msra.mxu0 0.0
    %1315 = vmatprep.subr.mxu0 0.0
    %1316 = vmatpush1.msra.mxu0 0.0
    %1317 = vmatprep.subr.mxu0 0.0
    %1318 = vmatpush1.msra.mxu0 0.0
    %1319 = vmatprep.subr.mxu0 0.0
    %1320 = vmatpush1.msra.mxu0 0.0
    %1321 = vmatprep.subr.mxu0 0.0
    %1322 = vmatpush1.msra.mxu0 0.0
    %1323 = vmatprep.subr.mxu0 0.0
    %1324 = vmatpush1.msra.mxu0 0.0
    %1325 = vmatprep.subr.mxu0 0.0
    %1326 = vmatpush1.msra.mxu0 0.0
    %1327 = vmatprep.subr.mxu0 0.0
    %1328 = vmatpush1.msra.mxu0 0.0
    %1329 = vmatprep.subr.mxu0 0.0
    %1330 = vmatpush1.msra.mxu0 0.0
    %1331 = vmatprep.subr.mxu0 0.0
    %1332 = vmatpush1.msra.mxu0 0.0
    %1333 = vmatprep.subr.mxu0 0.0
    %1334 = vmatpush1.msra.mxu0 0.0
    %1335 = vmatprep.subr.mxu0 0.0
    %1336 = vmatpush1.msra.mxu0 0.0
    %1337 = vmatprep.subr.mxu0 0.0
    %1338 = vmatpush1.msra.mxu0 0.0
    %1339 = vmatprep.subr.mxu0 0.0
    %1340 = vmatpush1.msra.mxu0 0.0
    %1341 = vmatprep.subr.mxu0 0.0
    %1342 = vmatpush1.msra.mxu0 0.0
    %1343 = vmatprep.subr.mxu0 0.0
    %1344 = vmatpush1.msra.mxu0 0.0
    %1345 = vmatprep.subr.mxu0 0.0
    %1346 = vmatpush1.msra.mxu0 0.0
    %1347 = vmatprep.subr.mxu0 0.0
    %1348 = vmatpush1.msra.mxu0 0.0
    %1349 = vmatprep.subr.mxu0 0.0
    %1350 = vmatpush1.msra.mxu0 0.0
    %1351 = vmatprep.subr.mxu0 0.0
    %1352 = vmatpush1.msra.mxu0 0.0
    %1353 = vmatprep.subr.mxu0 0.0
    %1354 = vmatpush1.msra.mxu0 0.0
    %1355 = vmatprep.subr.mxu0 0.0
    %1356 = vmatpush1.msra.mxu0 0.0
    %1357 = vmatprep.subr.mxu0 0.0
    %1358 = vmatpush1.msra.mxu0 0.0
    %1359 = vmatprep.subr.mxu0 0.0
    %1360 = vmatpush1.msra.mxu0 0.0
    %1361 = vmatprep.subr.mxu0 0.0
    %1362 = vmatpush1.msra.mxu0 0.0
    %1363 = vmatprep.subr.mxu0 0.0
    %1364 = vmatpush1.msra.mxu0 0.0
    %1365 = vmatprep.mubr.f32.mxu0 0.0
    %v1366 = vand.u32 %v1199, 4294901760
    %1367 = vmatmul.mubr.f32.gmra.mrb[0].mxu0 %v1366
    %v1368 = vpop.f32.mrb[0].mxu0
    %v1369 = vadd.f32 %v1278, %v1368
    %v1370 = vpop.f32.mrb[0].mxu0
    %1371 = vmatprep.mubr.f32.mxu0 0.0
    %v1372 = vand.u32 %v1202, 4294901760
    %1373 = vmatmul.mubr.f32.gmra.mrb[0].mxu0 %v1372
    %v1374 = vpop.f32.mrb[0].mxu0
    %v1375 = vadd.f32 %v1288, %v1374
    %v1376 = vpop.f32.mrb[0].mxu0
    %1377 = vdwg.mxu0
    %1378 = vmatprep.subr.mxu0 0.0
    %v1379 = vand.u32 %v1190, 4294901760
    %v1380 = vsub.f32 %v1190, %v1379
    %1381 = vmatpush1.msra.mxu0 %v1380
    %1382 = vmatprep.subr.mxu0 0.0
    %v1383 = vand.u32 %v1191, 4294901760
    %v1384 = vsub.f32 %v1191, %v1383
    %1385 = vmatpush1.msra.mxu0 %v1384
    %1386 = vmatprep.subr.mxu0 0.0
    %1387 = vmatpush1.msra.mxu0 0.0
    %1388 = vmatprep.subr.mxu0 0.0
    %1389 = vmatpush1.msra.mxu0 0.0
    %1390 = vmatprep.subr.mxu0 0.0
    %1391 = vmatpush1.msra.mxu0 0.0
    %1392 = vmatprep.subr.mxu0 0.0
    %1393 = vmatpush1.msra.mxu0 0.0
    %1394 = vmatprep.subr.mxu0 0.0
    %1395 = vmatpush1.msra.mxu0 0.0
    %1396 = vmatprep.subr.mxu0 0.0
    %1397 = vmatpush1.msra.mxu0 0.0
    %1398 = vmatprep.subr.mxu0 0.0
    %1399 = vmatpush1.msra.mxu0 0.0
    %1400 = vmatprep.subr.mxu0 0.0
    %1401 = vmatpush1.msra.mxu0 0.0
    %1402 = vmatprep.subr.mxu0 0.0
    %1403 = vmatpush1.msra.mxu0 0.0
    %1404 = vmatprep.subr.mxu0 0.0
    %1405 = vmatpush1.msra.mxu0 0.0
    %1406 = vmatprep.subr.mxu0 0.0
    %1407 = vmatpush1.msra.mxu0 0.0
    %1408 = vmatprep.subr.mxu0 0.0
    %1409 = vmatpush1.msra.mxu0 0.0
    %1410 = vmatprep.subr.mxu0 0.0
    %1411 = vmatpush1.msra.mxu0 0.0
    %1412 = vmatprep.subr.mxu0 0.0
    %1413 = vmatpush1.msra.mxu0 0.0
    %1414 = vmatprep.subr.mxu0 0.0
    %1415 = vmatpush1.msra.mxu0 0.0
    %1416 = vmatprep.subr.mxu0 0.0
    %1417 = vmatpush1.msra.mxu0 0.0
    %1418 = vmatprep.subr.mxu0 0.0
    %1419 = vmatpush1.msra.mxu0 0.0
    %1420 = vmatprep.subr.mxu0 0.0
    %1421 = vmatpush1.msra.mxu0 0.0
    %1422 = vmatprep.subr.mxu0 0.0
    %1423 = vmatpush1.msra.mxu0 0.0
    %1424 = vmatprep.subr.mxu0 0.0
    %1425 = vmatpush1.msra.mxu0 0.0
    %1426 = vmatprep.subr.mxu0 0.0
    %1427 = vmatpush1.msra.mxu0 0.0
    %1428 = vmatprep.subr.mxu0 0.0
    %1429 = vmatpush1.msra.mxu0 0.0
    %1430 = vmatprep.subr.mxu0 0.0
    %1431 = vmatpush1.msra.mxu0 0.0
    %1432 = vmatprep.subr.mxu0 0.0
    %1433 = vmatpush1.msra.mxu0 0.0
    %1434 = vmatprep.subr.mxu0 0.0
    %1435 = vmatpush1.msra.mxu0 0.0
    %1436 = vmatprep.subr.mxu0 0.0
    %1437 = vmatpush1.msra.mxu0 0.0
    %1438 = vmatprep.subr.mxu0 0.0
    %1439 = vmatpush1.msra.mxu0 0.0
    %1440 = vmatprep.subr.mxu0 0.0
    %1441 = vmatpush1.msra.mxu0 0.0
    %1442 = vmatprep.subr.mxu0 0.0
    %1443 = vmatpush1.msra.mxu0 0.0
    %1444 = vmatprep.subr.mxu0 0.0
    %1445 = vmatpush1.msra.mxu0 0.0
    %1446 = vmatprep.mubr.f32.mxu0 0.0
    %v1447 = vand.u32 %v1199, 4294901760
    %v1448 = vsub.f32 %v1199, %v1447
    %1449 = vmatmul.mubr.f32.gmra.mrb[0].mxu0 %v1448
    %v1450 = vpop.f32.mrb[0].mxu0
    %v1451 = vadd.f32 %v1369, %v1450
    %v1452 = vpop.f32.mrb[0].mxu0
    %1453 = vmatprep.mubr.f32.mxu0 0.0
    %v1454 = vand.u32 %v1202, 4294901760
    %v1455 = vsub.f32 %v1202, %v1454
    %1456 = vmatmul.mubr.f32.gmra.mrb[0].mxu0 %v1455
    %v1457 = vpop.f32.mrb[0].mxu0
    %v1458 = vadd.f32 %v1375, %v1457
    %v1459 = vpop.f32.mrb[0].mxu0
    %1460 = vdwg.mxu0
    %1461 = vmatprep.subr.mxu0 0.0
    %v1462 = vand.u32 %v1190, 4294901760
    %1463 = vmatpush1.msra.mxu0 %v1462
    %1464 = vmatprep.subr.mxu0 0.0
    %v1465 = vand.u32 %v1191, 4294901760
    %1466 = vmatpush1.msra.mxu0 %v1465
    %1467 = vmatprep.subr.mxu0 0.0
    %1468 = vmatpush1.msra.mxu0 0.0
    %1469 = vmatprep.subr.mxu0 0.0
    %1470 = vmatpush1.msra.mxu0 0.0
    %1471 = vmatprep.subr.mxu0 0.0
    %1472 = vmatpush1.msra.mxu0 0.0
    %1473 = vmatprep.subr.mxu0 0.0
    %1474 = vmatpush1.msra.mxu0 0.0
    %1475 = vmatprep.subr.mxu0 0.0
    %1476 = vmatpush1.msra.mxu0 0.0
    %1477 = vmatprep.subr.mxu0 0.0
    %1478 = vmatpush1.msra.mxu0 0.0
    %1479 = vmatprep.subr.mxu0 0.0
    %1480 = vmatpush1.msra.mxu0 0.0
    %1481 = vmatprep.subr.mxu0 0.0
    %1482 = vmatpush1.msra.mxu0 0.0
    %1483 = vmatprep.subr.mxu0 0.0
    %1484 = vmatpush1.msra.mxu0 0.0
    %1485 = vmatprep.subr.mxu0 0.0
    %1486 = vmatpush1.msra.mxu0 0.0
    %1487 = vmatprep.subr.mxu0 0.0
    %1488 = vmatpush1.msra.mxu0 0.0
    %1489 = vmatprep.subr.mxu0 0.0
    %1490 = vmatpush1.msra.mxu0 0.0
    %1491 = vmatprep.subr.mxu0 0.0
    %1492 = vmatpush1.msra.mxu0 0.0
    %1493 = vmatprep.subr.mxu0 0.0
    %1494 = vmatpush1.msra.mxu0 0.0
    %1495 = vmatprep.subr.mxu0 0.0
    %1496 = vmatpush1.msra.mxu0 0.0
    %1497 = vmatprep.subr.mxu0 0.0
    %1498 = vmatpush1.msra.mxu0 0.0
    %1499 = vmatprep.subr.mxu0 0.0
    %1500 = vmatpush1.msra.mxu0 0.0
    %1501 = vmatprep.subr.mxu0 0.0
    %1502 = vmatpush1.msra.mxu0 0.0
    %1503 = vmatprep.subr.mxu0 0.0
    %1504 = vmatpush1.msra.mxu0 0.0
    %1505 = vmatprep.subr.mxu0 0.0
    %1506 = vmatpush1.msra.mxu0 0.0
    %1507 = vmatprep.subr.mxu0 0.0
    %1508 = vmatpush1.msra.mxu0 0.0
    %1509 = vmatprep.subr.mxu0 0.0
    %1510 = vmatpush1.msra.mxu0 0.0
    %1511 = vmatprep.subr.mxu0 0.0
    %1512 = vmatpush1.msra.mxu0 0.0
    %1513 = vmatprep.subr.mxu0 0.0
    %1514 = vmatpush1.msra.mxu0 0.0
    %1515 = vmatprep.subr.mxu0 0.0
    %1516 = vmatpush1.msra.mxu0 0.0
    %1517 = vmatprep.subr.mxu0 0.0
    %1518 = vmatpush1.msra.mxu0 0.0
    %1519 = vmatprep.subr.mxu0 0.0
    %1520 = vmatpush1.msra.mxu0 0.0
    %1521 = vmatprep.subr.mxu0 0.0
    %1522 = vmatpush1.msra.mxu0 0.0
    %1523 = vmatprep.subr.mxu0 0.0
    %1524 = vmatpush1.msra.mxu0 0.0
    %1525 = vmatprep.subr.mxu0 0.0
    %1526 = vmatpush1.msra.mxu0 0.0
    %1527 = vmatprep.mubr.f32.mxu0 0.0
    %v1528 = vand.u32 %v1199, 4294901760
    %v1529 = vsub.f32 %v1199, %v1528
    %v1530 = vand.u32 %v1529, 4294901760
    %1531 = vmatmul.mubr.f32.gmra.mrb[0].mxu0 %v1530
    %v1532 = vpop.f32.mrb[0].mxu0
    %v1533 = vadd.f32 %v1451, %v1532
    %v1534 = vpop.f32.mrb[0].mxu0
    %1535 = vmatprep.mubr.f32.mxu0 0.0
    %v1536 = vand.u32 %v1202, 4294901760
    %v1537 = vsub.f32 %v1202, %v1536
    %v1538 = vand.u32 %v1537, 4294901760
    %1539 = vmatmul.mubr.f32.gmra.mrb[0].mxu0 %v1538
    %v1540 = vpop.f32.mrb[0].mxu0
    %v1541 = vadd.f32 %v1458, %v1540
    %v1542 = vpop.f32.mrb[0].mxu0
    %1543 = vdwg.mxu0
    %1544 = vmatprep.subr.mxu0 0.0
    %v1545 = vand.u32 %v1190, 4294901760
    %v1546 = vsub.f32 %v1190, %v1545
    %v1547 = vand.u32 %v1546, 4294901760
    %1548 = vmatpush1.msra.mxu0 %v1547
    %1549 = vmatprep.subr.mxu0 0.0
    %v1550 = vand.u32 %v1191, 4294901760
    %v1551 = vsub.f32 %v1191, %v1550
    %v1552 = vand.u32 %v1551, 4294901760
    %1553 = vmatpush1.msra.mxu0 %v1552
    %1554 = vmatprep.subr.mxu0 0.0
    %1555 = vmatpush1.msra.mxu0 0.0
    %1556 = vmatprep.subr.mxu0 0.0
    %1557 = vmatpush1.msra.mxu0 0.0
    %1558 = vmatprep.subr.mxu0 0.0
    %1559 = vmatpush1.msra.mxu0 0.0
    %1560 = vmatprep.subr.mxu0 0.0
    %1561 = vmatpush1.msra.mxu0 0.0
    %1562 = vmatprep.subr.mxu0 0.0
    %1563 = vmatpush1.msra.mxu0 0.0
    %1564 = vmatprep.subr.mxu0 0.0
    %1565 = vmatpush1.msra.mxu0 0.0
    %1566 = vmatprep.subr.mxu0 0.0
    %1567 = vmatpush1.msra.mxu0 0.0
    %1568 = vmatprep.subr.mxu0 0.0
    %1569 = vmatpush1.msra.mxu0 0.0
    %1570 = vmatprep.subr.mxu0 0.0
    %1571 = vmatpush1.msra.mxu0 0.0
    %1572 = vmatprep.subr.mxu0 0.0
    %1573 = vmatpush1.msra.mxu0 0.0
    %1574 = vmatprep.subr.mxu0 0.0
    %1575 = vmatpush1.msra.mxu0 0.0
    %1576 = vmatprep.subr.mxu0 0.0
    %1577 = vmatpush1.msra.mxu0 0.0
    %1578 = vmatprep.subr.mxu0 0.0
    %1579 = vmatpush1.msra.mxu0 0.0
    %1580 = vmatprep.subr.mxu0 0.0
    %1581 = vmatpush1.msra.mxu0 0.0
    %1582 = vmatprep.subr.mxu0 0.0
    %1583 = vmatpush1.msra.mxu0 0.0
    %1584 = vmatprep.subr.mxu0 0.0
    %1585 = vmatpush1.msra.mxu0 0.0
    %1586 = vmatprep.subr.mxu0 0.0
    %1587 = vmatpush1.msra.mxu0 0.0
    %1588 = vmatprep.subr.mxu0 0.0
    %1589 = vmatpush1.msra.mxu0 0.0
    %1590 = vmatprep.subr.mxu0 0.0
    %1591 = vmatpush1.msra.mxu0 0.0
    %1592 = vmatprep.subr.mxu0 0.0
    %1593 = vmatpush1.msra.mxu0 0.0
    %1594 = vmatprep.subr.mxu0 0.0
    %1595 = vmatpush1.msra.mxu0 0.0
    %1596 = vmatprep.subr.mxu0 0.0
    %1597 = vmatpush1.msra.mxu0 0.0
    %1598 = vmatprep.subr.mxu0 0.0
    %1599 = vmatpush1.msra.mxu0 0.0
    %1600 = vmatprep.subr.mxu0 0.0
    %1601 = vmatpush1.msra.mxu0 0.0
    %1602 = vmatprep.subr.mxu0 0.0
    %1603 = vmatpush1.msra.mxu0 0.0
    %1604 = vmatprep.subr.mxu0 0.0
    %1605 = vmatpush1.msra.mxu0 0.0
    %1606 = vmatprep.subr.mxu0 0.0
    %1607 = vmatpush1.msra.mxu0 0.0
    %1608 = vmatprep.subr.mxu0 0.0
    %1609 = vmatpush1.msra.mxu0 0.0
    %1610 = vmatprep.subr.mxu0 0.0
    %1611 = vmatpush1.msra.mxu0 0.0
    %1612 = vmatprep.subr.mxu0 0.0
    %1613 = vmatpush1.msra.mxu0 0.0
    %1614 = vmatprep.mubr.f32.mxu0 0.0
    %v1615 = vand.u32 %v1199, 4294901760
    %1616 = vmatmul.mubr.f32.gmra.mrb[0].mxu0 %v1615
    %v1617 = vpop.f32.mrb[0].mxu0
    %v1618 = vadd.f32 %v1533, %v1617
    %v1619 = vpop.f32.mrb[0].mxu0
    %1620 = vmatprep.mubr.f32.mxu0 0.0
    %v1621 = vand.u32 %v1202, 4294901760
    %1622 = vmatmul.mubr.f32.gmra.mrb[0].mxu0 %v1621
    %v1623 = vpop.f32.mrb[0].mxu0
    %v1624 = vadd.f32 %v1541, %v1623
    %v1625 = vpop.f32.mrb[0].mxu0
    %1626 = vdwg.mxu0
    %1627 = vmatprep.subr.mxu0 0.0
    %v1628 = vand.u32 %v1190, 4294901760
    %1629 = vmatpush1.msra.mxu0 %v1628
    %1630 = vmatprep.subr.mxu0 0.0
    %v1631 = vand.u32 %v1191, 4294901760
    %1632 = vmatpush1.msra.mxu0 %v1631
    %1633 = vmatprep.subr.mxu0 0.0
    %1634 = vmatpush1.msra.mxu0 0.0
    %1635 = vmatprep.subr.mxu0 0.0
    %1636 = vmatpush1.msra.mxu0 0.0
    %1637 = vmatprep.subr.mxu0 0.0
    %1638 = vmatpush1.msra.mxu0 0.0
    %1639 = vmatprep.subr.mxu0 0.0
    %1640 = vmatpush1.msra.mxu0 0.0
    %1641 = vmatprep.subr.mxu0 0.0
    %1642 = vmatpush1.msra.mxu0 0.0
    %1643 = vmatprep.subr.mxu0 0.0
    %1644 = vmatpush1.msra.mxu0 0.0
    %1645 = vmatprep.subr.mxu0 0.0
    %1646 = vmatpush1.msra.mxu0 0.0
    %1647 = vmatprep.subr.mxu0 0.0
    %1648 = vmatpush1.msra.mxu0 0.0
    %1649 = vmatprep.subr.mxu0 0.0
    %1650 = vmatpush1.msra.mxu0 0.0
    %1651 = vmatprep.subr.mxu0 0.0
    %1652 = vmatpush1.msra.mxu0 0.0
    %1653 = vmatprep.subr.mxu0 0.0
    %1654 = vmatpush1.msra.mxu0 0.0
    %1655 = vmatprep.subr.mxu0 0.0
    %1656 = vmatpush1.msra.mxu0 0.0
    %1657 = vmatprep.subr.mxu0 0.0
    %1658 = vmatpush1.msra.mxu0 0.0
    %1659 = vmatprep.subr.mxu0 0.0
    %1660 = vmatpush1.msra.mxu0 0.0
    %1661 = vmatprep.subr.mxu0 0.0
    %1662 = vmatpush1.msra.mxu0 0.0
    %1663 = vmatprep.subr.mxu0 0.0
    %1664 = vmatpush1.msra.mxu0 0.0
    %1665 = vmatprep.subr.mxu0 0.0
    %1666 = vmatpush1.msra.mxu0 0.0
    %1667 = vmatprep.subr.mxu0 0.0
    %1668 = vmatpush1.msra.mxu0 0.0
    %1669 = vmatprep.subr.mxu0 0.0
    %1670 = vmatpush1.msra.mxu0 0.0
    %1671 = vmatprep.subr.mxu0 0.0
    %1672 = vmatpush1.msra.mxu0 0.0
    %1673 = vmatprep.subr.mxu0 0.0
    %1674 = vmatpush1.msra.mxu0 0.0
    %1675 = vmatprep.subr.mxu0 0.0
    %1676 = vmatpush1.msra.mxu0 0.0
    %1677 = vmatprep.subr.mxu0 0.0
    %1678 = vmatpush1.msra.mxu0 0.0
    %1679 = vmatprep.subr.mxu0 0.0
    %1680 = vmatpush1.msra.mxu0 0.0
    %1681 = vmatprep.subr.mxu0 0.0
    %1682 = vmatpush1.msra.mxu0 0.0
    %1683 = vmatprep.subr.mxu0 0.0
    %1684 = vmatpush1.msra.mxu0 0.0
    %1685 = vmatprep.subr.mxu0 0.0
    %1686 = vmatpush1.msra.mxu0 0.0
    %1687 = vmatprep.subr.mxu0 0.0
    %1688 = vmatpush1.msra.mxu0 0.0
    %1689 = vmatprep.subr.mxu0 0.0
    %1690 = vmatpush1.msra.mxu0 0.0
    %1691 = vmatprep.subr.mxu0 0.0
    %1692 = vmatpush1.msra.mxu0 0.0
    %1693 = vmatprep.mubr.f32.mxu0 0.0
    %v1694 = vand.u32 %v1199, 4294901760
    %1695 = vmatmul.mubr.f32.gmra.mrb[0].mxu0 %v1694
    %v1696 = vpop.f32.mrb[0].mxu0
    %v1697 = vadd.f32 %v1618, %v1696
    %v1698 = vpop.f32.mrb[0].mxu0
    %1699 = vmatprep.mubr.f32.mxu0 0.0
    %v1700 = vand.u32 %v1202, 4294901760
    %1701 = vmatmul.mubr.f32.gmra.mrb[0].mxu0 %v1700
    %v1702 = vpop.f32.mrb[0].mxu0
    %v1703 = vadd.f32 %v1624, %v1702
    %v1704 = vpop.f32.mrb[0].mxu0
    %1705 = vdwg.mxu0
    %v1707 = vsel %vm37, %v1193, 0
    %v1710 = vsel %vm37, %v1194, 0
    %1712 = vmatprep.subr.mxu0 0.0
    %v1713 = vand.u32 %v40, 4294901760
    %1714 = vmatpush1.msra.mxu0 %v1713
    %1715 = vmatprep.subr.mxu0 0.0
    %1716 = vmatpush1.msra.mxu0 0.0
    %1717 = vmatprep.subr.mxu0 0.0
    %1718 = vmatpush1.msra.mxu0 0.0
    %1719 = vmatprep.subr.mxu0 0.0
    %1720 = vmatpush1.msra.mxu0 0.0
    %1721 = vmatprep.subr.mxu0 0.0
    %1722 = vmatpush1.msra.mxu0 0.0
    %1723 = vmatprep.subr.mxu0 0.0
    %1724 = vmatpush1.msra.mxu0 0.0
    %1725 = vmatprep.subr.mxu0 0.0
    %1726 = vmatpush1.msra.mxu0 0.0
    %1727 = vmatprep.subr.mxu0 0.0
    %1728 = vmatpush1.msra.mxu0 0.0
    %1729 = vmatprep.subr.mxu0 0.0
    %1730 = vmatpush1.msra.mxu0 0.0
    %1731 = vmatprep.subr.mxu0 0.0
    %1732 = vmatpush1.msra.mxu0 0.0
    %1733 = vmatprep.subr.mxu0 0.0
    %1734 = vmatpush1.msra.mxu0 0.0
    %1735 = vmatprep.subr.mxu0 0.0
    %1736 = vmatpush1.msra.mxu0 0.0
    %1737 = vmatprep.subr.mxu0 0.0
    %1738 = vmatpush1.msra.mxu0 0.0
    %1739 = vmatprep.subr.mxu0 0.0
    %1740 = vmatpush1.msra.mxu0 0.0
    %1741 = vmatprep.subr.mxu0 0.0
    %1742 = vmatpush1.msra.mxu0 0.0
    %1743 = vmatprep.subr.mxu0 0.0
    %1744 = vmatpush1.msra.mxu0 0.0
    %1745 = vmatprep.subr.mxu0 0.0
    %1746 = vmatpush1.msra.mxu0 0.0
    %1747 = vmatprep.subr.mxu0 0.0
    %1748 = vmatpush1.msra.mxu0 0.0
    %1749 = vmatprep.subr.mxu0 0.0
    %1750 = vmatpush1.msra.mxu0 0.0
    %1751 = vmatprep.subr.mxu0 0.0
    %1752 = vmatpush1.msra.mxu0 0.0
    %1753 = vmatprep.subr.mxu0 0.0
    %1754 = vmatpush1.msra.mxu0 0.0
    %1755 = vmatprep.subr.mxu0 0.0
    %1756 = vmatpush1.msra.mxu0 0.0
    %1757 = vmatprep.subr.mxu0 0.0
    %1758 = vmatpush1.msra.mxu0 0.0
    %1759 = vmatprep.subr.mxu0 0.0
    %1760 = vmatpush1.msra.mxu0 0.0
    %1761 = vmatprep.subr.mxu0 0.0
    %1762 = vmatpush1.msra.mxu0 0.0
    %1763 = vmatprep.subr.mxu0 0.0
    %1764 = vmatpush1.msra.mxu0 0.0
    %1765 = vmatprep.subr.mxu0 0.0
    %1766 = vmatpush1.msra.mxu0 0.0
    %1767 = vmatprep.subr.mxu0 0.0
    %1768 = vmatpush1.msra.mxu0 0.0
    %1769 = vmatprep.subr.mxu0 0.0
    %1770 = vmatpush1.msra.mxu0 0.0
    %1771 = vmatprep.subr.mxu0 0.0
    %1772 = vmatpush1.msra.mxu0 0.0
    %1773 = vmatprep.subr.mxu0 0.0
    %1774 = vmatpush1.msra.mxu0 0.0
    %1775 = vmatprep.subr.mxu0 0.0
    %1776 = vmatpush1.msra.mxu0 0.0
    %1777 = vmatprep.mubr.f32.mxu0 0.0
    %v1778 = vand.u32 %v1707, 4294901760
    %v1779 = vsub.f32 %v1707, %v1778
    %v1780 = vand.u32 %v1779, 4294901760
    %v1781 = vsub.f32 %v1779, %v1780
    %v1782 = vand.u32 %v1781, 4294901760
    %1783 = vmatmul.mubr.f32.gmra.mrb[0].mxu0 %v1782
    %v1784 = vpop.f32.mrb[0].mxu0
    %v1785 = vadd.f32 %v1697, %v1784
    %v1786 = vpop.f32.mrb[0].mxu0
    %1787 = vmatprep.mubr.f32.mxu0 0.0
    %v1788 = vand.u32 %v1710, 4294901760
    %v1789 = vsub.f32 %v1710, %v1788
    %v1790 = vand.u32 %v1789, 4294901760
    %v1791 = vsub.f32 %v1789, %v1790
    %v1792 = vand.u32 %v1791, 4294901760
    %1793 = vmatmul.mubr.f32.gmra.mrb[0].mxu0 %v1792
    %v1794 = vpop.f32.mrb[0].mxu0
    %v1795 = vadd.f32 %v1703, %v1794
    %v1796 = vpop.f32.mrb[0].mxu0
    %1797 = vdwg.mxu0
    %1798 = vmatprep.subr.mxu0 0.0
    %v1799 = vand.u32 %v40, 4294901760
    %v1800 = vsub.f32 %v40, %v1799
    %v1801 = vand.u32 %v1800, 4294901760
    %v1802 = vsub.f32 %v1800, %v1801
    %v1803 = vand.u32 %v1802, 4294901760
    %1804 = vmatpush1.msra.mxu0 %v1803
    %1805 = vmatprep.subr.mxu0 0.0
    %1806 = vmatpush1.msra.mxu0 0.0
    %1807 = vmatprep.subr.mxu0 0.0
    %1808 = vmatpush1.msra.mxu0 0.0
    %1809 = vmatprep.subr.mxu0 0.0
    %1810 = vmatpush1.msra.mxu0 0.0
    %1811 = vmatprep.subr.mxu0 0.0
    %1812 = vmatpush1.msra.mxu0 0.0
    %1813 = vmatprep.subr.mxu0 0.0
    %1814 = vmatpush1.msra.mxu0 0.0
    %1815 = vmatprep.subr.mxu0 0.0
    %1816 = vmatpush1.msra.mxu0 0.0
    %1817 = vmatprep.subr.mxu0 0.0
    %1818 = vmatpush1.msra.mxu0 0.0
    %1819 = vmatprep.subr.mxu0 0.0
    %1820 = vmatpush1.msra.mxu0 0.0
    %1821 = vmatprep.subr.mxu0 0.0
    %1822 = vmatpush1.msra.mxu0 0.0
    %1823 = vmatprep.subr.mxu0 0.0
    %1824 = vmatpush1.msra.mxu0 0.0
    %1825 = vmatprep.subr.mxu0 0.0
    %1826 = vmatpush1.msra.mxu0 0.0
    %1827 = vmatprep.subr.mxu0 0.0
    %1828 = vmatpush1.msra.mxu0 0.0
    %1829 = vmatprep.subr.mxu0 0.0
    %1830 = vmatpush1.msra.mxu0 0.0
    %1831 = vmatprep.subr.mxu0 0.0
    %1832 = vmatpush1.msra.mxu0 0.0
    %1833 = vmatprep.subr.mxu0 0.0
    %1834 = vmatpush1.msra.mxu0 0.0
    %1835 = vmatprep.subr.mxu0 0.0
    %1836 = vmatpush1.msra.mxu0 0.0
    %1837 = vmatprep.subr.mxu0 0.0
    %1838 = vmatpush1.msra.mxu0 0.0
    %1839 = vmatprep.subr.mxu0 0.0
    %1840 = vmatpush1.msra.mxu0 0.0
    %1841 = vmatprep.subr.mxu0 0.0
    %1842 = vmatpush1.msra.mxu0 0.0
    %1843 = vmatprep.subr.mxu0 0.0
    %1844 = vmatpush1.msra.mxu0 0.0
    %1845 = vmatprep.subr.mxu0 0.0
    %1846 = vmatpush1.msra.mxu0 0.0
    %1847 = vmatprep.subr.mxu0 0.0
    %1848 = vmatpush1.msra.mxu0 0.0
    %1849 = vmatprep.subr.mxu0 0.0
    %1850 = vmatpush1.msra.mxu0 0.0
    %1851 = vmatprep.subr.mxu0 0.0
    %1852 = vmatpush1.msra.mxu0 0.0
    %1853 = vmatprep.subr.mxu0 0.0
    %1854 = vmatpush1.msra.mxu0 0.0
    %1855 = vmatprep.subr.mxu0 0.0
    %1856 = vmatpush1.msra.mxu0 0.0
    %1857 = vmatprep.subr.mxu0 0.0
    %1858 = vmatpush1.msra.mxu0 0.0
    %1859 = vmatprep.subr.mxu0 0.0
    %1860 = vmatpush1.msra.mxu0 0.0
    %1861 = vmatprep.subr.mxu0 0.0
    %1862 = vmatpush1.msra.mxu0 0.0
    %1863 = vmatprep.subr.mxu0 0.0
    %1864 = vmatpush1.msra.mxu0 0.0
    %1865 = vmatprep.subr.mxu0 0.0
    %1866 = vmatpush1.msra.mxu0 0.0
    %1867 = vmatprep.mubr.f32.mxu0 0.0
    %v1868 = vand.u32 %v1707, 4294901760
    %1869 = vmatmul.mubr.f32.gmra.mrb[0].mxu0 %v1868
    %v1870 = vpop.f32.mrb[0].mxu0
    %v1871 = vadd.f32 %v1785, %v1870
    %v1872 = vpop.f32.mrb[0].mxu0
    %1873 = vmatprep.mubr.f32.mxu0 0.0
    %v1874 = vand.u32 %v1710, 4294901760
    %1875 = vmatmul.mubr.f32.gmra.mrb[0].mxu0 %v1874
    %v1876 = vpop.f32.mrb[0].mxu0
    %v1877 = vadd.f32 %v1795, %v1876
    %v1878 = vpop.f32.mrb[0].mxu0
    %1879 = vdwg.mxu0
    %1880 = vmatprep.subr.mxu0 0.0
    %v1881 = vand.u32 %v40, 4294901760
    %v1882 = vsub.f32 %v40, %v1881
    %1883 = vmatpush1.msra.mxu0 %v1882
    %1884 = vmatprep.subr.mxu0 0.0
    %1885 = vmatpush1.msra.mxu0 0.0
    %1886 = vmatprep.subr.mxu0 0.0
    %1887 = vmatpush1.msra.mxu0 0.0
    %1888 = vmatprep.subr.mxu0 0.0
    %1889 = vmatpush1.msra.mxu0 0.0
    %1890 = vmatprep.subr.mxu0 0.0
    %1891 = vmatpush1.msra.mxu0 0.0
    %1892 = vmatprep.subr.mxu0 0.0
    %1893 = vmatpush1.msra.mxu0 0.0
    %1894 = vmatprep.subr.mxu0 0.0
    %1895 = vmatpush1.msra.mxu0 0.0
    %1896 = vmatprep.subr.mxu0 0.0
    %1897 = vmatpush1.msra.mxu0 0.0
    %1898 = vmatprep.subr.mxu0 0.0
    %1899 = vmatpush1.msra.mxu0 0.0
    %1900 = vmatprep.subr.mxu0 0.0
    %1901 = vmatpush1.msra.mxu0 0.0
    %1902 = vmatprep.subr.mxu0 0.0
    %1903 = vmatpush1.msra.mxu0 0.0
    %1904 = vmatprep.subr.mxu0 0.0
    %1905 = vmatpush1.msra.mxu0 0.0
    %1906 = vmatprep.subr.mxu0 0.0
    %1907 = vmatpush1.msra.mxu0 0.0
    %1908 = vmatprep.subr.mxu0 0.0
    %1909 = vmatpush1.msra.mxu0 0.0
    %1910 = vmatprep.subr.mxu0 0.0
    %1911 = vmatpush1.msra.mxu0 0.0
    %1912 = vmatprep.subr.mxu0 0.0
    %1913 = vmatpush1.msra.mxu0 0.0
    %1914 = vmatprep.subr.mxu0 0.0
    %1915 = vmatpush1.msra.mxu0 0.0
    %1916 = vmatprep.subr.mxu0 0.0
    %1917 = vmatpush1.msra.mxu0 0.0
    %1918 = vmatprep.subr.mxu0 0.0
    %1919 = vmatpush1.msra.mxu0 0.0
    %1920 = vmatprep.subr.mxu0 0.0
    %1921 = vmatpush1.msra.mxu0 0.0
    %1922 = vmatprep.subr.mxu0 0.0
    %1923 = vmatpush1.msra.mxu0 0.0
    %1924 = vmatprep.subr.mxu0 0.0
    %1925 = vmatpush1.msra.mxu0 0.0
    %1926 = vmatprep.subr.mxu0 0.0
    %1927 = vmatpush1.msra.mxu0 0.0
    %1928 = vmatprep.subr.mxu0 0.0
    %1929 = vmatpush1.msra.mxu0 0.0
    %1930 = vmatprep.subr.mxu0 0.0
    %1931 = vmatpush1.msra.mxu0 0.0
    %1932 = vmatprep.subr.mxu0 0.0
    %1933 = vmatpush1.msra.mxu0 0.0
    %1934 = vmatprep.subr.mxu0 0.0
    %1935 = vmatpush1.msra.mxu0 0.0
    %1936 = vmatprep.subr.mxu0 0.0
    %1937 = vmatpush1.msra.mxu0 0.0
    %1938 = vmatprep.subr.mxu0 0.0
    %1939 = vmatpush1.msra.mxu0 0.0
    %1940 = vmatprep.subr.mxu0 0.0
    %1941 = vmatpush1.msra.mxu0 0.0
    %1942 = vmatprep.subr.mxu0 0.0
    %1943 = vmatpush1.msra.mxu0 0.0
    %1944 = vmatprep.subr.mxu0 0.0
    %1945 = vmatpush1.msra.mxu0 0.0
    %1946 = vmatprep.mubr.f32.mxu0 0.0
    %v1947 = vand.u32 %v1707, 4294901760
    %v1948 = vsub.f32 %v1707, %v1947
    %1949 = vmatmul.mubr.f32.gmra.mrb[0].mxu0 %v1948
    %v1950 = vpop.f32.mrb[0].mxu0
    %v1951 = vadd.f32 %v1871, %v1950
    %v1952 = vpop.f32.mrb[0].mxu0
    %1953 = vmatprep.mubr.f32.mxu0 0.0
    %v1954 = vand.u32 %v1710, 4294901760
    %v1955 = vsub.f32 %v1710, %v1954
    %1956 = vmatmul.mubr.f32.gmra.mrb[0].mxu0 %v1955
    %v1957 = vpop.f32.mrb[0].mxu0
    %v1958 = vadd.f32 %v1877, %v1957
    %v1959 = vpop.f32.mrb[0].mxu0
    %1960 = vdwg.mxu0
    %1961 = vmatprep.subr.mxu0 0.0
    %v1962 = vand.u32 %v40, 4294901760
    %1963 = vmatpush1.msra.mxu0 %v1962
    %1964 = vmatprep.subr.mxu0 0.0
    %1965 = vmatpush1.msra.mxu0 0.0
    %1966 = vmatprep.subr.mxu0 0.0
    %1967 = vmatpush1.msra.mxu0 0.0
    %1968 = vmatprep.subr.mxu0 0.0
    %1969 = vmatpush1.msra.mxu0 0.0
    %1970 = vmatprep.subr.mxu0 0.0
    %1971 = vmatpush1.msra.mxu0 0.0
    %1972 = vmatprep.subr.mxu0 0.0
    %1973 = vmatpush1.msra.mxu0 0.0
    %1974 = vmatprep.subr.mxu0 0.0
    %1975 = vmatpush1.msra.mxu0 0.0
    %1976 = vmatprep.subr.mxu0 0.0
    %1977 = vmatpush1.msra.mxu0 0.0
    %1978 = vmatprep.subr.mxu0 0.0
    %1979 = vmatpush1.msra.mxu0 0.0
    %1980 = vmatprep.subr.mxu0 0.0
    %1981 = vmatpush1.msra.mxu0 0.0
    %1982 = vmatprep.subr.mxu0 0.0
    %1983 = vmatpush1.msra.mxu0 0.0
    %1984 = vmatprep.subr.mxu0 0.0
    %1985 = vmatpush1.msra.mxu0 0.0
    %1986 = vmatprep.subr.mxu0 0.0
    %1987 = vmatpush1.msra.mxu0 0.0
    %1988 = vmatprep.subr.mxu0 0.0
    %1989 = vmatpush1.msra.mxu0 0.0
    %1990 = vmatprep.subr.mxu0 0.0
    %1991 = vmatpush1.msra.mxu0 0.0
    %1992 = vmatprep.subr.mxu0 0.0
    %1993 = vmatpush1.msra.mxu0 0.0
    %1994 = vmatprep.subr.mxu0 0.0
    %1995 = vmatpush1.msra.mxu0 0.0
    %1996 = vmatprep.subr.mxu0 0.0
    %1997 = vmatpush1.msra.mxu0 0.0
    %1998 = vmatprep.subr.mxu0 0.0
    %1999 = vmatpush1.msra.mxu0 0.0
    %2000 = vmatprep.subr.mxu0 0.0
    %2001 = vmatpush1.msra.mxu0 0.0
    %2002 = vmatprep.subr.mxu0 0.0
    %2003 = vmatpush1.msra.mxu0 0.0
    %2004 = vmatprep.subr.mxu0 0.0
    %2005 = vmatpush1.msra.mxu0 0.0
    %2006 = vmatprep.subr.mxu0 0.0
    %2007 = vmatpush1.msra.mxu0 0.0
    %2008 = vmatprep.subr.mxu0 0.0
    %2009 = vmatpush1.msra.mxu0 0.0
    %2010 = vmatprep.subr.mxu0 0.0
    %2011 = vmatpush1.msra.mxu0 0.0
    %2012 = vmatprep.subr.mxu0 0.0
    %2013 = vmatpush1.msra.mxu0 0.0
    %2014 = vmatprep.subr.mxu0 0.0
    %2015 = vmatpush1.msra.mxu0 0.0
    %2016 = vmatprep.subr.mxu0 0.0
    %2017 = vmatpush1.msra.mxu0 0.0
    %2018 = vmatprep.subr.mxu0 0.0
    %2019 = vmatpush1.msra.mxu0 0.0
    %2020 = vmatprep.subr.mxu0 0.0
    %2021 = vmatpush1.msra.mxu0 0.0
    %2022 = vmatprep.subr.mxu0 0.0
    %2023 = vmatpush1.msra.mxu0 0.0
    %2024 = vmatprep.subr.mxu0 0.0
    %2025 = vmatpush1.msra.mxu0 0.0
    %2026 = vmatprep.mubr.f32.mxu0 0.0
    %v2027 = vand.u32 %v1707, 4294901760
    %v2028 = vsub.f32 %v1707, %v2027
    %v2029 = vand.u32 %v2028, 4294901760
    %2030 = vmatmul.mubr.f32.gmra.mrb[0].mxu0 %v2029
    %v2031 = vpop.f32.mrb[0].mxu0
    %v2032 = vadd.f32 %v1951, %v2031
    %v2033 = vpop.f32.mrb[0].mxu0
    %2034 = vmatprep.mubr.f32.mxu0 0.0
    %v2035 = vand.u32 %v1710, 4294901760
    %v2036 = vsub.f32 %v1710, %v2035
    %v2037 = vand.u32 %v2036, 4294901760
    %2038 = vmatmul.mubr.f32.gmra.mrb[0].mxu0 %v2037
    %v2039 = vpop.f32.mrb[0].mxu0
    %v2040 = vadd.f32 %v1958, %v2039
    %v2041 = vpop.f32.mrb[0].mxu0
    %2042 = vdwg.mxu0
    %2043 = vmatprep.subr.mxu0 0.0
    %v2044 = vand.u32 %v40, 4294901760
    %v2045 = vsub.f32 %v40, %v2044
    %v2046 = vand.u32 %v2045, 4294901760
    %2047 = vmatpush1.msra.mxu0 %v2046
    %2048 = vmatprep.subr.mxu0 0.0
    %2049 = vmatpush1.msra.mxu0 0.0
    %2050 = vmatprep.subr.mxu0 0.0
    %2051 = vmatpush1.msra.mxu0 0.0
    %2052 = vmatprep.subr.mxu0 0.0
    %2053 = vmatpush1.msra.mxu0 0.0
    %2054 = vmatprep.subr.mxu0 0.0
    %2055 = vmatpush1.msra.mxu0 0.0
    %2056 = vmatprep.subr.mxu0 0.0
    %2057 = vmatpush1.msra.mxu0 0.0
    %2058 = vmatprep.subr.mxu0 0.0
    %2059 = vmatpush1.msra.mxu0 0.0
    %2060 = vmatprep.subr.mxu0 0.0
    %2061 = vmatpush1.msra.mxu0 0.0
    %2062 = vmatprep.subr.mxu0 0.0
    %2063 = vmatpush1.msra.mxu0 0.0
    %2064 = vmatprep.subr.mxu0 0.0
    %2065 = vmatpush1.msra.mxu0 0.0
    %2066 = vmatprep.subr.mxu0 0.0
    %2067 = vmatpush1.msra.mxu0 0.0
    %2068 = vmatprep.subr.mxu0 0.0
    %2069 = vmatpush1.msra.mxu0 0.0
    %2070 = vmatprep.subr.mxu0 0.0
    %2071 = vmatpush1.msra.mxu0 0.0
    %2072 = vmatprep.subr.mxu0 0.0
    %2073 = vmatpush1.msra.mxu0 0.0
    %2074 = vmatprep.subr.mxu0 0.0
    %2075 = vmatpush1.msra.mxu0 0.0
    %2076 = vmatprep.subr.mxu0 0.0
    %2077 = vmatpush1.msra.mxu0 0.0
    %2078 = vmatprep.subr.mxu0 0.0
    %2079 = vmatpush1.msra.mxu0 0.0
    %2080 = vmatprep.subr.mxu0 0.0
    %2081 = vmatpush1.msra.mxu0 0.0
    %2082 = vmatprep.subr.mxu0 0.0
    %2083 = vmatpush1.msra.mxu0 0.0
    %2084 = vmatprep.subr.mxu0 0.0
    %2085 = vmatpush1.msra.mxu0 0.0
    %2086 = vmatprep.subr.mxu0 0.0
    %2087 = vmatpush1.msra.mxu0 0.0
    %2088 = vmatprep.subr.mxu0 0.0
    %2089 = vmatpush1.msra.mxu0 0.0
    %2090 = vmatprep.subr.mxu0 0.0
    %2091 = vmatpush1.msra.mxu0 0.0
    %2092 = vmatprep.subr.mxu0 0.0
    %2093 = vmatpush1.msra.mxu0 0.0
    %2094 = vmatprep.subr.mxu0 0.0
    %2095 = vmatpush1.msra.mxu0 0.0
    %2096 = vmatprep.subr.mxu0 0.0
    %2097 = vmatpush1.msra.mxu0 0.0
    %2098 = vmatprep.subr.mxu0 0.0
    %2099 = vmatpush1.msra.mxu0 0.0
    %2100 = vmatprep.subr.mxu0 0.0
    %2101 = vmatpush1.msra.mxu0 0.0
    %2102 = vmatprep.subr.mxu0 0.0
    %2103 = vmatpush1.msra.mxu0 0.0
    %2104 = vmatprep.subr.mxu0 0.0
    %2105 = vmatpush1.msra.mxu0 0.0
    %2106 = vmatprep.subr.mxu0 0.0
    %2107 = vmatpush1.msra.mxu0 0.0
    %2108 = vmatprep.subr.mxu0 0.0
    %2109 = vmatpush1.msra.mxu0 0.0
    %2110 = vmatprep.mubr.f32.mxu0 0.0
    %v2111 = vand.u32 %v1707, 4294901760
    %2112 = vmatmul.mubr.f32.gmra.mrb[0].mxu0 %v2111
    %v2113 = vpop.f32.mrb[0].mxu0
    %v2114 = vadd.f32 %v2032, %v2113
    %v2115 = vpop.f32.mrb[0].mxu0
    %2116 = vmatprep.mubr.f32.mxu0 0.0
    %v2117 = vand.u32 %v1710, 4294901760
    %2118 = vmatmul.mubr.f32.gmra.mrb[0].mxu0 %v2117
    %v2119 = vpop.f32.mrb[0].mxu0
    %v2120 = vadd.f32 %v2040, %v2119
    %v2121 = vpop.f32.mrb[0].mxu0
    %2122 = vdwg.mxu0
    %2123 = vmatprep.subr.mxu0 0.0
    %v2124 = vand.u32 %v40, 4294901760
    %2125 = vmatpush1.msra.mxu0 %v2124
    %2126 = vmatprep.subr.mxu0 0.0
    %2127 = vmatpush1.msra.mxu0 0.0
    %2128 = vmatprep.subr.mxu0 0.0
    %2129 = vmatpush1.msra.mxu0 0.0
    %2130 = vmatprep.subr.mxu0 0.0
    %2131 = vmatpush1.msra.mxu0 0.0
    %2132 = vmatprep.subr.mxu0 0.0
    %2133 = vmatpush1.msra.mxu0 0.0
    %2134 = vmatprep.subr.mxu0 0.0
    %2135 = vmatpush1.msra.mxu0 0.0
    %2136 = vmatprep.subr.mxu0 0.0
    %2137 = vmatpush1.msra.mxu0 0.0
    %2138 = vmatprep.subr.mxu0 0.0
    %2139 = vmatpush1.msra.mxu0 0.0
    %2140 = vmatprep.subr.mxu0 0.0
    %2141 = vmatpush1.msra.mxu0 0.0
    %2142 = vmatprep.subr.mxu0 0.0
    %2143 = vmatpush1.msra.mxu0 0.0
    %2144 = vmatprep.subr.mxu0 0.0
    %2145 = vmatpush1.msra.mxu0 0.0
    %2146 = vmatprep.subr.mxu0 0.0
    %2147 = vmatpush1.msra.mxu0 0.0
    %2148 = vmatprep.subr.mxu0 0.0
    %2149 = vmatpush1.msra.mxu0 0.0
    %2150 = vmatprep.subr.mxu0 0.0
    %2151 = vmatpush1.msra.mxu0 0.0
    %2152 = vmatprep.subr.mxu0 0.0
    %2153 = vmatpush1.msra.mxu0 0.0
    %2154 = vmatprep.subr.mxu0 0.0
    %2155 = vmatpush1.msra.mxu0 0.0
    %2156 = vmatprep.subr.mxu0 0.0
    %2157 = vmatpush1.msra.mxu0 0.0
    %2158 = vmatprep.subr.mxu0 0.0
    %2159 = vmatpush1.msra.mxu0 0.0
    %2160 = vmatprep.subr.mxu0 0.0
    %2161 = vmatpush1.msra.mxu0 0.0
    %2162 = vmatprep.subr.mxu0 0.0
    %2163 = vmatpush1.msra.mxu0 0.0
    %2164 = vmatprep.subr.mxu0 0.0
    %2165 = vmatpush1.msra.mxu0 0.0
    %2166 = vmatprep.subr.mxu0 0.0
    %2167 = vmatpush1.msra.mxu0 0.0
    %2168 = vmatprep.subr.mxu0 0.0
    %2169 = vmatpush1.msra.mxu0 0.0
    %2170 = vmatprep.subr.mxu0 0.0
    %2171 = vmatpush1.msra.mxu0 0.0
    %2172 = vmatprep.subr.mxu0 0.0
    %2173 = vmatpush1.msra.mxu0 0.0
    %2174 = vmatprep.subr.mxu0 0.0
    %2175 = vmatpush1.msra.mxu0 0.0
    %2176 = vmatprep.subr.mxu0 0.0
    %2177 = vmatpush1.msra.mxu0 0.0
    %2178 = vmatprep.subr.mxu0 0.0
    %2179 = vmatpush1.msra.mxu0 0.0
    %2180 = vmatprep.subr.mxu0 0.0
    %2181 = vmatpush1.msra.mxu0 0.0
    %2182 = vmatprep.subr.mxu0 0.0
    %2183 = vmatpush1.msra.mxu0 0.0
    %2184 = vmatprep.subr.mxu0 0.0
    %2185 = vmatpush1.msra.mxu0 0.0
    %2186 = vmatprep.subr.mxu0 0.0
    %2187 = vmatpush1.msra.mxu0 0.0
    %2188 = vmatprep.mubr.f32.mxu0 0.0
    %v2189 = vand.u32 %v1707, 4294901760
    %2190 = vmatmul.mubr.f32.gmra.mrb[0].mxu0 %v2189
    %v2191 = vpop.f32.mrb[0].mxu0
    %v2192 = vadd.f32 %v2114, %v2191
    %v2193 = vpop.f32.mrb[0].mxu0
    %2194 = vmatprep.mubr.f32.mxu0 0.0
    %v2195 = vand.u32 %v1710, 4294901760
    %2196 = vmatmul.mubr.f32.gmra.mrb[0].mxu0 %v2195
    %v2197 = vpop.f32.mrb[0].mxu0
    %v2198 = vadd.f32 %v2120, %v2197
    %v2199 = vpop.f32.mrb[0].mxu0
    %2200 = vdwg.mxu0
    %s2201 = scalar_lea.vmem %s3, 96
    %v2202 = vld [vmem:[%s2201] sm:$0xff]
    %v2203 = vld [vmem:[%s2201 + $0x8] sm:$0xff]
    %2205 = vset.pattern.permute.xlu0 0
    %2206 = vperm.xlu0 %2205, %v2202
    %v2207 = vpop.permute.xlu0 %2206
    %2210 = vset.pattern.permute.xlu0 0
    %2211 = vperm.xlu0 %2210, %v2203
    %v2212 = vpop.permute.xlu0 %2211
    %v2214 = vadd.f32 %v2192, %v2207
    %v2215 = vadd.f32 %v2198, %v2212
    %v2216 = vsel %vm550, %v2214, 0.0
    %2217 = vadd.xlane.f32.xlu0 %v2216
    %v2218 = vpop.xlane.xlu0 %2217
    %v2219 = vsel %vm550, %v2215, 0.0
    %2220 = vadd.xlane.f32.xlu0 %v2219
    %v2221 = vpop.xlane.xlu0 %2220
    %v2222 = vmul.f32 %v2218, %v557
    %v2223 = vmul.f32 %v2221, %v557
    %v2224 = vsub.f32 %v2214, %v2222
    %v2225 = vsub.f32 %v2215, %v2223
    %v2226 = vmul.f32 %v2224, %v2224
    %v2227 = vmul.f32 %v2225, %v2225
    %v2228 = vsel %vm550, %v2226, 0.0
    %2229 = vadd.xlane.f32.xlu0 %v2228
    %v2230 = vpop.xlane.xlu0 %2229
    %v2231 = vsel %vm550, %v2227, 0.0
    %2232 = vadd.xlane.f32.xlu0 %v2231
    %v2233 = vpop.xlane.xlu0 %2232
    %v2234 = vmul.f32 %v2230, %v557
    %v2235 = vmul.f32 %v2233, %v557
    %v2236 = vadd.f32 %v2234, 1e-05
    %v2237 = vadd.f32 %v2235, 1e-05
    %v2238 = vrsqrt.pop %v2236
    %v2239 = vrsqrt.pop %v2237
    %s2240 = scalar_lea.vmem %s3, 112
    %v2241 = vld [vmem:[%s2240] sm:$0xff]
    %v2242 = vld [vmem:[%s2240 + $0x8] sm:$0xff]
    %v2243 = vmul.f32 %v2238, %v2241
    %v2244 = vmul.f32 %v2239, %v2242
    %2246 = vset.pattern.permute.xlu0 0
    %2247 = vperm.xlu0 %2246, %v2243
    %v2248 = vpop.permute.xlu0 %2247
    %2251 = vset.pattern.permute.xlu0 0
    %2252 = vperm.xlu0 %2251, %v2244
    %v2253 = vpop.permute.xlu0 %2252
    %v2255 = vmul.f32 %v2224, %v2248
    %v2256 = vmul.f32 %v2225, %v2253
    %s2257 = scalar_lea.vmem %s3, 128
    %v2258 = vld [vmem:[%s2257] sm:$0xff]
    %v2259 = vld [vmem:[%s2257 + $0x8] sm:$0xff]
    %2261 = vset.pattern.permute.xlu0 0
    %2262 = vperm.xlu0 %2261, %v2258
    %v2263 = vpop.permute.xlu0 %2262
    %2266 = vset.pattern.permute.xlu0 0
    %2267 = vperm.xlu0 %2266, %v2259
    %v2268 = vpop.permute.xlu0 %2267
    %v2270 = vadd.f32 %v2255, %v2263
    %v2271 = vadd.f32 %v2256, %v2268
    %v2272 = vmax.f32 %v2270, 0.0
    %v2273 = vmax.f32 %v2271, 0.0
    %v2275 = vsel %vm550, %v2272, 0
    %v2278 = vsel %vm550, %v2273, 0
    %2280 = vmatprep.subr.mxu0 0.0
    %v2281 = vand.u32 %v21, 4294901760
    %2282 = vmatpush1.msra.mxu0 %v2281
    %2283 = vmatprep.subr.mxu0 0.0
    %v2284 = vand.u32 %v22, 4294901760
    %2285 = vmatpush1.msra.mxu0 %v2284
    %2286 = vmatprep.subr.mxu0 0.0
    %v2287 = vand.u32 %v23, 4294901760
    %2288 = vmatpush1.msra.mxu0 %v2287
    %2289 = vmatprep.subr.mxu0 0.0
    %v2290 = vand.u32 %v24, 4294901760
    %2291 = vmatpush1.msra.mxu0 %v2290
    %2292 = vmatprep.subr.mxu0 0.0
    %2293 = vmatpush1.msra.mxu0 0.0
    %2294 = vmatprep.subr.mxu0 0.0
    %2295 = vmatpush1.msra.mxu0 0.0
    %2296 = vmatprep.subr.mxu0 0.0
    %2297 = vmatpush1.msra.mxu0 0.0
    %2298 = vmatprep.subr.mxu0 0.0
    %2299 = vmatpush1.msra.mxu0 0.0
    %2300 = vmatprep.subr.mxu0 0.0
    %2301 = vmatpush1.msra.mxu0 0.0
    %2302 = vmatprep.subr.mxu0 0.0
    %2303 = vmatpush1.msra.mxu0 0.0
    %2304 = vmatprep.subr.mxu0 0.0
    %2305 = vmatpush1.msra.mxu0 0.0
    %2306 = vmatprep.subr.mxu0 0.0
    %2307 = vmatpush1.msra.mxu0 0.0
    %2308 = vmatprep.subr.mxu0 0.0
    %2309 = vmatpush1.msra.mxu0 0.0
    %2310 = vmatprep.subr.mxu0 0.0
    %2311 = vmatpush1.msra.mxu0 0.0
    %2312 = vmatprep.subr.mxu0 0.0
    %2313 = vmatpush1.msra.mxu0 0.0
    %2314 = vmatprep.subr.mxu0 0.0
    %2315 = vmatpush1.msra.mxu0 0.0
    %2316 = vmatprep.subr.mxu0 0.0
    %2317 = vmatpush1.msra.mxu0 0.0
    %2318 = vmatprep.subr.mxu0 0.0
    %2319 = vmatpush1.msra.mxu0 0.0
    %2320 = vmatprep.subr.mxu0 0.0
    %2321 = vmatpush1.msra.mxu0 0.0
    %2322 = vmatprep.subr.mxu0 0.0
    %2323 = vmatpush1.msra.mxu0 0.0
    %2324 = vmatprep.subr.mxu0 0.0
    %2325 = vmatpush1.msra.mxu0 0.0
    %2326 = vmatprep.subr.mxu0 0.0
    %2327 = vmatpush1.msra.mxu0 0.0
    %2328 = vmatprep.subr.mxu0 0.0
    %2329 = vmatpush1.msra.mxu0 0.0
    %2330 = vmatprep.subr.mxu0 0.0
    %2331 = vmatpush1.msra.mxu0 0.0
    %2332 = vmatprep.subr.mxu0 0.0
    %2333 = vmatpush1.msra.mxu0 0.0
    %2334 = vmatprep.subr.mxu0 0.0
    %2335 = vmatpush1.msra.mxu0 0.0
    %2336 = vmatprep.subr.mxu0 0.0
    %2337 = vmatpush1.msra.mxu0 0.0
    %2338 = vmatprep.subr.mxu0 0.0
    %2339 = vmatpush1.msra.mxu0 0.0
    %2340 = vmatprep.subr.mxu0 0.0
    %2341 = vmatpush1.msra.mxu0 0.0
    %2342 = vmatprep.subr.mxu0 0.0
    %2343 = vmatpush1.msra.mxu0 0.0
    %2344 = vmatprep.subr.mxu0 0.0
    %2345 = vmatpush1.msra.mxu0 0.0
    %2346 = vmatprep.subr.mxu0 0.0
    %2347 = vmatpush1.msra.mxu0 0.0
    %2348 = vmatprep.mubr.f32.mxu0 0.0
    %v2349 = vand.u32 %v2275, 4294901760
    %v2350 = vsub.f32 %v2275, %v2349
    %v2351 = vand.u32 %v2350, 4294901760
    %v2352 = vsub.f32 %v2350, %v2351
    %v2353 = vand.u32 %v2352, 4294901760
    %2354 = vmatmul.mubr.f32.gmra.mrb[0].mxu0 %v2353
    %v2355 = vpop.f32.mrb[0].mxu0
    %v2356 = vadd.f32 0.0, %v2355
    %v2357 = vpop.f32.mrb[0].mxu0
    %2358 = vmatprep.mubr.f32.mxu0 0.0
    %v2359 = vand.u32 %v2278, 4294901760
    %v2360 = vsub.f32 %v2278, %v2359
    %v2361 = vand.u32 %v2360, 4294901760
    %v2362 = vsub.f32 %v2360, %v2361
    %v2363 = vand.u32 %v2362, 4294901760
    %2364 = vmatmul.mubr.f32.gmra.mrb[0].mxu0 %v2363
    %v2365 = vpop.f32.mrb[0].mxu0
    %v2366 = vadd.f32 0.0, %v2365
    %v2367 = vpop.f32.mrb[0].mxu0
    %2368 = vdwg.mxu0
    %2369 = vmatprep.subr.mxu0 0.0
    %v2370 = vand.u32 %v21, 4294901760
    %v2371 = vsub.f32 %v21, %v2370
    %v2372 = vand.u32 %v2371, 4294901760
    %v2373 = vsub.f32 %v2371, %v2372
    %v2374 = vand.u32 %v2373, 4294901760
    %2375 = vmatpush1.msra.mxu0 %v2374
    %2376 = vmatprep.subr.mxu0 0.0
    %v2377 = vand.u32 %v22, 4294901760
    %v2378 = vsub.f32 %v22, %v2377
    %v2379 = vand.u32 %v2378, 4294901760
    %v2380 = vsub.f32 %v2378, %v2379
    %v2381 = vand.u32 %v2380, 4294901760
    %2382 = vmatpush1.msra.mxu0 %v2381
    %2383 = vmatprep.subr.mxu0 0.0
    %v2384 = vand.u32 %v23, 4294901760
    %v2385 = vsub.f32 %v23, %v2384
    %v2386 = vand.u32 %v2385, 4294901760
    %v2387 = vsub.f32 %v2385, %v2386
    %v2388 = vand.u32 %v2387, 4294901760
    %2389 = vmatpush1.msra.mxu0 %v2388
    %2390 = vmatprep.subr.mxu0 0.0
    %v2391 = vand.u32 %v24, 4294901760
    %v2392 = vsub.f32 %v24, %v2391
    %v2393 = vand.u32 %v2392, 4294901760
    %v2394 = vsub.f32 %v2392, %v2393
    %v2395 = vand.u32 %v2394, 4294901760
    %2396 = vmatpush1.msra.mxu0 %v2395
    %2397 = vmatprep.subr.mxu0 0.0
    %2398 = vmatpush1.msra.mxu0 0.0
    %2399 = vmatprep.subr.mxu0 0.0
    %2400 = vmatpush1.msra.mxu0 0.0
    %2401 = vmatprep.subr.mxu0 0.0
    %2402 = vmatpush1.msra.mxu0 0.0
    %2403 = vmatprep.subr.mxu0 0.0
    %2404 = vmatpush1.msra.mxu0 0.0
    %2405 = vmatprep.subr.mxu0 0.0
    %2406 = vmatpush1.msra.mxu0 0.0
    %2407 = vmatprep.subr.mxu0 0.0
    %2408 = vmatpush1.msra.mxu0 0.0
    %2409 = vmatprep.subr.mxu0 0.0
    %2410 = vmatpush1.msra.mxu0 0.0
    %2411 = vmatprep.subr.mxu0 0.0
    %2412 = vmatpush1.msra.mxu0 0.0
    %2413 = vmatprep.subr.mxu0 0.0
    %2414 = vmatpush1.msra.mxu0 0.0
    %2415 = vmatprep.subr.mxu0 0.0
    %2416 = vmatpush1.msra.mxu0 0.0
    %2417 = vmatprep.subr.mxu0 0.0
    %2418 = vmatpush1.msra.mxu0 0.0
    %2419 = vmatprep.subr.mxu0 0.0
    %2420 = vmatpush1.msra.mxu0 0.0
    %2421 = vmatprep.subr.mxu0 0.0
    %2422 = vmatpush1.msra.mxu0 0.0
    %2423 = vmatprep.subr.mxu0 0.0
    %2424 = vmatpush1.msra.mxu0 0.0
    %2425 = vmatprep.subr.mxu0 0.0
    %2426 = vmatpush1.msra.mxu0 0.0
    %2427 = vmatprep.subr.mxu0 0.0
    %2428 = vmatpush1.msra.mxu0 0.0
    %2429 = vmatprep.subr.mxu0 0.0
    %2430 = vmatpush1.msra.mxu0 0.0
    %2431 = vmatprep.subr.mxu0 0.0
    %2432 = vmatpush1.msra.mxu0 0.0
    %2433 = vmatprep.subr.mxu0 0.0
    %2434 = vmatpush1.msra.mxu0 0.0
    %2435 = vmatprep.subr.mxu0 0.0
    %2436 = vmatpush1.msra.mxu0 0.0
    %2437 = vmatprep.subr.mxu0 0.0
    %2438 = vmatpush1.msra.mxu0 0.0
    %2439 = vmatprep.subr.mxu0 0.0
    %2440 = vmatpush1.msra.mxu0 0.0
    %2441 = vmatprep.subr.mxu0 0.0
    %2442 = vmatpush1.msra.mxu0 0.0
    %2443 = vmatprep.subr.mxu0 0.0
    %2444 = vmatpush1.msra.mxu0 0.0
    %2445 = vmatprep.subr.mxu0 0.0
    %2446 = vmatpush1.msra.mxu0 0.0
    %2447 = vmatprep.subr.mxu0 0.0
    %2448 = vmatpush1.msra.mxu0 0.0
    %2449 = vmatprep.subr.mxu0 0.0
    %2450 = vmatpush1.msra.mxu0 0.0
    %2451 = vmatprep.subr.mxu0 0.0
    %2452 = vmatpush1.msra.mxu0 0.0
    %2453 = vmatprep.mubr.f32.mxu0 0.0
    %v2454 = vand.u32 %v2275, 4294901760
    %2455 = vmatmul.mubr.f32.gmra.mrb[0].mxu0 %v2454
    %v2456 = vpop.f32.mrb[0].mxu0
    %v2457 = vadd.f32 %v2356, %v2456
    %v2458 = vpop.f32.mrb[0].mxu0
    %2459 = vmatprep.mubr.f32.mxu0 0.0
    %v2460 = vand.u32 %v2278, 4294901760
    %2461 = vmatmul.mubr.f32.gmra.mrb[0].mxu0 %v2460
    %v2462 = vpop.f32.mrb[0].mxu0
    %v2463 = vadd.f32 %v2366, %v2462
    %v2464 = vpop.f32.mrb[0].mxu0
    %2465 = vdwg.mxu0
    %2466 = vmatprep.subr.mxu0 0.0
    %v2467 = vand.u32 %v21, 4294901760
    %v2468 = vsub.f32 %v21, %v2467
    %2469 = vmatpush1.msra.mxu0 %v2468
    %2470 = vmatprep.subr.mxu0 0.0
    %v2471 = vand.u32 %v22, 4294901760
    %v2472 = vsub.f32 %v22, %v2471
    %2473 = vmatpush1.msra.mxu0 %v2472
    %2474 = vmatprep.subr.mxu0 0.0
    %v2475 = vand.u32 %v23, 4294901760
    %v2476 = vsub.f32 %v23, %v2475
    %2477 = vmatpush1.msra.mxu0 %v2476
    %2478 = vmatprep.subr.mxu0 0.0
    %v2479 = vand.u32 %v24, 4294901760
    %v2480 = vsub.f32 %v24, %v2479
    %2481 = vmatpush1.msra.mxu0 %v2480
    %2482 = vmatprep.subr.mxu0 0.0
    %2483 = vmatpush1.msra.mxu0 0.0
    %2484 = vmatprep.subr.mxu0 0.0
    %2485 = vmatpush1.msra.mxu0 0.0
    %2486 = vmatprep.subr.mxu0 0.0
    %2487 = vmatpush1.msra.mxu0 0.0
    %2488 = vmatprep.subr.mxu0 0.0
    %2489 = vmatpush1.msra.mxu0 0.0
    %2490 = vmatprep.subr.mxu0 0.0
    %2491 = vmatpush1.msra.mxu0 0.0
    %2492 = vmatprep.subr.mxu0 0.0
    %2493 = vmatpush1.msra.mxu0 0.0
    %2494 = vmatprep.subr.mxu0 0.0
    %2495 = vmatpush1.msra.mxu0 0.0
    %2496 = vmatprep.subr.mxu0 0.0
    %2497 = vmatpush1.msra.mxu0 0.0
    %2498 = vmatprep.subr.mxu0 0.0
    %2499 = vmatpush1.msra.mxu0 0.0
    %2500 = vmatprep.subr.mxu0 0.0
    %2501 = vmatpush1.msra.mxu0 0.0
    %2502 = vmatprep.subr.mxu0 0.0
    %2503 = vmatpush1.msra.mxu0 0.0
    %2504 = vmatprep.subr.mxu0 0.0
    %2505 = vmatpush1.msra.mxu0 0.0
    %2506 = vmatprep.subr.mxu0 0.0
    %2507 = vmatpush1.msra.mxu0 0.0
    %2508 = vmatprep.subr.mxu0 0.0
    %2509 = vmatpush1.msra.mxu0 0.0
    %2510 = vmatprep.subr.mxu0 0.0
    %2511 = vmatpush1.msra.mxu0 0.0
    %2512 = vmatprep.subr.mxu0 0.0
    %2513 = vmatpush1.msra.mxu0 0.0
    %2514 = vmatprep.subr.mxu0 0.0
    %2515 = vmatpush1.msra.mxu0 0.0
    %2516 = vmatprep.subr.mxu0 0.0
    %2517 = vmatpush1.msra.mxu0 0.0
    %2518 = vmatprep.subr.mxu0 0.0
    %2519 = vmatpush1.msra.mxu0 0.0
    %2520 = vmatprep.subr.mxu0 0.0
    %2521 = vmatpush1.msra.mxu0 0.0
    %2522 = vmatprep.subr.mxu0 0.0
    %2523 = vmatpush1.msra.mxu0 0.0
    %2524 = vmatprep.subr.mxu0 0.0
    %2525 = vmatpush1.msra.mxu0 0.0
    %2526 = vmatprep.subr.mxu0 0.0
    %2527 = vmatpush1.msra.mxu0 0.0
    %2528 = vmatprep.subr.mxu0 0.0
    %2529 = vmatpush1.msra.mxu0 0.0
    %2530 = vmatprep.subr.mxu0 0.0
    %2531 = vmatpush1.msra.mxu0 0.0
    %2532 = vmatprep.subr.mxu0 0.0
    %2533 = vmatpush1.msra.mxu0 0.0
    %2534 = vmatprep.subr.mxu0 0.0
    %2535 = vmatpush1.msra.mxu0 0.0
    %2536 = vmatprep.subr.mxu0 0.0
    %2537 = vmatpush1.msra.mxu0 0.0
    %2538 = vmatprep.mubr.f32.mxu0 0.0
    %v2539 = vand.u32 %v2275, 4294901760
    %v2540 = vsub.f32 %v2275, %v2539
    %2541 = vmatmul.mubr.f32.gmra.mrb[0].mxu0 %v2540
    %v2542 = vpop.f32.mrb[0].mxu0
    %v2543 = vadd.f32 %v2457, %v2542
    %v2544 = vpop.f32.mrb[0].mxu0
    %2545 = vmatprep.mubr.f32.mxu0 0.0
    %v2546 = vand.u32 %v2278, 4294901760
    %v2547 = vsub.f32 %v2278, %v2546
    %2548 = vmatmul.mubr.f32.gmra.mrb[0].mxu0 %v2547
    %v2549 = vpop.f32.mrb[0].mxu0
    %v2550 = vadd.f32 %v2463, %v2549
    %v2551 = vpop.f32.mrb[0].mxu0
    %2552 = vdwg.mxu0
    %2553 = vmatprep.subr.mxu0 0.0
    %v2554 = vand.u32 %v21, 4294901760
    %2555 = vmatpush1.msra.mxu0 %v2554
    %2556 = vmatprep.subr.mxu0 0.0
    %v2557 = vand.u32 %v22, 4294901760
    %2558 = vmatpush1.msra.mxu0 %v2557
    %2559 = vmatprep.subr.mxu0 0.0
    %v2560 = vand.u32 %v23, 4294901760
    %2561 = vmatpush1.msra.mxu0 %v2560
    %2562 = vmatprep.subr.mxu0 0.0
    %v2563 = vand.u32 %v24, 4294901760
    %2564 = vmatpush1.msra.mxu0 %v2563
    %2565 = vmatprep.subr.mxu0 0.0
    %2566 = vmatpush1.msra.mxu0 0.0
    %2567 = vmatprep.subr.mxu0 0.0
    %2568 = vmatpush1.msra.mxu0 0.0
    %2569 = vmatprep.subr.mxu0 0.0
    %2570 = vmatpush1.msra.mxu0 0.0
    %2571 = vmatprep.subr.mxu0 0.0
    %2572 = vmatpush1.msra.mxu0 0.0
    %2573 = vmatprep.subr.mxu0 0.0
    %2574 = vmatpush1.msra.mxu0 0.0
    %2575 = vmatprep.subr.mxu0 0.0
    %2576 = vmatpush1.msra.mxu0 0.0
    %2577 = vmatprep.subr.mxu0 0.0
    %2578 = vmatpush1.msra.mxu0 0.0
    %2579 = vmatprep.subr.mxu0 0.0
    %2580 = vmatpush1.msra.mxu0 0.0
    %2581 = vmatprep.subr.mxu0 0.0
    %2582 = vmatpush1.msra.mxu0 0.0
    %2583 = vmatprep.subr.mxu0 0.0
    %2584 = vmatpush1.msra.mxu0 0.0
    %2585 = vmatprep.subr.mxu0 0.0
    %2586 = vmatpush1.msra.mxu0 0.0
    %2587 = vmatprep.subr.mxu0 0.0
    %2588 = vmatpush1.msra.mxu0 0.0
    %2589 = vmatprep.subr.mxu0 0.0
    %2590 = vmatpush1.msra.mxu0 0.0
    %2591 = vmatprep.subr.mxu0 0.0
    %2592 = vmatpush1.msra.mxu0 0.0
    %2593 = vmatprep.subr.mxu0 0.0
    %2594 = vmatpush1.msra.mxu0 0.0
    %2595 = vmatprep.subr.mxu0 0.0
    %2596 = vmatpush1.msra.mxu0 0.0
    %2597 = vmatprep.subr.mxu0 0.0
    %2598 = vmatpush1.msra.mxu0 0.0
    %2599 = vmatprep.subr.mxu0 0.0
    %2600 = vmatpush1.msra.mxu0 0.0
    %2601 = vmatprep.subr.mxu0 0.0
    %2602 = vmatpush1.msra.mxu0 0.0
    %2603 = vmatprep.subr.mxu0 0.0
    %2604 = vmatpush1.msra.mxu0 0.0
    %2605 = vmatprep.subr.mxu0 0.0
    %2606 = vmatpush1.msra.mxu0 0.0
    %2607 = vmatprep.subr.mxu0 0.0
    %2608 = vmatpush1.msra.mxu0 0.0
    %2609 = vmatprep.subr.mxu0 0.0
    %2610 = vmatpush1.msra.mxu0 0.0
    %2611 = vmatprep.subr.mxu0 0.0
    %2612 = vmatpush1.msra.mxu0 0.0
    %2613 = vmatprep.subr.mxu0 0.0
    %2614 = vmatpush1.msra.mxu0 0.0
    %2615 = vmatprep.subr.mxu0 0.0
    %2616 = vmatpush1.msra.mxu0 0.0
    %2617 = vmatprep.subr.mxu0 0.0
    %2618 = vmatpush1.msra.mxu0 0.0
    %2619 = vmatprep.subr.mxu0 0.0
    %2620 = vmatpush1.msra.mxu0 0.0
    %2621 = vmatprep.mubr.f32.mxu0 0.0
    %v2622 = vand.u32 %v2275, 4294901760
    %v2623 = vsub.f32 %v2275, %v2622
    %v2624 = vand.u32 %v2623, 4294901760
    %2625 = vmatmul.mubr.f32.gmra.mrb[0].mxu0 %v2624
    %v2626 = vpop.f32.mrb[0].mxu0
    %v2627 = vadd.f32 %v2543, %v2626
    %v2628 = vpop.f32.mrb[0].mxu0
    %2629 = vmatprep.mubr.f32.mxu0 0.0
    %v2630 = vand.u32 %v2278, 4294901760
    %v2631 = vsub.f32 %v2278, %v2630
    %v2632 = vand.u32 %v2631, 4294901760
    %2633 = vmatmul.mubr.f32.gmra.mrb[0].mxu0 %v2632
    %v2634 = vpop.f32.mrb[0].mxu0
    %v2635 = vadd.f32 %v2550, %v2634
    %v2636 = vpop.f32.mrb[0].mxu0
    %2637 = vdwg.mxu0
    %2638 = vmatprep.subr.mxu0 0.0
    %v2639 = vand.u32 %v21, 4294901760
    %v2640 = vsub.f32 %v21, %v2639
    %v2641 = vand.u32 %v2640, 4294901760
    %2642 = vmatpush1.msra.mxu0 %v2641
    %2643 = vmatprep.subr.mxu0 0.0
    %v2644 = vand.u32 %v22, 4294901760
    %v2645 = vsub.f32 %v22, %v2644
    %v2646 = vand.u32 %v2645, 4294901760
    %2647 = vmatpush1.msra.mxu0 %v2646
    %2648 = vmatprep.subr.mxu0 0.0
    %v2649 = vand.u32 %v23, 4294901760
    %v2650 = vsub.f32 %v23, %v2649
    %v2651 = vand.u32 %v2650, 4294901760
    %2652 = vmatpush1.msra.mxu0 %v2651
    %2653 = vmatprep.subr.mxu0 0.0
    %v2654 = vand.u32 %v24, 4294901760
    %v2655 = vsub.f32 %v24, %v2654
    %v2656 = vand.u32 %v2655, 4294901760
    %2657 = vmatpush1.msra.mxu0 %v2656
    %2658 = vmatprep.subr.mxu0 0.0
    %2659 = vmatpush1.msra.mxu0 0.0
    %2660 = vmatprep.subr.mxu0 0.0
    %2661 = vmatpush1.msra.mxu0 0.0
    %2662 = vmatprep.subr.mxu0 0.0
    %2663 = vmatpush1.msra.mxu0 0.0
    %2664 = vmatprep.subr.mxu0 0.0
    %2665 = vmatpush1.msra.mxu0 0.0
    %2666 = vmatprep.subr.mxu0 0.0
    %2667 = vmatpush1.msra.mxu0 0.0
    %2668 = vmatprep.subr.mxu0 0.0
    %2669 = vmatpush1.msra.mxu0 0.0
    %2670 = vmatprep.subr.mxu0 0.0
    %2671 = vmatpush1.msra.mxu0 0.0
    %2672 = vmatprep.subr.mxu0 0.0
    %2673 = vmatpush1.msra.mxu0 0.0
    %2674 = vmatprep.subr.mxu0 0.0
    %2675 = vmatpush1.msra.mxu0 0.0
    %2676 = vmatprep.subr.mxu0 0.0
    %2677 = vmatpush1.msra.mxu0 0.0
    %2678 = vmatprep.subr.mxu0 0.0
    %2679 = vmatpush1.msra.mxu0 0.0
    %2680 = vmatprep.subr.mxu0 0.0
    %2681 = vmatpush1.msra.mxu0 0.0
    %2682 = vmatprep.subr.mxu0 0.0
    %2683 = vmatpush1.msra.mxu0 0.0
    %2684 = vmatprep.subr.mxu0 0.0
    %2685 = vmatpush1.msra.mxu0 0.0
    %2686 = vmatprep.subr.mxu0 0.0
    %2687 = vmatpush1.msra.mxu0 0.0
    %2688 = vmatprep.subr.mxu0 0.0
    %2689 = vmatpush1.msra.mxu0 0.0
    %2690 = vmatprep.subr.mxu0 0.0
    %2691 = vmatpush1.msra.mxu0 0.0
    %2692 = vmatprep.subr.mxu0 0.0
    %2693 = vmatpush1.msra.mxu0 0.0
    %2694 = vmatprep.subr.mxu0 0.0
    %2695 = vmatpush1.msra.mxu0 0.0
    %2696 = vmatprep.subr.mxu0 0.0
    %2697 = vmatpush1.msra.mxu0 0.0
    %2698 = vmatprep.subr.mxu0 0.0
    %2699 = vmatpush1.msra.mxu0 0.0
    %2700 = vmatprep.subr.mxu0 0.0
    %2701 = vmatpush1.msra.mxu0 0.0
    %2702 = vmatprep.subr.mxu0 0.0
    %2703 = vmatpush1.msra.mxu0 0.0
    %2704 = vmatprep.subr.mxu0 0.0
    %2705 = vmatpush1.msra.mxu0 0.0
    %2706 = vmatprep.subr.mxu0 0.0
    %2707 = vmatpush1.msra.mxu0 0.0
    %2708 = vmatprep.subr.mxu0 0.0
    %2709 = vmatpush1.msra.mxu0 0.0
    %2710 = vmatprep.subr.mxu0 0.0
    %2711 = vmatpush1.msra.mxu0 0.0
    %2712 = vmatprep.subr.mxu0 0.0
    %2713 = vmatpush1.msra.mxu0 0.0
    %2714 = vmatprep.mubr.f32.mxu0 0.0
    %v2715 = vand.u32 %v2275, 4294901760
    %2716 = vmatmul.mubr.f32.gmra.mrb[0].mxu0 %v2715
    %v2717 = vpop.f32.mrb[0].mxu0
    %v2718 = vadd.f32 %v2627, %v2717
    %v2719 = vpop.f32.mrb[0].mxu0
    %2720 = vmatprep.mubr.f32.mxu0 0.0
    %v2721 = vand.u32 %v2278, 4294901760
    %2722 = vmatmul.mubr.f32.gmra.mrb[0].mxu0 %v2721
    %v2723 = vpop.f32.mrb[0].mxu0
    %v2724 = vadd.f32 %v2635, %v2723
    %v2725 = vpop.f32.mrb[0].mxu0
    %2726 = vdwg.mxu0
    %2727 = vmatprep.subr.mxu0 0.0
    %v2728 = vand.u32 %v21, 4294901760
    %2729 = vmatpush1.msra.mxu0 %v2728
    %2730 = vmatprep.subr.mxu0 0.0
    %v2731 = vand.u32 %v22, 4294901760
    %2732 = vmatpush1.msra.mxu0 %v2731
    %2733 = vmatprep.subr.mxu0 0.0
    %v2734 = vand.u32 %v23, 4294901760
    %2735 = vmatpush1.msra.mxu0 %v2734
    %2736 = vmatprep.subr.mxu0 0.0
    %v2737 = vand.u32 %v24, 4294901760
    %2738 = vmatpush1.msra.mxu0 %v2737
    %2739 = vmatprep.subr.mxu0 0.0
    %2740 = vmatpush1.msra.mxu0 0.0
    %2741 = vmatprep.subr.mxu0 0.0
    %2742 = vmatpush1.msra.mxu0 0.0
    %2743 = vmatprep.subr.mxu0 0.0
    %2744 = vmatpush1.msra.mxu0 0.0
    %2745 = vmatprep.subr.mxu0 0.0
    %2746 = vmatpush1.msra.mxu0 0.0
    %2747 = vmatprep.subr.mxu0 0.0
    %2748 = vmatpush1.msra.mxu0 0.0
    %2749 = vmatprep.subr.mxu0 0.0
    %2750 = vmatpush1.msra.mxu0 0.0
    %2751 = vmatprep.subr.mxu0 0.0
    %2752 = vmatpush1.msra.mxu0 0.0
    %2753 = vmatprep.subr.mxu0 0.0
    %2754 = vmatpush1.msra.mxu0 0.0
    %2755 = vmatprep.subr.mxu0 0.0
    %2756 = vmatpush1.msra.mxu0 0.0
    %2757 = vmatprep.subr.mxu0 0.0
    %2758 = vmatpush1.msra.mxu0 0.0
    %2759 = vmatprep.subr.mxu0 0.0
    %2760 = vmatpush1.msra.mxu0 0.0
    %2761 = vmatprep.subr.mxu0 0.0
    %2762 = vmatpush1.msra.mxu0 0.0
    %2763 = vmatprep.subr.mxu0 0.0
    %2764 = vmatpush1.msra.mxu0 0.0
    %2765 = vmatprep.subr.mxu0 0.0
    %2766 = vmatpush1.msra.mxu0 0.0
    %2767 = vmatprep.subr.mxu0 0.0
    %2768 = vmatpush1.msra.mxu0 0.0
    %2769 = vmatprep.subr.mxu0 0.0
    %2770 = vmatpush1.msra.mxu0 0.0
    %2771 = vmatprep.subr.mxu0 0.0
    %2772 = vmatpush1.msra.mxu0 0.0
    %2773 = vmatprep.subr.mxu0 0.0
    %2774 = vmatpush1.msra.mxu0 0.0
    %2775 = vmatprep.subr.mxu0 0.0
    %2776 = vmatpush1.msra.mxu0 0.0
    %2777 = vmatprep.subr.mxu0 0.0
    %2778 = vmatpush1.msra.mxu0 0.0
    %2779 = vmatprep.subr.mxu0 0.0
    %2780 = vmatpush1.msra.mxu0 0.0
    %2781 = vmatprep.subr.mxu0 0.0
    %2782 = vmatpush1.msra.mxu0 0.0
    %2783 = vmatprep.subr.mxu0 0.0
    %2784 = vmatpush1.msra.mxu0 0.0
    %2785 = vmatprep.subr.mxu0 0.0
    %2786 = vmatpush1.msra.mxu0 0.0
    %2787 = vmatprep.subr.mxu0 0.0
    %2788 = vmatpush1.msra.mxu0 0.0
    %2789 = vmatprep.subr.mxu0 0.0
    %2790 = vmatpush1.msra.mxu0 0.0
    %2791 = vmatprep.subr.mxu0 0.0
    %2792 = vmatpush1.msra.mxu0 0.0
    %2793 = vmatprep.subr.mxu0 0.0
    %2794 = vmatpush1.msra.mxu0 0.0
    %2795 = vmatprep.mubr.f32.mxu0 0.0
    %v2796 = vand.u32 %v2275, 4294901760
    %2797 = vmatmul.mubr.f32.gmra.mrb[0].mxu0 %v2796
    %v2798 = vpop.f32.mrb[0].mxu0
    %v2799 = vadd.f32 %v2718, %v2798
    %v2800 = vpop.f32.mrb[0].mxu0
    %2801 = vmatprep.mubr.f32.mxu0 0.0
    %v2802 = vand.u32 %v2278, 4294901760
    %2803 = vmatmul.mubr.f32.gmra.mrb[0].mxu0 %v2802
    %v2804 = vpop.f32.mrb[0].mxu0
    %v2805 = vadd.f32 %v2724, %v2804
    %v2806 = vpop.f32.mrb[0].mxu0
    %2807 = vdwg.mxu0
    %2808 = vmatprep.subr.mxu0 0.0
    %v2809 = vand.u32 %v26, 4294901760
    %2810 = vmatpush1.msra.mxu0 %v2809
    %2811 = vmatprep.subr.mxu0 0.0
    %v2812 = vand.u32 %v27, 4294901760
    %2813 = vmatpush1.msra.mxu0 %v2812
    %2814 = vmatprep.subr.mxu0 0.0
    %v2815 = vand.u32 %v28, 4294901760
    %2816 = vmatpush1.msra.mxu0 %v2815
    %2817 = vmatprep.subr.mxu0 0.0
    %v2818 = vand.u32 %v29, 4294901760
    %2819 = vmatpush1.msra.mxu0 %v2818
    %2820 = vmatprep.subr.mxu0 0.0
    %2821 = vmatpush1.msra.mxu0 0.0
    %2822 = vmatprep.subr.mxu0 0.0
    %2823 = vmatpush1.msra.mxu0 0.0
    %2824 = vmatprep.subr.mxu0 0.0
    %2825 = vmatpush1.msra.mxu0 0.0
    %2826 = vmatprep.subr.mxu0 0.0
    %2827 = vmatpush1.msra.mxu0 0.0
    %2828 = vmatprep.subr.mxu0 0.0
    %2829 = vmatpush1.msra.mxu0 0.0
    %2830 = vmatprep.subr.mxu0 0.0
    %2831 = vmatpush1.msra.mxu0 0.0
    %2832 = vmatprep.subr.mxu0 0.0
    %2833 = vmatpush1.msra.mxu0 0.0
    %2834 = vmatprep.subr.mxu0 0.0
    %2835 = vmatpush1.msra.mxu0 0.0
    %2836 = vmatprep.subr.mxu0 0.0
    %2837 = vmatpush1.msra.mxu0 0.0
    %2838 = vmatprep.subr.mxu0 0.0
    %2839 = vmatpush1.msra.mxu0 0.0
    %2840 = vmatprep.subr.mxu0 0.0
    %2841 = vmatpush1.msra.mxu0 0.0
    %2842 = vmatprep.subr.mxu0 0.0
    %2843 = vmatpush1.msra.mxu0 0.0
    %2844 = vmatprep.subr.mxu0 0.0
    %2845 = vmatpush1.msra.mxu0 0.0
    %2846 = vmatprep.subr.mxu0 0.0
    %2847 = vmatpush1.msra.mxu0 0.0
    %2848 = vmatprep.subr.mxu0 0.0
    %2849 = vmatpush1.msra.mxu0 0.0
    %2850 = vmatprep.subr.mxu0 0.0
    %2851 = vmatpush1.msra.mxu0 0.0
    %2852 = vmatprep.subr.mxu0 0.0
    %2853 = vmatpush1.msra.mxu0 0.0
    %2854 = vmatprep.subr.mxu0 0.0
    %2855 = vmatpush1.msra.mxu0 0.0
    %2856 = vmatprep.subr.mxu0 0.0
    %2857 = vmatpush1.msra.mxu0 0.0
    %2858 = vmatprep.subr.mxu0 0.0
    %2859 = vmatpush1.msra.mxu0 0.0
    %2860 = vmatprep.subr.mxu0 0.0
    %2861 = vmatpush1.msra.mxu0 0.0
    %2862 = vmatprep.subr.mxu0 0.0
    %2863 = vmatpush1.msra.mxu0 0.0
    %2864 = vmatprep.subr.mxu0 0.0
    %2865 = vmatpush1.msra.mxu0 0.0
    %2866 = vmatprep.subr.mxu0 0.0
    %2867 = vmatpush1.msra.mxu0 0.0
    %2868 = vmatprep.subr.mxu0 0.0
    %2869 = vmatpush1.msra.mxu0 0.0
    %2870 = vmatprep.subr.mxu0 0.0
    %2871 = vmatpush1.msra.mxu0 0.0
    %2872 = vmatprep.subr.mxu0 0.0
    %2873 = vmatpush1.msra.mxu0 0.0
    %2874 = vmatprep.subr.mxu0 0.0
    %2875 = vmatpush1.msra.mxu0 0.0
    %2876 = vmatprep.mubr.f32.mxu0 0.0
    %v2877 = vand.u32 %v2275, 4294901760
    %v2878 = vsub.f32 %v2275, %v2877
    %v2879 = vand.u32 %v2878, 4294901760
    %v2880 = vsub.f32 %v2878, %v2879
    %v2881 = vand.u32 %v2880, 4294901760
    %2882 = vmatmul.mubr.f32.gmra.mrb[0].mxu0 %v2881
    %v2883 = vpop.f32.mrb[0].mxu0
    %v2884 = vadd.f32 0.0, %v2883
    %v2885 = vpop.f32.mrb[0].mxu0
    %2886 = vmatprep.mubr.f32.mxu0 0.0
    %v2887 = vand.u32 %v2278, 4294901760
    %v2888 = vsub.f32 %v2278, %v2887
    %v2889 = vand.u32 %v2888, 4294901760
    %v2890 = vsub.f32 %v2888, %v2889
    %v2891 = vand.u32 %v2890, 4294901760
    %2892 = vmatmul.mubr.f32.gmra.mrb[0].mxu0 %v2891
    %v2893 = vpop.f32.mrb[0].mxu0
    %v2894 = vadd.f32 0.0, %v2893
    %v2895 = vpop.f32.mrb[0].mxu0
    %2896 = vdwg.mxu0
    %2897 = vmatprep.subr.mxu0 0.0
    %v2898 = vand.u32 %v26, 4294901760
    %v2899 = vsub.f32 %v26, %v2898
    %v2900 = vand.u32 %v2899, 4294901760
    %v2901 = vsub.f32 %v2899, %v2900
    %v2902 = vand.u32 %v2901, 4294901760
    %2903 = vmatpush1.msra.mxu0 %v2902
    %2904 = vmatprep.subr.mxu0 0.0
    %v2905 = vand.u32 %v27, 4294901760
    %v2906 = vsub.f32 %v27, %v2905
    %v2907 = vand.u32 %v2906, 4294901760
    %v2908 = vsub.f32 %v2906, %v2907
    %v2909 = vand.u32 %v2908, 4294901760
    %2910 = vmatpush1.msra.mxu0 %v2909
    %2911 = vmatprep.subr.mxu0 0.0
    %v2912 = vand.u32 %v28, 4294901760
    %v2913 = vsub.f32 %v28, %v2912
    %v2914 = vand.u32 %v2913, 4294901760
    %v2915 = vsub.f32 %v2913, %v2914
    %v2916 = vand.u32 %v2915, 4294901760
    %2917 = vmatpush1.msra.mxu0 %v2916
    %2918 = vmatprep.subr.mxu0 0.0
    %v2919 = vand.u32 %v29, 4294901760
    %v2920 = vsub.f32 %v29, %v2919
    %v2921 = vand.u32 %v2920, 4294901760
    %v2922 = vsub.f32 %v2920, %v2921
    %v2923 = vand.u32 %v2922, 4294901760
    %2924 = vmatpush1.msra.mxu0 %v2923
    %2925 = vmatprep.subr.mxu0 0.0
    %2926 = vmatpush1.msra.mxu0 0.0
    %2927 = vmatprep.subr.mxu0 0.0
    %2928 = vmatpush1.msra.mxu0 0.0
    %2929 = vmatprep.subr.mxu0 0.0
    %2930 = vmatpush1.msra.mxu0 0.0
    %2931 = vmatprep.subr.mxu0 0.0
    %2932 = vmatpush1.msra.mxu0 0.0
    %2933 = vmatprep.subr.mxu0 0.0
    %2934 = vmatpush1.msra.mxu0 0.0
    %2935 = vmatprep.subr.mxu0 0.0
    %2936 = vmatpush1.msra.mxu0 0.0
    %2937 = vmatprep.subr.mxu0 0.0
    %2938 = vmatpush1.msra.mxu0 0.0
    %2939 = vmatprep.subr.mxu0 0.0
    %2940 = vmatpush1.msra.mxu0 0.0
    %2941 = vmatprep.subr.mxu0 0.0
    %2942 = vmatpush1.msra.mxu0 0.0
    %2943 = vmatprep.subr.mxu0 0.0
    %2944 = vmatpush1.msra.mxu0 0.0
    %2945 = vmatprep.subr.mxu0 0.0
    %2946 = vmatpush1.msra.mxu0 0.0
    %2947 = vmatprep.subr.mxu0 0.0
    %2948 = vmatpush1.msra.mxu0 0.0
    %2949 = vmatprep.subr.mxu0 0.0
    %2950 = vmatpush1.msra.mxu0 0.0
    %2951 = vmatprep.subr.mxu0 0.0
    %2952 = vmatpush1.msra.mxu0 0.0
    %2953 = vmatprep.subr.mxu0 0.0
    %2954 = vmatpush1.msra.mxu0 0.0
    %2955 = vmatprep.subr.mxu0 0.0
    %2956 = vmatpush1.msra.mxu0 0.0
    %2957 = vmatprep.subr.mxu0 0.0
    %2958 = vmatpush1.msra.mxu0 0.0
    %2959 = vmatprep.subr.mxu0 0.0
    %2960 = vmatpush1.msra.mxu0 0.0
    %2961 = vmatprep.subr.mxu0 0.0
    %2962 = vmatpush1.msra.mxu0 0.0
    %2963 = vmatprep.subr.mxu0 0.0
    %2964 = vmatpush1.msra.mxu0 0.0
    %2965 = vmatprep.subr.mxu0 0.0
    %2966 = vmatpush1.msra.mxu0 0.0
    %2967 = vmatprep.subr.mxu0 0.0
    %2968 = vmatpush1.msra.mxu0 0.0
    %2969 = vmatprep.subr.mxu0 0.0
    %2970 = vmatpush1.msra.mxu0 0.0
    %2971 = vmatprep.subr.mxu0 0.0
    %2972 = vmatpush1.msra.mxu0 0.0
    %2973 = vmatprep.subr.mxu0 0.0
    %2974 = vmatpush1.msra.mxu0 0.0
    %2975 = vmatprep.subr.mxu0 0.0
    %2976 = vmatpush1.msra.mxu0 0.0
    %2977 = vmatprep.subr.mxu0 0.0
    %2978 = vmatpush1.msra.mxu0 0.0
    %2979 = vmatprep.subr.mxu0 0.0
    %2980 = vmatpush1.msra.mxu0 0.0
    %2981 = vmatprep.mubr.f32.mxu0 0.0
    %v2982 = vand.u32 %v2275, 4294901760
    %2983 = vmatmul.mubr.f32.gmra.mrb[0].mxu0 %v2982
    %v2984 = vpop.f32.mrb[0].mxu0
    %v2985 = vadd.f32 %v2884, %v2984
    %v2986 = vpop.f32.mrb[0].mxu0
    %2987 = vmatprep.mubr.f32.mxu0 0.0
    %v2988 = vand.u32 %v2278, 4294901760
    %2989 = vmatmul.mubr.f32.gmra.mrb[0].mxu0 %v2988
    %v2990 = vpop.f32.mrb[0].mxu0
    %v2991 = vadd.f32 %v2894, %v2990
    %v2992 = vpop.f32.mrb[0].mxu0
    %2993 = vdwg.mxu0
    %2994 = vmatprep.subr.mxu0 0.0
    %v2995 = vand.u32 %v26, 4294901760
    %v2996 = vsub.f32 %v26, %v2995
    %2997 = vmatpush1.msra.mxu0 %v2996
    %2998 = vmatprep.subr.mxu0 0.0
    %v2999 = vand.u32 %v27, 4294901760
    %v3000 = vsub.f32 %v27, %v2999
    %3001 = vmatpush1.msra.mxu0 %v3000
    %3002 = vmatprep.subr.mxu0 0.0
    %v3003 = vand.u32 %v28, 4294901760
    %v3004 = vsub.f32 %v28, %v3003
    %3005 = vmatpush1.msra.mxu0 %v3004
    %3006 = vmatprep.subr.mxu0 0.0
    %v3007 = vand.u32 %v29, 4294901760
    %v3008 = vsub.f32 %v29, %v3007
    %3009 = vmatpush1.msra.mxu0 %v3008
    %3010 = vmatprep.subr.mxu0 0.0
    %3011 = vmatpush1.msra.mxu0 0.0
    %3012 = vmatprep.subr.mxu0 0.0
    %3013 = vmatpush1.msra.mxu0 0.0
    %3014 = vmatprep.subr.mxu0 0.0
    %3015 = vmatpush1.msra.mxu0 0.0
    %3016 = vmatprep.subr.mxu0 0.0
    %3017 = vmatpush1.msra.mxu0 0.0
    %3018 = vmatprep.subr.mxu0 0.0
    %3019 = vmatpush1.msra.mxu0 0.0
    %3020 = vmatprep.subr.mxu0 0.0
    %3021 = vmatpush1.msra.mxu0 0.0
    %3022 = vmatprep.subr.mxu0 0.0
    %3023 = vmatpush1.msra.mxu0 0.0
    %3024 = vmatprep.subr.mxu0 0.0
    %3025 = vmatpush1.msra.mxu0 0.0
    %3026 = vmatprep.subr.mxu0 0.0
    %3027 = vmatpush1.msra.mxu0 0.0
    %3028 = vmatprep.subr.mxu0 0.0
    %3029 = vmatpush1.msra.mxu0 0.0
    %3030 = vmatprep.subr.mxu0 0.0
    %3031 = vmatpush1.msra.mxu0 0.0
    %3032 = vmatprep.subr.mxu0 0.0
    %3033 = vmatpush1.msra.mxu0 0.0
    %3034 = vmatprep.subr.mxu0 0.0
    %3035 = vmatpush1.msra.mxu0 0.0
    %3036 = vmatprep.subr.mxu0 0.0
    %3037 = vmatpush1.msra.mxu0 0.0
    %3038 = vmatprep.subr.mxu0 0.0
    %3039 = vmatpush1.msra.mxu0 0.0
    %3040 = vmatprep.subr.mxu0 0.0
    %3041 = vmatpush1.msra.mxu0 0.0
    %3042 = vmatprep.subr.mxu0 0.0
    %3043 = vmatpush1.msra.mxu0 0.0
    %3044 = vmatprep.subr.mxu0 0.0
    %3045 = vmatpush1.msra.mxu0 0.0
    %3046 = vmatprep.subr.mxu0 0.0
    %3047 = vmatpush1.msra.mxu0 0.0
    %3048 = vmatprep.subr.mxu0 0.0
    %3049 = vmatpush1.msra.mxu0 0.0
    %3050 = vmatprep.subr.mxu0 0.0
    %3051 = vmatpush1.msra.mxu0 0.0
    %3052 = vmatprep.subr.mxu0 0.0
    %3053 = vmatpush1.msra.mxu0 0.0
    %3054 = vmatprep.subr.mxu0 0.0
    %3055 = vmatpush1.msra.mxu0 0.0
    %3056 = vmatprep.subr.mxu0 0.0
    %3057 = vmatpush1.msra.mxu0 0.0
    %3058 = vmatprep.subr.mxu0 0.0
    %3059 = vmatpush1.msra.mxu0 0.0
    %3060 = vmatprep.subr.mxu0 0.0
    %3061 = vmatpush1.msra.mxu0 0.0
    %3062 = vmatprep.subr.mxu0 0.0
    %3063 = vmatpush1.msra.mxu0 0.0
    %3064 = vmatprep.subr.mxu0 0.0
    %3065 = vmatpush1.msra.mxu0 0.0
    %3066 = vmatprep.mubr.f32.mxu0 0.0
    %v3067 = vand.u32 %v2275, 4294901760
    %v3068 = vsub.f32 %v2275, %v3067
    %3069 = vmatmul.mubr.f32.gmra.mrb[0].mxu0 %v3068
    %v3070 = vpop.f32.mrb[0].mxu0
    %v3071 = vadd.f32 %v2985, %v3070
    %v3072 = vpop.f32.mrb[0].mxu0
    %3073 = vmatprep.mubr.f32.mxu0 0.0
    %v3074 = vand.u32 %v2278, 4294901760
    %v3075 = vsub.f32 %v2278, %v3074
    %3076 = vmatmul.mubr.f32.gmra.mrb[0].mxu0 %v3075
    %v3077 = vpop.f32.mrb[0].mxu0
    %v3078 = vadd.f32 %v2991, %v3077
    %v3079 = vpop.f32.mrb[0].mxu0
    %3080 = vdwg.mxu0
    %3081 = vmatprep.subr.mxu0 0.0
    %v3082 = vand.u32 %v26, 4294901760
    %3083 = vmatpush1.msra.mxu0 %v3082
    %3084 = vmatprep.subr.mxu0 0.0
    %v3085 = vand.u32 %v27, 4294901760
    %3086 = vmatpush1.msra.mxu0 %v3085
    %3087 = vmatprep.subr.mxu0 0.0
    %v3088 = vand.u32 %v28, 4294901760
    %3089 = vmatpush1.msra.mxu0 %v3088
    %3090 = vmatprep.subr.mxu0 0.0
    %v3091 = vand.u32 %v29, 4294901760
    %3092 = vmatpush1.msra.mxu0 %v3091
    %3093 = vmatprep.subr.mxu0 0.0
    %3094 = vmatpush1.msra.mxu0 0.0
    %3095 = vmatprep.subr.mxu0 0.0
    %3096 = vmatpush1.msra.mxu0 0.0
    %3097 = vmatprep.subr.mxu0 0.0
    %3098 = vmatpush1.msra.mxu0 0.0
    %3099 = vmatprep.subr.mxu0 0.0
    %3100 = vmatpush1.msra.mxu0 0.0
    %3101 = vmatprep.subr.mxu0 0.0
    %3102 = vmatpush1.msra.mxu0 0.0
    %3103 = vmatprep.subr.mxu0 0.0
    %3104 = vmatpush1.msra.mxu0 0.0
    %3105 = vmatprep.subr.mxu0 0.0
    %3106 = vmatpush1.msra.mxu0 0.0
    %3107 = vmatprep.subr.mxu0 0.0
    %3108 = vmatpush1.msra.mxu0 0.0
    %3109 = vmatprep.subr.mxu0 0.0
    %3110 = vmatpush1.msra.mxu0 0.0
    %3111 = vmatprep.subr.mxu0 0.0
    %3112 = vmatpush1.msra.mxu0 0.0
    %3113 = vmatprep.subr.mxu0 0.0
    %3114 = vmatpush1.msra.mxu0 0.0
    %3115 = vmatprep.subr.mxu0 0.0
    %3116 = vmatpush1.msra.mxu0 0.0
    %3117 = vmatprep.subr.mxu0 0.0
    %3118 = vmatpush1.msra.mxu0 0.0
    %3119 = vmatprep.subr.mxu0 0.0
    %3120 = vmatpush1.msra.mxu0 0.0
    %3121 = vmatprep.subr.mxu0 0.0
    %3122 = vmatpush1.msra.mxu0 0.0
    %3123 = vmatprep.subr.mxu0 0.0
    %3124 = vmatpush1.msra.mxu0 0.0
    %3125 = vmatprep.subr.mxu0 0.0
    %3126 = vmatpush1.msra.mxu0 0.0
    %3127 = vmatprep.subr.mxu0 0.0
    %3128 = vmatpush1.msra.mxu0 0.0
    %3129 = vmatprep.subr.mxu0 0.0
    %3130 = vmatpush1.msra.mxu0 0.0
    %3131 = vmatprep.subr.mxu0 0.0
    %3132 = vmatpush1.msra.mxu0 0.0
    %3133 = vmatprep.subr.mxu0 0.0
    %3134 = vmatpush1.msra.mxu0 0.0
    %3135 = vmatprep.subr.mxu0 0.0
    %3136 = vmatpush1.msra.mxu0 0.0
    %3137 = vmatprep.subr.mxu0 0.0
    %3138 = vmatpush1.msra.mxu0 0.0
    %3139 = vmatprep.subr.mxu0 0.0
    %3140 = vmatpush1.msra.mxu0 0.0
    %3141 = vmatprep.subr.mxu0 0.0
    %3142 = vmatpush1.msra.mxu0 0.0
    %3143 = vmatprep.subr.mxu0 0.0
    %3144 = vmatpush1.msra.mxu0 0.0
    %3145 = vmatprep.subr.mxu0 0.0
    %3146 = vmatpush1.msra.mxu0 0.0
    %3147 = vmatprep.subr.mxu0 0.0
    %3148 = vmatpush1.msra.mxu0 0.0
    %3149 = vmatprep.mubr.f32.mxu0 0.0
    %v3150 = vand.u32 %v2275, 4294901760
    %v3151 = vsub.f32 %v2275, %v3150
    %v3152 = vand.u32 %v3151, 4294901760
    %3153 = vmatmul.mubr.f32.gmra.mrb[0].mxu0 %v3152
    %v3154 = vpop.f32.mrb[0].mxu0
    %v3155 = vadd.f32 %v3071, %v3154
    %v3156 = vpop.f32.mrb[0].mxu0
    %3157 = vmatprep.mubr.f32.mxu0 0.0
    %v3158 = vand.u32 %v2278, 4294901760
    %v3159 = vsub.f32 %v2278, %v3158
    %v3160 = vand.u32 %v3159, 4294901760
    %3161 = vmatmul.mubr.f32.gmra.mrb[0].mxu0 %v3160
    %v3162 = vpop.f32.mrb[0].mxu0
    %v3163 = vadd.f32 %v3078, %v3162
    %v3164 = vpop.f32.mrb[0].mxu0
    %3165 = vdwg.mxu0
    %3166 = vmatprep.subr.mxu0 0.0
    %v3167 = vand.u32 %v26, 4294901760
    %v3168 = vsub.f32 %v26, %v3167
    %v3169 = vand.u32 %v3168, 4294901760
    %3170 = vmatpush1.msra.mxu0 %v3169
    %3171 = vmatprep.subr.mxu0 0.0
    %v3172 = vand.u32 %v27, 4294901760
    %v3173 = vsub.f32 %v27, %v3172
    %v3174 = vand.u32 %v3173, 4294901760
    %3175 = vmatpush1.msra.mxu0 %v3174
    %3176 = vmatprep.subr.mxu0 0.0
    %v3177 = vand.u32 %v28, 4294901760
    %v3178 = vsub.f32 %v28, %v3177
    %v3179 = vand.u32 %v3178, 4294901760
    %3180 = vmatpush1.msra.mxu0 %v3179
    %3181 = vmatprep.subr.mxu0 0.0
    %v3182 = vand.u32 %v29, 4294901760
    %v3183 = vsub.f32 %v29, %v3182
    %v3184 = vand.u32 %v3183, 4294901760
    %3185 = vmatpush1.msra.mxu0 %v3184
    %3186 = vmatprep.subr.mxu0 0.0
    %3187 = vmatpush1.msra.mxu0 0.0
    %3188 = vmatprep.subr.mxu0 0.0
    %3189 = vmatpush1.msra.mxu0 0.0
    %3190 = vmatprep.subr.mxu0 0.0
    %3191 = vmatpush1.msra.mxu0 0.0
    %3192 = vmatprep.subr.mxu0 0.0
    %3193 = vmatpush1.msra.mxu0 0.0
    %3194 = vmatprep.subr.mxu0 0.0
    %3195 = vmatpush1.msra.mxu0 0.0
    %3196 = vmatprep.subr.mxu0 0.0
    %3197 = vmatpush1.msra.mxu0 0.0
    %3198 = vmatprep.subr.mxu0 0.0
    %3199 = vmatpush1.msra.mxu0 0.0
    %3200 = vmatprep.subr.mxu0 0.0
    %3201 = vmatpush1.msra.mxu0 0.0
    %3202 = vmatprep.subr.mxu0 0.0
    %3203 = vmatpush1.msra.mxu0 0.0
    %3204 = vmatprep.subr.mxu0 0.0
    %3205 = vmatpush1.msra.mxu0 0.0
    %3206 = vmatprep.subr.mxu0 0.0
    %3207 = vmatpush1.msra.mxu0 0.0
    %3208 = vmatprep.subr.mxu0 0.0
    %3209 = vmatpush1.msra.mxu0 0.0
    %3210 = vmatprep.subr.mxu0 0.0
    %3211 = vmatpush1.msra.mxu0 0.0
    %3212 = vmatprep.subr.mxu0 0.0
    %3213 = vmatpush1.msra.mxu0 0.0
    %3214 = vmatprep.subr.mxu0 0.0
    %3215 = vmatpush1.msra.mxu0 0.0
    %3216 = vmatprep.subr.mxu0 0.0
    %3217 = vmatpush1.msra.mxu0 0.0
    %3218 = vmatprep.subr.mxu0 0.0
    %3219 = vmatpush1.msra.mxu0 0.0
    %3220 = vmatprep.subr.mxu0 0.0
    %3221 = vmatpush1.msra.mxu0 0.0
    %3222 = vmatprep.subr.mxu0 0.0
    %3223 = vmatpush1.msra.mxu0 0.0
    %3224 = vmatprep.subr.mxu0 0.0
    %3225 = vmatpush1.msra.mxu0 0.0
    %3226 = vmatprep.subr.mxu0 0.0
    %3227 = vmatpush1.msra.mxu0 0.0
    %3228 = vmatprep.subr.mxu0 0.0
    %3229 = vmatpush1.msra.mxu0 0.0
    %3230 = vmatprep.subr.mxu0 0.0
    %3231 = vmatpush1.msra.mxu0 0.0
    %3232 = vmatprep.subr.mxu0 0.0
    %3233 = vmatpush1.msra.mxu0 0.0
    %3234 = vmatprep.subr.mxu0 0.0
    %3235 = vmatpush1.msra.mxu0 0.0
    %3236 = vmatprep.subr.mxu0 0.0
    %3237 = vmatpush1.msra.mxu0 0.0
    %3238 = vmatprep.subr.mxu0 0.0
    %3239 = vmatpush1.msra.mxu0 0.0
    %3240 = vmatprep.subr.mxu0 0.0
    %3241 = vmatpush1.msra.mxu0 0.0
    %3242 = vmatprep.mubr.f32.mxu0 0.0
    %v3243 = vand.u32 %v2275, 4294901760
    %3244 = vmatmul.mubr.f32.gmra.mrb[0].mxu0 %v3243
    %v3245 = vpop.f32.mrb[0].mxu0
    %v3246 = vadd.f32 %v3155, %v3245
    %v3247 = vpop.f32.mrb[0].mxu0
    %3248 = vmatprep.mubr.f32.mxu0 0.0
    %v3249 = vand.u32 %v2278, 4294901760
    %3250 = vmatmul.mubr.f32.gmra.mrb[0].mxu0 %v3249
    %v3251 = vpop.f32.mrb[0].mxu0
    %v3252 = vadd.f32 %v3163, %v3251
    %v3253 = vpop.f32.mrb[0].mxu0
    %3254 = vdwg.mxu0
    %3255 = vmatprep.subr.mxu0 0.0
    %v3256 = vand.u32 %v26, 4294901760
    %3257 = vmatpush1.msra.mxu0 %v3256
    %3258 = vmatprep.subr.mxu0 0.0
    %v3259 = vand.u32 %v27, 4294901760
    %3260 = vmatpush1.msra.mxu0 %v3259
    %3261 = vmatprep.subr.mxu0 0.0
    %v3262 = vand.u32 %v28, 4294901760
    %3263 = vmatpush1.msra.mxu0 %v3262
    %3264 = vmatprep.subr.mxu0 0.0
    %v3265 = vand.u32 %v29, 4294901760
    %3266 = vmatpush1.msra.mxu0 %v3265
    %3267 = vmatprep.subr.mxu0 0.0
    %3268 = vmatpush1.msra.mxu0 0.0
    %3269 = vmatprep.subr.mxu0 0.0
    %3270 = vmatpush1.msra.mxu0 0.0
    %3271 = vmatprep.subr.mxu0 0.0
    %3272 = vmatpush1.msra.mxu0 0.0
    %3273 = vmatprep.subr.mxu0 0.0
    %3274 = vmatpush1.msra.mxu0 0.0
    %3275 = vmatprep.subr.mxu0 0.0
    %3276 = vmatpush1.msra.mxu0 0.0
    %3277 = vmatprep.subr.mxu0 0.0
    %3278 = vmatpush1.msra.mxu0 0.0
    %3279 = vmatprep.subr.mxu0 0.0
    %3280 = vmatpush1.msra.mxu0 0.0
    %3281 = vmatprep.subr.mxu0 0.0
    %3282 = vmatpush1.msra.mxu0 0.0
    %3283 = vmatprep.subr.mxu0 0.0
    %3284 = vmatpush1.msra.mxu0 0.0
    %3285 = vmatprep.subr.mxu0 0.0
    %3286 = vmatpush1.msra.mxu0 0.0
    %3287 = vmatprep.subr.mxu0 0.0
    %3288 = vmatpush1.msra.mxu0 0.0
    %3289 = vmatprep.subr.mxu0 0.0
    %3290 = vmatpush1.msra.mxu0 0.0
    %3291 = vmatprep.subr.mxu0 0.0
    %3292 = vmatpush1.msra.mxu0 0.0
    %3293 = vmatprep.subr.mxu0 0.0
    %3294 = vmatpush1.msra.mxu0 0.0
    %3295 = vmatprep.subr.mxu0 0.0
    %3296 = vmatpush1.msra.mxu0 0.0
    %3297 = vmatprep.subr.mxu0 0.0
    %3298 = vmatpush1.msra.mxu0 0.0
    %3299 = vmatprep.subr.mxu0 0.0
    %3300 = vmatpush1.msra.mxu0 0.0
    %3301 = vmatprep.subr.mxu0 0.0
    %3302 = vmatpush1.msra.mxu0 0.0
    %3303 = vmatprep.subr.mxu0 0.0
    %3304 = vmatpush1.msra.mxu0 0.0
    %3305 = vmatprep.subr.mxu0 0.0
    %3306 = vmatpush1.msra.mxu0 0.0
    %3307 = vmatprep.subr.mxu0 0.0
    %3308 = vmatpush1.msra.mxu0 0.0
    %3309 = vmatprep.subr.mxu0 0.0
    %3310 = vmatpush1.msra.mxu0 0.0
    %3311 = vmatprep.subr.mxu0 0.0
    %3312 = vmatpush1.msra.mxu0 0.0
    %3313 = vmatprep.subr.mxu0 0.0
    %3314 = vmatpush1.msra.mxu0 0.0
    %3315 = vmatprep.subr.mxu0 0.0
    %3316 = vmatpush1.msra.mxu0 0.0
    %3317 = vmatprep.subr.mxu0 0.0
    %3318 = vmatpush1.msra.mxu0 0.0
    %3319 = vmatprep.subr.mxu0 0.0
    %3320 = vmatpush1.msra.mxu0 0.0
    %3321 = vmatprep.subr.mxu0 0.0
    %3322 = vmatpush1.msra.mxu0 0.0
    %3323 = vmatprep.mubr.f32.mxu0 0.0
    %v3324 = vand.u32 %v2275, 4294901760
    %3325 = vmatmul.mubr.f32.gmra.mrb[0].mxu0 %v3324
    %v3326 = vpop.f32.mrb[0].mxu0
    %v3327 = vadd.f32 %v3246, %v3326
    %v3328 = vpop.f32.mrb[0].mxu0
    %3329 = vmatprep.mubr.f32.mxu0 0.0
    %v3330 = vand.u32 %v2278, 4294901760
    %3331 = vmatmul.mubr.f32.gmra.mrb[0].mxu0 %v3330
    %v3332 = vpop.f32.mrb[0].mxu0
    %v3333 = vadd.f32 %v3252, %v3332
    %v3334 = vpop.f32.mrb[0].mxu0
    %3335 = vdwg.mxu0
    %v3336 = vld [vmem:[%s2] sm:$0xff]
    %v3337 = vld [vmem:[%s2 + $0x8] sm:$0xff]
    %s3338 = scalar_lea.vmem %s3, 144
    %v3339 = vld [vmem:[%s3338] sm:$0xff]
    %v3340 = vld [vmem:[%s3338 + $0x8] sm:$0xff]
    %3342 = vset.pattern.permute.xlu0 0
    %3343 = vperm.xlu0 %3342, %v3339
    %v3344 = vpop.permute.xlu0 %3343
    %3347 = vset.pattern.permute.xlu0 0
    %3348 = vperm.xlu0 %3347, %v3340
    %v3349 = vpop.permute.xlu0 %3348
    %vm3351 = vcmask 392192
    %v3353 = vsel %vm3351, %v3336, 0
    %v3356 = vsel %vm3351, %v3337, 0
    %3358 = vmatprep.subr.mxu0 0.0
    %v3359 = vand.u32 %v2799, 4294901760
    %3360 = vmatpush1.msra.mxu0 %v3359
    %3361 = vmatprep.subr.mxu0 0.0
    %v3362 = vand.u32 %v2805, 4294901760
    %3363 = vmatpush1.msra.mxu0 %v3362
    %3364 = vmatprep.subr.mxu0 0.0
    %v3365 = vand.u32 %v2272, 4294901760
    %3366 = vmatpush1.msra.mxu0 %v3365
    %3367 = vmatprep.subr.mxu0 0.0
    %v3368 = vand.u32 %v2273, 4294901760
    %3369 = vmatpush1.msra.mxu0 %v3368
    %3370 = vmatprep.subr.mxu0 0.0
    %v3371 = vand.u32 %v3327, 4294901760
    %3372 = vmatpush1.msra.mxu0 %v3371
    %3373 = vmatprep.subr.mxu0 0.0
    %v3374 = vand.u32 %v3333, 4294901760
    %3375 = vmatpush1.msra.mxu0 %v3374
    %3376 = vmatprep.subr.mxu0 0.0
    %3377 = vmatpush1.msra.mxu0 0.0
    %3378 = vmatprep.subr.mxu0 0.0
    %3379 = vmatpush1.msra.mxu0 0.0
    %3380 = vmatprep.subr.mxu0 0.0
    %3381 = vmatpush1.msra.mxu0 0.0
    %3382 = vmatprep.subr.mxu0 0.0
    %3383 = vmatpush1.msra.mxu0 0.0
    %3384 = vmatprep.subr.mxu0 0.0
    %3385 = vmatpush1.msra.mxu0 0.0
    %3386 = vmatprep.subr.mxu0 0.0
    %3387 = vmatpush1.msra.mxu0 0.0
    %3388 = vmatprep.subr.mxu0 0.0
    %3389 = vmatpush1.msra.mxu0 0.0
    %3390 = vmatprep.subr.mxu0 0.0
    %3391 = vmatpush1.msra.mxu0 0.0
    %3392 = vmatprep.subr.mxu0 0.0
    %3393 = vmatpush1.msra.mxu0 0.0
    %3394 = vmatprep.subr.mxu0 0.0
    %3395 = vmatpush1.msra.mxu0 0.0
    %3396 = vmatprep.subr.mxu0 0.0
    %3397 = vmatpush1.msra.mxu0 0.0
    %3398 = vmatprep.subr.mxu0 0.0
    %3399 = vmatpush1.msra.mxu0 0.0
    %3400 = vmatprep.subr.mxu0 0.0
    %3401 = vmatpush1.msra.mxu0 0.0
    %3402 = vmatprep.subr.mxu0 0.0
    %3403 = vmatpush1.msra.mxu0 0.0
    %3404 = vmatprep.subr.mxu0 0.0
    %3405 = vmatpush1.msra.mxu0 0.0
    %3406 = vmatprep.subr.mxu0 0.0
    %3407 = vmatpush1.msra.mxu0 0.0
    %3408 = vmatprep.subr.mxu0 0.0
    %3409 = vmatpush1.msra.mxu0 0.0
    %3410 = vmatprep.subr.mxu0 0.0
    %3411 = vmatpush1.msra.mxu0 0.0
    %3412 = vmatprep.subr.mxu0 0.0
    %3413 = vmatpush1.msra.mxu0 0.0
    %3414 = vmatprep.subr.mxu0 0.0
    %3415 = vmatpush1.msra.mxu0 0.0
    %3416 = vmatprep.subr.mxu0 0.0
    %3417 = vmatpush1.msra.mxu0 0.0
    %3418 = vmatprep.subr.mxu0 0.0
    %3419 = vmatpush1.msra.mxu0 0.0
    %3420 = vmatprep.subr.mxu0 0.0
    %3421 = vmatpush1.msra.mxu0 0.0
    %3422 = vmatprep.subr.mxu0 0.0
    %3423 = vmatpush1.msra.mxu0 0.0
    %3424 = vmatprep.subr.mxu0 0.0
    %3425 = vmatpush1.msra.mxu0 0.0
    %3426 = vmatprep.subr.mxu0 0.0
    %3427 = vmatpush1.msra.mxu0 0.0
    %3428 = vmatprep.mubr.f32.mxu0 0.0
    %v3429 = vand.u32 %v3353, 4294901760
    %v3430 = vsub.f32 %v3353, %v3429
    %v3431 = vand.u32 %v3430, 4294901760
    %v3432 = vsub.f32 %v3430, %v3431
    %v3433 = vand.u32 %v3432, 4294901760
    %3434 = vmatmul.mubr.f32.gmra.mrb[0].mxu0 %v3433
    %v3435 = vpop.f32.mrb[0].mxu0
    %v3436 = vadd.f32 %v3344, %v3435
    %v3437 = vpop.f32.mrb[0].mxu0
    %3438 = vmatprep.mubr.f32.mxu0 0.0
    %v3439 = vand.u32 %v3356, 4294901760
    %v3440 = vsub.f32 %v3356, %v3439
    %v3441 = vand.u32 %v3440, 4294901760
    %v3442 = vsub.f32 %v3440, %v3441
    %v3443 = vand.u32 %v3442, 4294901760
    %3444 = vmatmul.mubr.f32.gmra.mrb[0].mxu0 %v3443
    %v3445 = vpop.f32.mrb[0].mxu0
    %v3446 = vadd.f32 %v3349, %v3445
    %v3447 = vpop.f32.mrb[0].mxu0
    %3448 = vdwg.mxu0
    %3449 = vmatprep.subr.mxu0 0.0
    %v3450 = vand.u32 %v2799, 4294901760
    %v3451 = vsub.f32 %v2799, %v3450
    %v3452 = vand.u32 %v3451, 4294901760
    %v3453 = vsub.f32 %v3451, %v3452
    %v3454 = vand.u32 %v3453, 4294901760
    %3455 = vmatpush1.msra.mxu0 %v3454
    %3456 = vmatprep.subr.mxu0 0.0
    %v3457 = vand.u32 %v2805, 4294901760
    %v3458 = vsub.f32 %v2805, %v3457
    %v3459 = vand.u32 %v3458, 4294901760
    %v3460 = vsub.f32 %v3458, %v3459
    %v3461 = vand.u32 %v3460, 4294901760
    %3462 = vmatpush1.msra.mxu0 %v3461
    %3463 = vmatprep.subr.mxu0 0.0
    %v3464 = vand.u32 %v2272, 4294901760
    %v3465 = vsub.f32 %v2272, %v3464
    %v3466 = vand.u32 %v3465, 4294901760
    %v3467 = vsub.f32 %v3465, %v3466
    %v3468 = vand.u32 %v3467, 4294901760
    %3469 = vmatpush1.msra.mxu0 %v3468
    %3470 = vmatprep.subr.mxu0 0.0
    %v3471 = vand.u32 %v2273, 4294901760
    %v3472 = vsub.f32 %v2273, %v3471
    %v3473 = vand.u32 %v3472, 4294901760
    %v3474 = vsub.f32 %v3472, %v3473
    %v3475 = vand.u32 %v3474, 4294901760
    %3476 = vmatpush1.msra.mxu0 %v3475
    %3477 = vmatprep.subr.mxu0 0.0
    %v3478 = vand.u32 %v3327, 4294901760
    %v3479 = vsub.f32 %v3327, %v3478
    %v3480 = vand.u32 %v3479, 4294901760
    %v3481 = vsub.f32 %v3479, %v3480
    %v3482 = vand.u32 %v3481, 4294901760
    %3483 = vmatpush1.msra.mxu0 %v3482
    %3484 = vmatprep.subr.mxu0 0.0
    %v3485 = vand.u32 %v3333, 4294901760
    %v3486 = vsub.f32 %v3333, %v3485
    %v3487 = vand.u32 %v3486, 4294901760
    %v3488 = vsub.f32 %v3486, %v3487
    %v3489 = vand.u32 %v3488, 4294901760
    %3490 = vmatpush1.msra.mxu0 %v3489
    %3491 = vmatprep.subr.mxu0 0.0
    %3492 = vmatpush1.msra.mxu0 0.0
    %3493 = vmatprep.subr.mxu0 0.0
    %3494 = vmatpush1.msra.mxu0 0.0
    %3495 = vmatprep.subr.mxu0 0.0
    %3496 = vmatpush1.msra.mxu0 0.0
    %3497 = vmatprep.subr.mxu0 0.0
    %3498 = vmatpush1.msra.mxu0 0.0
    %3499 = vmatprep.subr.mxu0 0.0
    %3500 = vmatpush1.msra.mxu0 0.0
    %3501 = vmatprep.subr.mxu0 0.0
    %3502 = vmatpush1.msra.mxu0 0.0
    %3503 = vmatprep.subr.mxu0 0.0
    %3504 = vmatpush1.msra.mxu0 0.0
    %3505 = vmatprep.subr.mxu0 0.0
    %3506 = vmatpush1.msra.mxu0 0.0
    %3507 = vmatprep.subr.mxu0 0.0
    %3508 = vmatpush1.msra.mxu0 0.0
    %3509 = vmatprep.subr.mxu0 0.0
    %3510 = vmatpush1.msra.mxu0 0.0
    %3511 = vmatprep.subr.mxu0 0.0
    %3512 = vmatpush1.msra.mxu0 0.0
    %3513 = vmatprep.subr.mxu0 0.0
    %3514 = vmatpush1.msra.mxu0 0.0
    %3515 = vmatprep.subr.mxu0 0.0
    %3516 = vmatpush1.msra.mxu0 0.0
    %3517 = vmatprep.subr.mxu0 0.0
    %3518 = vmatpush1.msra.mxu0 0.0
    %3519 = vmatprep.subr.mxu0 0.0
    %3520 = vmatpush1.msra.mxu0 0.0
    %3521 = vmatprep.subr.mxu0 0.0
    %3522 = vmatpush1.msra.mxu0 0.0
    %3523 = vmatprep.subr.mxu0 0.0
    %3524 = vmatpush1.msra.mxu0 0.0
    %3525 = vmatprep.subr.mxu0 0.0
    %3526 = vmatpush1.msra.mxu0 0.0
    %3527 = vmatprep.subr.mxu0 0.0
    %3528 = vmatpush1.msra.mxu0 0.0
    %3529 = vmatprep.subr.mxu0 0.0
    %3530 = vmatpush1.msra.mxu0 0.0
    %3531 = vmatprep.subr.mxu0 0.0
    %3532 = vmatpush1.msra.mxu0 0.0
    %3533 = vmatprep.subr.mxu0 0.0
    %3534 = vmatpush1.msra.mxu0 0.0
    %3535 = vmatprep.subr.mxu0 0.0
    %3536 = vmatpush1.msra.mxu0 0.0
    %3537 = vmatprep.subr.mxu0 0.0
    %3538 = vmatpush1.msra.mxu0 0.0
    %3539 = vmatprep.subr.mxu0 0.0
    %3540 = vmatpush1.msra.mxu0 0.0
    %3541 = vmatprep.subr.mxu0 0.0
    %3542 = vmatpush1.msra.mxu0 0.0
    %3543 = vmatprep.mubr.f32.mxu0 0.0
    %v3544 = vand.u32 %v3353, 4294901760
    %3545 = vmatmul.mubr.f32.gmra.mrb[0].mxu0 %v3544
    %v3546 = vpop.f32.mrb[0].mxu0
    %v3547 = vadd.f32 %v3436, %v3546
    %v3548 = vpop.f32.mrb[0].mxu0
    %3549 = vmatprep.mubr.f32.mxu0 0.0
    %v3550 = vand.u32 %v3356, 4294901760
    %3551 = vmatmul.mubr.f32.gmra.mrb[0].mxu0 %v3550
    %v3552 = vpop.f32.mrb[0].mxu0
    %v3553 = vadd.f32 %v3446, %v3552
    %v3554 = vpop.f32.mrb[0].mxu0
    %3555 = vdwg.mxu0
    %3556 = vmatprep.subr.mxu0 0.0
    %v3557 = vand.u32 %v2799, 4294901760
    %v3558 = vsub.f32 %v2799, %v3557
    %3559 = vmatpush1.msra.mxu0 %v3558
    %3560 = vmatprep.subr.mxu0 0.0
    %v3561 = vand.u32 %v2805, 4294901760
    %v3562 = vsub.f32 %v2805, %v3561
    %3563 = vmatpush1.msra.mxu0 %v3562
    %3564 = vmatprep.subr.mxu0 0.0
    %v3565 = vand.u32 %v2272, 4294901760
    %v3566 = vsub.f32 %v2272, %v3565
    %3567 = vmatpush1.msra.mxu0 %v3566
    %3568 = vmatprep.subr.mxu0 0.0
    %v3569 = vand.u32 %v2273, 4294901760
    %v3570 = vsub.f32 %v2273, %v3569
    %3571 = vmatpush1.msra.mxu0 %v3570
    %3572 = vmatprep.subr.mxu0 0.0
    %v3573 = vand.u32 %v3327, 4294901760
    %v3574 = vsub.f32 %v3327, %v3573
    %3575 = vmatpush1.msra.mxu0 %v3574
    %3576 = vmatprep.subr.mxu0 0.0
    %v3577 = vand.u32 %v3333, 4294901760
    %v3578 = vsub.f32 %v3333, %v3577
    %3579 = vmatpush1.msra.mxu0 %v3578
    %3580 = vmatprep.subr.mxu0 0.0
    %3581 = vmatpush1.msra.mxu0 0.0
    %3582 = vmatprep.subr.mxu0 0.0
    %3583 = vmatpush1.msra.mxu0 0.0
    %3584 = vmatprep.subr.mxu0 0.0
    %3585 = vmatpush1.msra.mxu0 0.0
    %3586 = vmatprep.subr.mxu0 0.0
    %3587 = vmatpush1.msra.mxu0 0.0
    %3588 = vmatprep.subr.mxu0 0.0
    %3589 = vmatpush1.msra.mxu0 0.0
    %3590 = vmatprep.subr.mxu0 0.0
    %3591 = vmatpush1.msra.mxu0 0.0
    %3592 = vmatprep.subr.mxu0 0.0
    %3593 = vmatpush1.msra.mxu0 0.0
    %3594 = vmatprep.subr.mxu0 0.0
    %3595 = vmatpush1.msra.mxu0 0.0
    %3596 = vmatprep.subr.mxu0 0.0
    %3597 = vmatpush1.msra.mxu0 0.0
    %3598 = vmatprep.subr.mxu0 0.0
    %3599 = vmatpush1.msra.mxu0 0.0
    %3600 = vmatprep.subr.mxu0 0.0
    %3601 = vmatpush1.msra.mxu0 0.0
    %3602 = vmatprep.subr.mxu0 0.0
    %3603 = vmatpush1.msra.mxu0 0.0
    %3604 = vmatprep.subr.mxu0 0.0
    %3605 = vmatpush1.msra.mxu0 0.0
    %3606 = vmatprep.subr.mxu0 0.0
    %3607 = vmatpush1.msra.mxu0 0.0
    %3608 = vmatprep.subr.mxu0 0.0
    %3609 = vmatpush1.msra.mxu0 0.0
    %3610 = vmatprep.subr.mxu0 0.0
    %3611 = vmatpush1.msra.mxu0 0.0
    %3612 = vmatprep.subr.mxu0 0.0
    %3613 = vmatpush1.msra.mxu0 0.0
    %3614 = vmatprep.subr.mxu0 0.0
    %3615 = vmatpush1.msra.mxu0 0.0
    %3616 = vmatprep.subr.mxu0 0.0
    %3617 = vmatpush1.msra.mxu0 0.0
    %3618 = vmatprep.subr.mxu0 0.0
    %3619 = vmatpush1.msra.mxu0 0.0
    %3620 = vmatprep.subr.mxu0 0.0
    %3621 = vmatpush1.msra.mxu0 0.0
    %3622 = vmatprep.subr.mxu0 0.0
    %3623 = vmatpush1.msra.mxu0 0.0
    %3624 = vmatprep.subr.mxu0 0.0
    %3625 = vmatpush1.msra.mxu0 0.0
    %3626 = vmatprep.subr.mxu0 0.0
    %3627 = vmatpush1.msra.mxu0 0.0
    %3628 = vmatprep.subr.mxu0 0.0
    %3629 = vmatpush1.msra.mxu0 0.0
    %3630 = vmatprep.subr.mxu0 0.0
    %3631 = vmatpush1.msra.mxu0 0.0
    %3632 = vmatprep.mubr.f32.mxu0 0.0
    %v3633 = vand.u32 %v3353, 4294901760
    %v3634 = vsub.f32 %v3353, %v3633
    %3635 = vmatmul.mubr.f32.gmra.mrb[0].mxu0 %v3634
    %v3636 = vpop.f32.mrb[0].mxu0
    %v3637 = vadd.f32 %v3547, %v3636
    %v3638 = vpop.f32.mrb[0].mxu0
    %3639 = vmatprep.mubr.f32.mxu0 0.0
    %v3640 = vand.u32 %v3356, 4294901760
    %v3641 = vsub.f32 %v3356, %v3640
    %3642 = vmatmul.mubr.f32.gmra.mrb[0].mxu0 %v3641
    %v3643 = vpop.f32.mrb[0].mxu0
    %v3644 = vadd.f32 %v3553, %v3643
    %v3645 = vpop.f32.mrb[0].mxu0
    %3646 = vdwg.mxu0
    %3647 = vmatprep.subr.mxu0 0.0
    %v3648 = vand.u32 %v2799, 4294901760
    %3649 = vmatpush1.msra.mxu0 %v3648
    %3650 = vmatprep.subr.mxu0 0.0
    %v3651 = vand.u32 %v2805, 4294901760
    %3652 = vmatpush1.msra.mxu0 %v3651
    %3653 = vmatprep.subr.mxu0 0.0
    %v3654 = vand.u32 %v2272, 4294901760
    %3655 = vmatpush1.msra.mxu0 %v3654
    %3656 = vmatprep.subr.mxu0 0.0
    %v3657 = vand.u32 %v2273, 4294901760
    %3658 = vmatpush1.msra.mxu0 %v3657
    %3659 = vmatprep.subr.mxu0 0.0
    %v3660 = vand.u32 %v3327, 4294901760
    %3661 = vmatpush1.msra.mxu0 %v3660
    %3662 = vmatprep.subr.mxu0 0.0
    %v3663 = vand.u32 %v3333, 4294901760
    %3664 = vmatpush1.msra.mxu0 %v3663
    %3665 = vmatprep.subr.mxu0 0.0
    %3666 = vmatpush1.msra.mxu0 0.0
    %3667 = vmatprep.subr.mxu0 0.0
    %3668 = vmatpush1.msra.mxu0 0.0
    %3669 = vmatprep.subr.mxu0 0.0
    %3670 = vmatpush1.msra.mxu0 0.0
    %3671 = vmatprep.subr.mxu0 0.0
    %3672 = vmatpush1.msra.mxu0 0.0
    %3673 = vmatprep.subr.mxu0 0.0
    %3674 = vmatpush1.msra.mxu0 0.0
    %3675 = vmatprep.subr.mxu0 0.0
    %3676 = vmatpush1.msra.mxu0 0.0
    %3677 = vmatprep.subr.mxu0 0.0
    %3678 = vmatpush1.msra.mxu0 0.0
    %3679 = vmatprep.subr.mxu0 0.0
    %3680 = vmatpush1.msra.mxu0 0.0
    %3681 = vmatprep.subr.mxu0 0.0
    %3682 = vmatpush1.msra.mxu0 0.0
    %3683 = vmatprep.subr.mxu0 0.0
    %3684 = vmatpush1.msra.mxu0 0.0
    %3685 = vmatprep.subr.mxu0 0.0
    %3686 = vmatpush1.msra.mxu0 0.0
    %3687 = vmatprep.subr.mxu0 0.0
    %3688 = vmatpush1.msra.mxu0 0.0
    %3689 = vmatprep.subr.mxu0 0.0
    %3690 = vmatpush1.msra.mxu0 0.0
    %3691 = vmatprep.subr.mxu0 0.0
    %3692 = vmatpush1.msra.mxu0 0.0
    %3693 = vmatprep.subr.mxu0 0.0
    %3694 = vmatpush1.msra.mxu0 0.0
    %3695 = vmatprep.subr.mxu0 0.0
    %3696 = vmatpush1.msra.mxu0 0.0
    %3697 = vmatprep.subr.mxu0 0.0
    %3698 = vmatpush1.msra.mxu0 0.0
    %3699 = vmatprep.subr.mxu0 0.0
    %3700 = vmatpush1.msra.mxu0 0.0
    %3701 = vmatprep.subr.mxu0 0.0
    %3702 = vmatpush1.msra.mxu0 0.0
    %3703 = vmatprep.subr.mxu0 0.0
    %3704 = vmatpush1.msra.mxu0 0.0
    %3705 = vmatprep.subr.mxu0 0.0
    %3706 = vmatpush1.msra.mxu0 0.0
    %3707 = vmatprep.subr.mxu0 0.0
    %3708 = vmatpush1.msra.mxu0 0.0
    %3709 = vmatprep.subr.mxu0 0.0
    %3710 = vmatpush1.msra.mxu0 0.0
    %3711 = vmatprep.subr.mxu0 0.0
    %3712 = vmatpush1.msra.mxu0 0.0
    %3713 = vmatprep.subr.mxu0 0.0
    %3714 = vmatpush1.msra.mxu0 0.0
    %3715 = vmatprep.subr.mxu0 0.0
    %3716 = vmatpush1.msra.mxu0 0.0
    %3717 = vmatprep.mubr.f32.mxu0 0.0
    %v3718 = vand.u32 %v3353, 4294901760
    %v3719 = vsub.f32 %v3353, %v3718
    %v3720 = vand.u32 %v3719, 4294901760
    %3721 = vmatmul.mubr.f32.gmra.mrb[0].mxu0 %v3720
    %v3722 = vpop.f32.mrb[0].mxu0
    %v3723 = vadd.f32 %v3637, %v3722
    %v3724 = vpop.f32.mrb[0].mxu0
    %3725 = vmatprep.mubr.f32.mxu0 0.0
    %v3726 = vand.u32 %v3356, 4294901760
    %v3727 = vsub.f32 %v3356, %v3726
    %v3728 = vand.u32 %v3727, 4294901760
    %3729 = vmatmul.mubr.f32.gmra.mrb[0].mxu0 %v3728
    %v3730 = vpop.f32.mrb[0].mxu0
    %v3731 = vadd.f32 %v3644, %v3730
    %v3732 = vpop.f32.mrb[0].mxu0
    %3733 = vdwg.mxu0
    %3734 = vmatprep.subr.mxu0 0.0
    %v3735 = vand.u32 %v2799, 4294901760
    %v3736 = vsub.f32 %v2799, %v3735
    %v3737 = vand.u32 %v3736, 4294901760
    %3738 = vmatpush1.msra.mxu0 %v3737
    %3739 = vmatprep.subr.mxu0 0.0
    %v3740 = vand.u32 %v2805, 4294901760
    %v3741 = vsub.f32 %v2805, %v3740
    %v3742 = vand.u32 %v3741, 4294901760
    %3743 = vmatpush1.msra.mxu0 %v3742
    %3744 = vmatprep.subr.mxu0 0.0
    %v3745 = vand.u32 %v2272, 4294901760
    %v3746 = vsub.f32 %v2272, %v3745
    %v3747 = vand.u32 %v3746, 4294901760
    %3748 = vmatpush1.msra.mxu0 %v3747
    %3749 = vmatprep.subr.mxu0 0.0
    %v3750 = vand.u32 %v2273, 4294901760
    %v3751 = vsub.f32 %v2273, %v3750
    %v3752 = vand.u32 %v3751, 4294901760
    %3753 = vmatpush1.msra.mxu0 %v3752
    %3754 = vmatprep.subr.mxu0 0.0
    %v3755 = vand.u32 %v3327, 4294901760
    %v3756 = vsub.f32 %v3327, %v3755
    %v3757 = vand.u32 %v3756, 4294901760
    %3758 = vmatpush1.msra.mxu0 %v3757
    %3759 = vmatprep.subr.mxu0 0.0
    %v3760 = vand.u32 %v3333, 4294901760
    %v3761 = vsub.f32 %v3333, %v3760
    %v3762 = vand.u32 %v3761, 4294901760
    %3763 = vmatpush1.msra.mxu0 %v3762
    %3764 = vmatprep.subr.mxu0 0.0
    %3765 = vmatpush1.msra.mxu0 0.0
    %3766 = vmatprep.subr.mxu0 0.0
    %3767 = vmatpush1.msra.mxu0 0.0
    %3768 = vmatprep.subr.mxu0 0.0
    %3769 = vmatpush1.msra.mxu0 0.0
    %3770 = vmatprep.subr.mxu0 0.0
    %3771 = vmatpush1.msra.mxu0 0.0
    %3772 = vmatprep.subr.mxu0 0.0
    %3773 = vmatpush1.msra.mxu0 0.0
    %3774 = vmatprep.subr.mxu0 0.0
    %3775 = vmatpush1.msra.mxu0 0.0
    %3776 = vmatprep.subr.mxu0 0.0
    %3777 = vmatpush1.msra.mxu0 0.0
    %3778 = vmatprep.subr.mxu0 0.0
    %3779 = vmatpush1.msra.mxu0 0.0
    %3780 = vmatprep.subr.mxu0 0.0
    %3781 = vmatpush1.msra.mxu0 0.0
    %3782 = vmatprep.subr.mxu0 0.0
    %3783 = vmatpush1.msra.mxu0 0.0
    %3784 = vmatprep.subr.mxu0 0.0
    %3785 = vmatpush1.msra.mxu0 0.0
    %3786 = vmatprep.subr.mxu0 0.0
    %3787 = vmatpush1.msra.mxu0 0.0
    %3788 = vmatprep.subr.mxu0 0.0
    %3789 = vmatpush1.msra.mxu0 0.0
    %3790 = vmatprep.subr.mxu0 0.0
    %3791 = vmatpush1.msra.mxu0 0.0
    %3792 = vmatprep.subr.mxu0 0.0
    %3793 = vmatpush1.msra.mxu0 0.0
    %3794 = vmatprep.subr.mxu0 0.0
    %3795 = vmatpush1.msra.mxu0 0.0
    %3796 = vmatprep.subr.mxu0 0.0
    %3797 = vmatpush1.msra.mxu0 0.0
    %3798 = vmatprep.subr.mxu0 0.0
    %3799 = vmatpush1.msra.mxu0 0.0
    %3800 = vmatprep.subr.mxu0 0.0
    %3801 = vmatpush1.msra.mxu0 0.0
    %3802 = vmatprep.subr.mxu0 0.0
    %3803 = vmatpush1.msra.mxu0 0.0
    %3804 = vmatprep.subr.mxu0 0.0
    %3805 = vmatpush1.msra.mxu0 0.0
    %3806 = vmatprep.subr.mxu0 0.0
    %3807 = vmatpush1.msra.mxu0 0.0
    %3808 = vmatprep.subr.mxu0 0.0
    %3809 = vmatpush1.msra.mxu0 0.0
    %3810 = vmatprep.subr.mxu0 0.0
    %3811 = vmatpush1.msra.mxu0 0.0
    %3812 = vmatprep.subr.mxu0 0.0
    %3813 = vmatpush1.msra.mxu0 0.0
    %3814 = vmatprep.subr.mxu0 0.0
    %3815 = vmatpush1.msra.mxu0 0.0
    %3816 = vmatprep.mubr.f32.mxu0 0.0
    %v3817 = vand.u32 %v3353, 4294901760
    %3818 = vmatmul.mubr.f32.gmra.mrb[0].mxu0 %v3817
    %v3819 = vpop.f32.mrb[0].mxu0
    %v3820 = vadd.f32 %v3723, %v3819
    %v3821 = vpop.f32.mrb[0].mxu0
    %3822 = vmatprep.mubr.f32.mxu0 0.0
    %v3823 = vand.u32 %v3356, 4294901760
    %3824 = vmatmul.mubr.f32.gmra.mrb[0].mxu0 %v3823
    %v3825 = vpop.f32.mrb[0].mxu0
    %v3826 = vadd.f32 %v3731, %v3825
    %v3827 = vpop.f32.mrb[0].mxu0
    %3828 = vdwg.mxu0
    %3829 = vmatprep.subr.mxu0 0.0
    %v3830 = vand.u32 %v2799, 4294901760
    %3831 = vmatpush1.msra.mxu0 %v3830
    %3832 = vmatprep.subr.mxu0 0.0
    %v3833 = vand.u32 %v2805, 4294901760
    %3834 = vmatpush1.msra.mxu0 %v3833
    %3835 = vmatprep.subr.mxu0 0.0
    %v3836 = vand.u32 %v2272, 4294901760
    %3837 = vmatpush1.msra.mxu0 %v3836
    %3838 = vmatprep.subr.mxu0 0.0
    %v3839 = vand.u32 %v2273, 4294901760
    %3840 = vmatpush1.msra.mxu0 %v3839
    %3841 = vmatprep.subr.mxu0 0.0
    %v3842 = vand.u32 %v3327, 4294901760
    %3843 = vmatpush1.msra.mxu0 %v3842
    %3844 = vmatprep.subr.mxu0 0.0
    %v3845 = vand.u32 %v3333, 4294901760
    %3846 = vmatpush1.msra.mxu0 %v3845
    %3847 = vmatprep.subr.mxu0 0.0
    %3848 = vmatpush1.msra.mxu0 0.0
    %3849 = vmatprep.subr.mxu0 0.0
    %3850 = vmatpush1.msra.mxu0 0.0
    %3851 = vmatprep.subr.mxu0 0.0
    %3852 = vmatpush1.msra.mxu0 0.0
    %3853 = vmatprep.subr.mxu0 0.0
    %3854 = vmatpush1.msra.mxu0 0.0
    %3855 = vmatprep.subr.mxu0 0.0
    %3856 = vmatpush1.msra.mxu0 0.0
    %3857 = vmatprep.subr.mxu0 0.0
    %3858 = vmatpush1.msra.mxu0 0.0
    %3859 = vmatprep.subr.mxu0 0.0
    %3860 = vmatpush1.msra.mxu0 0.0
    %3861 = vmatprep.subr.mxu0 0.0
    %3862 = vmatpush1.msra.mxu0 0.0
    %3863 = vmatprep.subr.mxu0 0.0
    %3864 = vmatpush1.msra.mxu0 0.0
    %3865 = vmatprep.subr.mxu0 0.0
    %3866 = vmatpush1.msra.mxu0 0.0
    %3867 = vmatprep.subr.mxu0 0.0
    %3868 = vmatpush1.msra.mxu0 0.0
    %3869 = vmatprep.subr.mxu0 0.0
    %3870 = vmatpush1.msra.mxu0 0.0
    %3871 = vmatprep.subr.mxu0 0.0
    %3872 = vmatpush1.msra.mxu0 0.0
    %3873 = vmatprep.subr.mxu0 0.0
    %3874 = vmatpush1.msra.mxu0 0.0
    %3875 = vmatprep.subr.mxu0 0.0
    %3876 = vmatpush1.msra.mxu0 0.0
    %3877 = vmatprep.subr.mxu0 0.0
    %3878 = vmatpush1.msra.mxu0 0.0
    %3879 = vmatprep.subr.mxu0 0.0
    %3880 = vmatpush1.msra.mxu0 0.0
    %3881 = vmatprep.subr.mxu0 0.0
    %3882 = vmatpush1.msra.mxu0 0.0
    %3883 = vmatprep.subr.mxu0 0.0
    %3884 = vmatpush1.msra.mxu0 0.0
    %3885 = vmatprep.subr.mxu0 0.0
    %3886 = vmatpush1.msra.mxu0 0.0
    %3887 = vmatprep.subr.mxu0 0.0
    %3888 = vmatpush1.msra.mxu0 0.0
    %3889 = vmatprep.subr.mxu0 0.0
    %3890 = vmatpush1.msra.mxu0 0.0
    %3891 = vmatprep.subr.mxu0 0.0
    %3892 = vmatpush1.msra.mxu0 0.0
    %3893 = vmatprep.subr.mxu0 0.0
    %3894 = vmatpush1.msra.mxu0 0.0
    %3895 = vmatprep.subr.mxu0 0.0
    %3896 = vmatpush1.msra.mxu0 0.0
    %3897 = vmatprep.subr.mxu0 0.0
    %3898 = vmatpush1.msra.mxu0 0.0
    %3899 = vmatprep.mubr.f32.mxu0 0.0
    %v3900 = vand.u32 %v3353, 4294901760
    %3901 = vmatmul.mubr.f32.gmra.mrb[0].mxu0 %v3900
    %v3902 = vpop.f32.mrb[0].mxu0
    %v3903 = vadd.f32 %v3820, %v3902
    %v3904 = vpop.f32.mrb[0].mxu0
    %3905 = vmatprep.mubr.f32.mxu0 0.0
    %v3906 = vand.u32 %v3356, 4294901760
    %3907 = vmatmul.mubr.f32.gmra.mrb[0].mxu0 %v3906
    %v3908 = vpop.f32.mrb[0].mxu0
    %v3909 = vadd.f32 %v3826, %v3908
    %v3910 = vpop.f32.mrb[0].mxu0
    %3911 = vdwg.mxu0
    %v3912 = vmax.f32 %v3903, 0.0
    %v3913 = vmax.f32 %v3909, 0.0
    %v3915 = vsel %vm550, %v3912, 0
    %v3918 = vsel %vm550, %v3913, 0
    %3920 = vmatprep.subr.mxu0 0.0
    %v3921 = vand.u32 %v21, 4294901760
    %3922 = vmatpush1.msra.mxu0 %v3921
    %3923 = vmatprep.subr.mxu0 0.0
    %v3924 = vand.u32 %v22, 4294901760
    %3925 = vmatpush1.msra.mxu0 %v3924
    %3926 = vmatprep.subr.mxu0 0.0
    %v3927 = vand.u32 %v23, 4294901760
    %3928 = vmatpush1.msra.mxu0 %v3927
    %3929 = vmatprep.subr.mxu0 0.0
    %v3930 = vand.u32 %v24, 4294901760
    %3931 = vmatpush1.msra.mxu0 %v3930
    %3932 = vmatprep.subr.mxu0 0.0
    %3933 = vmatpush1.msra.mxu0 0.0
    %3934 = vmatprep.subr.mxu0 0.0
    %3935 = vmatpush1.msra.mxu0 0.0
    %3936 = vmatprep.subr.mxu0 0.0
    %3937 = vmatpush1.msra.mxu0 0.0
    %3938 = vmatprep.subr.mxu0 0.0
    %3939 = vmatpush1.msra.mxu0 0.0
    %3940 = vmatprep.subr.mxu0 0.0
    %3941 = vmatpush1.msra.mxu0 0.0
    %3942 = vmatprep.subr.mxu0 0.0
    %3943 = vmatpush1.msra.mxu0 0.0
    %3944 = vmatprep.subr.mxu0 0.0
    %3945 = vmatpush1.msra.mxu0 0.0
    %3946 = vmatprep.subr.mxu0 0.0
    %3947 = vmatpush1.msra.mxu0 0.0
    %3948 = vmatprep.subr.mxu0 0.0
    %3949 = vmatpush1.msra.mxu0 0.0
    %3950 = vmatprep.subr.mxu0 0.0
    %3951 = vmatpush1.msra.mxu0 0.0
    %3952 = vmatprep.subr.mxu0 0.0
    %3953 = vmatpush1.msra.mxu0 0.0
    %3954 = vmatprep.subr.mxu0 0.0
    %3955 = vmatpush1.msra.mxu0 0.0
    %3956 = vmatprep.subr.mxu0 0.0
    %3957 = vmatpush1.msra.mxu0 0.0
    %3958 = vmatprep.subr.mxu0 0.0
    %3959 = vmatpush1.msra.mxu0 0.0
    %3960 = vmatprep.subr.mxu0 0.0
    %3961 = vmatpush1.msra.mxu0 0.0
    %3962 = vmatprep.subr.mxu0 0.0
    %3963 = vmatpush1.msra.mxu0 0.0
    %3964 = vmatprep.subr.mxu0 0.0
    %3965 = vmatpush1.msra.mxu0 0.0
    %3966 = vmatprep.subr.mxu0 0.0
    %3967 = vmatpush1.msra.mxu0 0.0
    %3968 = vmatprep.subr.mxu0 0.0
    %3969 = vmatpush1.msra.mxu0 0.0
    %3970 = vmatprep.subr.mxu0 0.0
    %3971 = vmatpush1.msra.mxu0 0.0
    %3972 = vmatprep.subr.mxu0 0.0
    %3973 = vmatpush1.msra.mxu0 0.0
    %3974 = vmatprep.subr.mxu0 0.0
    %3975 = vmatpush1.msra.mxu0 0.0
    %3976 = vmatprep.subr.mxu0 0.0
    %3977 = vmatpush1.msra.mxu0 0.0
    %3978 = vmatprep.subr.mxu0 0.0
    %3979 = vmatpush1.msra.mxu0 0.0
    %3980 = vmatprep.subr.mxu0 0.0
    %3981 = vmatpush1.msra.mxu0 0.0
    %3982 = vmatprep.subr.mxu0 0.0
    %3983 = vmatpush1.msra.mxu0 0.0
    %3984 = vmatprep.subr.mxu0 0.0
    %3985 = vmatpush1.msra.mxu0 0.0
    %3986 = vmatprep.subr.mxu0 0.0
    %3987 = vmatpush1.msra.mxu0 0.0
    %3988 = vmatprep.mubr.f32.mxu0 0.0
    %v3989 = vand.u32 %v3915, 4294901760
    %v3990 = vsub.f32 %v3915, %v3989
    %v3991 = vand.u32 %v3990, 4294901760
    %v3992 = vsub.f32 %v3990, %v3991
    %v3993 = vand.u32 %v3992, 4294901760
    %3994 = vmatmul.mubr.f32.gmra.mrb[0].mxu0 %v3993
    %v3995 = vpop.f32.mrb[0].mxu0
    %v3996 = vadd.f32 0.0, %v3995
    %v3997 = vpop.f32.mrb[0].mxu0
    %3998 = vmatprep.mubr.f32.mxu0 0.0
    %v3999 = vand.u32 %v3918, 4294901760
    %v4000 = vsub.f32 %v3918, %v3999
    %v4001 = vand.u32 %v4000, 4294901760
    %v4002 = vsub.f32 %v4000, %v4001
    %v4003 = vand.u32 %v4002, 4294901760
    %4004 = vmatmul.mubr.f32.gmra.mrb[0].mxu0 %v4003
    %v4005 = vpop.f32.mrb[0].mxu0
    %v4006 = vadd.f32 0.0, %v4005
    %v4007 = vpop.f32.mrb[0].mxu0
    %4008 = vdwg.mxu0
    %4009 = vmatprep.subr.mxu0 0.0
    %v4010 = vand.u32 %v21, 4294901760
    %v4011 = vsub.f32 %v21, %v4010
    %v4012 = vand.u32 %v4011, 4294901760
    %v4013 = vsub.f32 %v4011, %v4012
    %v4014 = vand.u32 %v4013, 4294901760
    %4015 = vmatpush1.msra.mxu0 %v4014
    %4016 = vmatprep.subr.mxu0 0.0
    %v4017 = vand.u32 %v22, 4294901760
    %v4018 = vsub.f32 %v22, %v4017
    %v4019 = vand.u32 %v4018, 4294901760
    %v4020 = vsub.f32 %v4018, %v4019
    %v4021 = vand.u32 %v4020, 4294901760
    %4022 = vmatpush1.msra.mxu0 %v4021
    %4023 = vmatprep.subr.mxu0 0.0
    %v4024 = vand.u32 %v23, 4294901760
    %v4025 = vsub.f32 %v23, %v4024
    %v4026 = vand.u32 %v4025, 4294901760
    %v4027 = vsub.f32 %v4025, %v4026
    %v4028 = vand.u32 %v4027, 4294901760
    %4029 = vmatpush1.msra.mxu0 %v4028
    %4030 = vmatprep.subr.mxu0 0.0
    %v4031 = vand.u32 %v24, 4294901760
    %v4032 = vsub.f32 %v24, %v4031
    %v4033 = vand.u32 %v4032, 4294901760
    %v4034 = vsub.f32 %v4032, %v4033
    %v4035 = vand.u32 %v4034, 4294901760
    %4036 = vmatpush1.msra.mxu0 %v4035
    %4037 = vmatprep.subr.mxu0 0.0
    %4038 = vmatpush1.msra.mxu0 0.0
    %4039 = vmatprep.subr.mxu0 0.0
    %4040 = vmatpush1.msra.mxu0 0.0
    %4041 = vmatprep.subr.mxu0 0.0
    %4042 = vmatpush1.msra.mxu0 0.0
    %4043 = vmatprep.subr.mxu0 0.0
    %4044 = vmatpush1.msra.mxu0 0.0
    %4045 = vmatprep.subr.mxu0 0.0
    %4046 = vmatpush1.msra.mxu0 0.0
    %4047 = vmatprep.subr.mxu0 0.0
    %4048 = vmatpush1.msra.mxu0 0.0
    %4049 = vmatprep.subr.mxu0 0.0
    %4050 = vmatpush1.msra.mxu0 0.0
    %4051 = vmatprep.subr.mxu0 0.0
    %4052 = vmatpush1.msra.mxu0 0.0
    %4053 = vmatprep.subr.mxu0 0.0
    %4054 = vmatpush1.msra.mxu0 0.0
    %4055 = vmatprep.subr.mxu0 0.0
    %4056 = vmatpush1.msra.mxu0 0.0
    %4057 = vmatprep.subr.mxu0 0.0
    %4058 = vmatpush1.msra.mxu0 0.0
    %4059 = vmatprep.subr.mxu0 0.0
    %4060 = vmatpush1.msra.mxu0 0.0
    %4061 = vmatprep.subr.mxu0 0.0
    %4062 = vmatpush1.msra.mxu0 0.0
    %4063 = vmatprep.subr.mxu0 0.0
    %4064 = vmatpush1.msra.mxu0 0.0
    %4065 = vmatprep.subr.mxu0 0.0
    %4066 = vmatpush1.msra.mxu0 0.0
    %4067 = vmatprep.subr.mxu0 0.0
    %4068 = vmatpush1.msra.mxu0 0.0
    %4069 = vmatprep.subr.mxu0 0.0
    %4070 = vmatpush1.msra.mxu0 0.0
    %4071 = vmatprep.subr.mxu0 0.0
    %4072 = vmatpush1.msra.mxu0 0.0
    %4073 = vmatprep.subr.mxu0 0.0
    %4074 = vmatpush1.msra.mxu0 0.0
    %4075 = vmatprep.subr.mxu0 0.0
    %4076 = vmatpush1.msra.mxu0 0.0
    %4077 = vmatprep.subr.mxu0 0.0
    %4078 = vmatpush1.msra.mxu0 0.0
    %4079 = vmatprep.subr.mxu0 0.0
    %4080 = vmatpush1.msra.mxu0 0.0
    %4081 = vmatprep.subr.mxu0 0.0
    %4082 = vmatpush1.msra.mxu0 0.0
    %4083 = vmatprep.subr.mxu0 0.0
    %4084 = vmatpush1.msra.mxu0 0.0
    %4085 = vmatprep.subr.mxu0 0.0
    %4086 = vmatpush1.msra.mxu0 0.0
    %4087 = vmatprep.subr.mxu0 0.0
    %4088 = vmatpush1.msra.mxu0 0.0
    %4089 = vmatprep.subr.mxu0 0.0
    %4090 = vmatpush1.msra.mxu0 0.0
    %4091 = vmatprep.subr.mxu0 0.0
    %4092 = vmatpush1.msra.mxu0 0.0
    %4093 = vmatprep.mubr.f32.mxu0 0.0
    %v4094 = vand.u32 %v3915, 4294901760
    %4095 = vmatmul.mubr.f32.gmra.mrb[0].mxu0 %v4094
    %v4096 = vpop.f32.mrb[0].mxu0
    %v4097 = vadd.f32 %v3996, %v4096
    %v4098 = vpop.f32.mrb[0].mxu0
    %4099 = vmatprep.mubr.f32.mxu0 0.0
    %v4100 = vand.u32 %v3918, 4294901760
    %4101 = vmatmul.mubr.f32.gmra.mrb[0].mxu0 %v4100
    %v4102 = vpop.f32.mrb[0].mxu0
    %v4103 = vadd.f32 %v4006, %v4102
    %v4104 = vpop.f32.mrb[0].mxu0
    %4105 = vdwg.mxu0
    %4106 = vmatprep.subr.mxu0 0.0
    %v4107 = vand.u32 %v21, 4294901760
    %v4108 = vsub.f32 %v21, %v4107
    %4109 = vmatpush1.msra.mxu0 %v4108
    %4110 = vmatprep.subr.mxu0 0.0
    %v4111 = vand.u32 %v22, 4294901760
    %v4112 = vsub.f32 %v22, %v4111
    %4113 = vmatpush1.msra.mxu0 %v4112
    %4114 = vmatprep.subr.mxu0 0.0
    %v4115 = vand.u32 %v23, 4294901760
    %v4116 = vsub.f32 %v23, %v4115
    %4117 = vmatpush1.msra.mxu0 %v4116
    %4118 = vmatprep.subr.mxu0 0.0
    %v4119 = vand.u32 %v24, 4294901760
    %v4120 = vsub.f32 %v24, %v4119
    %4121 = vmatpush1.msra.mxu0 %v4120
    %4122 = vmatprep.subr.mxu0 0.0
    %4123 = vmatpush1.msra.mxu0 0.0
    %4124 = vmatprep.subr.mxu0 0.0
    %4125 = vmatpush1.msra.mxu0 0.0
    %4126 = vmatprep.subr.mxu0 0.0
    %4127 = vmatpush1.msra.mxu0 0.0
    %4128 = vmatprep.subr.mxu0 0.0
    %4129 = vmatpush1.msra.mxu0 0.0
    %4130 = vmatprep.subr.mxu0 0.0
    %4131 = vmatpush1.msra.mxu0 0.0
    %4132 = vmatprep.subr.mxu0 0.0
    %4133 = vmatpush1.msra.mxu0 0.0
    %4134 = vmatprep.subr.mxu0 0.0
    %4135 = vmatpush1.msra.mxu0 0.0
    %4136 = vmatprep.subr.mxu0 0.0
    %4137 = vmatpush1.msra.mxu0 0.0
    %4138 = vmatprep.subr.mxu0 0.0
    %4139 = vmatpush1.msra.mxu0 0.0
    %4140 = vmatprep.subr.mxu0 0.0
    %4141 = vmatpush1.msra.mxu0 0.0
    %4142 = vmatprep.subr.mxu0 0.0
    %4143 = vmatpush1.msra.mxu0 0.0
    %4144 = vmatprep.subr.mxu0 0.0
    %4145 = vmatpush1.msra.mxu0 0.0
    %4146 = vmatprep.subr.mxu0 0.0
    %4147 = vmatpush1.msra.mxu0 0.0
    %4148 = vmatprep.subr.mxu0 0.0
    %4149 = vmatpush1.msra.mxu0 0.0
    %4150 = vmatprep.subr.mxu0 0.0
    %4151 = vmatpush1.msra.mxu0 0.0
    %4152 = vmatprep.subr.mxu0 0.0
    %4153 = vmatpush1.msra.mxu0 0.0
    %4154 = vmatprep.subr.mxu0 0.0
    %4155 = vmatpush1.msra.mxu0 0.0
    %4156 = vmatprep.subr.mxu0 0.0
    %4157 = vmatpush1.msra.mxu0 0.0
    %4158 = vmatprep.subr.mxu0 0.0
    %4159 = vmatpush1.msra.mxu0 0.0
    %4160 = vmatprep.subr.mxu0 0.0
    %4161 = vmatpush1.msra.mxu0 0.0
    %4162 = vmatprep.subr.mxu0 0.0
    %4163 = vmatpush1.msra.mxu0 0.0
    %4164 = vmatprep.subr.mxu0 0.0
    %4165 = vmatpush1.msra.mxu0 0.0
    %4166 = vmatprep.subr.mxu0 0.0
    %4167 = vmatpush1.msra.mxu0 0.0
    %4168 = vmatprep.subr.mxu0 0.0
    %4169 = vmatpush1.msra.mxu0 0.0
    %4170 = vmatprep.subr.mxu0 0.0
    %4171 = vmatpush1.msra.mxu0 0.0
    %4172 = vmatprep.subr.mxu0 0.0
    %4173 = vmatpush1.msra.mxu0 0.0
    %4174 = vmatprep.subr.mxu0 0.0
    %4175 = vmatpush1.msra.mxu0 0.0
    %4176 = vmatprep.subr.mxu0 0.0
    %4177 = vmatpush1.msra.mxu0 0.0
    %4178 = vmatprep.mubr.f32.mxu0 0.0
    %v4179 = vand.u32 %v3915, 4294901760
    %v4180 = vsub.f32 %v3915, %v4179
    %4181 = vmatmul.mubr.f32.gmra.mrb[0].mxu0 %v4180
    %v4182 = vpop.f32.mrb[0].mxu0
    %v4183 = vadd.f32 %v4097, %v4182
    %v4184 = vpop.f32.mrb[0].mxu0
    %4185 = vmatprep.mubr.f32.mxu0 0.0
    %v4186 = vand.u32 %v3918, 4294901760
    %v4187 = vsub.f32 %v3918, %v4186
    %4188 = vmatmul.mubr.f32.gmra.mrb[0].mxu0 %v4187
    %v4189 = vpop.f32.mrb[0].mxu0
    %v4190 = vadd.f32 %v4103, %v4189
    %v4191 = vpop.f32.mrb[0].mxu0
    %4192 = vdwg.mxu0
    %4193 = vmatprep.subr.mxu0 0.0
    %v4194 = vand.u32 %v21, 4294901760
    %4195 = vmatpush1.msra.mxu0 %v4194
    %4196 = vmatprep.subr.mxu0 0.0
    %v4197 = vand.u32 %v22, 4294901760
    %4198 = vmatpush1.msra.mxu0 %v4197
    %4199 = vmatprep.subr.mxu0 0.0
    %v4200 = vand.u32 %v23, 4294901760
    %4201 = vmatpush1.msra.mxu0 %v4200
    %4202 = vmatprep.subr.mxu0 0.0
    %v4203 = vand.u32 %v24, 4294901760
    %4204 = vmatpush1.msra.mxu0 %v4203
    %4205 = vmatprep.subr.mxu0 0.0
    %4206 = vmatpush1.msra.mxu0 0.0
    %4207 = vmatprep.subr.mxu0 0.0
    %4208 = vmatpush1.msra.mxu0 0.0
    %4209 = vmatprep.subr.mxu0 0.0
    %4210 = vmatpush1.msra.mxu0 0.0
    %4211 = vmatprep.subr.mxu0 0.0
    %4212 = vmatpush1.msra.mxu0 0.0
    %4213 = vmatprep.subr.mxu0 0.0
    %4214 = vmatpush1.msra.mxu0 0.0
    %4215 = vmatprep.subr.mxu0 0.0
    %4216 = vmatpush1.msra.mxu0 0.0
    %4217 = vmatprep.subr.mxu0 0.0
    %4218 = vmatpush1.msra.mxu0 0.0
    %4219 = vmatprep.subr.mxu0 0.0
    %4220 = vmatpush1.msra.mxu0 0.0
    %4221 = vmatprep.subr.mxu0 0.0
    %4222 = vmatpush1.msra.mxu0 0.0
    %4223 = vmatprep.subr.mxu0 0.0
    %4224 = vmatpush1.msra.mxu0 0.0
    %4225 = vmatprep.subr.mxu0 0.0
    %4226 = vmatpush1.msra.mxu0 0.0
    %4227 = vmatprep.subr.mxu0 0.0
    %4228 = vmatpush1.msra.mxu0 0.0
    %4229 = vmatprep.subr.mxu0 0.0
    %4230 = vmatpush1.msra.mxu0 0.0
    %4231 = vmatprep.subr.mxu0 0.0
    %4232 = vmatpush1.msra.mxu0 0.0
    %4233 = vmatprep.subr.mxu0 0.0
    %4234 = vmatpush1.msra.mxu0 0.0
    %4235 = vmatprep.subr.mxu0 0.0
    %4236 = vmatpush1.msra.mxu0 0.0
    %4237 = vmatprep.subr.mxu0 0.0
    %4238 = vmatpush1.msra.mxu0 0.0
    %4239 = vmatprep.subr.mxu0 0.0
    %4240 = vmatpush1.msra.mxu0 0.0
    %4241 = vmatprep.subr.mxu0 0.0
    %4242 = vmatpush1.msra.mxu0 0.0
    %4243 = vmatprep.subr.mxu0 0.0
    %4244 = vmatpush1.msra.mxu0 0.0
    %4245 = vmatprep.subr.mxu0 0.0
    %4246 = vmatpush1.msra.mxu0 0.0
    %4247 = vmatprep.subr.mxu0 0.0
    %4248 = vmatpush1.msra.mxu0 0.0
    %4249 = vmatprep.subr.mxu0 0.0
    %4250 = vmatpush1.msra.mxu0 0.0
    %4251 = vmatprep.subr.mxu0 0.0
    %4252 = vmatpush1.msra.mxu0 0.0
    %4253 = vmatprep.subr.mxu0 0.0
    %4254 = vmatpush1.msra.mxu0 0.0
    %4255 = vmatprep.subr.mxu0 0.0
    %4256 = vmatpush1.msra.mxu0 0.0
    %4257 = vmatprep.subr.mxu0 0.0
    %4258 = vmatpush1.msra.mxu0 0.0
    %4259 = vmatprep.subr.mxu0 0.0
    %4260 = vmatpush1.msra.mxu0 0.0
    %4261 = vmatprep.mubr.f32.mxu0 0.0
    %v4262 = vand.u32 %v3915, 4294901760
    %v4263 = vsub.f32 %v3915, %v4262
    %v4264 = vand.u32 %v4263, 4294901760
    %4265 = vmatmul.mubr.f32.gmra.mrb[0].mxu0 %v4264
    %v4266 = vpop.f32.mrb[0].mxu0
    %v4267 = vadd.f32 %v4183, %v4266
    %v4268 = vpop.f32.mrb[0].mxu0
    %4269 = vmatprep.mubr.f32.mxu0 0.0
    %v4270 = vand.u32 %v3918, 4294901760
    %v4271 = vsub.f32 %v3918, %v4270
    %v4272 = vand.u32 %v4271, 4294901760
    %4273 = vmatmul.mubr.f32.gmra.mrb[0].mxu0 %v4272
    %v4274 = vpop.f32.mrb[0].mxu0
    %v4275 = vadd.f32 %v4190, %v4274
    %v4276 = vpop.f32.mrb[0].mxu0
    %4277 = vdwg.mxu0
    %4278 = vmatprep.subr.mxu0 0.0
    %v4279 = vand.u32 %v21, 4294901760
    %v4280 = vsub.f32 %v21, %v4279
    %v4281 = vand.u32 %v4280, 4294901760
    %4282 = vmatpush1.msra.mxu0 %v4281
    %4283 = vmatprep.subr.mxu0 0.0
    %v4284 = vand.u32 %v22, 4294901760
    %v4285 = vsub.f32 %v22, %v4284
    %v4286 = vand.u32 %v4285, 4294901760
    %4287 = vmatpush1.msra.mxu0 %v4286
    %4288 = vmatprep.subr.mxu0 0.0
    %v4289 = vand.u32 %v23, 4294901760
    %v4290 = vsub.f32 %v23, %v4289
    %v4291 = vand.u32 %v4290, 4294901760
    %4292 = vmatpush1.msra.mxu0 %v4291
    %4293 = vmatprep.subr.mxu0 0.0
    %v4294 = vand.u32 %v24, 4294901760
    %v4295 = vsub.f32 %v24, %v4294
    %v4296 = vand.u32 %v4295, 4294901760
    %4297 = vmatpush1.msra.mxu0 %v4296
    %4298 = vmatprep.subr.mxu0 0.0
    %4299 = vmatpush1.msra.mxu0 0.0
    %4300 = vmatprep.subr.mxu0 0.0
    %4301 = vmatpush1.msra.mxu0 0.0
    %4302 = vmatprep.subr.mxu0 0.0
    %4303 = vmatpush1.msra.mxu0 0.0
    %4304 = vmatprep.subr.mxu0 0.0
    %4305 = vmatpush1.msra.mxu0 0.0
    %4306 = vmatprep.subr.mxu0 0.0
    %4307 = vmatpush1.msra.mxu0 0.0
    %4308 = vmatprep.subr.mxu0 0.0
    %4309 = vmatpush1.msra.mxu0 0.0
    %4310 = vmatprep.subr.mxu0 0.0
    %4311 = vmatpush1.msra.mxu0 0.0
    %4312 = vmatprep.subr.mxu0 0.0
    %4313 = vmatpush1.msra.mxu0 0.0
    %4314 = vmatprep.subr.mxu0 0.0
    %4315 = vmatpush1.msra.mxu0 0.0
    %4316 = vmatprep.subr.mxu0 0.0
    %4317 = vmatpush1.msra.mxu0 0.0
    %4318 = vmatprep.subr.mxu0 0.0
    %4319 = vmatpush1.msra.mxu0 0.0
    %4320 = vmatprep.subr.mxu0 0.0
    %4321 = vmatpush1.msra.mxu0 0.0
    %4322 = vmatprep.subr.mxu0 0.0
    %4323 = vmatpush1.msra.mxu0 0.0
    %4324 = vmatprep.subr.mxu0 0.0
    %4325 = vmatpush1.msra.mxu0 0.0
    %4326 = vmatprep.subr.mxu0 0.0
    %4327 = vmatpush1.msra.mxu0 0.0
    %4328 = vmatprep.subr.mxu0 0.0
    %4329 = vmatpush1.msra.mxu0 0.0
    %4330 = vmatprep.subr.mxu0 0.0
    %4331 = vmatpush1.msra.mxu0 0.0
    %4332 = vmatprep.subr.mxu0 0.0
    %4333 = vmatpush1.msra.mxu0 0.0
    %4334 = vmatprep.subr.mxu0 0.0
    %4335 = vmatpush1.msra.mxu0 0.0
    %4336 = vmatprep.subr.mxu0 0.0
    %4337 = vmatpush1.msra.mxu0 0.0
    %4338 = vmatprep.subr.mxu0 0.0
    %4339 = vmatpush1.msra.mxu0 0.0
    %4340 = vmatprep.subr.mxu0 0.0
    %4341 = vmatpush1.msra.mxu0 0.0
    %4342 = vmatprep.subr.mxu0 0.0
    %4343 = vmatpush1.msra.mxu0 0.0
    %4344 = vmatprep.subr.mxu0 0.0
    %4345 = vmatpush1.msra.mxu0 0.0
    %4346 = vmatprep.subr.mxu0 0.0
    %4347 = vmatpush1.msra.mxu0 0.0
    %4348 = vmatprep.subr.mxu0 0.0
    %4349 = vmatpush1.msra.mxu0 0.0
    %4350 = vmatprep.subr.mxu0 0.0
    %4351 = vmatpush1.msra.mxu0 0.0
    %4352 = vmatprep.subr.mxu0 0.0
    %4353 = vmatpush1.msra.mxu0 0.0
    %4354 = vmatprep.mubr.f32.mxu0 0.0
    %v4355 = vand.u32 %v3915, 4294901760
    %4356 = vmatmul.mubr.f32.gmra.mrb[0].mxu0 %v4355
    %v4357 = vpop.f32.mrb[0].mxu0
    %v4358 = vadd.f32 %v4267, %v4357
    %v4359 = vpop.f32.mrb[0].mxu0
    %4360 = vmatprep.mubr.f32.mxu0 0.0
    %v4361 = vand.u32 %v3918, 4294901760
    %4362 = vmatmul.mubr.f32.gmra.mrb[0].mxu0 %v4361
    %v4363 = vpop.f32.mrb[0].mxu0
    %v4364 = vadd.f32 %v4275, %v4363
    %v4365 = vpop.f32.mrb[0].mxu0
    %4366 = vdwg.mxu0
    %4367 = vmatprep.subr.mxu0 0.0
    %v4368 = vand.u32 %v21, 4294901760
    %4369 = vmatpush1.msra.mxu0 %v4368
    %4370 = vmatprep.subr.mxu0 0.0
    %v4371 = vand.u32 %v22, 4294901760
    %4372 = vmatpush1.msra.mxu0 %v4371
    %4373 = vmatprep.subr.mxu0 0.0
    %v4374 = vand.u32 %v23, 4294901760
    %4375 = vmatpush1.msra.mxu0 %v4374
    %4376 = vmatprep.subr.mxu0 0.0
    %v4377 = vand.u32 %v24, 4294901760
    %4378 = vmatpush1.msra.mxu0 %v4377
    %4379 = vmatprep.subr.mxu0 0.0
    %4380 = vmatpush1.msra.mxu0 0.0
    %4381 = vmatprep.subr.mxu0 0.0
    %4382 = vmatpush1.msra.mxu0 0.0
    %4383 = vmatprep.subr.mxu0 0.0
    %4384 = vmatpush1.msra.mxu0 0.0
    %4385 = vmatprep.subr.mxu0 0.0
    %4386 = vmatpush1.msra.mxu0 0.0
    %4387 = vmatprep.subr.mxu0 0.0
    %4388 = vmatpush1.msra.mxu0 0.0
    %4389 = vmatprep.subr.mxu0 0.0
    %4390 = vmatpush1.msra.mxu0 0.0
    %4391 = vmatprep.subr.mxu0 0.0
    %4392 = vmatpush1.msra.mxu0 0.0
    %4393 = vmatprep.subr.mxu0 0.0
    %4394 = vmatpush1.msra.mxu0 0.0
    %4395 = vmatprep.subr.mxu0 0.0
    %4396 = vmatpush1.msra.mxu0 0.0
    %4397 = vmatprep.subr.mxu0 0.0
    %4398 = vmatpush1.msra.mxu0 0.0
    %4399 = vmatprep.subr.mxu0 0.0
    %4400 = vmatpush1.msra.mxu0 0.0
    %4401 = vmatprep.subr.mxu0 0.0
    %4402 = vmatpush1.msra.mxu0 0.0
    %4403 = vmatprep.subr.mxu0 0.0
    %4404 = vmatpush1.msra.mxu0 0.0
    %4405 = vmatprep.subr.mxu0 0.0
    %4406 = vmatpush1.msra.mxu0 0.0
    %4407 = vmatprep.subr.mxu0 0.0
    %4408 = vmatpush1.msra.mxu0 0.0
    %4409 = vmatprep.subr.mxu0 0.0
    %4410 = vmatpush1.msra.mxu0 0.0
    %4411 = vmatprep.subr.mxu0 0.0
    %4412 = vmatpush1.msra.mxu0 0.0
    %4413 = vmatprep.subr.mxu0 0.0
    %4414 = vmatpush1.msra.mxu0 0.0
    %4415 = vmatprep.subr.mxu0 0.0
    %4416 = vmatpush1.msra.mxu0 0.0
    %4417 = vmatprep.subr.mxu0 0.0
    %4418 = vmatpush1.msra.mxu0 0.0
    %4419 = vmatprep.subr.mxu0 0.0
    %4420 = vmatpush1.msra.mxu0 0.0
    %4421 = vmatprep.subr.mxu0 0.0
    %4422 = vmatpush1.msra.mxu0 0.0
    %4423 = vmatprep.subr.mxu0 0.0
    %4424 = vmatpush1.msra.mxu0 0.0
    %4425 = vmatprep.subr.mxu0 0.0
    %4426 = vmatpush1.msra.mxu0 0.0
    %4427 = vmatprep.subr.mxu0 0.0
    %4428 = vmatpush1.msra.mxu0 0.0
    %4429 = vmatprep.subr.mxu0 0.0
    %4430 = vmatpush1.msra.mxu0 0.0
    %4431 = vmatprep.subr.mxu0 0.0
    %4432 = vmatpush1.msra.mxu0 0.0
    %4433 = vmatprep.subr.mxu0 0.0
    %4434 = vmatpush1.msra.mxu0 0.0
    %4435 = vmatprep.mubr.f32.mxu0 0.0
    %v4436 = vand.u32 %v3915, 4294901760
    %4437 = vmatmul.mubr.f32.gmra.mrb[0].mxu0 %v4436
    %v4438 = vpop.f32.mrb[0].mxu0
    %v4439 = vadd.f32 %v4358, %v4438
    %v4440 = vpop.f32.mrb[0].mxu0
    %4441 = vmatprep.mubr.f32.mxu0 0.0
    %v4442 = vand.u32 %v3918, 4294901760
    %4443 = vmatmul.mubr.f32.gmra.mrb[0].mxu0 %v4442
    %v4444 = vpop.f32.mrb[0].mxu0
    %v4445 = vadd.f32 %v4364, %v4444
    %v4446 = vpop.f32.mrb[0].mxu0
    %4447 = vdwg.mxu0
    %4448 = vmatprep.subr.mxu0 0.0
    %v4449 = vand.u32 %v26, 4294901760
    %4450 = vmatpush1.msra.mxu0 %v4449
    %4451 = vmatprep.subr.mxu0 0.0
    %v4452 = vand.u32 %v27, 4294901760
    %4453 = vmatpush1.msra.mxu0 %v4452
    %4454 = vmatprep.subr.mxu0 0.0
    %v4455 = vand.u32 %v28, 4294901760
    %4456 = vmatpush1.msra.mxu0 %v4455
    %4457 = vmatprep.subr.mxu0 0.0
    %v4458 = vand.u32 %v29, 4294901760
    %4459 = vmatpush1.msra.mxu0 %v4458
    %4460 = vmatprep.subr.mxu0 0.0
    %4461 = vmatpush1.msra.mxu0 0.0
    %4462 = vmatprep.subr.mxu0 0.0
    %4463 = vmatpush1.msra.mxu0 0.0
    %4464 = vmatprep.subr.mxu0 0.0
    %4465 = vmatpush1.msra.mxu0 0.0
    %4466 = vmatprep.subr.mxu0 0.0
    %4467 = vmatpush1.msra.mxu0 0.0
    %4468 = vmatprep.subr.mxu0 0.0
    %4469 = vmatpush1.msra.mxu0 0.0
    %4470 = vmatprep.subr.mxu0 0.0
    %4471 = vmatpush1.msra.mxu0 0.0
    %4472 = vmatprep.subr.mxu0 0.0
    %4473 = vmatpush1.msra.mxu0 0.0
    %4474 = vmatprep.subr.mxu0 0.0
    %4475 = vmatpush1.msra.mxu0 0.0
    %4476 = vmatprep.subr.mxu0 0.0
    %4477 = vmatpush1.msra.mxu0 0.0
    %4478 = vmatprep.subr.mxu0 0.0
    %4479 = vmatpush1.msra.mxu0 0.0
    %4480 = vmatprep.subr.mxu0 0.0
    %4481 = vmatpush1.msra.mxu0 0.0
    %4482 = vmatprep.subr.mxu0 0.0
    %4483 = vmatpush1.msra.mxu0 0.0
    %4484 = vmatprep.subr.mxu0 0.0
    %4485 = vmatpush1.msra.mxu0 0.0
    %4486 = vmatprep.subr.mxu0 0.0
    %4487 = vmatpush1.msra.mxu0 0.0
    %4488 = vmatprep.subr.mxu0 0.0
    %4489 = vmatpush1.msra.mxu0 0.0
    %4490 = vmatprep.subr.mxu0 0.0
    %4491 = vmatpush1.msra.mxu0 0.0
    %4492 = vmatprep.subr.mxu0 0.0
    %4493 = vmatpush1.msra.mxu0 0.0
    %4494 = vmatprep.subr.mxu0 0.0
    %4495 = vmatpush1.msra.mxu0 0.0
    %4496 = vmatprep.subr.mxu0 0.0
    %4497 = vmatpush1.msra.mxu0 0.0
    %4498 = vmatprep.subr.mxu0 0.0
    %4499 = vmatpush1.msra.mxu0 0.0
    %4500 = vmatprep.subr.mxu0 0.0
    %4501 = vmatpush1.msra.mxu0 0.0
    %4502 = vmatprep.subr.mxu0 0.0
    %4503 = vmatpush1.msra.mxu0 0.0
    %4504 = vmatprep.subr.mxu0 0.0
    %4505 = vmatpush1.msra.mxu0 0.0
    %4506 = vmatprep.subr.mxu0 0.0
    %4507 = vmatpush1.msra.mxu0 0.0
    %4508 = vmatprep.subr.mxu0 0.0
    %4509 = vmatpush1.msra.mxu0 0.0
    %4510 = vmatprep.subr.mxu0 0.0
    %4511 = vmatpush1.msra.mxu0 0.0
    %4512 = vmatprep.subr.mxu0 0.0
    %4513 = vmatpush1.msra.mxu0 0.0
    %4514 = vmatprep.subr.mxu0 0.0
    %4515 = vmatpush1.msra.mxu0 0.0
    %4516 = vmatprep.mubr.f32.mxu0 0.0
    %v4517 = vand.u32 %v3915, 4294901760
    %v4518 = vsub.f32 %v3915, %v4517
    %v4519 = vand.u32 %v4518, 4294901760
    %v4520 = vsub.f32 %v4518, %v4519
    %v4521 = vand.u32 %v4520, 4294901760
    %4522 = vmatmul.mubr.f32.gmra.mrb[0].mxu0 %v4521
    %v4523 = vpop.f32.mrb[0].mxu0
    %v4524 = vadd.f32 0.0, %v4523
    %v4525 = vpop.f32.mrb[0].mxu0
    %4526 = vmatprep.mubr.f32.mxu0 0.0
    %v4527 = vand.u32 %v3918, 4294901760
    %v4528 = vsub.f32 %v3918, %v4527
    %v4529 = vand.u32 %v4528, 4294901760
    %v4530 = vsub.f32 %v4528, %v4529
    %v4531 = vand.u32 %v4530, 4294901760
    %4532 = vmatmul.mubr.f32.gmra.mrb[0].mxu0 %v4531
    %v4533 = vpop.f32.mrb[0].mxu0
    %v4534 = vadd.f32 0.0, %v4533
    %v4535 = vpop.f32.mrb[0].mxu0
    %4536 = vdwg.mxu0
    %4537 = vmatprep.subr.mxu0 0.0
    %v4538 = vand.u32 %v26, 4294901760
    %v4539 = vsub.f32 %v26, %v4538
    %v4540 = vand.u32 %v4539, 4294901760
    %v4541 = vsub.f32 %v4539, %v4540
    %v4542 = vand.u32 %v4541, 4294901760
    %4543 = vmatpush1.msra.mxu0 %v4542
    %4544 = vmatprep.subr.mxu0 0.0
    %v4545 = vand.u32 %v27, 4294901760
    %v4546 = vsub.f32 %v27, %v4545
    %v4547 = vand.u32 %v4546, 4294901760
    %v4548 = vsub.f32 %v4546, %v4547
    %v4549 = vand.u32 %v4548, 4294901760
    %4550 = vmatpush1.msra.mxu0 %v4549
    %4551 = vmatprep.subr.mxu0 0.0
    %v4552 = vand.u32 %v28, 4294901760
    %v4553 = vsub.f32 %v28, %v4552
    %v4554 = vand.u32 %v4553, 4294901760
    %v4555 = vsub.f32 %v4553, %v4554
    %v4556 = vand.u32 %v4555, 4294901760
    %4557 = vmatpush1.msra.mxu0 %v4556
    %4558 = vmatprep.subr.mxu0 0.0
    %v4559 = vand.u32 %v29, 4294901760
    %v4560 = vsub.f32 %v29, %v4559
    %v4561 = vand.u32 %v4560, 4294901760
    %v4562 = vsub.f32 %v4560, %v4561
    %v4563 = vand.u32 %v4562, 4294901760
    %4564 = vmatpush1.msra.mxu0 %v4563
    %4565 = vmatprep.subr.mxu0 0.0
    %4566 = vmatpush1.msra.mxu0 0.0
    %4567 = vmatprep.subr.mxu0 0.0
    %4568 = vmatpush1.msra.mxu0 0.0
    %4569 = vmatprep.subr.mxu0 0.0
    %4570 = vmatpush1.msra.mxu0 0.0
    %4571 = vmatprep.subr.mxu0 0.0
    %4572 = vmatpush1.msra.mxu0 0.0
    %4573 = vmatprep.subr.mxu0 0.0
    %4574 = vmatpush1.msra.mxu0 0.0
    %4575 = vmatprep.subr.mxu0 0.0
    %4576 = vmatpush1.msra.mxu0 0.0
    %4577 = vmatprep.subr.mxu0 0.0
    %4578 = vmatpush1.msra.mxu0 0.0
    %4579 = vmatprep.subr.mxu0 0.0
    %4580 = vmatpush1.msra.mxu0 0.0
    %4581 = vmatprep.subr.mxu0 0.0
    %4582 = vmatpush1.msra.mxu0 0.0
    %4583 = vmatprep.subr.mxu0 0.0
    %4584 = vmatpush1.msra.mxu0 0.0
    %4585 = vmatprep.subr.mxu0 0.0
    %4586 = vmatpush1.msra.mxu0 0.0
    %4587 = vmatprep.subr.mxu0 0.0
    %4588 = vmatpush1.msra.mxu0 0.0
    %4589 = vmatprep.subr.mxu0 0.0
    %4590 = vmatpush1.msra.mxu0 0.0
    %4591 = vmatprep.subr.mxu0 0.0
    %4592 = vmatpush1.msra.mxu0 0.0
    %4593 = vmatprep.subr.mxu0 0.0
    %4594 = vmatpush1.msra.mxu0 0.0
    %4595 = vmatprep.subr.mxu0 0.0
    %4596 = vmatpush1.msra.mxu0 0.0
    %4597 = vmatprep.subr.mxu0 0.0
    %4598 = vmatpush1.msra.mxu0 0.0
    %4599 = vmatprep.subr.mxu0 0.0
    %4600 = vmatpush1.msra.mxu0 0.0
    %4601 = vmatprep.subr.mxu0 0.0
    %4602 = vmatpush1.msra.mxu0 0.0
    %4603 = vmatprep.subr.mxu0 0.0
    %4604 = vmatpush1.msra.mxu0 0.0
    %4605 = vmatprep.subr.mxu0 0.0
    %4606 = vmatpush1.msra.mxu0 0.0
    %4607 = vmatprep.subr.mxu0 0.0
    %4608 = vmatpush1.msra.mxu0 0.0
    %4609 = vmatprep.subr.mxu0 0.0
    %4610 = vmatpush1.msra.mxu0 0.0
    %4611 = vmatprep.subr.mxu0 0.0
    %4612 = vmatpush1.msra.mxu0 0.0
    %4613 = vmatprep.subr.mxu0 0.0
    %4614 = vmatpush1.msra.mxu0 0.0
    %4615 = vmatprep.subr.mxu0 0.0
    %4616 = vmatpush1.msra.mxu0 0.0
    %4617 = vmatprep.subr.mxu0 0.0
    %4618 = vmatpush1.msra.mxu0 0.0
    %4619 = vmatprep.subr.mxu0 0.0
    %4620 = vmatpush1.msra.mxu0 0.0
    %4621 = vmatprep.mubr.f32.mxu0 0.0
    %v4622 = vand.u32 %v3915, 4294901760
    %4623 = vmatmul.mubr.f32.gmra.mrb[0].mxu0 %v4622
    %v4624 = vpop.f32.mrb[0].mxu0
    %v4625 = vadd.f32 %v4524, %v4624
    %v4626 = vpop.f32.mrb[0].mxu0
    %4627 = vmatprep.mubr.f32.mxu0 0.0
    %v4628 = vand.u32 %v3918, 4294901760
    %4629 = vmatmul.mubr.f32.gmra.mrb[0].mxu0 %v4628
    %v4630 = vpop.f32.mrb[0].mxu0
    %v4631 = vadd.f32 %v4534, %v4630
    %v4632 = vpop.f32.mrb[0].mxu0
    %4633 = vdwg.mxu0
    %4634 = vmatprep.subr.mxu0 0.0
    %v4635 = vand.u32 %v26, 4294901760
    %v4636 = vsub.f32 %v26, %v4635
    %4637 = vmatpush1.msra.mxu0 %v4636
    %4638 = vmatprep.subr.mxu0 0.0
    %v4639 = vand.u32 %v27, 4294901760
    %v4640 = vsub.f32 %v27, %v4639
    %4641 = vmatpush1.msra.mxu0 %v4640
    %4642 = vmatprep.subr.mxu0 0.0
    %v4643 = vand.u32 %v28, 4294901760
    %v4644 = vsub.f32 %v28, %v4643
    %4645 = vmatpush1.msra.mxu0 %v4644
    %4646 = vmatprep.subr.mxu0 0.0
    %v4647 = vand.u32 %v29, 4294901760
    %v4648 = vsub.f32 %v29, %v4647
    %4649 = vmatpush1.msra.mxu0 %v4648
    %4650 = vmatprep.subr.mxu0 0.0
    %4651 = vmatpush1.msra.mxu0 0.0
    %4652 = vmatprep.subr.mxu0 0.0
    %4653 = vmatpush1.msra.mxu0 0.0
    %4654 = vmatprep.subr.mxu0 0.0
    %4655 = vmatpush1.msra.mxu0 0.0
    %4656 = vmatprep.subr.mxu0 0.0
    %4657 = vmatpush1.msra.mxu0 0.0
    %4658 = vmatprep.subr.mxu0 0.0
    %4659 = vmatpush1.msra.mxu0 0.0
    %4660 = vmatprep.subr.mxu0 0.0
    %4661 = vmatpush1.msra.mxu0 0.0
    %4662 = vmatprep.subr.mxu0 0.0
    %4663 = vmatpush1.msra.mxu0 0.0
    %4664 = vmatprep.subr.mxu0 0.0
    %4665 = vmatpush1.msra.mxu0 0.0
    %4666 = vmatprep.subr.mxu0 0.0
    %4667 = vmatpush1.msra.mxu0 0.0
    %4668 = vmatprep.subr.mxu0 0.0
    %4669 = vmatpush1.msra.mxu0 0.0
    %4670 = vmatprep.subr.mxu0 0.0
    %4671 = vmatpush1.msra.mxu0 0.0
    %4672 = vmatprep.subr.mxu0 0.0
    %4673 = vmatpush1.msra.mxu0 0.0
    %4674 = vmatprep.subr.mxu0 0.0
    %4675 = vmatpush1.msra.mxu0 0.0
    %4676 = vmatprep.subr.mxu0 0.0
    %4677 = vmatpush1.msra.mxu0 0.0
    %4678 = vmatprep.subr.mxu0 0.0
    %4679 = vmatpush1.msra.mxu0 0.0
    %4680 = vmatprep.subr.mxu0 0.0
    %4681 = vmatpush1.msra.mxu0 0.0
    %4682 = vmatprep.subr.mxu0 0.0
    %4683 = vmatpush1.msra.mxu0 0.0
    %4684 = vmatprep.subr.mxu0 0.0
    %4685 = vmatpush1.msra.mxu0 0.0
    %4686 = vmatprep.subr.mxu0 0.0
    %4687 = vmatpush1.msra.mxu0 0.0
    %4688 = vmatprep.subr.mxu0 0.0
    %4689 = vmatpush1.msra.mxu0 0.0
    %4690 = vmatprep.subr.mxu0 0.0
    %4691 = vmatpush1.msra.mxu0 0.0
    %4692 = vmatprep.subr.mxu0 0.0
    %4693 = vmatpush1.msra.mxu0 0.0
    %4694 = vmatprep.subr.mxu0 0.0
    %4695 = vmatpush1.msra.mxu0 0.0
    %4696 = vmatprep.subr.mxu0 0.0
    %4697 = vmatpush1.msra.mxu0 0.0
    %4698 = vmatprep.subr.mxu0 0.0
    %4699 = vmatpush1.msra.mxu0 0.0
    %4700 = vmatprep.subr.mxu0 0.0
    %4701 = vmatpush1.msra.mxu0 0.0
    %4702 = vmatprep.subr.mxu0 0.0
    %4703 = vmatpush1.msra.mxu0 0.0
    %4704 = vmatprep.subr.mxu0 0.0
    %4705 = vmatpush1.msra.mxu0 0.0
    %4706 = vmatprep.mubr.f32.mxu0 0.0
    %v4707 = vand.u32 %v3915, 4294901760
    %v4708 = vsub.f32 %v3915, %v4707
    %4709 = vmatmul.mubr.f32.gmra.mrb[0].mxu0 %v4708
    %v4710 = vpop.f32.mrb[0].mxu0
    %v4711 = vadd.f32 %v4625, %v4710
    %v4712 = vpop.f32.mrb[0].mxu0
    %4713 = vmatprep.mubr.f32.mxu0 0.0
    %v4714 = vand.u32 %v3918, 4294901760
    %v4715 = vsub.f32 %v3918, %v4714
    %4716 = vmatmul.mubr.f32.gmra.mrb[0].mxu0 %v4715
    %v4717 = vpop.f32.mrb[0].mxu0
    %v4718 = vadd.f32 %v4631, %v4717
    %v4719 = vpop.f32.mrb[0].mxu0
    %4720 = vdwg.mxu0
    %4721 = vmatprep.subr.mxu0 0.0
    %v4722 = vand.u32 %v26, 4294901760
    %4723 = vmatpush1.msra.mxu0 %v4722
    %4724 = vmatprep.subr.mxu0 0.0
    %v4725 = vand.u32 %v27, 4294901760
    %4726 = vmatpush1.msra.mxu0 %v4725
    %4727 = vmatprep.subr.mxu0 0.0
    %v4728 = vand.u32 %v28, 4294901760
    %4729 = vmatpush1.msra.mxu0 %v4728
    %4730 = vmatprep.subr.mxu0 0.0
    %v4731 = vand.u32 %v29, 4294901760
    %4732 = vmatpush1.msra.mxu0 %v4731
    %4733 = vmatprep.subr.mxu0 0.0
    %4734 = vmatpush1.msra.mxu0 0.0
    %4735 = vmatprep.subr.mxu0 0.0
    %4736 = vmatpush1.msra.mxu0 0.0
    %4737 = vmatprep.subr.mxu0 0.0
    %4738 = vmatpush1.msra.mxu0 0.0
    %4739 = vmatprep.subr.mxu0 0.0
    %4740 = vmatpush1.msra.mxu0 0.0
    %4741 = vmatprep.subr.mxu0 0.0
    %4742 = vmatpush1.msra.mxu0 0.0
    %4743 = vmatprep.subr.mxu0 0.0
    %4744 = vmatpush1.msra.mxu0 0.0
    %4745 = vmatprep.subr.mxu0 0.0
    %4746 = vmatpush1.msra.mxu0 0.0
    %4747 = vmatprep.subr.mxu0 0.0
    %4748 = vmatpush1.msra.mxu0 0.0
    %4749 = vmatprep.subr.mxu0 0.0
    %4750 = vmatpush1.msra.mxu0 0.0
    %4751 = vmatprep.subr.mxu0 0.0
    %4752 = vmatpush1.msra.mxu0 0.0
    %4753 = vmatprep.subr.mxu0 0.0
    %4754 = vmatpush1.msra.mxu0 0.0
    %4755 = vmatprep.subr.mxu0 0.0
    %4756 = vmatpush1.msra.mxu0 0.0
    %4757 = vmatprep.subr.mxu0 0.0
    %4758 = vmatpush1.msra.mxu0 0.0
    %4759 = vmatprep.subr.mxu0 0.0
    %4760 = vmatpush1.msra.mxu0 0.0
    %4761 = vmatprep.subr.mxu0 0.0
    %4762 = vmatpush1.msra.mxu0 0.0
    %4763 = vmatprep.subr.mxu0 0.0
    %4764 = vmatpush1.msra.mxu0 0.0
    %4765 = vmatprep.subr.mxu0 0.0
    %4766 = vmatpush1.msra.mxu0 0.0
    %4767 = vmatprep.subr.mxu0 0.0
    %4768 = vmatpush1.msra.mxu0 0.0
    %4769 = vmatprep.subr.mxu0 0.0
    %4770 = vmatpush1.msra.mxu0 0.0
    %4771 = vmatprep.subr.mxu0 0.0
    %4772 = vmatpush1.msra.mxu0 0.0
    %4773 = vmatprep.subr.mxu0 0.0
    %4774 = vmatpush1.msra.mxu0 0.0
    %4775 = vmatprep.subr.mxu0 0.0
    %4776 = vmatpush1.msra.mxu0 0.0
    %4777 = vmatprep.subr.mxu0 0.0
    %4778 = vmatpush1.msra.mxu0 0.0
    %4779 = vmatprep.subr.mxu0 0.0
    %4780 = vmatpush1.msra.mxu0 0.0
    %4781 = vmatprep.subr.mxu0 0.0
    %4782 = vmatpush1.msra.mxu0 0.0
    %4783 = vmatprep.subr.mxu0 0.0
    %4784 = vmatpush1.msra.mxu0 0.0
    %4785 = vmatprep.subr.mxu0 0.0
    %4786 = vmatpush1.msra.mxu0 0.0
    %4787 = vmatprep.subr.mxu0 0.0
    %4788 = vmatpush1.msra.mxu0 0.0
    %4789 = vmatprep.mubr.f32.mxu0 0.0
    %v4790 = vand.u32 %v3915, 4294901760
    %v4791 = vsub.f32 %v3915, %v4790
    %v4792 = vand.u32 %v4791, 4294901760
    %4793 = vmatmul.mubr.f32.gmra.mrb[0].mxu0 %v4792
    %v4794 = vpop.f32.mrb[0].mxu0
    %v4795 = vadd.f32 %v4711, %v4794
    %v4796 = vpop.f32.mrb[0].mxu0
    %4797 = vmatprep.mubr.f32.mxu0 0.0
    %v4798 = vand.u32 %v3918, 4294901760
    %v4799 = vsub.f32 %v3918, %v4798
    %v4800 = vand.u32 %v4799, 4294901760
    %4801 = vmatmul.mubr.f32.gmra.mrb[0].mxu0 %v4800
    %v4802 = vpop.f32.mrb[0].mxu0
    %v4803 = vadd.f32 %v4718, %v4802
    %v4804 = vpop.f32.mrb[0].mxu0
    %4805 = vdwg.mxu0
    %4806 = vmatprep.subr.mxu0 0.0
    %v4807 = vand.u32 %v26, 4294901760
    %v4808 = vsub.f32 %v26, %v4807
    %v4809 = vand.u32 %v4808, 4294901760
    %4810 = vmatpush1.msra.mxu0 %v4809
    %4811 = vmatprep.subr.mxu0 0.0
    %v4812 = vand.u32 %v27, 4294901760
    %v4813 = vsub.f32 %v27, %v4812
    %v4814 = vand.u32 %v4813, 4294901760
    %4815 = vmatpush1.msra.mxu0 %v4814
    %4816 = vmatprep.subr.mxu0 0.0
    %v4817 = vand.u32 %v28, 4294901760
    %v4818 = vsub.f32 %v28, %v4817
    %v4819 = vand.u32 %v4818, 4294901760
    %4820 = vmatpush1.msra.mxu0 %v4819
    %4821 = vmatprep.subr.mxu0 0.0
    %v4822 = vand.u32 %v29, 4294901760
    %v4823 = vsub.f32 %v29, %v4822
    %v4824 = vand.u32 %v4823, 4294901760
    %4825 = vmatpush1.msra.mxu0 %v4824
    %4826 = vmatprep.subr.mxu0 0.0
    %4827 = vmatpush1.msra.mxu0 0.0
    %4828 = vmatprep.subr.mxu0 0.0
    %4829 = vmatpush1.msra.mxu0 0.0
    %4830 = vmatprep.subr.mxu0 0.0
    %4831 = vmatpush1.msra.mxu0 0.0
    %4832 = vmatprep.subr.mxu0 0.0
    %4833 = vmatpush1.msra.mxu0 0.0
    %4834 = vmatprep.subr.mxu0 0.0
    %4835 = vmatpush1.msra.mxu0 0.0
    %4836 = vmatprep.subr.mxu0 0.0
    %4837 = vmatpush1.msra.mxu0 0.0
    %4838 = vmatprep.subr.mxu0 0.0
    %4839 = vmatpush1.msra.mxu0 0.0
    %4840 = vmatprep.subr.mxu0 0.0
    %4841 = vmatpush1.msra.mxu0 0.0
    %4842 = vmatprep.subr.mxu0 0.0
    %4843 = vmatpush1.msra.mxu0 0.0
    %4844 = vmatprep.subr.mxu0 0.0
    %4845 = vmatpush1.msra.mxu0 0.0
    %4846 = vmatprep.subr.mxu0 0.0
    %4847 = vmatpush1.msra.mxu0 0.0
    %4848 = vmatprep.subr.mxu0 0.0
    %4849 = vmatpush1.msra.mxu0 0.0
    %4850 = vmatprep.subr.mxu0 0.0
    %4851 = vmatpush1.msra.mxu0 0.0
    %4852 = vmatprep.subr.mxu0 0.0
    %4853 = vmatpush1.msra.mxu0 0.0
    %4854 = vmatprep.subr.mxu0 0.0
    %4855 = vmatpush1.msra.mxu0 0.0
    %4856 = vmatprep.subr.mxu0 0.0
    %4857 = vmatpush1.msra.mxu0 0.0
    %4858 = vmatprep.subr.mxu0 0.0
    %4859 = vmatpush1.msra.mxu0 0.0
    %4860 = vmatprep.subr.mxu0 0.0
    %4861 = vmatpush1.msra.mxu0 0.0
    %4862 = vmatprep.subr.mxu0 0.0
    %4863 = vmatpush1.msra.mxu0 0.0
    %4864 = vmatprep.subr.mxu0 0.0
    %4865 = vmatpush1.msra.mxu0 0.0
    %4866 = vmatprep.subr.mxu0 0.0
    %4867 = vmatpush1.msra.mxu0 0.0
    %4868 = vmatprep.subr.mxu0 0.0
    %4869 = vmatpush1.msra.mxu0 0.0
    %4870 = vmatprep.subr.mxu0 0.0
    %4871 = vmatpush1.msra.mxu0 0.0
    %4872 = vmatprep.subr.mxu0 0.0
    %4873 = vmatpush1.msra.mxu0 0.0
    %4874 = vmatprep.subr.mxu0 0.0
    %4875 = vmatpush1.msra.mxu0 0.0
    %4876 = vmatprep.subr.mxu0 0.0
    %4877 = vmatpush1.msra.mxu0 0.0
    %4878 = vmatprep.subr.mxu0 0.0
    %4879 = vmatpush1.msra.mxu0 0.0
    %4880 = vmatprep.subr.mxu0 0.0
    %4881 = vmatpush1.msra.mxu0 0.0
    %4882 = vmatprep.mubr.f32.mxu0 0.0
    %v4883 = vand.u32 %v3915, 4294901760
    %4884 = vmatmul.mubr.f32.gmra.mrb[0].mxu0 %v4883
    %v4885 = vpop.f32.mrb[0].mxu0
    %v4886 = vadd.f32 %v4795, %v4885
    %v4887 = vpop.f32.mrb[0].mxu0
    %4888 = vmatprep.mubr.f32.mxu0 0.0
    %v4889 = vand.u32 %v3918, 4294901760
    %4890 = vmatmul.mubr.f32.gmra.mrb[0].mxu0 %v4889
    %v4891 = vpop.f32.mrb[0].mxu0
    %v4892 = vadd.f32 %v4803, %v4891
    %v4893 = vpop.f32.mrb[0].mxu0
    %4894 = vdwg.mxu0
    %4895 = vmatprep.subr.mxu0 0.0
    %v4896 = vand.u32 %v26, 4294901760
    %4897 = vmatpush1.msra.mxu0 %v4896
    %4898 = vmatprep.subr.mxu0 0.0
    %v4899 = vand.u32 %v27, 4294901760
    %4900 = vmatpush1.msra.mxu0 %v4899
    %4901 = vmatprep.subr.mxu0 0.0
    %v4902 = vand.u32 %v28, 4294901760
    %4903 = vmatpush1.msra.mxu0 %v4902
    %4904 = vmatprep.subr.mxu0 0.0
    %v4905 = vand.u32 %v29, 4294901760
    %4906 = vmatpush1.msra.mxu0 %v4905
    %4907 = vmatprep.subr.mxu0 0.0
    %4908 = vmatpush1.msra.mxu0 0.0
    %4909 = vmatprep.subr.mxu0 0.0
    %4910 = vmatpush1.msra.mxu0 0.0
    %4911 = vmatprep.subr.mxu0 0.0
    %4912 = vmatpush1.msra.mxu0 0.0
    %4913 = vmatprep.subr.mxu0 0.0
    %4914 = vmatpush1.msra.mxu0 0.0
    %4915 = vmatprep.subr.mxu0 0.0
    %4916 = vmatpush1.msra.mxu0 0.0
    %4917 = vmatprep.subr.mxu0 0.0
    %4918 = vmatpush1.msra.mxu0 0.0
    %4919 = vmatprep.subr.mxu0 0.0
    %4920 = vmatpush1.msra.mxu0 0.0
    %4921 = vmatprep.subr.mxu0 0.0
    %4922 = vmatpush1.msra.mxu0 0.0
    %4923 = vmatprep.subr.mxu0 0.0
    %4924 = vmatpush1.msra.mxu0 0.0
    %4925 = vmatprep.subr.mxu0 0.0
    %4926 = vmatpush1.msra.mxu0 0.0
    %4927 = vmatprep.subr.mxu0 0.0
    %4928 = vmatpush1.msra.mxu0 0.0
    %4929 = vmatprep.subr.mxu0 0.0
    %4930 = vmatpush1.msra.mxu0 0.0
    %4931 = vmatprep.subr.mxu0 0.0
    %4932 = vmatpush1.msra.mxu0 0.0
    %4933 = vmatprep.subr.mxu0 0.0
    %4934 = vmatpush1.msra.mxu0 0.0
    %4935 = vmatprep.subr.mxu0 0.0
    %4936 = vmatpush1.msra.mxu0 0.0
    %4937 = vmatprep.subr.mxu0 0.0
    %4938 = vmatpush1.msra.mxu0 0.0
    %4939 = vmatprep.subr.mxu0 0.0
    %4940 = vmatpush1.msra.mxu0 0.0
    %4941 = vmatprep.subr.mxu0 0.0
    %4942 = vmatpush1.msra.mxu0 0.0
    %4943 = vmatprep.subr.mxu0 0.0
    %4944 = vmatpush1.msra.mxu0 0.0
    %4945 = vmatprep.subr.mxu0 0.0
    %4946 = vmatpush1.msra.mxu0 0.0
    %4947 = vmatprep.subr.mxu0 0.0
    %4948 = vmatpush1.msra.mxu0 0.0
    %4949 = vmatprep.subr.mxu0 0.0
    %4950 = vmatpush1.msra.mxu0 0.0
    %4951 = vmatprep.subr.mxu0 0.0
    %4952 = vmatpush1.msra.mxu0 0.0
    %4953 = vmatprep.subr.mxu0 0.0
    %4954 = vmatpush1.msra.mxu0 0.0
    %4955 = vmatprep.subr.mxu0 0.0
    %4956 = vmatpush1.msra.mxu0 0.0
    %4957 = vmatprep.subr.mxu0 0.0
    %4958 = vmatpush1.msra.mxu0 0.0
    %4959 = vmatprep.subr.mxu0 0.0
    %4960 = vmatpush1.msra.mxu0 0.0
    %4961 = vmatprep.subr.mxu0 0.0
    %4962 = vmatpush1.msra.mxu0 0.0
    %4963 = vmatprep.mubr.f32.mxu0 0.0
    %v4964 = vand.u32 %v3915, 4294901760
    %4965 = vmatmul.mubr.f32.gmra.mrb[0].mxu0 %v4964
    %v4966 = vpop.f32.mrb[0].mxu0
    %v4967 = vadd.f32 %v4886, %v4966
    %v4968 = vpop.f32.mrb[0].mxu0
    %4969 = vmatprep.mubr.f32.mxu0 0.0
    %v4970 = vand.u32 %v3918, 4294901760
    %4971 = vmatmul.mubr.f32.gmra.mrb[0].mxu0 %v4970
    %v4972 = vpop.f32.mrb[0].mxu0
    %v4973 = vadd.f32 %v4892, %v4972
    %v4974 = vpop.f32.mrb[0].mxu0
    %4975 = vdwg.mxu0
    %s4976 = scalar_lea.vmem %s2, 16
    %v4977 = vld [vmem:[%s4976] sm:$0xff]
    %v4978 = vld [vmem:[%s4976 + $0x8] sm:$0xff]
    %s4979 = scalar_lea.vmem %s3, 160
    %v4980 = vld [vmem:[%s4979] sm:$0xff]
    %v4981 = vld [vmem:[%s4979 + $0x8] sm:$0xff]
    %4983 = vset.pattern.permute.xlu0 0
    %4984 = vperm.xlu0 %4983, %v4980
    %v4985 = vpop.permute.xlu0 %4984
    %4988 = vset.pattern.permute.xlu0 0
    %4989 = vperm.xlu0 %4988, %v4981
    %v4990 = vpop.permute.xlu0 %4989
    %v4993 = vsel %vm3351, %v4977, 0
    %v4996 = vsel %vm3351, %v4978, 0
    %4998 = vmatprep.subr.mxu0 0.0
    %v4999 = vand.u32 %v4439, 4294901760
    %5000 = vmatpush1.msra.mxu0 %v4999
    %5001 = vmatprep.subr.mxu0 0.0
    %v5002 = vand.u32 %v4445, 4294901760
    %5003 = vmatpush1.msra.mxu0 %v5002
    %5004 = vmatprep.subr.mxu0 0.0
    %v5005 = vand.u32 %v3912, 4294901760
    %5006 = vmatpush1.msra.mxu0 %v5005
    %5007 = vmatprep.subr.mxu0 0.0
    %v5008 = vand.u32 %v3913, 4294901760
    %5009 = vmatpush1.msra.mxu0 %v5008
    %5010 = vmatprep.subr.mxu0 0.0
    %v5011 = vand.u32 %v4967, 4294901760
    %5012 = vmatpush1.msra.mxu0 %v5011
    %5013 = vmatprep.subr.mxu0 0.0
    %v5014 = vand.u32 %v4973, 4294901760
    %5015 = vmatpush1.msra.mxu0 %v5014
    %5016 = vmatprep.subr.mxu0 0.0
    %5017 = vmatpush1.msra.mxu0 0.0
    %5018 = vmatprep.subr.mxu0 0.0
    %5019 = vmatpush1.msra.mxu0 0.0
    %5020 = vmatprep.subr.mxu0 0.0
    %5021 = vmatpush1.msra.mxu0 0.0
    %5022 = vmatprep.subr.mxu0 0.0
    %5023 = vmatpush1.msra.mxu0 0.0
    %5024 = vmatprep.subr.mxu0 0.0
    %5025 = vmatpush1.msra.mxu0 0.0
    %5026 = vmatprep.subr.mxu0 0.0
    %5027 = vmatpush1.msra.mxu0 0.0
    %5028 = vmatprep.subr.mxu0 0.0
    %5029 = vmatpush1.msra.mxu0 0.0
    %5030 = vmatprep.subr.mxu0 0.0
    %5031 = vmatpush1.msra.mxu0 0.0
    %5032 = vmatprep.subr.mxu0 0.0
    %5033 = vmatpush1.msra.mxu0 0.0
    %5034 = vmatprep.subr.mxu0 0.0
    %5035 = vmatpush1.msra.mxu0 0.0
    %5036 = vmatprep.subr.mxu0 0.0
    %5037 = vmatpush1.msra.mxu0 0.0
    %5038 = vmatprep.subr.mxu0 0.0
    %5039 = vmatpush1.msra.mxu0 0.0
    %5040 = vmatprep.subr.mxu0 0.0
    %5041 = vmatpush1.msra.mxu0 0.0
    %5042 = vmatprep.subr.mxu0 0.0
    %5043 = vmatpush1.msra.mxu0 0.0
    %5044 = vmatprep.subr.mxu0 0.0
    %5045 = vmatpush1.msra.mxu0 0.0
    %5046 = vmatprep.subr.mxu0 0.0
    %5047 = vmatpush1.msra.mxu0 0.0
    %5048 = vmatprep.subr.mxu0 0.0
    %5049 = vmatpush1.msra.mxu0 0.0
    %5050 = vmatprep.subr.mxu0 0.0
    %5051 = vmatpush1.msra.mxu0 0.0
    %5052 = vmatprep.subr.mxu0 0.0
    %5053 = vmatpush1.msra.mxu0 0.0
    %5054 = vmatprep.subr.mxu0 0.0
    %5055 = vmatpush1.msra.mxu0 0.0
    %5056 = vmatprep.subr.mxu0 0.0
    %5057 = vmatpush1.msra.mxu0 0.0
    %5058 = vmatprep.subr.mxu0 0.0
    %5059 = vmatpush1.msra.mxu0 0.0
    %5060 = vmatprep.subr.mxu0 0.0
    %5061 = vmatpush1.msra.mxu0 0.0
    %5062 = vmatprep.subr.mxu0 0.0
    %5063 = vmatpush1.msra.mxu0 0.0
    %5064 = vmatprep.subr.mxu0 0.0
    %5065 = vmatpush1.msra.mxu0 0.0
    %5066 = vmatprep.subr.mxu0 0.0
    %5067 = vmatpush1.msra.mxu0 0.0
    %5068 = vmatprep.mubr.f32.mxu0 0.0
    %v5069 = vand.u32 %v4993, 4294901760
    %v5070 = vsub.f32 %v4993, %v5069
    %v5071 = vand.u32 %v5070, 4294901760
    %v5072 = vsub.f32 %v5070, %v5071
    %v5073 = vand.u32 %v5072, 4294901760
    %5074 = vmatmul.mubr.f32.gmra.mrb[0].mxu0 %v5073
    %v5075 = vpop.f32.mrb[0].mxu0
    %v5076 = vadd.f32 %v4985, %v5075
    %v5077 = vpop.f32.mrb[0].mxu0
    %5078 = vmatprep.mubr.f32.mxu0 0.0
    %v5079 = vand.u32 %v4996, 4294901760
    %v5080 = vsub.f32 %v4996, %v5079
    %v5081 = vand.u32 %v5080, 4294901760
    %v5082 = vsub.f32 %v5080, %v5081
    %v5083 = vand.u32 %v5082, 4294901760
    %5084 = vmatmul.mubr.f32.gmra.mrb[0].mxu0 %v5083
    %v5085 = vpop.f32.mrb[0].mxu0
    %v5086 = vadd.f32 %v4990, %v5085
    %v5087 = vpop.f32.mrb[0].mxu0
    %5088 = vdwg.mxu0
    %5089 = vmatprep.subr.mxu0 0.0
    %v5090 = vand.u32 %v4439, 4294901760
    %v5091 = vsub.f32 %v4439, %v5090
    %v5092 = vand.u32 %v5091, 4294901760
    %v5093 = vsub.f32 %v5091, %v5092
    %v5094 = vand.u32 %v5093, 4294901760
    %5095 = vmatpush1.msra.mxu0 %v5094
    %5096 = vmatprep.subr.mxu0 0.0
    %v5097 = vand.u32 %v4445, 4294901760
    %v5098 = vsub.f32 %v4445, %v5097
    %v5099 = vand.u32 %v5098, 4294901760
    %v5100 = vsub.f32 %v5098, %v5099
    %v5101 = vand.u32 %v5100, 4294901760
    %5102 = vmatpush1.msra.mxu0 %v5101
    %5103 = vmatprep.subr.mxu0 0.0
    %v5104 = vand.u32 %v3912, 4294901760
    %v5105 = vsub.f32 %v3912, %v5104
    %v5106 = vand.u32 %v5105, 4294901760
    %v5107 = vsub.f32 %v5105, %v5106
    %v5108 = vand.u32 %v5107, 4294901760
    %5109 = vmatpush1.msra.mxu0 %v5108
    %5110 = vmatprep.subr.mxu0 0.0
    %v5111 = vand.u32 %v3913, 4294901760
    %v5112 = vsub.f32 %v3913, %v5111
    %v5113 = vand.u32 %v5112, 4294901760
    %v5114 = vsub.f32 %v5112, %v5113
    %v5115 = vand.u32 %v5114, 4294901760
    %5116 = vmatpush1.msra.mxu0 %v5115
    %5117 = vmatprep.subr.mxu0 0.0
    %v5118 = vand.u32 %v4967, 4294901760
    %v5119 = vsub.f32 %v4967, %v5118
    %v5120 = vand.u32 %v5119, 4294901760
    %v5121 = vsub.f32 %v5119, %v5120
    %v5122 = vand.u32 %v5121, 4294901760
    %5123 = vmatpush1.msra.mxu0 %v5122
    %5124 = vmatprep.subr.mxu0 0.0
    %v5125 = vand.u32 %v4973, 4294901760
    %v5126 = vsub.f32 %v4973, %v5125
    %v5127 = vand.u32 %v5126, 4294901760
    %v5128 = vsub.f32 %v5126, %v5127
    %v5129 = vand.u32 %v5128, 4294901760
    %5130 = vmatpush1.msra.mxu0 %v5129
    %5131 = vmatprep.subr.mxu0 0.0
    %5132 = vmatpush1.msra.mxu0 0.0
    %5133 = vmatprep.subr.mxu0 0.0
    %5134 = vmatpush1.msra.mxu0 0.0
    %5135 = vmatprep.subr.mxu0 0.0
    %5136 = vmatpush1.msra.mxu0 0.0
    %5137 = vmatprep.subr.mxu0 0.0
    %5138 = vmatpush1.msra.mxu0 0.0
    %5139 = vmatprep.subr.mxu0 0.0
    %5140 = vmatpush1.msra.mxu0 0.0
    %5141 = vmatprep.subr.mxu0 0.0
    %5142 = vmatpush1.msra.mxu0 0.0
    %5143 = vmatprep.subr.mxu0 0.0
    %5144 = vmatpush1.msra.mxu0 0.0
    %5145 = vmatprep.subr.mxu0 0.0
    %5146 = vmatpush1.msra.mxu0 0.0
    %5147 = vmatprep.subr.mxu0 0.0
    %5148 = vmatpush1.msra.mxu0 0.0
    %5149 = vmatprep.subr.mxu0 0.0
    %5150 = vmatpush1.msra.mxu0 0.0
    %5151 = vmatprep.subr.mxu0 0.0
    %5152 = vmatpush1.msra.mxu0 0.0
    %5153 = vmatprep.subr.mxu0 0.0
    %5154 = vmatpush1.msra.mxu0 0.0
    %5155 = vmatprep.subr.mxu0 0.0
    %5156 = vmatpush1.msra.mxu0 0.0
    %5157 = vmatprep.subr.mxu0 0.0
    %5158 = vmatpush1.msra.mxu0 0.0
    %5159 = vmatprep.subr.mxu0 0.0
    %5160 = vmatpush1.msra.mxu0 0.0
    %5161 = vmatprep.subr.mxu0 0.0
    %5162 = vmatpush1.msra.mxu0 0.0
    %5163 = vmatprep.subr.mxu0 0.0
    %5164 = vmatpush1.msra.mxu0 0.0
    %5165 = vmatprep.subr.mxu0 0.0
    %5166 = vmatpush1.msra.mxu0 0.0
    %5167 = vmatprep.subr.mxu0 0.0
    %5168 = vmatpush1.msra.mxu0 0.0
    %5169 = vmatprep.subr.mxu0 0.0
    %5170 = vmatpush1.msra.mxu0 0.0
    %5171 = vmatprep.subr.mxu0 0.0
    %5172 = vmatpush1.msra.mxu0 0.0
    %5173 = vmatprep.subr.mxu0 0.0
    %5174 = vmatpush1.msra.mxu0 0.0
    %5175 = vmatprep.subr.mxu0 0.0
    %5176 = vmatpush1.msra.mxu0 0.0
    %5177 = vmatprep.subr.mxu0 0.0
    %5178 = vmatpush1.msra.mxu0 0.0
    %5179 = vmatprep.subr.mxu0 0.0
    %5180 = vmatpush1.msra.mxu0 0.0
    %5181 = vmatprep.subr.mxu0 0.0
    %5182 = vmatpush1.msra.mxu0 0.0
    %5183 = vmatprep.mubr.f32.mxu0 0.0
    %v5184 = vand.u32 %v4993, 4294901760
    %5185 = vmatmul.mubr.f32.gmra.mrb[0].mxu0 %v5184
    %v5186 = vpop.f32.mrb[0].mxu0
    %v5187 = vadd.f32 %v5076, %v5186
    %v5188 = vpop.f32.mrb[0].mxu0
    %5189 = vmatprep.mubr.f32.mxu0 0.0
    %v5190 = vand.u32 %v4996, 4294901760
    %5191 = vmatmul.mubr.f32.gmra.mrb[0].mxu0 %v5190
    %v5192 = vpop.f32.mrb[0].mxu0
    %v5193 = vadd.f32 %v5086, %v5192
    %v5194 = vpop.f32.mrb[0].mxu0
    %5195 = vdwg.mxu0
    %5196 = vmatprep.subr.mxu0 0.0
    %v5197 = vand.u32 %v4439, 4294901760
    %v5198 = vsub.f32 %v4439, %v5197
    %5199 = vmatpush1.msra.mxu0 %v5198
    %5200 = vmatprep.subr.mxu0 0.0
    %v5201 = vand.u32 %v4445, 4294901760
    %v5202 = vsub.f32 %v4445, %v5201
    %5203 = vmatpush1.msra.mxu0 %v5202
    %5204 = vmatprep.subr.mxu0 0.0
    %v5205 = vand.u32 %v3912, 4294901760
    %v5206 = vsub.f32 %v3912, %v5205
    %5207 = vmatpush1.msra.mxu0 %v5206
    %5208 = vmatprep.subr.mxu0 0.0
    %v5209 = vand.u32 %v3913, 4294901760
    %v5210 = vsub.f32 %v3913, %v5209
    %5211 = vmatpush1.msra.mxu0 %v5210
    %5212 = vmatprep.subr.mxu0 0.0
    %v5213 = vand.u32 %v4967, 4294901760
    %v5214 = vsub.f32 %v4967, %v5213
    %5215 = vmatpush1.msra.mxu0 %v5214
    %5216 = vmatprep.subr.mxu0 0.0
    %v5217 = vand.u32 %v4973, 4294901760
    %v5218 = vsub.f32 %v4973, %v5217
    %5219 = vmatpush1.msra.mxu0 %v5218
    %5220 = vmatprep.subr.mxu0 0.0
    %5221 = vmatpush1.msra.mxu0 0.0
    %5222 = vmatprep.subr.mxu0 0.0
    %5223 = vmatpush1.msra.mxu0 0.0
    %5224 = vmatprep.subr.mxu0 0.0
    %5225 = vmatpush1.msra.mxu0 0.0
    %5226 = vmatprep.subr.mxu0 0.0
    %5227 = vmatpush1.msra.mxu0 0.0
    %5228 = vmatprep.subr.mxu0 0.0
    %5229 = vmatpush1.msra.mxu0 0.0
    %5230 = vmatprep.subr.mxu0 0.0
    %5231 = vmatpush1.msra.mxu0 0.0
    %5232 = vmatprep.subr.mxu0 0.0
    %5233 = vmatpush1.msra.mxu0 0.0
    %5234 = vmatprep.subr.mxu0 0.0
    %5235 = vmatpush1.msra.mxu0 0.0
    %5236 = vmatprep.subr.mxu0 0.0
    %5237 = vmatpush1.msra.mxu0 0.0
    %5238 = vmatprep.subr.mxu0 0.0
    %5239 = vmatpush1.msra.mxu0 0.0
    %5240 = vmatprep.subr.mxu0 0.0
    %5241 = vmatpush1.msra.mxu0 0.0
    %5242 = vmatprep.subr.mxu0 0.0
    %5243 = vmatpush1.msra.mxu0 0.0
    %5244 = vmatprep.subr.mxu0 0.0
    %5245 = vmatpush1.msra.mxu0 0.0
    %5246 = vmatprep.subr.mxu0 0.0
    %5247 = vmatpush1.msra.mxu0 0.0
    %5248 = vmatprep.subr.mxu0 0.0
    %5249 = vmatpush1.msra.mxu0 0.0
    %5250 = vmatprep.subr.mxu0 0.0
    %5251 = vmatpush1.msra.mxu0 0.0
    %5252 = vmatprep.subr.mxu0 0.0
    %5253 = vmatpush1.msra.mxu0 0.0
    %5254 = vmatprep.subr.mxu0 0.0
    %5255 = vmatpush1.msra.mxu0 0.0
    %5256 = vmatprep.subr.mxu0 0.0
    %5257 = vmatpush1.msra.mxu0 0.0
    %5258 = vmatprep.subr.mxu0 0.0
    %5259 = vmatpush1.msra.mxu0 0.0
    %5260 = vmatprep.subr.mxu0 0.0
    %5261 = vmatpush1.msra.mxu0 0.0
    %5262 = vmatprep.subr.mxu0 0.0
    %5263 = vmatpush1.msra.mxu0 0.0
    %5264 = vmatprep.subr.mxu0 0.0
    %5265 = vmatpush1.msra.mxu0 0.0
    %5266 = vmatprep.subr.mxu0 0.0
    %5267 = vmatpush1.msra.mxu0 0.0
    %5268 = vmatprep.subr.mxu0 0.0
    %5269 = vmatpush1.msra.mxu0 0.0
    %5270 = vmatprep.subr.mxu0 0.0
    %5271 = vmatpush1.msra.mxu0 0.0
    %5272 = vmatprep.mubr.f32.mxu0 0.0
    %v5273 = vand.u32 %v4993, 4294901760
    %v5274 = vsub.f32 %v4993, %v5273
    %5275 = vmatmul.mubr.f32.gmra.mrb[0].mxu0 %v5274
    %v5276 = vpop.f32.mrb[0].mxu0
    %v5277 = vadd.f32 %v5187, %v5276
    %v5278 = vpop.f32.mrb[0].mxu0
    %5279 = vmatprep.mubr.f32.mxu0 0.0
    %v5280 = vand.u32 %v4996, 4294901760
    %v5281 = vsub.f32 %v4996, %v5280
    %5282 = vmatmul.mubr.f32.gmra.mrb[0].mxu0 %v5281
    %v5283 = vpop.f32.mrb[0].mxu0
    %v5284 = vadd.f32 %v5193, %v5283
    %v5285 = vpop.f32.mrb[0].mxu0
    %5286 = vdwg.mxu0
    %5287 = vmatprep.subr.mxu0 0.0
    %v5288 = vand.u32 %v4439, 4294901760
    %5289 = vmatpush1.msra.mxu0 %v5288
    %5290 = vmatprep.subr.mxu0 0.0
    %v5291 = vand.u32 %v4445, 4294901760
    %5292 = vmatpush1.msra.mxu0 %v5291
    %5293 = vmatprep.subr.mxu0 0.0
    %v5294 = vand.u32 %v3912, 4294901760
    %5295 = vmatpush1.msra.mxu0 %v5294
    %5296 = vmatprep.subr.mxu0 0.0
    %v5297 = vand.u32 %v3913, 4294901760
    %5298 = vmatpush1.msra.mxu0 %v5297
    %5299 = vmatprep.subr.mxu0 0.0
    %v5300 = vand.u32 %v4967, 4294901760
    %5301 = vmatpush1.msra.mxu0 %v5300
    %5302 = vmatprep.subr.mxu0 0.0
    %v5303 = vand.u32 %v4973, 4294901760
    %5304 = vmatpush1.msra.mxu0 %v5303
    %5305 = vmatprep.subr.mxu0 0.0
    %5306 = vmatpush1.msra.mxu0 0.0
    %5307 = vmatprep.subr.mxu0 0.0
    %5308 = vmatpush1.msra.mxu0 0.0
    %5309 = vmatprep.subr.mxu0 0.0
    %5310 = vmatpush1.msra.mxu0 0.0
    %5311 = vmatprep.subr.mxu0 0.0
    %5312 = vmatpush1.msra.mxu0 0.0
    %5313 = vmatprep.subr.mxu0 0.0
    %5314 = vmatpush1.msra.mxu0 0.0
    %5315 = vmatprep.subr.mxu0 0.0
    %5316 = vmatpush1.msra.mxu0 0.0
    %5317 = vmatprep.subr.mxu0 0.0
    %5318 = vmatpush1.msra.mxu0 0.0
    %5319 = vmatprep.subr.mxu0 0.0
    %5320 = vmatpush1.msra.mxu0 0.0
    %5321 = vmatprep.subr.mxu0 0.0
    %5322 = vmatpush1.msra.mxu0 0.0
    %5323 = vmatprep.subr.mxu0 0.0
    %5324 = vmatpush1.msra.mxu0 0.0
    %5325 = vmatprep.subr.mxu0 0.0
    %5326 = vmatpush1.msra.mxu0 0.0
    %5327 = vmatprep.subr.mxu0 0.0
    %5328 = vmatpush1.msra.mxu0 0.0
    %5329 = vmatprep.subr.mxu0 0.0
    %5330 = vmatpush1.msra.mxu0 0.0
    %5331 = vmatprep.subr.mxu0 0.0
    %5332 = vmatpush1.msra.mxu0 0.0
    %5333 = vmatprep.subr.mxu0 0.0
    %5334 = vmatpush1.msra.mxu0 0.0
    %5335 = vmatprep.subr.mxu0 0.0
    %5336 = vmatpush1.msra.mxu0 0.0
    %5337 = vmatprep.subr.mxu0 0.0
    %5338 = vmatpush1.msra.mxu0 0.0
    %5339 = vmatprep.subr.mxu0 0.0
    %5340 = vmatpush1.msra.mxu0 0.0
    %5341 = vmatprep.subr.mxu0 0.0
    %5342 = vmatpush1.msra.mxu0 0.0
    %5343 = vmatprep.subr.mxu0 0.0
    %5344 = vmatpush1.msra.mxu0 0.0
    %5345 = vmatprep.subr.mxu0 0.0
    %5346 = vmatpush1.msra.mxu0 0.0
    %5347 = vmatprep.subr.mxu0 0.0
    %5348 = vmatpush1.msra.mxu0 0.0
    %5349 = vmatprep.subr.mxu0 0.0
    %5350 = vmatpush1.msra.mxu0 0.0
    %5351 = vmatprep.subr.mxu0 0.0
    %5352 = vmatpush1.msra.mxu0 0.0
    %5353 = vmatprep.subr.mxu0 0.0
    %5354 = vmatpush1.msra.mxu0 0.0
    %5355 = vmatprep.subr.mxu0 0.0
    %5356 = vmatpush1.msra.mxu0 0.0
    %5357 = vmatprep.mubr.f32.mxu0 0.0
    %v5358 = vand.u32 %v4993, 4294901760
    %v5359 = vsub.f32 %v4993, %v5358
    %v5360 = vand.u32 %v5359, 4294901760
    %5361 = vmatmul.mubr.f32.gmra.mrb[0].mxu0 %v5360
    %v5362 = vpop.f32.mrb[0].mxu0
    %v5363 = vadd.f32 %v5277, %v5362
    %v5364 = vpop.f32.mrb[0].mxu0
    %5365 = vmatprep.mubr.f32.mxu0 0.0
    %v5366 = vand.u32 %v4996, 4294901760
    %v5367 = vsub.f32 %v4996, %v5366
    %v5368 = vand.u32 %v5367, 4294901760
    %5369 = vmatmul.mubr.f32.gmra.mrb[0].mxu0 %v5368
    %v5370 = vpop.f32.mrb[0].mxu0
    %v5371 = vadd.f32 %v5284, %v5370
    %v5372 = vpop.f32.mrb[0].mxu0
    %5373 = vdwg.mxu0
    %5374 = vmatprep.subr.mxu0 0.0
    %v5375 = vand.u32 %v4439, 4294901760
    %v5376 = vsub.f32 %v4439, %v5375
    %v5377 = vand.u32 %v5376, 4294901760
    %5378 = vmatpush1.msra.mxu0 %v5377
    %5379 = vmatprep.subr.mxu0 0.0
    %v5380 = vand.u32 %v4445, 4294901760
    %v5381 = vsub.f32 %v4445, %v5380
    %v5382 = vand.u32 %v5381, 4294901760
    %5383 = vmatpush1.msra.mxu0 %v5382
    %5384 = vmatprep.subr.mxu0 0.0
    %v5385 = vand.u32 %v3912, 4294901760
    %v5386 = vsub.f32 %v3912, %v5385
    %v5387 = vand.u32 %v5386, 4294901760
    %5388 = vmatpush1.msra.mxu0 %v5387
    %5389 = vmatprep.subr.mxu0 0.0
    %v5390 = vand.u32 %v3913, 4294901760
    %v5391 = vsub.f32 %v3913, %v5390
    %v5392 = vand.u32 %v5391, 4294901760
    %5393 = vmatpush1.msra.mxu0 %v5392
    %5394 = vmatprep.subr.mxu0 0.0
    %v5395 = vand.u32 %v4967, 4294901760
    %v5396 = vsub.f32 %v4967, %v5395
    %v5397 = vand.u32 %v5396, 4294901760
    %5398 = vmatpush1.msra.mxu0 %v5397
    %5399 = vmatprep.subr.mxu0 0.0
    %v5400 = vand.u32 %v4973, 4294901760
    %v5401 = vsub.f32 %v4973, %v5400
    %v5402 = vand.u32 %v5401, 4294901760
    %5403 = vmatpush1.msra.mxu0 %v5402
    %5404 = vmatprep.subr.mxu0 0.0
    %5405 = vmatpush1.msra.mxu0 0.0
    %5406 = vmatprep.subr.mxu0 0.0
    %5407 = vmatpush1.msra.mxu0 0.0
    %5408 = vmatprep.subr.mxu0 0.0
    %5409 = vmatpush1.msra.mxu0 0.0
    %5410 = vmatprep.subr.mxu0 0.0
    %5411 = vmatpush1.msra.mxu0 0.0
    %5412 = vmatprep.subr.mxu0 0.0
    %5413 = vmatpush1.msra.mxu0 0.0
    %5414 = vmatprep.subr.mxu0 0.0
    %5415 = vmatpush1.msra.mxu0 0.0
    %5416 = vmatprep.subr.mxu0 0.0
    %5417 = vmatpush1.msra.mxu0 0.0
    %5418 = vmatprep.subr.mxu0 0.0
    %5419 = vmatpush1.msra.mxu0 0.0
    %5420 = vmatprep.subr.mxu0 0.0
    %5421 = vmatpush1.msra.mxu0 0.0
    %5422 = vmatprep.subr.mxu0 0.0
    %5423 = vmatpush1.msra.mxu0 0.0
    %5424 = vmatprep.subr.mxu0 0.0
    %5425 = vmatpush1.msra.mxu0 0.0
    %5426 = vmatprep.subr.mxu0 0.0
    %5427 = vmatpush1.msra.mxu0 0.0
    %5428 = vmatprep.subr.mxu0 0.0
    %5429 = vmatpush1.msra.mxu0 0.0
    %5430 = vmatprep.subr.mxu0 0.0
    %5431 = vmatpush1.msra.mxu0 0.0
    %5432 = vmatprep.subr.mxu0 0.0
    %5433 = vmatpush1.msra.mxu0 0.0
    %5434 = vmatprep.subr.mxu0 0.0
    %5435 = vmatpush1.msra.mxu0 0.0
    %5436 = vmatprep.subr.mxu0 0.0
    %5437 = vmatpush1.msra.mxu0 0.0
    %5438 = vmatprep.subr.mxu0 0.0
    %5439 = vmatpush1.msra.mxu0 0.0
    %5440 = vmatprep.subr.mxu0 0.0
    %5441 = vmatpush1.msra.mxu0 0.0
    %5442 = vmatprep.subr.mxu0 0.0
    %5443 = vmatpush1.msra.mxu0 0.0
    %5444 = vmatprep.subr.mxu0 0.0
    %5445 = vmatpush1.msra.mxu0 0.0
    %5446 = vmatprep.subr.mxu0 0.0
    %5447 = vmatpush1.msra.mxu0 0.0
    %5448 = vmatprep.subr.mxu0 0.0
    %5449 = vmatpush1.msra.mxu0 0.0
    %5450 = vmatprep.subr.mxu0 0.0
    %5451 = vmatpush1.msra.mxu0 0.0
    %5452 = vmatprep.subr.mxu0 0.0
    %5453 = vmatpush1.msra.mxu0 0.0
    %5454 = vmatprep.subr.mxu0 0.0
    %5455 = vmatpush1.msra.mxu0 0.0
    %5456 = vmatprep.mubr.f32.mxu0 0.0
    %v5457 = vand.u32 %v4993, 4294901760
    %5458 = vmatmul.mubr.f32.gmra.mrb[0].mxu0 %v5457
    %v5459 = vpop.f32.mrb[0].mxu0
    %v5460 = vadd.f32 %v5363, %v5459
    %v5461 = vpop.f32.mrb[0].mxu0
    %5462 = vmatprep.mubr.f32.mxu0 0.0
    %v5463 = vand.u32 %v4996, 4294901760
    %5464 = vmatmul.mubr.f32.gmra.mrb[0].mxu0 %v5463
    %v5465 = vpop.f32.mrb[0].mxu0
    %v5466 = vadd.f32 %v5371, %v5465
    %v5467 = vpop.f32.mrb[0].mxu0
    %5468 = vdwg.mxu0
    %5469 = vmatprep.subr.mxu0 0.0
    %v5470 = vand.u32 %v4439, 4294901760
    %5471 = vmatpush1.msra.mxu0 %v5470
    %5472 = vmatprep.subr.mxu0 0.0
    %v5473 = vand.u32 %v4445, 4294901760
    %5474 = vmatpush1.msra.mxu0 %v5473
    %5475 = vmatprep.subr.mxu0 0.0
    %v5476 = vand.u32 %v3912, 4294901760
    %5477 = vmatpush1.msra.mxu0 %v5476
    %5478 = vmatprep.subr.mxu0 0.0
    %v5479 = vand.u32 %v3913, 4294901760
    %5480 = vmatpush1.msra.mxu0 %v5479
    %5481 = vmatprep.subr.mxu0 0.0
    %v5482 = vand.u32 %v4967, 4294901760
    %5483 = vmatpush1.msra.mxu0 %v5482
    %5484 = vmatprep.subr.mxu0 0.0
    %v5485 = vand.u32 %v4973, 4294901760
    %5486 = vmatpush1.msra.mxu0 %v5485
    %5487 = vmatprep.subr.mxu0 0.0
    %5488 = vmatpush1.msra.mxu0 0.0
    %5489 = vmatprep.subr.mxu0 0.0
    %5490 = vmatpush1.msra.mxu0 0.0
    %5491 = vmatprep.subr.mxu0 0.0
    %5492 = vmatpush1.msra.mxu0 0.0
    %5493 = vmatprep.subr.mxu0 0.0
    %5494 = vmatpush1.msra.mxu0 0.0
    %5495 = vmatprep.subr.mxu0 0.0
    %5496 = vmatpush1.msra.mxu0 0.0
    %5497 = vmatprep.subr.mxu0 0.0
    %5498 = vmatpush1.msra.mxu0 0.0
    %5499 = vmatprep.subr.mxu0 0.0
    %5500 = vmatpush1.msra.mxu0 0.0
    %5501 = vmatprep.subr.mxu0 0.0
    %5502 = vmatpush1.msra.mxu0 0.0
    %5503 = vmatprep.subr.mxu0 0.0
    %5504 = vmatpush1.msra.mxu0 0.0
    %5505 = vmatprep.subr.mxu0 0.0
    %5506 = vmatpush1.msra.mxu0 0.0
    %5507 = vmatprep.subr.mxu0 0.0
    %5508 = vmatpush1.msra.mxu0 0.0
    %5509 = vmatprep.subr.mxu0 0.0
    %5510 = vmatpush1.msra.mxu0 0.0
    %5511 = vmatprep.subr.mxu0 0.0
    %5512 = vmatpush1.msra.mxu0 0.0
    %5513 = vmatprep.subr.mxu0 0.0
    %5514 = vmatpush1.msra.mxu0 0.0
    %5515 = vmatprep.subr.mxu0 0.0
    %5516 = vmatpush1.msra.mxu0 0.0
    %5517 = vmatprep.subr.mxu0 0.0
    %5518 = vmatpush1.msra.mxu0 0.0
    %5519 = vmatprep.subr.mxu0 0.0
    %5520 = vmatpush1.msra.mxu0 0.0
    %5521 = vmatprep.subr.mxu0 0.0
    %5522 = vmatpush1.msra.mxu0 0.0
    %5523 = vmatprep.subr.mxu0 0.0
    %5524 = vmatpush1.msra.mxu0 0.0
    %5525 = vmatprep.subr.mxu0 0.0
    %5526 = vmatpush1.msra.mxu0 0.0
    %5527 = vmatprep.subr.mxu0 0.0
    %5528 = vmatpush1.msra.mxu0 0.0
    %5529 = vmatprep.subr.mxu0 0.0
    %5530 = vmatpush1.msra.mxu0 0.0
    %5531 = vmatprep.subr.mxu0 0.0
    %5532 = vmatpush1.msra.mxu0 0.0
    %5533 = vmatprep.subr.mxu0 0.0
    %5534 = vmatpush1.msra.mxu0 0.0
    %5535 = vmatprep.subr.mxu0 0.0
    %5536 = vmatpush1.msra.mxu0 0.0
    %5537 = vmatprep.subr.mxu0 0.0
    %5538 = vmatpush1.msra.mxu0 0.0
    %5539 = vmatprep.mubr.f32.mxu0 0.0
    %v5540 = vand.u32 %v4993, 4294901760
    %5541 = vmatmul.mubr.f32.gmra.mrb[0].mxu0 %v5540
    %v5542 = vpop.f32.mrb[0].mxu0
    %v5543 = vadd.f32 %v5460, %v5542
    %v5544 = vpop.f32.mrb[0].mxu0
    %5545 = vmatprep.mubr.f32.mxu0 0.0
    %v5546 = vand.u32 %v4996, 4294901760
    %5547 = vmatmul.mubr.f32.gmra.mrb[0].mxu0 %v5546
    %v5548 = vpop.f32.mrb[0].mxu0
    %v5549 = vadd.f32 %v5466, %v5548
    %v5550 = vpop.f32.mrb[0].mxu0
    %5551 = vdwg.mxu0
    %v5552 = vmax.f32 %v5543, 0.0
    %v5553 = vmax.f32 %v5549, 0.0
    %s5554 = scalar_lea.vmem %s1, 64
    %v5555 = vld [vmem:[%s5554] sm:$0xff]
    %v5556 = vld [vmem:[%s5554 + $0x8] sm:$0xff]
    %s5557 = scalar_lea.vmem %s3, 176
    %v5558 = vld [vmem:[%s5557] sm:$0xff]
    %v5559 = vld [vmem:[%s5557 + $0x8] sm:$0xff]
    %5561 = vset.pattern.permute.xlu0 0
    %5562 = vperm.xlu0 %5561, %v5558
    %v5563 = vpop.permute.xlu0 %5562
    %5566 = vset.pattern.permute.xlu0 0
    %5567 = vperm.xlu0 %5566, %v5559
    %v5568 = vpop.permute.xlu0 %5567
    %v5571 = vsel %vm37, %v5555, 0
    %v5574 = vsel %vm37, %v5556, 0
    %5576 = vmatprep.subr.mxu0 0.0
    %v5577 = vand.u32 %v5552, 4294901760
    %5578 = vmatpush1.msra.mxu0 %v5577
    %5579 = vmatprep.subr.mxu0 0.0
    %v5580 = vand.u32 %v5553, 4294901760
    %5581 = vmatpush1.msra.mxu0 %v5580
    %5582 = vmatprep.subr.mxu0 0.0
    %5583 = vmatpush1.msra.mxu0 0.0
    %5584 = vmatprep.subr.mxu0 0.0
    %5585 = vmatpush1.msra.mxu0 0.0
    %5586 = vmatprep.subr.mxu0 0.0
    %5587 = vmatpush1.msra.mxu0 0.0
    %5588 = vmatprep.subr.mxu0 0.0
    %5589 = vmatpush1.msra.mxu0 0.0
    %5590 = vmatprep.subr.mxu0 0.0
    %5591 = vmatpush1.msra.mxu0 0.0
    %5592 = vmatprep.subr.mxu0 0.0
    %5593 = vmatpush1.msra.mxu0 0.0
    %5594 = vmatprep.subr.mxu0 0.0
    %5595 = vmatpush1.msra.mxu0 0.0
    %5596 = vmatprep.subr.mxu0 0.0
    %5597 = vmatpush1.msra.mxu0 0.0
    %5598 = vmatprep.subr.mxu0 0.0
    %5599 = vmatpush1.msra.mxu0 0.0
    %5600 = vmatprep.subr.mxu0 0.0
    %5601 = vmatpush1.msra.mxu0 0.0
    %5602 = vmatprep.subr.mxu0 0.0
    %5603 = vmatpush1.msra.mxu0 0.0
    %5604 = vmatprep.subr.mxu0 0.0
    %5605 = vmatpush1.msra.mxu0 0.0
    %5606 = vmatprep.subr.mxu0 0.0
    %5607 = vmatpush1.msra.mxu0 0.0
    %5608 = vmatprep.subr.mxu0 0.0
    %5609 = vmatpush1.msra.mxu0 0.0
    %5610 = vmatprep.subr.mxu0 0.0
    %5611 = vmatpush1.msra.mxu0 0.0
    %5612 = vmatprep.subr.mxu0 0.0
    %5613 = vmatpush1.msra.mxu0 0.0
    %5614 = vmatprep.subr.mxu0 0.0
    %5615 = vmatpush1.msra.mxu0 0.0
    %5616 = vmatprep.subr.mxu0 0.0
    %5617 = vmatpush1.msra.mxu0 0.0
    %5618 = vmatprep.subr.mxu0 0.0
    %5619 = vmatpush1.msra.mxu0 0.0
    %5620 = vmatprep.subr.mxu0 0.0
    %5621 = vmatpush1.msra.mxu0 0.0
    %5622 = vmatprep.subr.mxu0 0.0
    %5623 = vmatpush1.msra.mxu0 0.0
    %5624 = vmatprep.subr.mxu0 0.0
    %5625 = vmatpush1.msra.mxu0 0.0
    %5626 = vmatprep.subr.mxu0 0.0
    %5627 = vmatpush1.msra.mxu0 0.0
    %5628 = vmatprep.subr.mxu0 0.0
    %5629 = vmatpush1.msra.mxu0 0.0
    %5630 = vmatprep.subr.mxu0 0.0
    %5631 = vmatpush1.msra.mxu0 0.0
    %5632 = vmatprep.subr.mxu0 0.0
    %5633 = vmatpush1.msra.mxu0 0.0
    %5634 = vmatprep.subr.mxu0 0.0
    %5635 = vmatpush1.msra.mxu0 0.0
    %5636 = vmatprep.subr.mxu0 0.0
    %5637 = vmatpush1.msra.mxu0 0.0
    %5638 = vmatprep.subr.mxu0 0.0
    %5639 = vmatpush1.msra.mxu0 0.0
    %5640 = vmatprep.subr.mxu0 0.0
    %5641 = vmatpush1.msra.mxu0 0.0
    %5642 = vmatprep.mubr.f32.mxu0 0.0
    %v5643 = vand.u32 %v5571, 4294901760
    %v5644 = vsub.f32 %v5571, %v5643
    %v5645 = vand.u32 %v5644, 4294901760
    %v5646 = vsub.f32 %v5644, %v5645
    %v5647 = vand.u32 %v5646, 4294901760
    %5648 = vmatmul.mubr.f32.gmra.mrb[0].mxu0 %v5647
    %v5649 = vpop.f32.mrb[0].mxu0
    %v5650 = vadd.f32 %v5563, %v5649
    %v5651 = vpop.f32.mrb[0].mxu0
    %5652 = vmatprep.mubr.f32.mxu0 0.0
    %v5653 = vand.u32 %v5574, 4294901760
    %v5654 = vsub.f32 %v5574, %v5653
    %v5655 = vand.u32 %v5654, 4294901760
    %v5656 = vsub.f32 %v5654, %v5655
    %v5657 = vand.u32 %v5656, 4294901760
    %5658 = vmatmul.mubr.f32.gmra.mrb[0].mxu0 %v5657
    %v5659 = vpop.f32.mrb[0].mxu0
    %v5660 = vadd.f32 %v5568, %v5659
    %v5661 = vpop.f32.mrb[0].mxu0
    %5662 = vdwg.mxu0
    %5663 = vmatprep.subr.mxu0 0.0
    %v5664 = vand.u32 %v5552, 4294901760
    %v5665 = vsub.f32 %v5552, %v5664
    %v5666 = vand.u32 %v5665, 4294901760
    %v5667 = vsub.f32 %v5665, %v5666
    %v5668 = vand.u32 %v5667, 4294901760
    %5669 = vmatpush1.msra.mxu0 %v5668
    %5670 = vmatprep.subr.mxu0 0.0
    %v5671 = vand.u32 %v5553, 4294901760
    %v5672 = vsub.f32 %v5553, %v5671
    %v5673 = vand.u32 %v5672, 4294901760
    %v5674 = vsub.f32 %v5672, %v5673
    %v5675 = vand.u32 %v5674, 4294901760
    %5676 = vmatpush1.msra.mxu0 %v5675
    %5677 = vmatprep.subr.mxu0 0.0
    %5678 = vmatpush1.msra.mxu0 0.0
    %5679 = vmatprep.subr.mxu0 0.0
    %5680 = vmatpush1.msra.mxu0 0.0
    %5681 = vmatprep.subr.mxu0 0.0
    %5682 = vmatpush1.msra.mxu0 0.0
    %5683 = vmatprep.subr.mxu0 0.0
    %5684 = vmatpush1.msra.mxu0 0.0
    %5685 = vmatprep.subr.mxu0 0.0
    %5686 = vmatpush1.msra.mxu0 0.0
    %5687 = vmatprep.subr.mxu0 0.0
    %5688 = vmatpush1.msra.mxu0 0.0
    %5689 = vmatprep.subr.mxu0 0.0
    %5690 = vmatpush1.msra.mxu0 0.0
    %5691 = vmatprep.subr.mxu0 0.0
    %5692 = vmatpush1.msra.mxu0 0.0
    %5693 = vmatprep.subr.mxu0 0.0
    %5694 = vmatpush1.msra.mxu0 0.0
    %5695 = vmatprep.subr.mxu0 0.0
    %5696 = vmatpush1.msra.mxu0 0.0
    %5697 = vmatprep.subr.mxu0 0.0
    %5698 = vmatpush1.msra.mxu0 0.0
    %5699 = vmatprep.subr.mxu0 0.0
    %5700 = vmatpush1.msra.mxu0 0.0
    %5701 = vmatprep.subr.mxu0 0.0
    %5702 = vmatpush1.msra.mxu0 0.0
    %5703 = vmatprep.subr.mxu0 0.0
    %5704 = vmatpush1.msra.mxu0 0.0
    %5705 = vmatprep.subr.mxu0 0.0
    %5706 = vmatpush1.msra.mxu0 0.0
    %5707 = vmatprep.subr.mxu0 0.0
    %5708 = vmatpush1.msra.mxu0 0.0
    %5709 = vmatprep.subr.mxu0 0.0
    %5710 = vmatpush1.msra.mxu0 0.0
    %5711 = vmatprep.subr.mxu0 0.0
    %5712 = vmatpush1.msra.mxu0 0.0
    %5713 = vmatprep.subr.mxu0 0.0
    %5714 = vmatpush1.msra.mxu0 0.0
    %5715 = vmatprep.subr.mxu0 0.0
    %5716 = vmatpush1.msra.mxu0 0.0
    %5717 = vmatprep.subr.mxu0 0.0
    %5718 = vmatpush1.msra.mxu0 0.0
    %5719 = vmatprep.subr.mxu0 0.0
    %5720 = vmatpush1.msra.mxu0 0.0
    %5721 = vmatprep.subr.mxu0 0.0
    %5722 = vmatpush1.msra.mxu0 0.0
    %5723 = vmatprep.subr.mxu0 0.0
    %5724 = vmatpush1.msra.mxu0 0.0
    %5725 = vmatprep.subr.mxu0 0.0
    %5726 = vmatpush1.msra.mxu0 0.0
    %5727 = vmatprep.subr.mxu0 0.0
    %5728 = vmatpush1.msra.mxu0 0.0
    %5729 = vmatprep.subr.mxu0 0.0
    %5730 = vmatpush1.msra.mxu0 0.0
    %5731 = vmatprep.subr.mxu0 0.0
    %5732 = vmatpush1.msra.mxu0 0.0
    %5733 = vmatprep.subr.mxu0 0.0
    %5734 = vmatpush1.msra.mxu0 0.0
    %5735 = vmatprep.subr.mxu0 0.0
    %5736 = vmatpush1.msra.mxu0 0.0
    %5737 = vmatprep.mubr.f32.mxu0 0.0
    %v5738 = vand.u32 %v5571, 4294901760
    %5739 = vmatmul.mubr.f32.gmra.mrb[0].mxu0 %v5738
    %v5740 = vpop.f32.mrb[0].mxu0
    %v5741 = vadd.f32 %v5650, %v5740
    %v5742 = vpop.f32.mrb[0].mxu0
    %5743 = vmatprep.mubr.f32.mxu0 0.0
    %v5744 = vand.u32 %v5574, 4294901760
    %5745 = vmatmul.mubr.f32.gmra.mrb[0].mxu0 %v5744
    %v5746 = vpop.f32.mrb[0].mxu0
    %v5747 = vadd.f32 %v5660, %v5746
    %v5748 = vpop.f32.mrb[0].mxu0
    %5749 = vdwg.mxu0
    %5750 = vmatprep.subr.mxu0 0.0
    %v5751 = vand.u32 %v5552, 4294901760
    %v5752 = vsub.f32 %v5552, %v5751
    %5753 = vmatpush1.msra.mxu0 %v5752
    %5754 = vmatprep.subr.mxu0 0.0
    %v5755 = vand.u32 %v5553, 4294901760
    %v5756 = vsub.f32 %v5553, %v5755
    %5757 = vmatpush1.msra.mxu0 %v5756
    %5758 = vmatprep.subr.mxu0 0.0
    %5759 = vmatpush1.msra.mxu0 0.0
    %5760 = vmatprep.subr.mxu0 0.0
    %5761 = vmatpush1.msra.mxu0 0.0
    %5762 = vmatprep.subr.mxu0 0.0
    %5763 = vmatpush1.msra.mxu0 0.0
    %5764 = vmatprep.subr.mxu0 0.0
    %5765 = vmatpush1.msra.mxu0 0.0
    %5766 = vmatprep.subr.mxu0 0.0
    %5767 = vmatpush1.msra.mxu0 0.0
    %5768 = vmatprep.subr.mxu0 0.0
    %5769 = vmatpush1.msra.mxu0 0.0
    %5770 = vmatprep.subr.mxu0 0.0
    %5771 = vmatpush1.msra.mxu0 0.0
    %5772 = vmatprep.subr.mxu0 0.0
    %5773 = vmatpush1.msra.mxu0 0.0
    %5774 = vmatprep.subr.mxu0 0.0
    %5775 = vmatpush1.msra.mxu0 0.0
    %5776 = vmatprep.subr.mxu0 0.0
    %5777 = vmatpush1.msra.mxu0 0.0
    %5778 = vmatprep.subr.mxu0 0.0
    %5779 = vmatpush1.msra.mxu0 0.0
    %5780 = vmatprep.subr.mxu0 0.0
    %5781 = vmatpush1.msra.mxu0 0.0
    %5782 = vmatprep.subr.mxu0 0.0
    %5783 = vmatpush1.msra.mxu0 0.0
    %5784 = vmatprep.subr.mxu0 0.0
    %5785 = vmatpush1.msra.mxu0 0.0
    %5786 = vmatprep.subr.mxu0 0.0
    %5787 = vmatpush1.msra.mxu0 0.0
    %5788 = vmatprep.subr.mxu0 0.0
    %5789 = vmatpush1.msra.mxu0 0.0
    %5790 = vmatprep.subr.mxu0 0.0
    %5791 = vmatpush1.msra.mxu0 0.0
    %5792 = vmatprep.subr.mxu0 0.0
    %5793 = vmatpush1.msra.mxu0 0.0
    %5794 = vmatprep.subr.mxu0 0.0
    %5795 = vmatpush1.msra.mxu0 0.0
    %5796 = vmatprep.subr.mxu0 0.0
    %5797 = vmatpush1.msra.mxu0 0.0
    %5798 = vmatprep.subr.mxu0 0.0
    %5799 = vmatpush1.msra.mxu0 0.0
    %5800 = vmatprep.subr.mxu0 0.0
    %5801 = vmatpush1.msra.mxu0 0.0
    %5802 = vmatprep.subr.mxu0 0.0
    %5803 = vmatpush1.msra.mxu0 0.0
    %5804 = vmatprep.subr.mxu0 0.0
    %5805 = vmatpush1.msra.mxu0 0.0
    %5806 = vmatprep.subr.mxu0 0.0
    %5807 = vmatpush1.msra.mxu0 0.0
    %5808 = vmatprep.subr.mxu0 0.0
    %5809 = vmatpush1.msra.mxu0 0.0
    %5810 = vmatprep.subr.mxu0 0.0
    %5811 = vmatpush1.msra.mxu0 0.0
    %5812 = vmatprep.subr.mxu0 0.0
    %5813 = vmatpush1.msra.mxu0 0.0
    %5814 = vmatprep.subr.mxu0 0.0
    %5815 = vmatpush1.msra.mxu0 0.0
    %5816 = vmatprep.subr.mxu0 0.0
    %5817 = vmatpush1.msra.mxu0 0.0
    %5818 = vmatprep.mubr.f32.mxu0 0.0
    %v5819 = vand.u32 %v5571, 4294901760
    %v5820 = vsub.f32 %v5571, %v5819
    %5821 = vmatmul.mubr.f32.gmra.mrb[0].mxu0 %v5820
    %v5822 = vpop.f32.mrb[0].mxu0
    %v5823 = vadd.f32 %v5741, %v5822
    %v5824 = vpop.f32.mrb[0].mxu0
    %5825 = vmatprep.mubr.f32.mxu0 0.0
    %v5826 = vand.u32 %v5574, 4294901760
    %v5827 = vsub.f32 %v5574, %v5826
    %5828 = vmatmul.mubr.f32.gmra.mrb[0].mxu0 %v5827
    %v5829 = vpop.f32.mrb[0].mxu0
    %v5830 = vadd.f32 %v5747, %v5829
    %v5831 = vpop.f32.mrb[0].mxu0
    %5832 = vdwg.mxu0
    %5833 = vmatprep.subr.mxu0 0.0
    %v5834 = vand.u32 %v5552, 4294901760
    %5835 = vmatpush1.msra.mxu0 %v5834
    %5836 = vmatprep.subr.mxu0 0.0
    %v5837 = vand.u32 %v5553, 4294901760
    %5838 = vmatpush1.msra.mxu0 %v5837
    %5839 = vmatprep.subr.mxu0 0.0
    %5840 = vmatpush1.msra.mxu0 0.0
    %5841 = vmatprep.subr.mxu0 0.0
    %5842 = vmatpush1.msra.mxu0 0.0
    %5843 = vmatprep.subr.mxu0 0.0
    %5844 = vmatpush1.msra.mxu0 0.0
    %5845 = vmatprep.subr.mxu0 0.0
    %5846 = vmatpush1.msra.mxu0 0.0
    %5847 = vmatprep.subr.mxu0 0.0
    %5848 = vmatpush1.msra.mxu0 0.0
    %5849 = vmatprep.subr.mxu0 0.0
    %5850 = vmatpush1.msra.mxu0 0.0
    %5851 = vmatprep.subr.mxu0 0.0
    %5852 = vmatpush1.msra.mxu0 0.0
    %5853 = vmatprep.subr.mxu0 0.0
    %5854 = vmatpush1.msra.mxu0 0.0
    %5855 = vmatprep.subr.mxu0 0.0
    %5856 = vmatpush1.msra.mxu0 0.0
    %5857 = vmatprep.subr.mxu0 0.0
    %5858 = vmatpush1.msra.mxu0 0.0
    %5859 = vmatprep.subr.mxu0 0.0
    %5860 = vmatpush1.msra.mxu0 0.0
    %5861 = vmatprep.subr.mxu0 0.0
    %5862 = vmatpush1.msra.mxu0 0.0
    %5863 = vmatprep.subr.mxu0 0.0
    %5864 = vmatpush1.msra.mxu0 0.0
    %5865 = vmatprep.subr.mxu0 0.0
    %5866 = vmatpush1.msra.mxu0 0.0
    %5867 = vmatprep.subr.mxu0 0.0
    %5868 = vmatpush1.msra.mxu0 0.0
    %5869 = vmatprep.subr.mxu0 0.0
    %5870 = vmatpush1.msra.mxu0 0.0
    %5871 = vmatprep.subr.mxu0 0.0
    %5872 = vmatpush1.msra.mxu0 0.0
    %5873 = vmatprep.subr.mxu0 0.0
    %5874 = vmatpush1.msra.mxu0 0.0
    %5875 = vmatprep.subr.mxu0 0.0
    %5876 = vmatpush1.msra.mxu0 0.0
    %5877 = vmatprep.subr.mxu0 0.0
    %5878 = vmatpush1.msra.mxu0 0.0
    %5879 = vmatprep.subr.mxu0 0.0
    %5880 = vmatpush1.msra.mxu0 0.0
    %5881 = vmatprep.subr.mxu0 0.0
    %5882 = vmatpush1.msra.mxu0 0.0
    %5883 = vmatprep.subr.mxu0 0.0
    %5884 = vmatpush1.msra.mxu0 0.0
    %5885 = vmatprep.subr.mxu0 0.0
    %5886 = vmatpush1.msra.mxu0 0.0
    %5887 = vmatprep.subr.mxu0 0.0
    %5888 = vmatpush1.msra.mxu0 0.0
    %5889 = vmatprep.subr.mxu0 0.0
    %5890 = vmatpush1.msra.mxu0 0.0
    %5891 = vmatprep.subr.mxu0 0.0
    %5892 = vmatpush1.msra.mxu0 0.0
    %5893 = vmatprep.subr.mxu0 0.0
    %5894 = vmatpush1.msra.mxu0 0.0
    %5895 = vmatprep.subr.mxu0 0.0
    %5896 = vmatpush1.msra.mxu0 0.0
    %5897 = vmatprep.subr.mxu0 0.0
    %5898 = vmatpush1.msra.mxu0 0.0
    %5899 = vmatprep.mubr.f32.mxu0 0.0
    %v5900 = vand.u32 %v5571, 4294901760
    %v5901 = vsub.f32 %v5571, %v5900
    %v5902 = vand.u32 %v5901, 4294901760
    %5903 = vmatmul.mubr.f32.gmra.mrb[0].mxu0 %v5902
    %v5904 = vpop.f32.mrb[0].mxu0
    %v5905 = vadd.f32 %v5823, %v5904
    %v5906 = vpop.f32.mrb[0].mxu0
    %5907 = vmatprep.mubr.f32.mxu0 0.0
    %v5908 = vand.u32 %v5574, 4294901760
    %v5909 = vsub.f32 %v5574, %v5908
    %v5910 = vand.u32 %v5909, 4294901760
    %5911 = vmatmul.mubr.f32.gmra.mrb[0].mxu0 %v5910
    %v5912 = vpop.f32.mrb[0].mxu0
    %v5913 = vadd.f32 %v5830, %v5912
    %v5914 = vpop.f32.mrb[0].mxu0
    %5915 = vdwg.mxu0
    %5916 = vmatprep.subr.mxu0 0.0
    %v5917 = vand.u32 %v5552, 4294901760
    %v5918 = vsub.f32 %v5552, %v5917
    %v5919 = vand.u32 %v5918, 4294901760
    %5920 = vmatpush1.msra.mxu0 %v5919
    %5921 = vmatprep.subr.mxu0 0.0
    %v5922 = vand.u32 %v5553, 4294901760
    %v5923 = vsub.f32 %v5553, %v5922
    %v5924 = vand.u32 %v5923, 4294901760
    %5925 = vmatpush1.msra.mxu0 %v5924
    %5926 = vmatprep.subr.mxu0 0.0
    %5927 = vmatpush1.msra.mxu0 0.0
    %5928 = vmatprep.subr.mxu0 0.0
    %5929 = vmatpush1.msra.mxu0 0.0
    %5930 = vmatprep.subr.mxu0 0.0
    %5931 = vmatpush1.msra.mxu0 0.0
    %5932 = vmatprep.subr.mxu0 0.0
    %5933 = vmatpush1.msra.mxu0 0.0
    %5934 = vmatprep.subr.mxu0 0.0
    %5935 = vmatpush1.msra.mxu0 0.0
    %5936 = vmatprep.subr.mxu0 0.0
    %5937 = vmatpush1.msra.mxu0 0.0
    %5938 = vmatprep.subr.mxu0 0.0
    %5939 = vmatpush1.msra.mxu0 0.0
    %5940 = vmatprep.subr.mxu0 0.0
    %5941 = vmatpush1.msra.mxu0 0.0
    %5942 = vmatprep.subr.mxu0 0.0
    %5943 = vmatpush1.msra.mxu0 0.0
    %5944 = vmatprep.subr.mxu0 0.0
    %5945 = vmatpush1.msra.mxu0 0.0
    %5946 = vmatprep.subr.mxu0 0.0
    %5947 = vmatpush1.msra.mxu0 0.0
    %5948 = vmatprep.subr.mxu0 0.0
    %5949 = vmatpush1.msra.mxu0 0.0
    %5950 = vmatprep.subr.mxu0 0.0
    %5951 = vmatpush1.msra.mxu0 0.0
    %5952 = vmatprep.subr.mxu0 0.0
    %5953 = vmatpush1.msra.mxu0 0.0
    %5954 = vmatprep.subr.mxu0 0.0
    %5955 = vmatpush1.msra.mxu0 0.0
    %5956 = vmatprep.subr.mxu0 0.0
    %5957 = vmatpush1.msra.mxu0 0.0
    %5958 = vmatprep.subr.mxu0 0.0
    %5959 = vmatpush1.msra.mxu0 0.0
    %5960 = vmatprep.subr.mxu0 0.0
    %5961 = vmatpush1.msra.mxu0 0.0
    %5962 = vmatprep.subr.mxu0 0.0
    %5963 = vmatpush1.msra.mxu0 0.0
    %5964 = vmatprep.subr.mxu0 0.0
    %5965 = vmatpush1.msra.mxu0 0.0
    %5966 = vmatprep.subr.mxu0 0.0
    %5967 = vmatpush1.msra.mxu0 0.0
    %5968 = vmatprep.subr.mxu0 0.0
    %5969 = vmatpush1.msra.mxu0 0.0
    %5970 = vmatprep.subr.mxu0 0.0
    %5971 = vmatpush1.msra.mxu0 0.0
    %5972 = vmatprep.subr.mxu0 0.0
    %5973 = vmatpush1.msra.mxu0 0.0
    %5974 = vmatprep.subr.mxu0 0.0
    %5975 = vmatpush1.msra.mxu0 0.0
    %5976 = vmatprep.subr.mxu0 0.0
    %5977 = vmatpush1.msra.mxu0 0.0
    %5978 = vmatprep.subr.mxu0 0.0
    %5979 = vmatpush1.msra.mxu0 0.0
    %5980 = vmatprep.subr.mxu0 0.0
    %5981 = vmatpush1.msra.mxu0 0.0
    %5982 = vmatprep.subr.mxu0 0.0
    %5983 = vmatpush1.msra.mxu0 0.0
    %5984 = vmatprep.subr.mxu0 0.0
    %5985 = vmatpush1.msra.mxu0 0.0
    %5986 = vmatprep.mubr.f32.mxu0 0.0
    %v5987 = vand.u32 %v5571, 4294901760
    %5988 = vmatmul.mubr.f32.gmra.mrb[0].mxu0 %v5987
    %v5989 = vpop.f32.mrb[0].mxu0
    %v5990 = vadd.f32 %v5905, %v5989
    %v5991 = vpop.f32.mrb[0].mxu0
    %5992 = vmatprep.mubr.f32.mxu0 0.0
    %v5993 = vand.u32 %v5574, 4294901760
    %5994 = vmatmul.mubr.f32.gmra.mrb[0].mxu0 %v5993
    %v5995 = vpop.f32.mrb[0].mxu0
    %v5996 = vadd.f32 %v5913, %v5995
    %v5997 = vpop.f32.mrb[0].mxu0
    %5998 = vdwg.mxu0
    %5999 = vmatprep.subr.mxu0 0.0
    %v6000 = vand.u32 %v5552, 4294901760
    %6001 = vmatpush1.msra.mxu0 %v6000
    %6002 = vmatprep.subr.mxu0 0.0
    %v6003 = vand.u32 %v5553, 4294901760
    %6004 = vmatpush1.msra.mxu0 %v6003
    %6005 = vmatprep.subr.mxu0 0.0
    %6006 = vmatpush1.msra.mxu0 0.0
    %6007 = vmatprep.subr.mxu0 0.0
    %6008 = vmatpush1.msra.mxu0 0.0
    %6009 = vmatprep.subr.mxu0 0.0
    %6010 = vmatpush1.msra.mxu0 0.0
    %6011 = vmatprep.subr.mxu0 0.0
    %6012 = vmatpush1.msra.mxu0 0.0
    %6013 = vmatprep.subr.mxu0 0.0
    %6014 = vmatpush1.msra.mxu0 0.0
    %6015 = vmatprep.subr.mxu0 0.0
    %6016 = vmatpush1.msra.mxu0 0.0
    %6017 = vmatprep.subr.mxu0 0.0
    %6018 = vmatpush1.msra.mxu0 0.0
    %6019 = vmatprep.subr.mxu0 0.0
    %6020 = vmatpush1.msra.mxu0 0.0
    %6021 = vmatprep.subr.mxu0 0.0
    %6022 = vmatpush1.msra.mxu0 0.0
    %6023 = vmatprep.subr.mxu0 0.0
    %6024 = vmatpush1.msra.mxu0 0.0
    %6025 = vmatprep.subr.mxu0 0.0
    %6026 = vmatpush1.msra.mxu0 0.0
    %6027 = vmatprep.subr.mxu0 0.0
    %6028 = vmatpush1.msra.mxu0 0.0
    %6029 = vmatprep.subr.mxu0 0.0
    %6030 = vmatpush1.msra.mxu0 0.0
    %6031 = vmatprep.subr.mxu0 0.0
    %6032 = vmatpush1.msra.mxu0 0.0
    %6033 = vmatprep.subr.mxu0 0.0
    %6034 = vmatpush1.msra.mxu0 0.0
    %6035 = vmatprep.subr.mxu0 0.0
    %6036 = vmatpush1.msra.mxu0 0.0
    %6037 = vmatprep.subr.mxu0 0.0
    %6038 = vmatpush1.msra.mxu0 0.0
    %6039 = vmatprep.subr.mxu0 0.0
    %6040 = vmatpush1.msra.mxu0 0.0
    %6041 = vmatprep.subr.mxu0 0.0
    %6042 = vmatpush1.msra.mxu0 0.0
    %6043 = vmatprep.subr.mxu0 0.0
    %6044 = vmatpush1.msra.mxu0 0.0
    %6045 = vmatprep.subr.mxu0 0.0
    %6046 = vmatpush1.msra.mxu0 0.0
    %6047 = vmatprep.subr.mxu0 0.0
    %6048 = vmatpush1.msra.mxu0 0.0
    %6049 = vmatprep.subr.mxu0 0.0
    %6050 = vmatpush1.msra.mxu0 0.0
    %6051 = vmatprep.subr.mxu0 0.0
    %6052 = vmatpush1.msra.mxu0 0.0
    %6053 = vmatprep.subr.mxu0 0.0
    %6054 = vmatpush1.msra.mxu0 0.0
    %6055 = vmatprep.subr.mxu0 0.0
    %6056 = vmatpush1.msra.mxu0 0.0
    %6057 = vmatprep.subr.mxu0 0.0
    %6058 = vmatpush1.msra.mxu0 0.0
    %6059 = vmatprep.subr.mxu0 0.0
    %6060 = vmatpush1.msra.mxu0 0.0
    %6061 = vmatprep.subr.mxu0 0.0
    %6062 = vmatpush1.msra.mxu0 0.0
    %6063 = vmatprep.subr.mxu0 0.0
    %6064 = vmatpush1.msra.mxu0 0.0
    %6065 = vmatprep.mubr.f32.mxu0 0.0
    %v6066 = vand.u32 %v5571, 4294901760
    %6067 = vmatmul.mubr.f32.gmra.mrb[0].mxu0 %v6066
    %v6068 = vpop.f32.mrb[0].mxu0
    %v6069 = vadd.f32 %v5990, %v6068
    %v6070 = vpop.f32.mrb[0].mxu0
    %6071 = vmatprep.mubr.f32.mxu0 0.0
    %v6072 = vand.u32 %v5574, 4294901760
    %6073 = vmatmul.mubr.f32.gmra.mrb[0].mxu0 %v6072
    %v6074 = vpop.f32.mrb[0].mxu0
    %v6075 = vadd.f32 %v5996, %v6074
    %v6076 = vpop.f32.mrb[0].mxu0
    %6077 = vdwg.mxu0
    %v6078 = vsel %vm550, %v6069, 0.0
    %6079 = vadd.xlane.f32.xlu0 %v6078
    %v6080 = vpop.xlane.xlu0 %6079
    %v6081 = vsel %vm550, %v6075, 0.0
    %6082 = vadd.xlane.f32.xlu0 %v6081
    %v6083 = vpop.xlane.xlu0 %6082
    %v6084 = vmul.f32 %v6080, %v557
    %v6085 = vmul.f32 %v6083, %v557
    %v6086 = vsub.f32 %v6069, %v6084
    %v6087 = vsub.f32 %v6075, %v6085
    %v6088 = vmul.f32 %v6086, %v6086
    %v6089 = vmul.f32 %v6087, %v6087
    %v6090 = vsel %vm550, %v6088, 0.0
    %6091 = vadd.xlane.f32.xlu0 %v6090
    %v6092 = vpop.xlane.xlu0 %6091
    %v6093 = vsel %vm550, %v6089, 0.0
    %6094 = vadd.xlane.f32.xlu0 %v6093
    %v6095 = vpop.xlane.xlu0 %6094
    %v6096 = vmul.f32 %v6092, %v557
    %v6097 = vmul.f32 %v6095, %v557
    %v6098 = vadd.f32 %v6096, 1e-05
    %v6099 = vadd.f32 %v6097, 1e-05
    %v6100 = vrsqrt.pop %v6098
    %v6101 = vrsqrt.pop %v6099
    %s6102 = scalar_lea.vmem %s3, 192
    %v6103 = vld [vmem:[%s6102] sm:$0xff]
    %v6104 = vld [vmem:[%s6102 + $0x8] sm:$0xff]
    %v6105 = vmul.f32 %v6100, %v6103
    %v6106 = vmul.f32 %v6101, %v6104
    %6108 = vset.pattern.permute.xlu0 0
    %6109 = vperm.xlu0 %6108, %v6105
    %v6110 = vpop.permute.xlu0 %6109
    %6113 = vset.pattern.permute.xlu0 0
    %6114 = vperm.xlu0 %6113, %v6106
    %v6115 = vpop.permute.xlu0 %6114
    %v6117 = vmul.f32 %v6086, %v6110
    %v6118 = vmul.f32 %v6087, %v6115
    %s6119 = scalar_lea.vmem %s3, 208
    %v6120 = vld [vmem:[%s6119] sm:$0xff]
    %v6121 = vld [vmem:[%s6119 + $0x8] sm:$0xff]
    %6123 = vset.pattern.permute.xlu0 0
    %6124 = vperm.xlu0 %6123, %v6120
    %v6125 = vpop.permute.xlu0 %6124
    %6128 = vset.pattern.permute.xlu0 0
    %6129 = vperm.xlu0 %6128, %v6121
    %v6130 = vpop.permute.xlu0 %6129
    %v6132 = vadd.f32 %v6117, %v6125
    %v6133 = vadd.f32 %v6118, %v6130
    %v6134 = vmax.f32 %v6132, 0.0
    %v6135 = vmax.f32 %v6133, 0.0
    %s6136 = scalar_lea.vmem %s1, 80
    %v6137 = vld [vmem:[%s6136] sm:$0xff]
    %v6138 = vld [vmem:[%s6136 + $0x8] sm:$0xff]
    %s6139 = scalar_lea.vmem %s3, 224
    %v6140 = vld [vmem:[%s6139] sm:$0xff]
    %v6141 = vld [vmem:[%s6139 + $0x8] sm:$0xff]
    %6143 = vset.pattern.permute.xlu0 0
    %6144 = vperm.xlu0 %6143, %v6140
    %v6145 = vpop.permute.xlu0 %6144
    %6148 = vset.pattern.permute.xlu0 0
    %6149 = vperm.xlu0 %6148, %v6141
    %v6150 = vpop.permute.xlu0 %6149
    %v6153 = vsel %vm37, %v6137, 0
    %v6156 = vsel %vm37, %v6138, 0
    %6158 = vmatprep.subr.mxu0 0.0
    %v6159 = vand.u32 %v6134, 4294901760
    %6160 = vmatpush1.msra.mxu0 %v6159
    %6161 = vmatprep.subr.mxu0 0.0
    %v6162 = vand.u32 %v6135, 4294901760
    %6163 = vmatpush1.msra.mxu0 %v6162
    %6164 = vmatprep.subr.mxu0 0.0
    %6165 = vmatpush1.msra.mxu0 0.0
    %6166 = vmatprep.subr.mxu0 0.0
    %6167 = vmatpush1.msra.mxu0 0.0
    %6168 = vmatprep.subr.mxu0 0.0
    %6169 = vmatpush1.msra.mxu0 0.0
    %6170 = vmatprep.subr.mxu0 0.0
    %6171 = vmatpush1.msra.mxu0 0.0
    %6172 = vmatprep.subr.mxu0 0.0
    %6173 = vmatpush1.msra.mxu0 0.0
    %6174 = vmatprep.subr.mxu0 0.0
    %6175 = vmatpush1.msra.mxu0 0.0
    %6176 = vmatprep.subr.mxu0 0.0
    %6177 = vmatpush1.msra.mxu0 0.0
    %6178 = vmatprep.subr.mxu0 0.0
    %6179 = vmatpush1.msra.mxu0 0.0
    %6180 = vmatprep.subr.mxu0 0.0
    %6181 = vmatpush1.msra.mxu0 0.0
    %6182 = vmatprep.subr.mxu0 0.0
    %6183 = vmatpush1.msra.mxu0 0.0
    %6184 = vmatprep.subr.mxu0 0.0
    %6185 = vmatpush1.msra.mxu0 0.0
    %6186 = vmatprep.subr.mxu0 0.0
    %6187 = vmatpush1.msra.mxu0 0.0
    %6188 = vmatprep.subr.mxu0 0.0
    %6189 = vmatpush1.msra.mxu0 0.0
    %6190 = vmatprep.subr.mxu0 0.0
    %6191 = vmatpush1.msra.mxu0 0.0
    %6192 = vmatprep.subr.mxu0 0.0
    %6193 = vmatpush1.msra.mxu0 0.0
    %6194 = vmatprep.subr.mxu0 0.0
    %6195 = vmatpush1.msra.mxu0 0.0
    %6196 = vmatprep.subr.mxu0 0.0
    %6197 = vmatpush1.msra.mxu0 0.0
    %6198 = vmatprep.subr.mxu0 0.0
    %6199 = vmatpush1.msra.mxu0 0.0
    %6200 = vmatprep.subr.mxu0 0.0
    %6201 = vmatpush1.msra.mxu0 0.0
    %6202 = vmatprep.subr.mxu0 0.0
    %6203 = vmatpush1.msra.mxu0 0.0
    %6204 = vmatprep.subr.mxu0 0.0
    %6205 = vmatpush1.msra.mxu0 0.0
    %6206 = vmatprep.subr.mxu0 0.0
    %6207 = vmatpush1.msra.mxu0 0.0
    %6208 = vmatprep.subr.mxu0 0.0
    %6209 = vmatpush1.msra.mxu0 0.0
    %6210 = vmatprep.subr.mxu0 0.0
    %6211 = vmatpush1.msra.mxu0 0.0
    %6212 = vmatprep.subr.mxu0 0.0
    %6213 = vmatpush1.msra.mxu0 0.0
    %6214 = vmatprep.subr.mxu0 0.0
    %6215 = vmatpush1.msra.mxu0 0.0
    %6216 = vmatprep.subr.mxu0 0.0
    %6217 = vmatpush1.msra.mxu0 0.0
    %6218 = vmatprep.subr.mxu0 0.0
    %6219 = vmatpush1.msra.mxu0 0.0
    %6220 = vmatprep.subr.mxu0 0.0
    %6221 = vmatpush1.msra.mxu0 0.0
    %6222 = vmatprep.subr.mxu0 0.0
    %6223 = vmatpush1.msra.mxu0 0.0
    %6224 = vmatprep.mubr.f32.mxu0 0.0
    %v6225 = vand.u32 %v6153, 4294901760
    %v6226 = vsub.f32 %v6153, %v6225
    %v6227 = vand.u32 %v6226, 4294901760
    %v6228 = vsub.f32 %v6226, %v6227
    %v6229 = vand.u32 %v6228, 4294901760
    %6230 = vmatmul.mubr.f32.gmra.mrb[0].mxu0 %v6229
    %v6231 = vpop.f32.mrb[0].mxu0
    %v6232 = vadd.f32 %v6145, %v6231
    %v6233 = vpop.f32.mrb[0].mxu0
    %6234 = vmatprep.mubr.f32.mxu0 0.0
    %v6235 = vand.u32 %v6156, 4294901760
    %v6236 = vsub.f32 %v6156, %v6235
    %v6237 = vand.u32 %v6236, 4294901760
    %v6238 = vsub.f32 %v6236, %v6237
    %v6239 = vand.u32 %v6238, 4294901760
    %6240 = vmatmul.mubr.f32.gmra.mrb[0].mxu0 %v6239
    %v6241 = vpop.f32.mrb[0].mxu0
    %v6242 = vadd.f32 %v6150, %v6241
    %v6243 = vpop.f32.mrb[0].mxu0
    %6244 = vdwg.mxu0
    %6245 = vmatprep.subr.mxu0 0.0
    %v6246 = vand.u32 %v6134, 4294901760
    %v6247 = vsub.f32 %v6134, %v6246
    %v6248 = vand.u32 %v6247, 4294901760
    %v6249 = vsub.f32 %v6247, %v6248
    %v6250 = vand.u32 %v6249, 4294901760
    %6251 = vmatpush1.msra.mxu0 %v6250
    %6252 = vmatprep.subr.mxu0 0.0
    %v6253 = vand.u32 %v6135, 4294901760
    %v6254 = vsub.f32 %v6135, %v6253
    %v6255 = vand.u32 %v6254, 4294901760
    %v6256 = vsub.f32 %v6254, %v6255
    %v6257 = vand.u32 %v6256, 4294901760
    %6258 = vmatpush1.msra.mxu0 %v6257
    %6259 = vmatprep.subr.mxu0 0.0
    %6260 = vmatpush1.msra.mxu0 0.0
    %6261 = vmatprep.subr.mxu0 0.0
    %6262 = vmatpush1.msra.mxu0 0.0
    %6263 = vmatprep.subr.mxu0 0.0
    %6264 = vmatpush1.msra.mxu0 0.0
    %6265 = vmatprep.subr.mxu0 0.0
    %6266 = vmatpush1.msra.mxu0 0.0
    %6267 = vmatprep.subr.mxu0 0.0
    %6268 = vmatpush1.msra.mxu0 0.0
    %6269 = vmatprep.subr.mxu0 0.0
    %6270 = vmatpush1.msra.mxu0 0.0
    %6271 = vmatprep.subr.mxu0 0.0
    %6272 = vmatpush1.msra.mxu0 0.0
    %6273 = vmatprep.subr.mxu0 0.0
    %6274 = vmatpush1.msra.mxu0 0.0
    %6275 = vmatprep.subr.mxu0 0.0
    %6276 = vmatpush1.msra.mxu0 0.0
    %6277 = vmatprep.subr.mxu0 0.0
    %6278 = vmatpush1.msra.mxu0 0.0
    %6279 = vmatprep.subr.mxu0 0.0
    %6280 = vmatpush1.msra.mxu0 0.0
    %6281 = vmatprep.subr.mxu0 0.0
    %6282 = vmatpush1.msra.mxu0 0.0
    %6283 = vmatprep.subr.mxu0 0.0
    %6284 = vmatpush1.msra.mxu0 0.0
    %6285 = vmatprep.subr.mxu0 0.0
    %6286 = vmatpush1.msra.mxu0 0.0
    %6287 = vmatprep.subr.mxu0 0.0
    %6288 = vmatpush1.msra.mxu0 0.0
    %6289 = vmatprep.subr.mxu0 0.0
    %6290 = vmatpush1.msra.mxu0 0.0
    %6291 = vmatprep.subr.mxu0 0.0
    %6292 = vmatpush1.msra.mxu0 0.0
    %6293 = vmatprep.subr.mxu0 0.0
    %6294 = vmatpush1.msra.mxu0 0.0
    %6295 = vmatprep.subr.mxu0 0.0
    %6296 = vmatpush1.msra.mxu0 0.0
    %6297 = vmatprep.subr.mxu0 0.0
    %6298 = vmatpush1.msra.mxu0 0.0
    %6299 = vmatprep.subr.mxu0 0.0
    %6300 = vmatpush1.msra.mxu0 0.0
    %6301 = vmatprep.subr.mxu0 0.0
    %6302 = vmatpush1.msra.mxu0 0.0
    %6303 = vmatprep.subr.mxu0 0.0
    %6304 = vmatpush1.msra.mxu0 0.0
    %6305 = vmatprep.subr.mxu0 0.0
    %6306 = vmatpush1.msra.mxu0 0.0
    %6307 = vmatprep.subr.mxu0 0.0
    %6308 = vmatpush1.msra.mxu0 0.0
    %6309 = vmatprep.subr.mxu0 0.0
    %6310 = vmatpush1.msra.mxu0 0.0
    %6311 = vmatprep.subr.mxu0 0.0
    %6312 = vmatpush1.msra.mxu0 0.0
    %6313 = vmatprep.subr.mxu0 0.0
    %6314 = vmatpush1.msra.mxu0 0.0
    %6315 = vmatprep.subr.mxu0 0.0
    %6316 = vmatpush1.msra.mxu0 0.0
    %6317 = vmatprep.subr.mxu0 0.0
    %6318 = vmatpush1.msra.mxu0 0.0
    %6319 = vmatprep.mubr.f32.mxu0 0.0
    %v6320 = vand.u32 %v6153, 4294901760
    %6321 = vmatmul.mubr.f32.gmra.mrb[0].mxu0 %v6320
    %v6322 = vpop.f32.mrb[0].mxu0
    %v6323 = vadd.f32 %v6232, %v6322
    %v6324 = vpop.f32.mrb[0].mxu0
    %6325 = vmatprep.mubr.f32.mxu0 0.0
    %v6326 = vand.u32 %v6156, 4294901760
    %6327 = vmatmul.mubr.f32.gmra.mrb[0].mxu0 %v6326
    %v6328 = vpop.f32.mrb[0].mxu0
    %v6329 = vadd.f32 %v6242, %v6328
    %v6330 = vpop.f32.mrb[0].mxu0
    %6331 = vdwg.mxu0
    %6332 = vmatprep.subr.mxu0 0.0
    %v6333 = vand.u32 %v6134, 4294901760
    %v6334 = vsub.f32 %v6134, %v6333
    %6335 = vmatpush1.msra.mxu0 %v6334
    %6336 = vmatprep.subr.mxu0 0.0
    %v6337 = vand.u32 %v6135, 4294901760
    %v6338 = vsub.f32 %v6135, %v6337
    %6339 = vmatpush1.msra.mxu0 %v6338
    %6340 = vmatprep.subr.mxu0 0.0
    %6341 = vmatpush1.msra.mxu0 0.0
    %6342 = vmatprep.subr.mxu0 0.0
    %6343 = vmatpush1.msra.mxu0 0.0
    %6344 = vmatprep.subr.mxu0 0.0
    %6345 = vmatpush1.msra.mxu0 0.0
    %6346 = vmatprep.subr.mxu0 0.0
    %6347 = vmatpush1.msra.mxu0 0.0
    %6348 = vmatprep.subr.mxu0 0.0
    %6349 = vmatpush1.msra.mxu0 0.0
    %6350 = vmatprep.subr.mxu0 0.0
    %6351 = vmatpush1.msra.mxu0 0.0
    %6352 = vmatprep.subr.mxu0 0.0
    %6353 = vmatpush1.msra.mxu0 0.0
    %6354 = vmatprep.subr.mxu0 0.0
    %6355 = vmatpush1.msra.mxu0 0.0
    %6356 = vmatprep.subr.mxu0 0.0
    %6357 = vmatpush1.msra.mxu0 0.0
    %6358 = vmatprep.subr.mxu0 0.0
    %6359 = vmatpush1.msra.mxu0 0.0
    %6360 = vmatprep.subr.mxu0 0.0
    %6361 = vmatpush1.msra.mxu0 0.0
    %6362 = vmatprep.subr.mxu0 0.0
    %6363 = vmatpush1.msra.mxu0 0.0
    %6364 = vmatprep.subr.mxu0 0.0
    %6365 = vmatpush1.msra.mxu0 0.0
    %6366 = vmatprep.subr.mxu0 0.0
    %6367 = vmatpush1.msra.mxu0 0.0
    %6368 = vmatprep.subr.mxu0 0.0
    %6369 = vmatpush1.msra.mxu0 0.0
    %6370 = vmatprep.subr.mxu0 0.0
    %6371 = vmatpush1.msra.mxu0 0.0
    %6372 = vmatprep.subr.mxu0 0.0
    %6373 = vmatpush1.msra.mxu0 0.0
    %6374 = vmatprep.subr.mxu0 0.0
    %6375 = vmatpush1.msra.mxu0 0.0
    %6376 = vmatprep.subr.mxu0 0.0
    %6377 = vmatpush1.msra.mxu0 0.0
    %6378 = vmatprep.subr.mxu0 0.0
    %6379 = vmatpush1.msra.mxu0 0.0
    %6380 = vmatprep.subr.mxu0 0.0
    %6381 = vmatpush1.msra.mxu0 0.0
    %6382 = vmatprep.subr.mxu0 0.0
    %6383 = vmatpush1.msra.mxu0 0.0
    %6384 = vmatprep.subr.mxu0 0.0
    %6385 = vmatpush1.msra.mxu0 0.0
    %6386 = vmatprep.subr.mxu0 0.0
    %6387 = vmatpush1.msra.mxu0 0.0
    %6388 = vmatprep.subr.mxu0 0.0
    %6389 = vmatpush1.msra.mxu0 0.0
    %6390 = vmatprep.subr.mxu0 0.0
    %6391 = vmatpush1.msra.mxu0 0.0
    %6392 = vmatprep.subr.mxu0 0.0
    %6393 = vmatpush1.msra.mxu0 0.0
    %6394 = vmatprep.subr.mxu0 0.0
    %6395 = vmatpush1.msra.mxu0 0.0
    %6396 = vmatprep.subr.mxu0 0.0
    %6397 = vmatpush1.msra.mxu0 0.0
    %6398 = vmatprep.subr.mxu0 0.0
    %6399 = vmatpush1.msra.mxu0 0.0
    %6400 = vmatprep.mubr.f32.mxu0 0.0
    %v6401 = vand.u32 %v6153, 4294901760
    %v6402 = vsub.f32 %v6153, %v6401
    %6403 = vmatmul.mubr.f32.gmra.mrb[0].mxu0 %v6402
    %v6404 = vpop.f32.mrb[0].mxu0
    %v6405 = vadd.f32 %v6323, %v6404
    %v6406 = vpop.f32.mrb[0].mxu0
    %6407 = vmatprep.mubr.f32.mxu0 0.0
    %v6408 = vand.u32 %v6156, 4294901760
    %v6409 = vsub.f32 %v6156, %v6408
    %6410 = vmatmul.mubr.f32.gmra.mrb[0].mxu0 %v6409
    %v6411 = vpop.f32.mrb[0].mxu0
    %v6412 = vadd.f32 %v6329, %v6411
    %v6413 = vpop.f32.mrb[0].mxu0
    %6414 = vdwg.mxu0
    %6415 = vmatprep.subr.mxu0 0.0
    %v6416 = vand.u32 %v6134, 4294901760
    %6417 = vmatpush1.msra.mxu0 %v6416
    %6418 = vmatprep.subr.mxu0 0.0
    %v6419 = vand.u32 %v6135, 4294901760
    %6420 = vmatpush1.msra.mxu0 %v6419
    %6421 = vmatprep.subr.mxu0 0.0
    %6422 = vmatpush1.msra.mxu0 0.0
    %6423 = vmatprep.subr.mxu0 0.0
    %6424 = vmatpush1.msra.mxu0 0.0
    %6425 = vmatprep.subr.mxu0 0.0
    %6426 = vmatpush1.msra.mxu0 0.0
    %6427 = vmatprep.subr.mxu0 0.0
    %6428 = vmatpush1.msra.mxu0 0.0
    %6429 = vmatprep.subr.mxu0 0.0
    %6430 = vmatpush1.msra.mxu0 0.0
    %6431 = vmatprep.subr.mxu0 0.0
    %6432 = vmatpush1.msra.mxu0 0.0
    %6433 = vmatprep.subr.mxu0 0.0
    %6434 = vmatpush1.msra.mxu0 0.0
    %6435 = vmatprep.subr.mxu0 0.0
    %6436 = vmatpush1.msra.mxu0 0.0
    %6437 = vmatprep.subr.mxu0 0.0
    %6438 = vmatpush1.msra.mxu0 0.0
    %6439 = vmatprep.subr.mxu0 0.0
    %6440 = vmatpush1.msra.mxu0 0.0
    %6441 = vmatprep.subr.mxu0 0.0
    %6442 = vmatpush1.msra.mxu0 0.0
    %6443 = vmatprep.subr.mxu0 0.0
    %6444 = vmatpush1.msra.mxu0 0.0
    %6445 = vmatprep.subr.mxu0 0.0
    %6446 = vmatpush1.msra.mxu0 0.0
    %6447 = vmatprep.subr.mxu0 0.0
    %6448 = vmatpush1.msra.mxu0 0.0
    %6449 = vmatprep.subr.mxu0 0.0
    %6450 = vmatpush1.msra.mxu0 0.0
    %6451 = vmatprep.subr.mxu0 0.0
    %6452 = vmatpush1.msra.mxu0 0.0
    %6453 = vmatprep.subr.mxu0 0.0
    %6454 = vmatpush1.msra.mxu0 0.0
    %6455 = vmatprep.subr.mxu0 0.0
    %6456 = vmatpush1.msra.mxu0 0.0
    %6457 = vmatprep.subr.mxu0 0.0
    %6458 = vmatpush1.msra.mxu0 0.0
    %6459 = vmatprep.subr.mxu0 0.0
    %6460 = vmatpush1.msra.mxu0 0.0
    %6461 = vmatprep.subr.mxu0 0.0
    %6462 = vmatpush1.msra.mxu0 0.0
    %6463 = vmatprep.subr.mxu0 0.0
    %6464 = vmatpush1.msra.mxu0 0.0
    %6465 = vmatprep.subr.mxu0 0.0
    %6466 = vmatpush1.msra.mxu0 0.0
    %6467 = vmatprep.subr.mxu0 0.0
    %6468 = vmatpush1.msra.mxu0 0.0
    %6469 = vmatprep.subr.mxu0 0.0
    %6470 = vmatpush1.msra.mxu0 0.0
    %6471 = vmatprep.subr.mxu0 0.0
    %6472 = vmatpush1.msra.mxu0 0.0
    %6473 = vmatprep.subr.mxu0 0.0
    %6474 = vmatpush1.msra.mxu0 0.0
    %6475 = vmatprep.subr.mxu0 0.0
    %6476 = vmatpush1.msra.mxu0 0.0
    %6477 = vmatprep.subr.mxu0 0.0
    %6478 = vmatpush1.msra.mxu0 0.0
    %6479 = vmatprep.subr.mxu0 0.0
    %6480 = vmatpush1.msra.mxu0 0.0
    %6481 = vmatprep.mubr.f32.mxu0 0.0
    %v6482 = vand.u32 %v6153, 4294901760
    %v6483 = vsub.f32 %v6153, %v6482
    %v6484 = vand.u32 %v6483, 4294901760
    %6485 = vmatmul.mubr.f32.gmra.mrb[0].mxu0 %v6484
    %v6486 = vpop.f32.mrb[0].mxu0
    %v6487 = vadd.f32 %v6405, %v6486
    %v6488 = vpop.f32.mrb[0].mxu0
    %6489 = vmatprep.mubr.f32.mxu0 0.0
    %v6490 = vand.u32 %v6156, 4294901760
    %v6491 = vsub.f32 %v6156, %v6490
    %v6492 = vand.u32 %v6491, 4294901760
    %6493 = vmatmul.mubr.f32.gmra.mrb[0].mxu0 %v6492
    %v6494 = vpop.f32.mrb[0].mxu0
    %v6495 = vadd.f32 %v6412, %v6494
    %v6496 = vpop.f32.mrb[0].mxu0
    %6497 = vdwg.mxu0
    %6498 = vmatprep.subr.mxu0 0.0
    %v6499 = vand.u32 %v6134, 4294901760
    %v6500 = vsub.f32 %v6134, %v6499
    %v6501 = vand.u32 %v6500, 4294901760
    %6502 = vmatpush1.msra.mxu0 %v6501
    %6503 = vmatprep.subr.mxu0 0.0
    %v6504 = vand.u32 %v6135, 4294901760
    %v6505 = vsub.f32 %v6135, %v6504
    %v6506 = vand.u32 %v6505, 4294901760
    %6507 = vmatpush1.msra.mxu0 %v6506
    %6508 = vmatprep.subr.mxu0 0.0
    %6509 = vmatpush1.msra.mxu0 0.0
    %6510 = vmatprep.subr.mxu0 0.0
    %6511 = vmatpush1.msra.mxu0 0.0
    %6512 = vmatprep.subr.mxu0 0.0
    %6513 = vmatpush1.msra.mxu0 0.0
    %6514 = vmatprep.subr.mxu0 0.0
    %6515 = vmatpush1.msra.mxu0 0.0
    %6516 = vmatprep.subr.mxu0 0.0
    %6517 = vmatpush1.msra.mxu0 0.0
    %6518 = vmatprep.subr.mxu0 0.0
    %6519 = vmatpush1.msra.mxu0 0.0
    %6520 = vmatprep.subr.mxu0 0.0
    %6521 = vmatpush1.msra.mxu0 0.0
    %6522 = vmatprep.subr.mxu0 0.0
    %6523 = vmatpush1.msra.mxu0 0.0
    %6524 = vmatprep.subr.mxu0 0.0
    %6525 = vmatpush1.msra.mxu0 0.0
    %6526 = vmatprep.subr.mxu0 0.0
    %6527 = vmatpush1.msra.mxu0 0.0
    %6528 = vmatprep.subr.mxu0 0.0
    %6529 = vmatpush1.msra.mxu0 0.0
    %6530 = vmatprep.subr.mxu0 0.0
    %6531 = vmatpush1.msra.mxu0 0.0
    %6532 = vmatprep.subr.mxu0 0.0
    %6533 = vmatpush1.msra.mxu0 0.0
    %6534 = vmatprep.subr.mxu0 0.0
    %6535 = vmatpush1.msra.mxu0 0.0
    %6536 = vmatprep.subr.mxu0 0.0
    %6537 = vmatpush1.msra.mxu0 0.0
    %6538 = vmatprep.subr.mxu0 0.0
    %6539 = vmatpush1.msra.mxu0 0.0
    %6540 = vmatprep.subr.mxu0 0.0
    %6541 = vmatpush1.msra.mxu0 0.0
    %6542 = vmatprep.subr.mxu0 0.0
    %6543 = vmatpush1.msra.mxu0 0.0
    %6544 = vmatprep.subr.mxu0 0.0
    %6545 = vmatpush1.msra.mxu0 0.0
    %6546 = vmatprep.subr.mxu0 0.0
    %6547 = vmatpush1.msra.mxu0 0.0
    %6548 = vmatprep.subr.mxu0 0.0
    %6549 = vmatpush1.msra.mxu0 0.0
    %6550 = vmatprep.subr.mxu0 0.0
    %6551 = vmatpush1.msra.mxu0 0.0
    %6552 = vmatprep.subr.mxu0 0.0
    %6553 = vmatpush1.msra.mxu0 0.0
    %6554 = vmatprep.subr.mxu0 0.0
    %6555 = vmatpush1.msra.mxu0 0.0
    %6556 = vmatprep.subr.mxu0 0.0
    %6557 = vmatpush1.msra.mxu0 0.0
    %6558 = vmatprep.subr.mxu0 0.0
    %6559 = vmatpush1.msra.mxu0 0.0
    %6560 = vmatprep.subr.mxu0 0.0
    %6561 = vmatpush1.msra.mxu0 0.0
    %6562 = vmatprep.subr.mxu0 0.0
    %6563 = vmatpush1.msra.mxu0 0.0
    %6564 = vmatprep.subr.mxu0 0.0
    %6565 = vmatpush1.msra.mxu0 0.0
    %6566 = vmatprep.subr.mxu0 0.0
    %6567 = vmatpush1.msra.mxu0 0.0
    %6568 = vmatprep.mubr.f32.mxu0 0.0
    %v6569 = vand.u32 %v6153, 4294901760
    %6570 = vmatmul.mubr.f32.gmra.mrb[0].mxu0 %v6569
    %v6571 = vpop.f32.mrb[0].mxu0
    %v6572 = vadd.f32 %v6487, %v6571
    %v6573 = vpop.f32.mrb[0].mxu0
    %6574 = vmatprep.mubr.f32.mxu0 0.0
    %v6575 = vand.u32 %v6156, 4294901760
    %6576 = vmatmul.mubr.f32.gmra.mrb[0].mxu0 %v6575
    %v6577 = vpop.f32.mrb[0].mxu0
    %v6578 = vadd.f32 %v6495, %v6577
    %v6579 = vpop.f32.mrb[0].mxu0
    %6580 = vdwg.mxu0
    %6581 = vmatprep.subr.mxu0 0.0
    %v6582 = vand.u32 %v6134, 4294901760
    %6583 = vmatpush1.msra.mxu0 %v6582
    %6584 = vmatprep.subr.mxu0 0.0
    %v6585 = vand.u32 %v6135, 4294901760
    %6586 = vmatpush1.msra.mxu0 %v6585
    %6587 = vmatprep.subr.mxu0 0.0
    %6588 = vmatpush1.msra.mxu0 0.0
    %6589 = vmatprep.subr.mxu0 0.0
    %6590 = vmatpush1.msra.mxu0 0.0
    %6591 = vmatprep.subr.mxu0 0.0
    %6592 = vmatpush1.msra.mxu0 0.0
    %6593 = vmatprep.subr.mxu0 0.0
    %6594 = vmatpush1.msra.mxu0 0.0
    %6595 = vmatprep.subr.mxu0 0.0
    %6596 = vmatpush1.msra.mxu0 0.0
    %6597 = vmatprep.subr.mxu0 0.0
    %6598 = vmatpush1.msra.mxu0 0.0
    %6599 = vmatprep.subr.mxu0 0.0
    %6600 = vmatpush1.msra.mxu0 0.0
    %6601 = vmatprep.subr.mxu0 0.0
    %6602 = vmatpush1.msra.mxu0 0.0
    %6603 = vmatprep.subr.mxu0 0.0
    %6604 = vmatpush1.msra.mxu0 0.0
    %6605 = vmatprep.subr.mxu0 0.0
    %6606 = vmatpush1.msra.mxu0 0.0
    %6607 = vmatprep.subr.mxu0 0.0
    %6608 = vmatpush1.msra.mxu0 0.0
    %6609 = vmatprep.subr.mxu0 0.0
    %6610 = vmatpush1.msra.mxu0 0.0
    %6611 = vmatprep.subr.mxu0 0.0
    %6612 = vmatpush1.msra.mxu0 0.0
    %6613 = vmatprep.subr.mxu0 0.0
    %6614 = vmatpush1.msra.mxu0 0.0
    %6615 = vmatprep.subr.mxu0 0.0
    %6616 = vmatpush1.msra.mxu0 0.0
    %6617 = vmatprep.subr.mxu0 0.0
    %6618 = vmatpush1.msra.mxu0 0.0
    %6619 = vmatprep.subr.mxu0 0.0
    %6620 = vmatpush1.msra.mxu0 0.0
    %6621 = vmatprep.subr.mxu0 0.0
    %6622 = vmatpush1.msra.mxu0 0.0
    %6623 = vmatprep.subr.mxu0 0.0
    %6624 = vmatpush1.msra.mxu0 0.0
    %6625 = vmatprep.subr.mxu0 0.0
    %6626 = vmatpush1.msra.mxu0 0.0
    %6627 = vmatprep.subr.mxu0 0.0
    %6628 = vmatpush1.msra.mxu0 0.0
    %6629 = vmatprep.subr.mxu0 0.0
    %6630 = vmatpush1.msra.mxu0 0.0
    %6631 = vmatprep.subr.mxu0 0.0
    %6632 = vmatpush1.msra.mxu0 0.0
    %6633 = vmatprep.subr.mxu0 0.0
    %6634 = vmatpush1.msra.mxu0 0.0
    %6635 = vmatprep.subr.mxu0 0.0
    %6636 = vmatpush1.msra.mxu0 0.0
    %6637 = vmatprep.subr.mxu0 0.0
    %6638 = vmatpush1.msra.mxu0 0.0
    %6639 = vmatprep.subr.mxu0 0.0
    %6640 = vmatpush1.msra.mxu0 0.0
    %6641 = vmatprep.subr.mxu0 0.0
    %6642 = vmatpush1.msra.mxu0 0.0
    %6643 = vmatprep.subr.mxu0 0.0
    %6644 = vmatpush1.msra.mxu0 0.0
    %6645 = vmatprep.subr.mxu0 0.0
    %6646 = vmatpush1.msra.mxu0 0.0
    %6647 = vmatprep.mubr.f32.mxu0 0.0
    %v6648 = vand.u32 %v6153, 4294901760
    %6649 = vmatmul.mubr.f32.gmra.mrb[0].mxu0 %v6648
    %v6650 = vpop.f32.mrb[0].mxu0
    %v6651 = vadd.f32 %v6572, %v6650
    %v6652 = vpop.f32.mrb[0].mxu0
    %6653 = vmatprep.mubr.f32.mxu0 0.0
    %v6654 = vand.u32 %v6156, 4294901760
    %6655 = vmatmul.mubr.f32.gmra.mrb[0].mxu0 %v6654
    %v6656 = vpop.f32.mrb[0].mxu0
    %v6657 = vadd.f32 %v6578, %v6656
    %v6658 = vpop.f32.mrb[0].mxu0
    %6659 = vdwg.mxu0
    %v6660 = vsel %vm550, %v6651, 0.0
    %6661 = vadd.xlane.f32.xlu0 %v6660
    %v6662 = vpop.xlane.xlu0 %6661
    %v6663 = vsel %vm550, %v6657, 0.0
    %6664 = vadd.xlane.f32.xlu0 %v6663
    %v6665 = vpop.xlane.xlu0 %6664
    %v6666 = vmul.f32 %v6662, %v557
    %v6667 = vmul.f32 %v6665, %v557
    %v6668 = vsub.f32 %v6651, %v6666
    %v6669 = vsub.f32 %v6657, %v6667
    %v6670 = vmul.f32 %v6668, %v6668
    %v6671 = vmul.f32 %v6669, %v6669
    %v6672 = vsel %vm550, %v6670, 0.0
    %6673 = vadd.xlane.f32.xlu0 %v6672
    %v6674 = vpop.xlane.xlu0 %6673
    %v6675 = vsel %vm550, %v6671, 0.0
    %6676 = vadd.xlane.f32.xlu0 %v6675
    %v6677 = vpop.xlane.xlu0 %6676
    %v6678 = vmul.f32 %v6674, %v557
    %v6679 = vmul.f32 %v6677, %v557
    %v6680 = vadd.f32 %v6678, 1e-05
    %v6681 = vadd.f32 %v6679, 1e-05
    %v6682 = vrsqrt.pop %v6680
    %v6683 = vrsqrt.pop %v6681
    %s6684 = scalar_lea.vmem %s3, 240
    %v6685 = vld [vmem:[%s6684] sm:$0xff]
    %v6686 = vld [vmem:[%s6684 + $0x8] sm:$0xff]
    %v6687 = vmul.f32 %v6682, %v6685
    %v6688 = vmul.f32 %v6683, %v6686
    %6690 = vset.pattern.permute.xlu0 0
    %6691 = vperm.xlu0 %6690, %v6687
    %v6692 = vpop.permute.xlu0 %6691
    %6695 = vset.pattern.permute.xlu0 0
    %6696 = vperm.xlu0 %6695, %v6688
    %v6697 = vpop.permute.xlu0 %6696
    %v6699 = vmul.f32 %v6668, %v6692
    %v6700 = vmul.f32 %v6669, %v6697
    %s6701 = scalar_lea.vmem %s3, 256
    %v6702 = vld [vmem:[%s6701] sm:$0xff]
    %v6703 = vld [vmem:[%s6701 + $0x8] sm:$0xff]
    %6705 = vset.pattern.permute.xlu0 0
    %6706 = vperm.xlu0 %6705, %v6702
    %v6707 = vpop.permute.xlu0 %6706
    %6710 = vset.pattern.permute.xlu0 0
    %6711 = vperm.xlu0 %6710, %v6703
    %v6712 = vpop.permute.xlu0 %6711
    %v6714 = vadd.f32 %v6699, %v6707
    %v6715 = vadd.f32 %v6700, %v6712
    %v6716 = vmax.f32 %v6714, 0.0
    %v6717 = vmax.f32 %v6715, 0.0
    %v6718 = vadd.f32 %v5552, %v6716
    %v6719 = vadd.f32 %v5553, %v6717
    %v6720 = vmax.f32 %v6718, 0.0
    %v6721 = vmax.f32 %v6719, 0.0
    %s6722 = scalar_lea.vmem %s1, 96
    %v6723 = vld [vmem:[%s6722] sm:$0xff]
    %v6724 = vld [vmem:[%s6722 + $0x8] sm:$0xff]
    %s6725 = scalar_lea.vmem %s3, 272
    %v6726 = vld [vmem:[%s6725] sm:$0xff]
    %v6727 = vld [vmem:[%s6725 + $0x8] sm:$0xff]
    %6729 = vset.pattern.permute.xlu0 0
    %6730 = vperm.xlu0 %6729, %v6726
    %v6731 = vpop.permute.xlu0 %6730
    %6734 = vset.pattern.permute.xlu0 0
    %6735 = vperm.xlu0 %6734, %v6727
    %v6736 = vpop.permute.xlu0 %6735
    %v6738 = vsel %vm37, %v6723, 0
    %v6741 = vsel %vm37, %v6724, 0
    %6743 = vmatprep.subr.mxu0 0.0
    %v6744 = vand.u32 %v6720, 4294901760
    %6745 = vmatpush1.msra.mxu0 %v6744
    %6746 = vmatprep.subr.mxu0 0.0
    %v6747 = vand.u32 %v6721, 4294901760
    %6748 = vmatpush1.msra.mxu0 %v6747
    %6749 = vmatprep.subr.mxu0 0.0
    %6750 = vmatpush1.msra.mxu0 0.0
    %6751 = vmatprep.subr.mxu0 0.0
    %6752 = vmatpush1.msra.mxu0 0.0
    %6753 = vmatprep.subr.mxu0 0.0
    %6754 = vmatpush1.msra.mxu0 0.0
    %6755 = vmatprep.subr.mxu0 0.0
    %6756 = vmatpush1.msra.mxu0 0.0
    %6757 = vmatprep.subr.mxu0 0.0
    %6758 = vmatpush1.msra.mxu0 0.0
    %6759 = vmatprep.subr.mxu0 0.0
    %6760 = vmatpush1.msra.mxu0 0.0
    %6761 = vmatprep.subr.mxu0 0.0
    %6762 = vmatpush1.msra.mxu0 0.0
    %6763 = vmatprep.subr.mxu0 0.0
    %6764 = vmatpush1.msra.mxu0 0.0
    %6765 = vmatprep.subr.mxu0 0.0
    %6766 = vmatpush1.msra.mxu0 0.0
    %6767 = vmatprep.subr.mxu0 0.0
    %6768 = vmatpush1.msra.mxu0 0.0
    %6769 = vmatprep.subr.mxu0 0.0
    %6770 = vmatpush1.msra.mxu0 0.0
    %6771 = vmatprep.subr.mxu0 0.0
    %6772 = vmatpush1.msra.mxu0 0.0
    %6773 = vmatprep.subr.mxu0 0.0
    %6774 = vmatpush1.msra.mxu0 0.0
    %6775 = vmatprep.subr.mxu0 0.0
    %6776 = vmatpush1.msra.mxu0 0.0
    %6777 = vmatprep.subr.mxu0 0.0
    %6778 = vmatpush1.msra.mxu0 0.0
    %6779 = vmatprep.subr.mxu0 0.0
    %6780 = vmatpush1.msra.mxu0 0.0
    %6781 = vmatprep.subr.mxu0 0.0
    %6782 = vmatpush1.msra.mxu0 0.0
    %6783 = vmatprep.subr.mxu0 0.0
    %6784 = vmatpush1.msra.mxu0 0.0
    %6785 = vmatprep.subr.mxu0 0.0
    %6786 = vmatpush1.msra.mxu0 0.0
    %6787 = vmatprep.subr.mxu0 0.0
    %6788 = vmatpush1.msra.mxu0 0.0
    %6789 = vmatprep.subr.mxu0 0.0
    %6790 = vmatpush1.msra.mxu0 0.0
    %6791 = vmatprep.subr.mxu0 0.0
    %6792 = vmatpush1.msra.mxu0 0.0
    %6793 = vmatprep.subr.mxu0 0.0
    %6794 = vmatpush1.msra.mxu0 0.0
    %6795 = vmatprep.subr.mxu0 0.0
    %6796 = vmatpush1.msra.mxu0 0.0
    %6797 = vmatprep.subr.mxu0 0.0
    %6798 = vmatpush1.msra.mxu0 0.0
    %6799 = vmatprep.subr.mxu0 0.0
    %6800 = vmatpush1.msra.mxu0 0.0
    %6801 = vmatprep.subr.mxu0 0.0
    %6802 = vmatpush1.msra.mxu0 0.0
    %6803 = vmatprep.subr.mxu0 0.0
    %6804 = vmatpush1.msra.mxu0 0.0
    %6805 = vmatprep.subr.mxu0 0.0
    %6806 = vmatpush1.msra.mxu0 0.0
    %6807 = vmatprep.subr.mxu0 0.0
    %6808 = vmatpush1.msra.mxu0 0.0
    %6809 = vmatprep.mubr.f32.mxu0 0.0
    %v6810 = vand.u32 %v6738, 4294901760
    %v6811 = vsub.f32 %v6738, %v6810
    %v6812 = vand.u32 %v6811, 4294901760
    %v6813 = vsub.f32 %v6811, %v6812
    %v6814 = vand.u32 %v6813, 4294901760
    %6815 = vmatmul.mubr.f32.gmra.mrb[0].mxu0 %v6814
    %v6816 = vpop.f32.mrb[0].mxu0
    %v6817 = vadd.f32 %v6731, %v6816
    %v6818 = vpop.f32.mrb[0].mxu0
    %6819 = vmatprep.mubr.f32.mxu0 0.0
    %v6820 = vand.u32 %v6741, 4294901760
    %v6821 = vsub.f32 %v6741, %v6820
    %v6822 = vand.u32 %v6821, 4294901760
    %v6823 = vsub.f32 %v6821, %v6822
    %v6824 = vand.u32 %v6823, 4294901760
    %6825 = vmatmul.mubr.f32.gmra.mrb[0].mxu0 %v6824
    %v6826 = vpop.f32.mrb[0].mxu0
    %v6827 = vpop.f32.mrb[0].mxu0
    %6828 = vdwg.mxu0
    %6829 = vmatprep.subr.mxu0 0.0
    %v6830 = vand.u32 %v6720, 4294901760
    %v6831 = vsub.f32 %v6720, %v6830
    %v6832 = vand.u32 %v6831, 4294901760
    %v6833 = vsub.f32 %v6831, %v6832
    %v6834 = vand.u32 %v6833, 4294901760
    %6835 = vmatpush1.msra.mxu0 %v6834
    %6836 = vmatprep.subr.mxu0 0.0
    %v6837 = vand.u32 %v6721, 4294901760
    %v6838 = vsub.f32 %v6721, %v6837
    %v6839 = vand.u32 %v6838, 4294901760
    %v6840 = vsub.f32 %v6838, %v6839
    %v6841 = vand.u32 %v6840, 4294901760
    %6842 = vmatpush1.msra.mxu0 %v6841
    %6843 = vmatprep.subr.mxu0 0.0
    %6844 = vmatpush1.msra.mxu0 0.0
    %6845 = vmatprep.subr.mxu0 0.0
    %6846 = vmatpush1.msra.mxu0 0.0
    %6847 = vmatprep.subr.mxu0 0.0
    %6848 = vmatpush1.msra.mxu0 0.0
    %6849 = vmatprep.subr.mxu0 0.0
    %6850 = vmatpush1.msra.mxu0 0.0
    %6851 = vmatprep.subr.mxu0 0.0
    %6852 = vmatpush1.msra.mxu0 0.0
    %6853 = vmatprep.subr.mxu0 0.0
    %6854 = vmatpush1.msra.mxu0 0.0
    %6855 = vmatprep.subr.mxu0 0.0
    %6856 = vmatpush1.msra.mxu0 0.0
    %6857 = vmatprep.subr.mxu0 0.0
    %6858 = vmatpush1.msra.mxu0 0.0
    %6859 = vmatprep.subr.mxu0 0.0
    %6860 = vmatpush1.msra.mxu0 0.0
    %6861 = vmatprep.subr.mxu0 0.0
    %6862 = vmatpush1.msra.mxu0 0.0
    %6863 = vmatprep.subr.mxu0 0.0
    %6864 = vmatpush1.msra.mxu0 0.0
    %6865 = vmatprep.subr.mxu0 0.0
    %6866 = vmatpush1.msra.mxu0 0.0
    %6867 = vmatprep.subr.mxu0 0.0
    %6868 = vmatpush1.msra.mxu0 0.0
    %6869 = vmatprep.subr.mxu0 0.0
    %6870 = vmatpush1.msra.mxu0 0.0
    %6871 = vmatprep.subr.mxu0 0.0
    %6872 = vmatpush1.msra.mxu0 0.0
    %6873 = vmatprep.subr.mxu0 0.0
    %6874 = vmatpush1.msra.mxu0 0.0
    %6875 = vmatprep.subr.mxu0 0.0
    %6876 = vmatpush1.msra.mxu0 0.0
    %6877 = vmatprep.subr.mxu0 0.0
    %6878 = vmatpush1.msra.mxu0 0.0
    %6879 = vmatprep.subr.mxu0 0.0
    %6880 = vmatpush1.msra.mxu0 0.0
    %6881 = vmatprep.subr.mxu0 0.0
    %6882 = vmatpush1.msra.mxu0 0.0
    %6883 = vmatprep.subr.mxu0 0.0
    %6884 = vmatpush1.msra.mxu0 0.0
    %6885 = vmatprep.subr.mxu0 0.0
    %6886 = vmatpush1.msra.mxu0 0.0
    %6887 = vmatprep.subr.mxu0 0.0
    %6888 = vmatpush1.msra.mxu0 0.0
    %6889 = vmatprep.subr.mxu0 0.0
    %6890 = vmatpush1.msra.mxu0 0.0
    %6891 = vmatprep.subr.mxu0 0.0
    %6892 = vmatpush1.msra.mxu0 0.0
    %6893 = vmatprep.subr.mxu0 0.0
    %6894 = vmatpush1.msra.mxu0 0.0
    %6895 = vmatprep.subr.mxu0 0.0
    %6896 = vmatpush1.msra.mxu0 0.0
    %6897 = vmatprep.subr.mxu0 0.0
    %6898 = vmatpush1.msra.mxu0 0.0
    %6899 = vmatprep.subr.mxu0 0.0
    %6900 = vmatpush1.msra.mxu0 0.0
    %6901 = vmatprep.subr.mxu0 0.0
    %6902 = vmatpush1.msra.mxu0 0.0
    %6903 = vmatprep.mubr.f32.mxu0 0.0
    %v6904 = vand.u32 %v6738, 4294901760
    %6905 = vmatmul.mubr.f32.gmra.mrb[0].mxu0 %v6904
    %v6906 = vpop.f32.mrb[0].mxu0
    %v6907 = vadd.f32 %v6817, %v6906
    %v6908 = vpop.f32.mrb[0].mxu0
    %6909 = vmatprep.mubr.f32.mxu0 0.0
    %v6910 = vand.u32 %v6741, 4294901760
    %6911 = vmatmul.mubr.f32.gmra.mrb[0].mxu0 %v6910
    %v6912 = vpop.f32.mrb[0].mxu0
    %v6913 = vpop.f32.mrb[0].mxu0
    %6914 = vdwg.mxu0
    %6915 = vmatprep.subr.mxu0 0.0
    %v6916 = vand.u32 %v6720, 4294901760
    %v6917 = vsub.f32 %v6720, %v6916
    %6918 = vmatpush1.msra.mxu0 %v6917
    %6919 = vmatprep.subr.mxu0 0.0
    %v6920 = vand.u32 %v6721, 4294901760
    %v6921 = vsub.f32 %v6721, %v6920
    %6922 = vmatpush1.msra.mxu0 %v6921
    %6923 = vmatprep.subr.mxu0 0.0
    %6924 = vmatpush1.msra.mxu0 0.0
    %6925 = vmatprep.subr.mxu0 0.0
    %6926 = vmatpush1.msra.mxu0 0.0
    %6927 = vmatprep.subr.mxu0 0.0
    %6928 = vmatpush1.msra.mxu0 0.0
    %6929 = vmatprep.subr.mxu0 0.0
    %6930 = vmatpush1.msra.mxu0 0.0
    %6931 = vmatprep.subr.mxu0 0.0
    %6932 = vmatpush1.msra.mxu0 0.0
    %6933 = vmatprep.subr.mxu0 0.0
    %6934 = vmatpush1.msra.mxu0 0.0
    %6935 = vmatprep.subr.mxu0 0.0
    %6936 = vmatpush1.msra.mxu0 0.0
    %6937 = vmatprep.subr.mxu0 0.0
    %6938 = vmatpush1.msra.mxu0 0.0
    %6939 = vmatprep.subr.mxu0 0.0
    %6940 = vmatpush1.msra.mxu0 0.0
    %6941 = vmatprep.subr.mxu0 0.0
    %6942 = vmatpush1.msra.mxu0 0.0
    %6943 = vmatprep.subr.mxu0 0.0
    %6944 = vmatpush1.msra.mxu0 0.0
    %6945 = vmatprep.subr.mxu0 0.0
    %6946 = vmatpush1.msra.mxu0 0.0
    %6947 = vmatprep.subr.mxu0 0.0
    %6948 = vmatpush1.msra.mxu0 0.0
    %6949 = vmatprep.subr.mxu0 0.0
    %6950 = vmatpush1.msra.mxu0 0.0
    %6951 = vmatprep.subr.mxu0 0.0
    %6952 = vmatpush1.msra.mxu0 0.0
    %6953 = vmatprep.subr.mxu0 0.0
    %6954 = vmatpush1.msra.mxu0 0.0
    %6955 = vmatprep.subr.mxu0 0.0
    %6956 = vmatpush1.msra.mxu0 0.0
    %6957 = vmatprep.subr.mxu0 0.0
    %6958 = vmatpush1.msra.mxu0 0.0
    %6959 = vmatprep.subr.mxu0 0.0
    %6960 = vmatpush1.msra.mxu0 0.0
    %6961 = vmatprep.subr.mxu0 0.0
    %6962 = vmatpush1.msra.mxu0 0.0
    %6963 = vmatprep.subr.mxu0 0.0
    %6964 = vmatpush1.msra.mxu0 0.0
    %6965 = vmatprep.subr.mxu0 0.0
    %6966 = vmatpush1.msra.mxu0 0.0
    %6967 = vmatprep.subr.mxu0 0.0
    %6968 = vmatpush1.msra.mxu0 0.0
    %6969 = vmatprep.subr.mxu0 0.0
    %6970 = vmatpush1.msra.mxu0 0.0
    %6971 = vmatprep.subr.mxu0 0.0
    %6972 = vmatpush1.msra.mxu0 0.0
    %6973 = vmatprep.subr.mxu0 0.0
    %6974 = vmatpush1.msra.mxu0 0.0
    %6975 = vmatprep.subr.mxu0 0.0
    %6976 = vmatpush1.msra.mxu0 0.0
    %6977 = vmatprep.subr.mxu0 0.0
    %6978 = vmatpush1.msra.mxu0 0.0
    %6979 = vmatprep.subr.mxu0 0.0
    %6980 = vmatpush1.msra.mxu0 0.0
    %6981 = vmatprep.subr.mxu0 0.0
    %6982 = vmatpush1.msra.mxu0 0.0
    %6983 = vmatprep.mubr.f32.mxu0 0.0
    %v6984 = vand.u32 %v6738, 4294901760
    %v6985 = vsub.f32 %v6738, %v6984
    %6986 = vmatmul.mubr.f32.gmra.mrb[0].mxu0 %v6985
    %v6987 = vpop.f32.mrb[0].mxu0
    %v6988 = vadd.f32 %v6907, %v6987
    %v6989 = vpop.f32.mrb[0].mxu0
    %6990 = vmatprep.mubr.f32.mxu0 0.0
    %v6991 = vand.u32 %v6741, 4294901760
    %v6992 = vsub.f32 %v6741, %v6991
    %6993 = vmatmul.mubr.f32.gmra.mrb[0].mxu0 %v6992
    %v6994 = vpop.f32.mrb[0].mxu0
    %v6995 = vpop.f32.mrb[0].mxu0
    %6996 = vdwg.mxu0
    %6997 = vmatprep.subr.mxu0 0.0
    %v6998 = vand.u32 %v6720, 4294901760
    %6999 = vmatpush1.msra.mxu0 %v6998
    %7000 = vmatprep.subr.mxu0 0.0
    %v7001 = vand.u32 %v6721, 4294901760
    %7002 = vmatpush1.msra.mxu0 %v7001
    %7003 = vmatprep.subr.mxu0 0.0
    %7004 = vmatpush1.msra.mxu0 0.0
    %7005 = vmatprep.subr.mxu0 0.0
    %7006 = vmatpush1.msra.mxu0 0.0
    %7007 = vmatprep.subr.mxu0 0.0
    %7008 = vmatpush1.msra.mxu0 0.0
    %7009 = vmatprep.subr.mxu0 0.0
    %7010 = vmatpush1.msra.mxu0 0.0
    %7011 = vmatprep.subr.mxu0 0.0
    %7012 = vmatpush1.msra.mxu0 0.0
    %7013 = vmatprep.subr.mxu0 0.0
    %7014 = vmatpush1.msra.mxu0 0.0
    %7015 = vmatprep.subr.mxu0 0.0
    %7016 = vmatpush1.msra.mxu0 0.0
    %7017 = vmatprep.subr.mxu0 0.0
    %7018 = vmatpush1.msra.mxu0 0.0
    %7019 = vmatprep.subr.mxu0 0.0
    %7020 = vmatpush1.msra.mxu0 0.0
    %7021 = vmatprep.subr.mxu0 0.0
    %7022 = vmatpush1.msra.mxu0 0.0
    %7023 = vmatprep.subr.mxu0 0.0
    %7024 = vmatpush1.msra.mxu0 0.0
    %7025 = vmatprep.subr.mxu0 0.0
    %7026 = vmatpush1.msra.mxu0 0.0
    %7027 = vmatprep.subr.mxu0 0.0
    %7028 = vmatpush1.msra.mxu0 0.0
    %7029 = vmatprep.subr.mxu0 0.0
    %7030 = vmatpush1.msra.mxu0 0.0
    %7031 = vmatprep.subr.mxu0 0.0
    %7032 = vmatpush1.msra.mxu0 0.0
    %7033 = vmatprep.subr.mxu0 0.0
    %7034 = vmatpush1.msra.mxu0 0.0
    %7035 = vmatprep.subr.mxu0 0.0
    %7036 = vmatpush1.msra.mxu0 0.0
    %7037 = vmatprep.subr.mxu0 0.0
    %7038 = vmatpush1.msra.mxu0 0.0
    %7039 = vmatprep.subr.mxu0 0.0
    %7040 = vmatpush1.msra.mxu0 0.0
    %7041 = vmatprep.subr.mxu0 0.0
    %7042 = vmatpush1.msra.mxu0 0.0
    %7043 = vmatprep.subr.mxu0 0.0
    %7044 = vmatpush1.msra.mxu0 0.0
    %7045 = vmatprep.subr.mxu0 0.0
    %7046 = vmatpush1.msra.mxu0 0.0
    %7047 = vmatprep.subr.mxu0 0.0
    %7048 = vmatpush1.msra.mxu0 0.0
    %7049 = vmatprep.subr.mxu0 0.0
    %7050 = vmatpush1.msra.mxu0 0.0
    %7051 = vmatprep.subr.mxu0 0.0
    %7052 = vmatpush1.msra.mxu0 0.0
    %7053 = vmatprep.subr.mxu0 0.0
    %7054 = vmatpush1.msra.mxu0 0.0
    %7055 = vmatprep.subr.mxu0 0.0
    %7056 = vmatpush1.msra.mxu0 0.0
    %7057 = vmatprep.subr.mxu0 0.0
    %7058 = vmatpush1.msra.mxu0 0.0
    %7059 = vmatprep.subr.mxu0 0.0
    %7060 = vmatpush1.msra.mxu0 0.0
    %7061 = vmatprep.subr.mxu0 0.0
    %7062 = vmatpush1.msra.mxu0 0.0
    %7063 = vmatprep.mubr.f32.mxu0 0.0
    %v7064 = vand.u32 %v6738, 4294901760
    %v7065 = vsub.f32 %v6738, %v7064
    %v7066 = vand.u32 %v7065, 4294901760
    %7067 = vmatmul.mubr.f32.gmra.mrb[0].mxu0 %v7066
    %v7068 = vpop.f32.mrb[0].mxu0
    %v7069 = vadd.f32 %v6988, %v7068
    %v7070 = vpop.f32.mrb[0].mxu0
    %7071 = vmatprep.mubr.f32.mxu0 0.0
    %v7072 = vand.u32 %v6741, 4294901760
    %v7073 = vsub.f32 %v6741, %v7072
    %v7074 = vand.u32 %v7073, 4294901760
    %7075 = vmatmul.mubr.f32.gmra.mrb[0].mxu0 %v7074
    %v7076 = vpop.f32.mrb[0].mxu0
    %v7077 = vpop.f32.mrb[0].mxu0
    %7078 = vdwg.mxu0
    %7079 = vmatprep.subr.mxu0 0.0
    %v7080 = vand.u32 %v6720, 4294901760
    %v7081 = vsub.f32 %v6720, %v7080
    %v7082 = vand.u32 %v7081, 4294901760
    %7083 = vmatpush1.msra.mxu0 %v7082
    %7084 = vmatprep.subr.mxu0 0.0
    %v7085 = vand.u32 %v6721, 4294901760
    %v7086 = vsub.f32 %v6721, %v7085
    %v7087 = vand.u32 %v7086, 4294901760
    %7088 = vmatpush1.msra.mxu0 %v7087
    %7089 = vmatprep.subr.mxu0 0.0
    %7090 = vmatpush1.msra.mxu0 0.0
    %7091 = vmatprep.subr.mxu0 0.0
    %7092 = vmatpush1.msra.mxu0 0.0
    %7093 = vmatprep.subr.mxu0 0.0
    %7094 = vmatpush1.msra.mxu0 0.0
    %7095 = vmatprep.subr.mxu0 0.0
    %7096 = vmatpush1.msra.mxu0 0.0
    %7097 = vmatprep.subr.mxu0 0.0
    %7098 = vmatpush1.msra.mxu0 0.0
    %7099 = vmatprep.subr.mxu0 0.0
    %7100 = vmatpush1.msra.mxu0 0.0
    %7101 = vmatprep.subr.mxu0 0.0
    %7102 = vmatpush1.msra.mxu0 0.0
    %7103 = vmatprep.subr.mxu0 0.0
    %7104 = vmatpush1.msra.mxu0 0.0
    %7105 = vmatprep.subr.mxu0 0.0
    %7106 = vmatpush1.msra.mxu0 0.0
    %7107 = vmatprep.subr.mxu0 0.0
    %7108 = vmatpush1.msra.mxu0 0.0
    %7109 = vmatprep.subr.mxu0 0.0
    %7110 = vmatpush1.msra.mxu0 0.0
    %7111 = vmatprep.subr.mxu0 0.0
    %7112 = vmatpush1.msra.mxu0 0.0
    %7113 = vmatprep.subr.mxu0 0.0
    %7114 = vmatpush1.msra.mxu0 0.0
    %7115 = vmatprep.subr.mxu0 0.0
    %7116 = vmatpush1.msra.mxu0 0.0
    %7117 = vmatprep.subr.mxu0 0.0
    %7118 = vmatpush1.msra.mxu0 0.0
    %7119 = vmatprep.subr.mxu0 0.0
    %7120 = vmatpush1.msra.mxu0 0.0
    %7121 = vmatprep.subr.mxu0 0.0
    %7122 = vmatpush1.msra.mxu0 0.0
    %7123 = vmatprep.subr.mxu0 0.0
    %7124 = vmatpush1.msra.mxu0 0.0
    %7125 = vmatprep.subr.mxu0 0.0
    %7126 = vmatpush1.msra.mxu0 0.0
    %7127 = vmatprep.subr.mxu0 0.0
    %7128 = vmatpush1.msra.mxu0 0.0
    %7129 = vmatprep.subr.mxu0 0.0
    %7130 = vmatpush1.msra.mxu0 0.0
    %7131 = vmatprep.subr.mxu0 0.0
    %7132 = vmatpush1.msra.mxu0 0.0
    %7133 = vmatprep.subr.mxu0 0.0
    %7134 = vmatpush1.msra.mxu0 0.0
    %7135 = vmatprep.subr.mxu0 0.0
    %7136 = vmatpush1.msra.mxu0 0.0
    %7137 = vmatprep.subr.mxu0 0.0
    %7138 = vmatpush1.msra.mxu0 0.0
    %7139 = vmatprep.subr.mxu0 0.0
    %7140 = vmatpush1.msra.mxu0 0.0
    %7141 = vmatprep.subr.mxu0 0.0
    %7142 = vmatpush1.msra.mxu0 0.0
    %7143 = vmatprep.subr.mxu0 0.0
    %7144 = vmatpush1.msra.mxu0 0.0
    %7145 = vmatprep.subr.mxu0 0.0
    %7146 = vmatpush1.msra.mxu0 0.0
    %7147 = vmatprep.subr.mxu0 0.0
    %7148 = vmatpush1.msra.mxu0 0.0
    %7149 = vmatprep.mubr.f32.mxu0 0.0
    %v7150 = vand.u32 %v6738, 4294901760
    %7151 = vmatmul.mubr.f32.gmra.mrb[0].mxu0 %v7150
    %v7152 = vpop.f32.mrb[0].mxu0
    %v7153 = vadd.f32 %v7069, %v7152
    %v7154 = vpop.f32.mrb[0].mxu0
    %7155 = vmatprep.mubr.f32.mxu0 0.0
    %v7156 = vand.u32 %v6741, 4294901760
    %7157 = vmatmul.mubr.f32.gmra.mrb[0].mxu0 %v7156
    %v7158 = vpop.f32.mrb[0].mxu0
    %v7159 = vpop.f32.mrb[0].mxu0
    %7160 = vdwg.mxu0
    %7161 = vmatprep.subr.mxu0 0.0
    %v7162 = vand.u32 %v6720, 4294901760
    %7163 = vmatpush1.msra.mxu0 %v7162
    %7164 = vmatprep.subr.mxu0 0.0
    %v7165 = vand.u32 %v6721, 4294901760
    %7166 = vmatpush1.msra.mxu0 %v7165
    %7167 = vmatprep.subr.mxu0 0.0
    %7168 = vmatpush1.msra.mxu0 0.0
    %7169 = vmatprep.subr.mxu0 0.0
    %7170 = vmatpush1.msra.mxu0 0.0
    %7171 = vmatprep.subr.mxu0 0.0
    %7172 = vmatpush1.msra.mxu0 0.0
    %7173 = vmatprep.subr.mxu0 0.0
    %7174 = vmatpush1.msra.mxu0 0.0
    %7175 = vmatprep.subr.mxu0 0.0
    %7176 = vmatpush1.msra.mxu0 0.0
    %7177 = vmatprep.subr.mxu0 0.0
    %7178 = vmatpush1.msra.mxu0 0.0
    %7179 = vmatprep.subr.mxu0 0.0
    %7180 = vmatpush1.msra.mxu0 0.0
    %7181 = vmatprep.subr.mxu0 0.0
    %7182 = vmatpush1.msra.mxu0 0.0
    %7183 = vmatprep.subr.mxu0 0.0
    %7184 = vmatpush1.msra.mxu0 0.0
    %7185 = vmatprep.subr.mxu0 0.0
    %7186 = vmatpush1.msra.mxu0 0.0
    %7187 = vmatprep.subr.mxu0 0.0
    %7188 = vmatpush1.msra.mxu0 0.0
    %7189 = vmatprep.subr.mxu0 0.0
    %7190 = vmatpush1.msra.mxu0 0.0
    %7191 = vmatprep.subr.mxu0 0.0
    %7192 = vmatpush1.msra.mxu0 0.0
    %7193 = vmatprep.subr.mxu0 0.0
    %7194 = vmatpush1.msra.mxu0 0.0
    %7195 = vmatprep.subr.mxu0 0.0
    %7196 = vmatpush1.msra.mxu0 0.0
    %7197 = vmatprep.subr.mxu0 0.0
    %7198 = vmatpush1.msra.mxu0 0.0
    %7199 = vmatprep.subr.mxu0 0.0
    %7200 = vmatpush1.msra.mxu0 0.0
    %7201 = vmatprep.subr.mxu0 0.0
    %7202 = vmatpush1.msra.mxu0 0.0
    %7203 = vmatprep.subr.mxu0 0.0
    %7204 = vmatpush1.msra.mxu0 0.0
    %7205 = vmatprep.subr.mxu0 0.0
    %7206 = vmatpush1.msra.mxu0 0.0
    %7207 = vmatprep.subr.mxu0 0.0
    %7208 = vmatpush1.msra.mxu0 0.0
    %7209 = vmatprep.subr.mxu0 0.0
    %7210 = vmatpush1.msra.mxu0 0.0
    %7211 = vmatprep.subr.mxu0 0.0
    %7212 = vmatpush1.msra.mxu0 0.0
    %7213 = vmatprep.subr.mxu0 0.0
    %7214 = vmatpush1.msra.mxu0 0.0
    %7215 = vmatprep.subr.mxu0 0.0
    %7216 = vmatpush1.msra.mxu0 0.0
    %7217 = vmatprep.subr.mxu0 0.0
    %7218 = vmatpush1.msra.mxu0 0.0
    %7219 = vmatprep.subr.mxu0 0.0
    %7220 = vmatpush1.msra.mxu0 0.0
    %7221 = vmatprep.subr.mxu0 0.0
    %7222 = vmatpush1.msra.mxu0 0.0
    %7223 = vmatprep.subr.mxu0 0.0
    %7224 = vmatpush1.msra.mxu0 0.0
    %7225 = vmatprep.subr.mxu0 0.0
    %7226 = vmatpush1.msra.mxu0 0.0
    %7227 = vmatprep.mubr.f32.mxu0 0.0
    %v7228 = vand.u32 %v6738, 4294901760
    %7229 = vmatmul.mubr.f32.gmra.mrb[0].mxu0 %v7228
    %v7230 = vpop.f32.mrb[0].mxu0
    %v7231 = vadd.f32 %v7153, %v7230
    %v7232 = vpop.f32.mrb[0].mxu0
    %7233 = vmatprep.mubr.f32.mxu0 0.0
    %v7234 = vand.u32 %v6741, 4294901760
    %7235 = vmatmul.mubr.f32.gmra.mrb[0].mxu0 %v7234
    %v7236 = vpop.f32.mrb[0].mxu0
    %v7237 = vpop.f32.mrb[0].mxu0
    %7238 = vdwg.mxu0
    %vm7239 = vcmask 122880
    %7240 = vst.msk [vmem:[#allocation2] sm:$0x1] %vm7239, %v7231
    %7242 = vrot.lane.b32.xlu0 %v7231, 112
    %v7243 = vpop.permute.xlu0 %7242
    %s7245 = scalar_lea.vmem [#allocation2], 1
    %7246 = vst.msk [vmem:[%s7245] sm:$0x1] %vm7239, %v7243
    // Predicated region
    $region22: #{tpu_custom_call.1} parent=1 // pred_check
      _
    $region23: #{tpu_custom_call.1} parent=1 // pred_check_branch
      %7248 = sbr.rel (0) target = $region25
    $region24: #{tpu_custom_call.1} parent=1 // pred_region
      %s7250 = ssub.s32 32, 32
      %7251 = vsyncadd [#allocation3], %s7250
      %s7252 = sshll.u32 [#allocation2], 4
      %s7253 = int_to_ptr.vmem [resolvable:$true] %s7252
      %7258 = dma.vmem_to_hbm [thread:$0]  %s7253, 32, %s5, [#allocation3], 16, 16, 1
    $region25: #{tpu_custom_call.1} parent=1 // pred_fallthru
      _
    // Predicated region
    $region26: #{tpu_custom_call.1} parent=1 // pred_check
      _
    $region27: #{tpu_custom_call.1} parent=1 // pred_check_branch
      %7260 = sbr.rel (0) target = $region29
    $region28: #{tpu_custom_call.1} parent=1 // pred_region
      %7261 = dma.done [#allocation3], 32
    $region29: #{tpu_custom_call.1} parent=1 // pred_fallthru
      _
    %7262 = vsyncpa [#allocation3], 1

</llo_original>
